<compile_context>
chip_gen: v7x
topology: tpu7x:2x2x1
jax: 0.10.0
libtpu: 0.0.40
codegen_flags: <defaults>
</compile_context>

<pallas_src>
import jax
import jax.numpy as jnp
from jax.experimental import pallas as pl
from jax.experimental.pallas import tpu as pltpu

BIGNET_DIM = 128      # reduced from the course's 1024 for a small, lane-aligned demo
LORA_DIM = 32
GROUP_SIZE = 16
N_BLOCKS = 6
LAYERS_PER_BLOCK = 3
N_LAYERS = N_BLOCKS * LAYERS_PER_BLOCK   # 18 QLoRALinear layers
N_LN = N_BLOCKS - 1                       # 5 LayerNorms between blocks
LN_EPS = 1e-5                             # torch.nn.LayerNorm default


# ---------------------------- Pallas kernel ----------------------------

def qlora_bignet_kernel(x_ref, wT_ref, b_ref, lnw_ref, lnb_ref, o_ref):
    """Whole-network forward for one batch tile, fully resident in VMEM.

    x_ref  : (TN, D)     f32   activation tile
    wT_ref : (18, D, D)  bf16  LoRA-folded weight, transposed to (in, out)
    b_ref  : (18, D)     f32   base bias
    lnw_ref: (5, D)      f32   LayerNorm gamma
    lnb_ref: (5, D)      f32   LayerNorm beta
    o_ref  : (TN, D)     f32
    """
    h = x_ref[...].astype(jnp.float32)
    layer = 0
    for blk in range(N_BLOCKS):
        res = h
        for j in range(LAYERS_PER_BLOCK):
            # Single bf16 MXU matmul per layer (LoRA already folded into wT),
            # f32 accumulation; bias add in f32.
            h = jnp.dot(h.astype(jnp.bfloat16), wT_ref[layer],
                        preferred_element_type=jnp.float32)
            h = h + b_ref[layer:layer + 1, :]
            if j < LAYERS_PER_BLOCK - 1:          # ReLU between the 3 linears
                h = jnp.maximum(h, 0.0)
            layer += 1
        h = h + res                               # Block residual
        if blk < N_BLOCKS - 1:                    # LayerNorm between blocks
            # One-pass statistics: var = E[h^2] - mu^2 (independent cross-lane
            # reductions). Clamp at 0: f32 cancellation can make it slightly
            # negative, which would poison rsqrt.
            mu = jnp.mean(h, axis=-1, keepdims=True)
            ms = jnp.mean(h * h, axis=-1, keepdims=True)
            var = jnp.maximum(ms - mu * mu, 0.0)
            h = ((h - mu) * jax.lax.rsqrt(var + LN_EPS)
                 * lnw_ref[blk:blk + 1, :] + lnb_ref[blk:blk + 1, :])
    o_ref[...] = h.astype(o_ref.dtype)


# ------------------------------ wrapper ------------------------------

def _invariant_spec(arr, single_buffer):
    """BlockSpec for a loop-invariant parameter (constant index_map).

    With single_buffer=True it requests Buffered(1): double-buffering a
    constant-index input gives zero overlap benefit and only doubles its
    VMEM footprint.
    """
    zeros = (0,) * arr.ndim
    idx_map = lambda i: zeros
    if single_buffer:
        return pl.BlockSpec(arr.shape, idx_map, pipeline_mode=pl.Buffered(1))
    return pl.BlockSpec(arr.shape, idx_map)


def _build_call(n_pad, d, tile_n, params, single_buffer):
    wT, b, lnw, lnb = params
    n_tiles = n_pad // tile_n
    return pl.pallas_call(
        qlora_bignet_kernel,
        out_shape=jax.ShapeDtypeStruct((n_pad, d), jnp.float32),
        grid_spec=pltpu.PrefetchScalarGridSpec(
            num_scalar_prefetch=0,
            grid=(n_tiles,),
            in_specs=[
                pl.BlockSpec((tile_n, d), lambda i: (i, 0)),
                # TODO(synk): at D=1024 switch wT to memory_space=pl.ANY and
                # stream per-layer int4 weights (see header comment).
                _invariant_spec(wT, single_buffer),
                _invariant_spec(b, single_buffer),
                _invariant_spec(lnw, single_buffer),
                _invariant_spec(lnb, single_buffer),
            ],
            out_specs=pl.BlockSpec((tile_n, d), lambda i: (i, 0)),
        ),
        compiler_params=pltpu.CompilerParams(
            dimension_semantics=("parallel",),   # batch tiles shard across TCs
        ),
    )


def auto_tile_n(n):
    """Pick the batch tile size.

    * Small batches: one tile (sublane-aligned) -> single grid step, no
      per-step pipeline overhead on single-TC v5e/v6e.
    * N >= 256: split into two 128-aligned tiles so both v7x TensorCores get
      work under the parallel grid axis, while still amortizing per-step
      overhead and the per-layer MXU weight push.
    """
    if n >= 256:
        half = -(-n // 2)                      # ceil(n / 2)
        return max(128, -(-half // 128) * 128)  # round up to multiple of 128
    return max(8, -(-n // 8) * 8)              # sublane-align tiny batches


def qlora_bignet(x, params, tile_n=None):
    """Run the fused network. Handles arbitrary N via cdiv + padding."""
    wT, b, lnw, lnb = params
    n, d = x.shape
    if tile_n is None:
        tile_n = auto_tile_n(n)
    n_tiles = pl.cdiv(n, tile_n)
    n_pad = n_tiles * tile_n
    x_p = x if n_pad == n else jnp.pad(x, ((0, n_pad - n), (0, 0)))

    try:
        call = _build_call(n_pad, d, tile_n, params, single_buffer=True)
        out = call(x_p, wT, b, lnw, lnb)
    except Exception:
        # Fallback for jax versions without BlockSpec(pipeline_mode=...):
        # default double-buffered invariants (correct, ~0.6 MiB extra VMEM
        # at D=128).
        call = _build_call(n_pad, d, tile_n, params, single_buffer=False)
        out = call(x_p, wT, b, lnw, lnb)
    return out[:n] if n_pad != n else out


# ---------------- parameter setup & reference (plain JAX glue) ----------------

def quantize_dequantize_4bit(w, group_size):
    """Emulates Linear4Bit storage: per-group symmetric absmax int4 quantize,
    then dequantize back to fp32 (forward math of F.linear w/ dequant weight)."""
    out_f, in_f = w.shape
    g = w.reshape(-1, group_size)
    norm = jnp.max(jnp.abs(g), axis=-1, keepdims=True)
    norm = jnp.where(norm == 0, 1.0, norm)
    q = jnp.clip(jnp.round(g / norm * 7.0), -8.0, 7.0)
    deq = q / 7.0 * norm
    return deq.reshape(out_f, in_f)


def init_params(key):
    """Per-layer *unfused* parameters mirroring the torch module layout."""
    D, R = BIGNET_DIM, LORA_DIM
    bound = 1.0 / (D ** 0.5)   # kaiming_uniform(a=sqrt(5)) bound for fan_in = D
    w_l, b_l, a_l, lb_l = [], [], [], []
    for _ in range(N_LAYERS):
        key, kw, kb, ka, kB = jax.random.split(key, 5)
        w = jax.random.uniform(kw, (D, D), jnp.float32, -bound, bound)   # (out, in)
        w = quantize_dequantize_4bit(w, GROUP_SIZE)
        bias = jax.random.uniform(kb, (D,), jnp.float32, -bound, bound)
        a = jax.random.uniform(ka, (R, D), jnp.float32, -bound, bound)   # lora_a.weight (R, in)
        # The torch module inits lora_b to zeros; use small nonzero values
        # here so the folded LoRA path is actually exercised by the check.
        lb = jax.random.uniform(kB, (D, R), jnp.float32, -0.05, 0.05)    # lora_b.weight (out, R)
        w_l.append(w); b_l.append(bias); a_l.append(a); lb_l.append(lb)
    return {
        "w": jnp.stack(w_l),                        # (18, D, D)  dequantized base
        "b": jnp.stack(b_l),                        # (18, D)
        "a": jnp.stack(a_l),                        # (18, R, D)
        "lb": jnp.stack(lb_l),                      # (18, D, R)
        "lnw": jnp.ones((N_LN, BIGNET_DIM), jnp.float32),   # 2-D: no sublane padding
        "lnb": jnp.zeros((N_LN, BIGNET_DIM), jnp.float32),
    }


def fold_params(p):
    """Fold LoRA into the base weight: W_eff = W_deq + lora_b @ lora_a.
    Kernel consumes W_eff^T (in, out) in bf16; bias / LN params stay f32 2-D."""
    w_eff = p["w"] + jnp.einsum("lor,lri->loi", p["lb"], p["a"])   # (18, out, in)
    wT = jnp.transpose(w_eff, (0, 2, 1)).astype(jnp.bfloat16)       # (18, in, out)
    return wT, p["b"], p["lnw"], p["lnb"]


def reference_forward(x, p):
    """Unfused f32 reference following the torch module exactly:
    base = F.linear(x, W_deq, b); lora = lora_b(lora_a(x)); out = base + lora."""
    h = x.astype(jnp.float32)
    layer = 0
    for blk in range(N_BLOCKS):
        res = h
        for j in range(LAYERS_PER_BLOCK):
            base = h @ p["w"][layer].T + p["b"][layer]
            lora = (h @ p["a"][layer].T) @ p["lb"][layer].T
            h = base + lora
            if j < LAYERS_PER_BLOCK - 1:
                h = jnp.maximum(h, 0.0)
            layer += 1
        h = h + res
        if blk < N_BLOCKS - 1:
            mu = jnp.mean(h, axis=-1, keepdims=True)
            var = jnp.mean(jnp.square(h - mu), axis=-1, keepdims=True)
            h = (h - mu) * jax.lax.rsqrt(var + LN_EPS) * p["lnw"][blk] + p["lnb"][blk]
    return h


if __name__ == "__main__":
    key = jax.random.PRNGKey(0)
    kx, kp = jax.random.split(key)
    N = 256                      # auto_tile_n -> 2 tiles of 128, both v7x TCs busy
    x = jax.random.normal(kx, (N, BIGNET_DIM), jnp.float32)

    raw = init_params(kp)
    params = fold_params(raw)

    out = jax.block_until_ready(qlora_bignet(x, params))
    ref = reference_forward(x, raw)

    assert out.shape == (N, BIGNET_DIM)
    assert bool(jnp.all(jnp.isfinite(out)))
    # Kernel runs bf16 matmul inputs (f32 accum) on LoRA-folded weights; the
    # reference is the unfused f32 torch-style path. Expected drift over the
    # 18 layers is ~1e-2 mean; real bugs (wrong transpose, dropped LoRA, bad
    # LayerNorm) produce O(1) errors, so these tolerances remain meaningful.
    abs_err = jnp.abs(out - ref)
    mean_err = float(jnp.mean(abs_err))
    max_err = float(jnp.max(abs_err))
    assert mean_err < 3e-2, f"mean abs err {mean_err}"
    assert max_err < 2.5e-1, f"max abs err {max_err}"
    print("KERNEL_OK")
</pallas_src>

<mosaic_0001>
module attributes {stable_mosaic.version = 11 : i64} {
  func.func @qlora_bignet_kernel(%arg0: i32, %arg1: memref<128x128xf32, #tpu.memory_space<vmem>>, %arg2: memref<18x128x128xbf16, #tpu.memory_space<vmem>>, %arg3: memref<18x128xf32, #tpu.memory_space<vmem>>, %arg4: memref<5x128xf32, #tpu.memory_space<vmem>>, %arg5: memref<5x128xf32, #tpu.memory_space<vmem>>, %arg6: memref<128x128xf32, #tpu.memory_space<vmem>>) attributes {dimension_semantics = [#tpu.dimension_semantics<parallel>], iteration_bounds = array<i64: 2>, scalar_prefetch = 0 : i64, scratch_operands = 0 : i64, tpu.core_type = #tpu.core_type<tc>, window_params = [{transform_indices = @transform_0, window_bounds = array<i64: 128, 128>}, {pipeline_mode = #tpu.pipeline_mode<synchronous>, transform_indices = @transform_1, window_bounds = array<i64: 18, 128, 128>}, {pipeline_mode = #tpu.pipeline_mode<synchronous>, transform_indices = @transform_2, window_bounds = array<i64: 18, 128>}, {pipeline_mode = #tpu.pipeline_mode<synchronous>, transform_indices = @transform_3, window_bounds = array<i64: 5, 128>}, {pipeline_mode = #tpu.pipeline_mode<synchronous>, transform_indices = @transform_4, window_bounds = array<i64: 5, 128>}, {transform_indices = @transform_5, window_bounds = array<i64: 128, 128>}]} {
    %c0 = arith.constant 0 : index
    %c0_0 = arith.constant 0 : index
    %0 = vector.load %arg1[%c0, %c0_0] : memref<128x128xf32, #tpu.memory_space<vmem>>, vector<128x128xf32>
    %1 = arith.truncf %0 : vector<128x128xf32> to vector<128x128xbf16>
    %c0_1 = arith.constant 0 : index
    %c0_2 = arith.constant 0 : index
    %c0_3 = arith.constant 0 : index
    %2 = vector.load %arg2[%c0_1, %c0_2, %c0_3] : memref<18x128x128xbf16, #tpu.memory_space<vmem>>, vector<1x128x128xbf16>
    %3 = vector.shape_cast %2 : vector<1x128x128xbf16> to vector<128x128xbf16>
    %cst = arith.constant dense<0.000000e+00> : vector<128x128xf32>
    %4 = tpu.matmul %1, %3, %cst {dimension_numbers = #tpu.dot_dimension_numbers<[1], [0], [0], [1], [0, 0, 1, 1], [], []>} : vector<128x128xbf16>, vector<128x128xbf16>, vector<128x128xf32> -> vector<128x128xf32>
    %c0_4 = arith.constant 0 : index
    %c0_5 = arith.constant 0 : index
    %5 = vector.load %arg3[%c0_4, %c0_5] : memref<18x128xf32, #tpu.memory_space<vmem>>, vector<1x128xf32>
    %6 = vector.broadcast %5 : vector<1x128xf32> to vector<128x128xf32>
    %7 = arith.addf %4, %6 : vector<128x128xf32>
    %cst_6 = arith.constant 0.000000e+00 : f32
    %8 = vector.broadcast %cst_6 : f32 to vector<128x128xf32>
    %9 = arith.maximumf %7, %8 : vector<128x128xf32>
    %10 = arith.truncf %9 : vector<128x128xf32> to vector<128x128xbf16>
    %c1 = arith.constant 1 : index
    %c0_7 = arith.constant 0 : index
    %c0_8 = arith.constant 0 : index
    %11 = vector.load %arg2[%c1, %c0_7, %c0_8] : memref<18x128x128xbf16, #tpu.memory_space<vmem>>, vector<1x128x128xbf16>
    %12 = vector.shape_cast %11 : vector<1x128x128xbf16> to vector<128x128xbf16>
    %cst_9 = arith.constant dense<0.000000e+00> : vector<128x128xf32>
    %13 = tpu.matmul %10, %12, %cst_9 {dimension_numbers = #tpu.dot_dimension_numbers<[1], [0], [0], [1], [0, 0, 1, 1], [], []>} : vector<128x128xbf16>, vector<128x128xbf16>, vector<128x128xf32> -> vector<128x128xf32>
    %c1_10 = arith.constant 1 : index
    %c0_11 = arith.constant 0 : index
    %14 = vector.load %arg3[%c1_10, %c0_11] : memref<18x128xf32, #tpu.memory_space<vmem>>, vector<1x128xf32>
    %15 = vector.broadcast %14 : vector<1x128xf32> to vector<128x128xf32>
    %16 = arith.addf %13, %15 : vector<128x128xf32>
    %cst_12 = arith.constant 0.000000e+00 : f32
    %17 = vector.broadcast %cst_12 : f32 to vector<128x128xf32>
    %18 = arith.maximumf %16, %17 : vector<128x128xf32>
    %19 = arith.truncf %18 : vector<128x128xf32> to vector<128x128xbf16>
    %c2 = arith.constant 2 : index
    %c0_13 = arith.constant 0 : index
    %c0_14 = arith.constant 0 : index
    %20 = vector.load %arg2[%c2, %c0_13, %c0_14] : memref<18x128x128xbf16, #tpu.memory_space<vmem>>, vector<1x128x128xbf16>
    %21 = vector.shape_cast %20 : vector<1x128x128xbf16> to vector<128x128xbf16>
    %cst_15 = arith.constant dense<0.000000e+00> : vector<128x128xf32>
    %22 = tpu.matmul %19, %21, %cst_15 {dimension_numbers = #tpu.dot_dimension_numbers<[1], [0], [0], [1], [0, 0, 1, 1], [], []>} : vector<128x128xbf16>, vector<128x128xbf16>, vector<128x128xf32> -> vector<128x128xf32>
    %c2_16 = arith.constant 2 : index
    %c0_17 = arith.constant 0 : index
    %23 = vector.load %arg3[%c2_16, %c0_17] : memref<18x128xf32, #tpu.memory_space<vmem>>, vector<1x128xf32>
    %24 = vector.broadcast %23 : vector<1x128xf32> to vector<128x128xf32>
    %25 = arith.addf %22, %24 : vector<128x128xf32>
    %26 = arith.addf %25, %0 : vector<128x128xf32>
    %cst_18 = arith.constant dense<0.000000e+00> : vector<128xf32>
    %27 = vector.multi_reduction <add>, %26, %cst_18 [1] : vector<128x128xf32> to vector<128xf32>
    %28 = vector.shape_cast %27 : vector<128xf32> to vector<128x1xf32>
    %cst_19 = arith.constant 1.280000e+02 : f32
    %29 = vector.broadcast %cst_19 : f32 to vector<128x1xf32>
    %30 = arith.divf %28, %29 : vector<128x1xf32>
    %31 = arith.mulf %26, %26 : vector<128x128xf32>
    %cst_20 = arith.constant dense<0.000000e+00> : vector<128xf32>
    %32 = vector.multi_reduction <add>, %31, %cst_20 [1] : vector<128x128xf32> to vector<128xf32>
    %33 = vector.shape_cast %32 : vector<128xf32> to vector<128x1xf32>
    %cst_21 = arith.constant 1.280000e+02 : f32
    %34 = vector.broadcast %cst_21 : f32 to vector<128x1xf32>
    %35 = arith.divf %33, %34 : vector<128x1xf32>
    %36 = arith.mulf %30, %30 : vector<128x1xf32>
    %37 = arith.subf %35, %36 : vector<128x1xf32>
    %cst_22 = arith.constant 0.000000e+00 : f32
    %38 = vector.broadcast %cst_22 : f32 to vector<128x1xf32>
    %39 = arith.maximumf %37, %38 : vector<128x1xf32>
    %40 = vector.broadcast %30 : vector<128x1xf32> to vector<128x128xf32>
    %41 = arith.subf %26, %40 : vector<128x128xf32>
    %cst_23 = arith.constant 9.99999974E-6 : f32
    %42 = vector.broadcast %cst_23 : f32 to vector<128x1xf32>
    %43 = arith.addf %39, %42 : vector<128x1xf32>
    %44 = math.rsqrt %43 : vector<128x1xf32>
    %45 = vector.broadcast %44 : vector<128x1xf32> to vector<128x128xf32>
    %46 = arith.mulf %41, %45 : vector<128x128xf32>
    %c0_24 = arith.constant 0 : index
    %c0_25 = arith.constant 0 : index
    %47 = vector.load %arg4[%c0_24, %c0_25] : memref<5x128xf32, #tpu.memory_space<vmem>>, vector<1x128xf32>
    %48 = vector.broadcast %47 : vector<1x128xf32> to vector<128x128xf32>
    %49 = arith.mulf %46, %48 : vector<128x128xf32>
    %c0_26 = arith.constant 0 : index
    %c0_27 = arith.constant 0 : index
    %50 = vector.load %arg5[%c0_26, %c0_27] : memref<5x128xf32, #tpu.memory_space<vmem>>, vector<1x128xf32>
    %51 = vector.broadcast %50 : vector<1x128xf32> to vector<128x128xf32>
    %52 = arith.addf %49, %51 : vector<128x128xf32>
    %53 = arith.truncf %52 : vector<128x128xf32> to vector<128x128xbf16>
    %c3 = arith.constant 3 : index
    %c0_28 = arith.constant 0 : index
    %c0_29 = arith.constant 0 : index
    %54 = vector.load %arg2[%c3, %c0_28, %c0_29] : memref<18x128x128xbf16, #tpu.memory_space<vmem>>, vector<1x128x128xbf16>
    %55 = vector.shape_cast %54 : vector<1x128x128xbf16> to vector<128x128xbf16>
    %cst_30 = arith.constant dense<0.000000e+00> : vector<128x128xf32>
    %56 = tpu.matmul %53, %55, %cst_30 {dimension_numbers = #tpu.dot_dimension_numbers<[1], [0], [0], [1], [0, 0, 1, 1], [], []>} : vector<128x128xbf16>, vector<128x128xbf16>, vector<128x128xf32> -> vector<128x128xf32>
    %c3_31 = arith.constant 3 : index
    %c0_32 = arith.constant 0 : index
    %57 = vector.load %arg3[%c3_31, %c0_32] : memref<18x128xf32, #tpu.memory_space<vmem>>, vector<1x128xf32>
    %58 = vector.broadcast %57 : vector<1x128xf32> to vector<128x128xf32>
    %59 = arith.addf %56, %58 : vector<128x128xf32>
    %cst_33 = arith.constant 0.000000e+00 : f32
    %60 = vector.broadcast %cst_33 : f32 to vector<128x128xf32>
    %61 = arith.maximumf %59, %60 : vector<128x128xf32>
    %62 = arith.truncf %61 : vector<128x128xf32> to vector<128x128xbf16>
    %c4 = arith.constant 4 : index
    %c0_34 = arith.constant 0 : index
    %c0_35 = arith.constant 0 : index
    %63 = vector.load %arg2[%c4, %c0_34, %c0_35] : memref<18x128x128xbf16, #tpu.memory_space<vmem>>, vector<1x128x128xbf16>
    %64 = vector.shape_cast %63 : vector<1x128x128xbf16> to vector<128x128xbf16>
    %cst_36 = arith.constant dense<0.000000e+00> : vector<128x128xf32>
    %65 = tpu.matmul %62, %64, %cst_36 {dimension_numbers = #tpu.dot_dimension_numbers<[1], [0], [0], [1], [0, 0, 1, 1], [], []>} : vector<128x128xbf16>, vector<128x128xbf16>, vector<128x128xf32> -> vector<128x128xf32>
    %c4_37 = arith.constant 4 : index
    %c0_38 = arith.constant 0 : index
    %66 = vector.load %arg3[%c4_37, %c0_38] : memref<18x128xf32, #tpu.memory_space<vmem>>, vector<1x128xf32>
    %67 = vector.broadcast %66 : vector<1x128xf32> to vector<128x128xf32>
    %68 = arith.addf %65, %67 : vector<128x128xf32>
    %cst_39 = arith.constant 0.000000e+00 : f32
    %69 = vector.broadcast %cst_39 : f32 to vector<128x128xf32>
    %70 = arith.maximumf %68, %69 : vector<128x128xf32>
    %71 = arith.truncf %70 : vector<128x128xf32> to vector<128x128xbf16>
    %c5 = arith.constant 5 : index
    %c0_40 = arith.constant 0 : index
    %c0_41 = arith.constant 0 : index
    %72 = vector.load %arg2[%c5, %c0_40, %c0_41] : memref<18x128x128xbf16, #tpu.memory_space<vmem>>, vector<1x128x128xbf16>
    %73 = vector.shape_cast %72 : vector<1x128x128xbf16> to vector<128x128xbf16>
    %cst_42 = arith.constant dense<0.000000e+00> : vector<128x128xf32>
    %74 = tpu.matmul %71, %73, %cst_42 {dimension_numbers = #tpu.dot_dimension_numbers<[1], [0], [0], [1], [0, 0, 1, 1], [], []>} : vector<128x128xbf16>, vector<128x128xbf16>, vector<128x128xf32> -> vector<128x128xf32>
    %c5_43 = arith.constant 5 : index
    %c0_44 = arith.constant 0 : index
    %75 = vector.load %arg3[%c5_43, %c0_44] : memref<18x128xf32, #tpu.memory_space<vmem>>, vector<1x128xf32>
    %76 = vector.broadcast %75 : vector<1x128xf32> to vector<128x128xf32>
    %77 = arith.addf %74, %76 : vector<128x128xf32>
    %78 = arith.addf %77, %52 : vector<128x128xf32>
    %cst_45 = arith.constant dense<0.000000e+00> : vector<128xf32>
    %79 = vector.multi_reduction <add>, %78, %cst_45 [1] : vector<128x128xf32> to vector<128xf32>
    %80 = vector.shape_cast %79 : vector<128xf32> to vector<128x1xf32>
    %cst_46 = arith.constant 1.280000e+02 : f32
    %81 = vector.broadcast %cst_46 : f32 to vector<128x1xf32>
    %82 = arith.divf %80, %81 : vector<128x1xf32>
    %83 = arith.mulf %78, %78 : vector<128x128xf32>
    %cst_47 = arith.constant dense<0.000000e+00> : vector<128xf32>
    %84 = vector.multi_reduction <add>, %83, %cst_47 [1] : vector<128x128xf32> to vector<128xf32>
    %85 = vector.shape_cast %84 : vector<128xf32> to vector<128x1xf32>
    %cst_48 = arith.constant 1.280000e+02 : f32
    %86 = vector.broadcast %cst_48 : f32 to vector<128x1xf32>
    %87 = arith.divf %85, %86 : vector<128x1xf32>
    %88 = arith.mulf %82, %82 : vector<128x1xf32>
    %89 = arith.subf %87, %88 : vector<128x1xf32>
    %cst_49 = arith.constant 0.000000e+00 : f32
    %90 = vector.broadcast %cst_49 : f32 to vector<128x1xf32>
    %91 = arith.maximumf %89, %90 : vector<128x1xf32>
    %92 = vector.broadcast %82 : vector<128x1xf32> to vector<128x128xf32>
    %93 = arith.subf %78, %92 : vector<128x128xf32>
    %cst_50 = arith.constant 9.99999974E-6 : f32
    %94 = vector.broadcast %cst_50 : f32 to vector<128x1xf32>
    %95 = arith.addf %91, %94 : vector<128x1xf32>
    %96 = math.rsqrt %95 : vector<128x1xf32>
    %97 = vector.broadcast %96 : vector<128x1xf32> to vector<128x128xf32>
    %98 = arith.mulf %93, %97 : vector<128x128xf32>
    %c1_51 = arith.constant 1 : index
    %c0_52 = arith.constant 0 : index
    %99 = vector.load %arg4[%c1_51, %c0_52] : memref<5x128xf32, #tpu.memory_space<vmem>>, vector<1x128xf32>
    %100 = vector.broadcast %99 : vector<1x128xf32> to vector<128x128xf32>
    %101 = arith.mulf %98, %100 : vector<128x128xf32>
    %c1_53 = arith.constant 1 : index
    %c0_54 = arith.constant 0 : index
    %102 = vector.load %arg5[%c1_53, %c0_54] : memref<5x128xf32, #tpu.memory_space<vmem>>, vector<1x128xf32>
    %103 = vector.broadcast %102 : vector<1x128xf32> to vector<128x128xf32>
    %104 = arith.addf %101, %103 : vector<128x128xf32>
    %105 = arith.truncf %104 : vector<128x128xf32> to vector<128x128xbf16>
    %c6 = arith.constant 6 : index
    %c0_55 = arith.constant 0 : index
    %c0_56 = arith.constant 0 : index
    %106 = vector.load %arg2[%c6, %c0_55, %c0_56] : memref<18x128x128xbf16, #tpu.memory_space<vmem>>, vector<1x128x128xbf16>
    %107 = vector.shape_cast %106 : vector<1x128x128xbf16> to vector<128x128xbf16>
    %cst_57 = arith.constant dense<0.000000e+00> : vector<128x128xf32>
    %108 = tpu.matmul %105, %107, %cst_57 {dimension_numbers = #tpu.dot_dimension_numbers<[1], [0], [0], [1], [0, 0, 1, 1], [], []>} : vector<128x128xbf16>, vector<128x128xbf16>, vector<128x128xf32> -> vector<128x128xf32>
    %c6_58 = arith.constant 6 : index
    %c0_59 = arith.constant 0 : index
    %109 = vector.load %arg3[%c6_58, %c0_59] : memref<18x128xf32, #tpu.memory_space<vmem>>, vector<1x128xf32>
    %110 = vector.broadcast %109 : vector<1x128xf32> to vector<128x128xf32>
    %111 = arith.addf %108, %110 : vector<128x128xf32>
    %cst_60 = arith.constant 0.000000e+00 : f32
    %112 = vector.broadcast %cst_60 : f32 to vector<128x128xf32>
    %113 = arith.maximumf %111, %112 : vector<128x128xf32>
    %114 = arith.truncf %113 : vector<128x128xf32> to vector<128x128xbf16>
    %c7 = arith.constant 7 : index
    %c0_61 = arith.constant 0 : index
    %c0_62 = arith.constant 0 : index
    %115 = vector.load %arg2[%c7, %c0_61, %c0_62] : memref<18x128x128xbf16, #tpu.memory_space<vmem>>, vector<1x128x128xbf16>
    %116 = vector.shape_cast %115 : vector<1x128x128xbf16> to vector<128x128xbf16>
    %cst_63 = arith.constant dense<0.000000e+00> : vector<128x128xf32>
    %117 = tpu.matmul %114, %116, %cst_63 {dimension_numbers = #tpu.dot_dimension_numbers<[1], [0], [0], [1], [0, 0, 1, 1], [], []>} : vector<128x128xbf16>, vector<128x128xbf16>, vector<128x128xf32> -> vector<128x128xf32>
    %c7_64 = arith.constant 7 : index
    %c0_65 = arith.constant 0 : index
    %118 = vector.load %arg3[%c7_64, %c0_65] : memref<18x128xf32, #tpu.memory_space<vmem>>, vector<1x128xf32>
    %119 = vector.broadcast %118 : vector<1x128xf32> to vector<128x128xf32>
    %120 = arith.addf %117, %119 : vector<128x128xf32>
    %cst_66 = arith.constant 0.000000e+00 : f32
    %121 = vector.broadcast %cst_66 : f32 to vector<128x128xf32>
    %122 = arith.maximumf %120, %121 : vector<128x128xf32>
    %123 = arith.truncf %122 : vector<128x128xf32> to vector<128x128xbf16>
    %c8 = arith.constant 8 : index
    %c0_67 = arith.constant 0 : index
    %c0_68 = arith.constant 0 : index
    %124 = vector.load %arg2[%c8, %c0_67, %c0_68] : memref<18x128x128xbf16, #tpu.memory_space<vmem>>, vector<1x128x128xbf16>
    %125 = vector.shape_cast %124 : vector<1x128x128xbf16> to vector<128x128xbf16>
    %cst_69 = arith.constant dense<0.000000e+00> : vector<128x128xf32>
    %126 = tpu.matmul %123, %125, %cst_69 {dimension_numbers = #tpu.dot_dimension_numbers<[1], [0], [0], [1], [0, 0, 1, 1], [], []>} : vector<128x128xbf16>, vector<128x128xbf16>, vector<128x128xf32> -> vector<128x128xf32>
    %c8_70 = arith.constant 8 : index
    %c0_71 = arith.constant 0 : index
    %127 = vector.load %arg3[%c8_70, %c0_71] : memref<18x128xf32, #tpu.memory_space<vmem>>, vector<1x128xf32>
    %128 = vector.broadcast %127 : vector<1x128xf32> to vector<128x128xf32>
    %129 = arith.addf %126, %128 : vector<128x128xf32>
    %130 = arith.addf %129, %104 : vector<128x128xf32>
    %cst_72 = arith.constant dense<0.000000e+00> : vector<128xf32>
    %131 = vector.multi_reduction <add>, %130, %cst_72 [1] : vector<128x128xf32> to vector<128xf32>
    %132 = vector.shape_cast %131 : vector<128xf32> to vector<128x1xf32>
    %cst_73 = arith.constant 1.280000e+02 : f32
    %133 = vector.broadcast %cst_73 : f32 to vector<128x1xf32>
    %134 = arith.divf %132, %133 : vector<128x1xf32>
    %135 = arith.mulf %130, %130 : vector<128x128xf32>
    %cst_74 = arith.constant dense<0.000000e+00> : vector<128xf32>
    %136 = vector.multi_reduction <add>, %135, %cst_74 [1] : vector<128x128xf32> to vector<128xf32>
    %137 = vector.shape_cast %136 : vector<128xf32> to vector<128x1xf32>
    %cst_75 = arith.constant 1.280000e+02 : f32
    %138 = vector.broadcast %cst_75 : f32 to vector<128x1xf32>
    %139 = arith.divf %137, %138 : vector<128x1xf32>
    %140 = arith.mulf %134, %134 : vector<128x1xf32>
    %141 = arith.subf %139, %140 : vector<128x1xf32>
    %cst_76 = arith.constant 0.000000e+00 : f32
    %142 = vector.broadcast %cst_76 : f32 to vector<128x1xf32>
    %143 = arith.maximumf %141, %142 : vector<128x1xf32>
    %144 = vector.broadcast %134 : vector<128x1xf32> to vector<128x128xf32>
    %145 = arith.subf %130, %144 : vector<128x128xf32>
    %cst_77 = arith.constant 9.99999974E-6 : f32
    %146 = vector.broadcast %cst_77 : f32 to vector<128x1xf32>
    %147 = arith.addf %143, %146 : vector<128x1xf32>
    %148 = math.rsqrt %147 : vector<128x1xf32>
    %149 = vector.broadcast %148 : vector<128x1xf32> to vector<128x128xf32>
    %150 = arith.mulf %145, %149 : vector<128x128xf32>
    %c2_78 = arith.constant 2 : index
    %c0_79 = arith.constant 0 : index
    %151 = vector.load %arg4[%c2_78, %c0_79] : memref<5x128xf32, #tpu.memory_space<vmem>>, vector<1x128xf32>
    %152 = vector.broadcast %151 : vector<1x128xf32> to vector<128x128xf32>
    %153 = arith.mulf %150, %152 : vector<128x128xf32>
    %c2_80 = arith.constant 2 : index
    %c0_81 = arith.constant 0 : index
    %154 = vector.load %arg5[%c2_80, %c0_81] : memref<5x128xf32, #tpu.memory_space<vmem>>, vector<1x128xf32>
    %155 = vector.broadcast %154 : vector<1x128xf32> to vector<128x128xf32>
    %156 = arith.addf %153, %155 : vector<128x128xf32>
    %157 = arith.truncf %156 : vector<128x128xf32> to vector<128x128xbf16>
    %c9 = arith.constant 9 : index
    %c0_82 = arith.constant 0 : index
    %c0_83 = arith.constant 0 : index
    %158 = vector.load %arg2[%c9, %c0_82, %c0_83] : memref<18x128x128xbf16, #tpu.memory_space<vmem>>, vector<1x128x128xbf16>
    %159 = vector.shape_cast %158 : vector<1x128x128xbf16> to vector<128x128xbf16>
    %cst_84 = arith.constant dense<0.000000e+00> : vector<128x128xf32>
    %160 = tpu.matmul %157, %159, %cst_84 {dimension_numbers = #tpu.dot_dimension_numbers<[1], [0], [0], [1], [0, 0, 1, 1], [], []>} : vector<128x128xbf16>, vector<128x128xbf16>, vector<128x128xf32> -> vector<128x128xf32>
    %c9_85 = arith.constant 9 : index
    %c0_86 = arith.constant 0 : index
    %161 = vector.load %arg3[%c9_85, %c0_86] : memref<18x128xf32, #tpu.memory_space<vmem>>, vector<1x128xf32>
    %162 = vector.broadcast %161 : vector<1x128xf32> to vector<128x128xf32>
    %163 = arith.addf %160, %162 : vector<128x128xf32>
    %cst_87 = arith.constant 0.000000e+00 : f32
    %164 = vector.broadcast %cst_87 : f32 to vector<128x128xf32>
    %165 = arith.maximumf %163, %164 : vector<128x128xf32>
    %166 = arith.truncf %165 : vector<128x128xf32> to vector<128x128xbf16>
    %c10 = arith.constant 10 : index
    %c0_88 = arith.constant 0 : index
    %c0_89 = arith.constant 0 : index
    %167 = vector.load %arg2[%c10, %c0_88, %c0_89] : memref<18x128x128xbf16, #tpu.memory_space<vmem>>, vector<1x128x128xbf16>
    %168 = vector.shape_cast %167 : vector<1x128x128xbf16> to vector<128x128xbf16>
    %cst_90 = arith.constant dense<0.000000e+00> : vector<128x128xf32>
    %169 = tpu.matmul %166, %168, %cst_90 {dimension_numbers = #tpu.dot_dimension_numbers<[1], [0], [0], [1], [0, 0, 1, 1], [], []>} : vector<128x128xbf16>, vector<128x128xbf16>, vector<128x128xf32> -> vector<128x128xf32>
    %c10_91 = arith.constant 10 : index
    %c0_92 = arith.constant 0 : index
    %170 = vector.load %arg3[%c10_91, %c0_92] : memref<18x128xf32, #tpu.memory_space<vmem>>, vector<1x128xf32>
    %171 = vector.broadcast %170 : vector<1x128xf32> to vector<128x128xf32>
    %172 = arith.addf %169, %171 : vector<128x128xf32>
    %cst_93 = arith.constant 0.000000e+00 : f32
    %173 = vector.broadcast %cst_93 : f32 to vector<128x128xf32>
    %174 = arith.maximumf %172, %173 : vector<128x128xf32>
    %175 = arith.truncf %174 : vector<128x128xf32> to vector<128x128xbf16>
    %c11 = arith.constant 11 : index
    %c0_94 = arith.constant 0 : index
    %c0_95 = arith.constant 0 : index
    %176 = vector.load %arg2[%c11, %c0_94, %c0_95] : memref<18x128x128xbf16, #tpu.memory_space<vmem>>, vector<1x128x128xbf16>
    %177 = vector.shape_cast %176 : vector<1x128x128xbf16> to vector<128x128xbf16>
    %cst_96 = arith.constant dense<0.000000e+00> : vector<128x128xf32>
    %178 = tpu.matmul %175, %177, %cst_96 {dimension_numbers = #tpu.dot_dimension_numbers<[1], [0], [0], [1], [0, 0, 1, 1], [], []>} : vector<128x128xbf16>, vector<128x128xbf16>, vector<128x128xf32> -> vector<128x128xf32>
    %c11_97 = arith.constant 11 : index
    %c0_98 = arith.constant 0 : index
    %179 = vector.load %arg3[%c11_97, %c0_98] : memref<18x128xf32, #tpu.memory_space<vmem>>, vector<1x128xf32>
    %180 = vector.broadcast %179 : vector<1x128xf32> to vector<128x128xf32>
    %181 = arith.addf %178, %180 : vector<128x128xf32>
    %182 = arith.addf %181, %156 : vector<128x128xf32>
    %cst_99 = arith.constant dense<0.000000e+00> : vector<128xf32>
    %183 = vector.multi_reduction <add>, %182, %cst_99 [1] : vector<128x128xf32> to vector<128xf32>
    %184 = vector.shape_cast %183 : vector<128xf32> to vector<128x1xf32>
    %cst_100 = arith.constant 1.280000e+02 : f32
    %185 = vector.broadcast %cst_100 : f32 to vector<128x1xf32>
    %186 = arith.divf %184, %185 : vector<128x1xf32>
    %187 = arith.mulf %182, %182 : vector<128x128xf32>
    %cst_101 = arith.constant dense<0.000000e+00> : vector<128xf32>
    %188 = vector.multi_reduction <add>, %187, %cst_101 [1] : vector<128x128xf32> to vector<128xf32>
    %189 = vector.shape_cast %188 : vector<128xf32> to vector<128x1xf32>
    %cst_102 = arith.constant 1.280000e+02 : f32
    %190 = vector.broadcast %cst_102 : f32 to vector<128x1xf32>
    %191 = arith.divf %189, %190 : vector<128x1xf32>
    %192 = arith.mulf %186, %186 : vector<128x1xf32>
    %193 = arith.subf %191, %192 : vector<128x1xf32>
    %cst_103 = arith.constant 0.000000e+00 : f32
    %194 = vector.broadcast %cst_103 : f32 to vector<128x1xf32>
    %195 = arith.maximumf %193, %194 : vector<128x1xf32>
    %196 = vector.broadcast %186 : vector<128x1xf32> to vector<128x128xf32>
    %197 = arith.subf %182, %196 : vector<128x128xf32>
    %cst_104 = arith.constant 9.99999974E-6 : f32
    %198 = vector.broadcast %cst_104 : f32 to vector<128x1xf32>
    %199 = arith.addf %195, %198 : vector<128x1xf32>
    %200 = math.rsqrt %199 : vector<128x1xf32>
    %201 = vector.broadcast %200 : vector<128x1xf32> to vector<128x128xf32>
    %202 = arith.mulf %197, %201 : vector<128x128xf32>
    %c3_105 = arith.constant 3 : index
    %c0_106 = arith.constant 0 : index
    %203 = vector.load %arg4[%c3_105, %c0_106] : memref<5x128xf32, #tpu.memory_space<vmem>>, vector<1x128xf32>
    %204 = vector.broadcast %203 : vector<1x128xf32> to vector<128x128xf32>
    %205 = arith.mulf %202, %204 : vector<128x128xf32>
    %c3_107 = arith.constant 3 : index
    %c0_108 = arith.constant 0 : index
    %206 = vector.load %arg5[%c3_107, %c0_108] : memref<5x128xf32, #tpu.memory_space<vmem>>, vector<1x128xf32>
    %207 = vector.broadcast %206 : vector<1x128xf32> to vector<128x128xf32>
    %208 = arith.addf %205, %207 : vector<128x128xf32>
    %209 = arith.truncf %208 : vector<128x128xf32> to vector<128x128xbf16>
    %c12 = arith.constant 12 : index
    %c0_109 = arith.constant 0 : index
    %c0_110 = arith.constant 0 : index
    %210 = vector.load %arg2[%c12, %c0_109, %c0_110] : memref<18x128x128xbf16, #tpu.memory_space<vmem>>, vector<1x128x128xbf16>
    %211 = vector.shape_cast %210 : vector<1x128x128xbf16> to vector<128x128xbf16>
    %cst_111 = arith.constant dense<0.000000e+00> : vector<128x128xf32>
    %212 = tpu.matmul %209, %211, %cst_111 {dimension_numbers = #tpu.dot_dimension_numbers<[1], [0], [0], [1], [0, 0, 1, 1], [], []>} : vector<128x128xbf16>, vector<128x128xbf16>, vector<128x128xf32> -> vector<128x128xf32>
    %c12_112 = arith.constant 12 : index
    %c0_113 = arith.constant 0 : index
    %213 = vector.load %arg3[%c12_112, %c0_113] : memref<18x128xf32, #tpu.memory_space<vmem>>, vector<1x128xf32>
    %214 = vector.broadcast %213 : vector<1x128xf32> to vector<128x128xf32>
    %215 = arith.addf %212, %214 : vector<128x128xf32>
    %cst_114 = arith.constant 0.000000e+00 : f32
    %216 = vector.broadcast %cst_114 : f32 to vector<128x128xf32>
    %217 = arith.maximumf %215, %216 : vector<128x128xf32>
    %218 = arith.truncf %217 : vector<128x128xf32> to vector<128x128xbf16>
    %c13 = arith.constant 13 : index
    %c0_115 = arith.constant 0 : index
    %c0_116 = arith.constant 0 : index
    %219 = vector.load %arg2[%c13, %c0_115, %c0_116] : memref<18x128x128xbf16, #tpu.memory_space<vmem>>, vector<1x128x128xbf16>
    %220 = vector.shape_cast %219 : vector<1x128x128xbf16> to vector<128x128xbf16>
    %cst_117 = arith.constant dense<0.000000e+00> : vector<128x128xf32>
    %221 = tpu.matmul %218, %220, %cst_117 {dimension_numbers = #tpu.dot_dimension_numbers<[1], [0], [0], [1], [0, 0, 1, 1], [], []>} : vector<128x128xbf16>, vector<128x128xbf16>, vector<128x128xf32> -> vector<128x128xf32>
    %c13_118 = arith.constant 13 : index
    %c0_119 = arith.constant 0 : index
    %222 = vector.load %arg3[%c13_118, %c0_119] : memref<18x128xf32, #tpu.memory_space<vmem>>, vector<1x128xf32>
    %223 = vector.broadcast %222 : vector<1x128xf32> to vector<128x128xf32>
    %224 = arith.addf %221, %223 : vector<128x128xf32>
    %cst_120 = arith.constant 0.000000e+00 : f32
    %225 = vector.broadcast %cst_120 : f32 to vector<128x128xf32>
    %226 = arith.maximumf %224, %225 : vector<128x128xf32>
    %227 = arith.truncf %226 : vector<128x128xf32> to vector<128x128xbf16>
    %c14 = arith.constant 14 : index
    %c0_121 = arith.constant 0 : index
    %c0_122 = arith.constant 0 : index
    %228 = vector.load %arg2[%c14, %c0_121, %c0_122] : memref<18x128x128xbf16, #tpu.memory_space<vmem>>, vector<1x128x128xbf16>
    %229 = vector.shape_cast %228 : vector<1x128x128xbf16> to vector<128x128xbf16>
    %cst_123 = arith.constant dense<0.000000e+00> : vector<128x128xf32>
    %230 = tpu.matmul %227, %229, %cst_123 {dimension_numbers = #tpu.dot_dimension_numbers<[1], [0], [0], [1], [0, 0, 1, 1], [], []>} : vector<128x128xbf16>, vector<128x128xbf16>, vector<128x128xf32> -> vector<128x128xf32>
    %c14_124 = arith.constant 14 : index
    %c0_125 = arith.constant 0 : index
    %231 = vector.load %arg3[%c14_124, %c0_125] : memref<18x128xf32, #tpu.memory_space<vmem>>, vector<1x128xf32>
    %232 = vector.broadcast %231 : vector<1x128xf32> to vector<128x128xf32>
    %233 = arith.addf %230, %232 : vector<128x128xf32>
    %234 = arith.addf %233, %208 : vector<128x128xf32>
    %cst_126 = arith.constant dense<0.000000e+00> : vector<128xf32>
    %235 = vector.multi_reduction <add>, %234, %cst_126 [1] : vector<128x128xf32> to vector<128xf32>
    %236 = vector.shape_cast %235 : vector<128xf32> to vector<128x1xf32>
    %cst_127 = arith.constant 1.280000e+02 : f32
    %237 = vector.broadcast %cst_127 : f32 to vector<128x1xf32>
    %238 = arith.divf %236, %237 : vector<128x1xf32>
    %239 = arith.mulf %234, %234 : vector<128x128xf32>
    %cst_128 = arith.constant dense<0.000000e+00> : vector<128xf32>
    %240 = vector.multi_reduction <add>, %239, %cst_128 [1] : vector<128x128xf32> to vector<128xf32>
    %241 = vector.shape_cast %240 : vector<128xf32> to vector<128x1xf32>
    %cst_129 = arith.constant 1.280000e+02 : f32
    %242 = vector.broadcast %cst_129 : f32 to vector<128x1xf32>
    %243 = arith.divf %241, %242 : vector<128x1xf32>
    %244 = arith.mulf %238, %238 : vector<128x1xf32>
    %245 = arith.subf %243, %244 : vector<128x1xf32>
    %cst_130 = arith.constant 0.000000e+00 : f32
    %246 = vector.broadcast %cst_130 : f32 to vector<128x1xf32>
    %247 = arith.maximumf %245, %246 : vector<128x1xf32>
    %248 = vector.broadcast %238 : vector<128x1xf32> to vector<128x128xf32>
    %249 = arith.subf %234, %248 : vector<128x128xf32>
    %cst_131 = arith.constant 9.99999974E-6 : f32
    %250 = vector.broadcast %cst_131 : f32 to vector<128x1xf32>
    %251 = arith.addf %247, %250 : vector<128x1xf32>
    %252 = math.rsqrt %251 : vector<128x1xf32>
    %253 = vector.broadcast %252 : vector<128x1xf32> to vector<128x128xf32>
    %254 = arith.mulf %249, %253 : vector<128x128xf32>
    %c4_132 = arith.constant 4 : index
    %c0_133 = arith.constant 0 : index
    %255 = vector.load %arg4[%c4_132, %c0_133] : memref<5x128xf32, #tpu.memory_space<vmem>>, vector<1x128xf32>
    %256 = vector.broadcast %255 : vector<1x128xf32> to vector<128x128xf32>
    %257 = arith.mulf %254, %256 : vector<128x128xf32>
    %c4_134 = arith.constant 4 : index
    %c0_135 = arith.constant 0 : index
    %258 = vector.load %arg5[%c4_134, %c0_135] : memref<5x128xf32, #tpu.memory_space<vmem>>, vector<1x128xf32>
    %259 = vector.broadcast %258 : vector<1x128xf32> to vector<128x128xf32>
    %260 = arith.addf %257, %259 : vector<128x128xf32>
    %261 = arith.truncf %260 : vector<128x128xf32> to vector<128x128xbf16>
    %c15 = arith.constant 15 : index
    %c0_136 = arith.constant 0 : index
    %c0_137 = arith.constant 0 : index
    %262 = vector.load %arg2[%c15, %c0_136, %c0_137] : memref<18x128x128xbf16, #tpu.memory_space<vmem>>, vector<1x128x128xbf16>
    %263 = vector.shape_cast %262 : vector<1x128x128xbf16> to vector<128x128xbf16>
    %cst_138 = arith.constant dense<0.000000e+00> : vector<128x128xf32>
    %264 = tpu.matmul %261, %263, %cst_138 {dimension_numbers = #tpu.dot_dimension_numbers<[1], [0], [0], [1], [0, 0, 1, 1], [], []>} : vector<128x128xbf16>, vector<128x128xbf16>, vector<128x128xf32> -> vector<128x128xf32>
    %c15_139 = arith.constant 15 : index
    %c0_140 = arith.constant 0 : index
    %265 = vector.load %arg3[%c15_139, %c0_140] : memref<18x128xf32, #tpu.memory_space<vmem>>, vector<1x128xf32>
    %266 = vector.broadcast %265 : vector<1x128xf32> to vector<128x128xf32>
    %267 = arith.addf %264, %266 : vector<128x128xf32>
    %cst_141 = arith.constant 0.000000e+00 : f32
    %268 = vector.broadcast %cst_141 : f32 to vector<128x128xf32>
    %269 = arith.maximumf %267, %268 : vector<128x128xf32>
    %270 = arith.truncf %269 : vector<128x128xf32> to vector<128x128xbf16>
    %c16 = arith.constant 16 : index
    %c0_142 = arith.constant 0 : index
    %c0_143 = arith.constant 0 : index
    %271 = vector.load %arg2[%c16, %c0_142, %c0_143] : memref<18x128x128xbf16, #tpu.memory_space<vmem>>, vector<1x128x128xbf16>
    %272 = vector.shape_cast %271 : vector<1x128x128xbf16> to vector<128x128xbf16>
    %cst_144 = arith.constant dense<0.000000e+00> : vector<128x128xf32>
    %273 = tpu.matmul %270, %272, %cst_144 {dimension_numbers = #tpu.dot_dimension_numbers<[1], [0], [0], [1], [0, 0, 1, 1], [], []>} : vector<128x128xbf16>, vector<128x128xbf16>, vector<128x128xf32> -> vector<128x128xf32>
    %c16_145 = arith.constant 16 : index
    %c0_146 = arith.constant 0 : index
    %274 = vector.load %arg3[%c16_145, %c0_146] : memref<18x128xf32, #tpu.memory_space<vmem>>, vector<1x128xf32>
    %275 = vector.broadcast %274 : vector<1x128xf32> to vector<128x128xf32>
    %276 = arith.addf %273, %275 : vector<128x128xf32>
    %cst_147 = arith.constant 0.000000e+00 : f32
    %277 = vector.broadcast %cst_147 : f32 to vector<128x128xf32>
    %278 = arith.maximumf %276, %277 : vector<128x128xf32>
    %279 = arith.truncf %278 : vector<128x128xf32> to vector<128x128xbf16>
    %c17 = arith.constant 17 : index
    %c0_148 = arith.constant 0 : index
    %c0_149 = arith.constant 0 : index
    %280 = vector.load %arg2[%c17, %c0_148, %c0_149] : memref<18x128x128xbf16, #tpu.memory_space<vmem>>, vector<1x128x128xbf16>
    %281 = vector.shape_cast %280 : vector<1x128x128xbf16> to vector<128x128xbf16>
    %cst_150 = arith.constant dense<0.000000e+00> : vector<128x128xf32>
    %282 = tpu.matmul %279, %281, %cst_150 {dimension_numbers = #tpu.dot_dimension_numbers<[1], [0], [0], [1], [0, 0, 1, 1], [], []>} : vector<128x128xbf16>, vector<128x128xbf16>, vector<128x128xf32> -> vector<128x128xf32>
    %c17_151 = arith.constant 17 : index
    %c0_152 = arith.constant 0 : index
    %283 = vector.load %arg3[%c17_151, %c0_152] : memref<18x128xf32, #tpu.memory_space<vmem>>, vector<1x128xf32>
    %284 = vector.broadcast %283 : vector<1x128xf32> to vector<128x128xf32>
    %285 = arith.addf %282, %284 : vector<128x128xf32>
    %286 = arith.addf %285, %260 : vector<128x128xf32>
    %c0_153 = arith.constant 0 : index
    %c0_154 = arith.constant 0 : index
    %287 = vector.load %arg6[%c0_153, %c0_154] : memref<128x128xf32, #tpu.memory_space<vmem>>, vector<128x128xf32>
    tpu.vector_store %arg6[%c0_153, %c0_154], %286 {strides = array<i32>} : memref<128x128xf32, #tpu.memory_space<vmem>>, vector<128x128xf32>,
    return
  }
  func.func @transform_0(%arg0: i32) -> (i32, i32) {
    %c0_i32 = arith.constant 0 : i32
    %c0_i32_0 = arith.constant 0 : i32
    return %arg0, %c0_i32 : i32, i32
  }
  func.func @transform_1(%arg0: i32) -> (i32, i32, i32) {
    %c0_i32 = arith.constant 0 : i32
    %c0_i32_0 = arith.constant 0 : i32
    %c0_i32_1 = arith.constant 0 : i32
    %c0_i32_2 = arith.constant 0 : i32
    return %c0_i32, %c0_i32_0, %c0_i32_1 : i32, i32, i32
  }
  func.func @transform_2(%arg0: i32) -> (i32, i32) {
    %c0_i32 = arith.constant 0 : i32
    %c0_i32_0 = arith.constant 0 : i32
    %c0_i32_1 = arith.constant 0 : i32
    return %c0_i32, %c0_i32_0 : i32, i32
  }
  func.func @transform_3(%arg0: i32) -> (i32, i32) {
    %c0_i32 = arith.constant 0 : i32
    %c0_i32_0 = arith.constant 0 : i32
    %c0_i32_1 = arith.constant 0 : i32
    return %c0_i32, %c0_i32_0 : i32, i32
  }
  func.func @transform_4(%arg0: i32) -> (i32, i32) {
    %c0_i32 = arith.constant 0 : i32
    %c0_i32_0 = arith.constant 0 : i32
    %c0_i32_1 = arith.constant 0 : i32
    return %c0_i32, %c0_i32_0 : i32, i32
  }
  func.func @transform_5(%arg0: i32) -> (i32, i32) {
    %c0_i32 = arith.constant 0 : i32
    %c0_i32_0 = arith.constant 0 : i32
    return %arg0, %c0_i32 : i32, i32
  }
}

module attributes {stable_mosaic.version = 11 : i64} {
  func.func @qlora_bignet_kernel(%arg0: i32, %arg1: memref<128x128xf32, #tpu.memory_space<vmem>>, %arg2: memref<18x128x128xbf16, #tpu.memory_space<vmem>>, %arg3: memref<18x128xf32, #tpu.memory_space<vmem>>, %arg4: memref<5x128xf32, #tpu.memory_space<vmem>>, %arg5: memref<5x128xf32, #tpu.memory_space<vmem>>, %arg6: memref<128x128xf32, #tpu.memory_space<vmem>>) attributes {dimension_semantics = [#tpu.dimension_semantics<parallel>], iteration_bounds = array<i64: 2>, scalar_prefetch = 0 : i64, scratch_operands = 0 : i64, tpu.core_type = #tpu.core_type<tc>, window_params = [{transform_indices = @transform_0, window_bounds = array<i64: 128, 128>}, {pipeline_mode = #tpu.pipeline_mode<synchronous>, transform_indices = @transform_1, window_bounds = array<i64: 18, 128, 128>}, {pipeline_mode = #tpu.pipeline_mode<synchronous>, transform_indices = @transform_2, window_bounds = array<i64: 18, 128>}, {pipeline_mode = #tpu.pipeline_mode<synchronous>, transform_indices = @transform_3, window_bounds = array<i64: 5, 128>}, {pipeline_mode = #tpu.pipeline_mode<synchronous>, transform_indices = @transform_4, window_bounds = array<i64: 5, 128>}, {transform_indices = @transform_5, window_bounds = array<i64: 128, 128>}]} {
    %c0 = arith.constant 0 : index
    %c0_0 = arith.constant 0 : index
    %0 = vector.load %arg1[%c0, %c0_0] : memref<128x128xf32, #tpu.memory_space<vmem>>, vector<128x128xf32>
    %1 = arith.truncf %0 : vector<128x128xf32> to vector<128x128xbf16>
    %c0_1 = arith.constant 0 : index
    %c0_2 = arith.constant 0 : index
    %c0_3 = arith.constant 0 : index
    %2 = vector.load %arg2[%c0_1, %c0_2, %c0_3] : memref<18x128x128xbf16, #tpu.memory_space<vmem>>, vector<1x128x128xbf16>
    %3 = vector.shape_cast %2 : vector<1x128x128xbf16> to vector<128x128xbf16>
    %cst = arith.constant dense<0.000000e+00> : vector<128x128xf32>
    %4 = tpu.matmul %1, %3, %cst {dimension_numbers = #tpu.dot_dimension_numbers<[1], [0], [0], [1], [0, 0, 1, 1], [], []>} : vector<128x128xbf16>, vector<128x128xbf16>, vector<128x128xf32> -> vector<128x128xf32>
    %c0_4 = arith.constant 0 : index
    %c0_5 = arith.constant 0 : index
    %5 = vector.load %arg3[%c0_4, %c0_5] : memref<18x128xf32, #tpu.memory_space<vmem>>, vector<1x128xf32>
    %6 = vector.broadcast %5 : vector<1x128xf32> to vector<128x128xf32>
    %7 = arith.addf %4, %6 : vector<128x128xf32>
    %cst_6 = arith.constant 0.000000e+00 : f32
    %8 = vector.broadcast %cst_6 : f32 to vector<128x128xf32>
    %9 = arith.maximumf %7, %8 : vector<128x128xf32>
    %10 = arith.truncf %9 : vector<128x128xf32> to vector<128x128xbf16>
    %c1 = arith.constant 1 : index
    %c0_7 = arith.constant 0 : index
    %c0_8 = arith.constant 0 : index
    %11 = vector.load %arg2[%c1, %c0_7, %c0_8] : memref<18x128x128xbf16, #tpu.memory_space<vmem>>, vector<1x128x128xbf16>
    %12 = vector.shape_cast %11 : vector<1x128x128xbf16> to vector<128x128xbf16>
    %cst_9 = arith.constant dense<0.000000e+00> : vector<128x128xf32>
    %13 = tpu.matmul %10, %12, %cst_9 {dimension_numbers = #tpu.dot_dimension_numbers<[1], [0], [0], [1], [0, 0, 1, 1], [], []>} : vector<128x128xbf16>, vector<128x128xbf16>, vector<128x128xf32> -> vector<128x128xf32>
    %c1_10 = arith.constant 1 : index
    %c0_11 = arith.constant 0 : index
    %14 = vector.load %arg3[%c1_10, %c0_11] : memref<18x128xf32, #tpu.memory_space<vmem>>, vector<1x128xf32>
    %15 = vector.broadcast %14 : vector<1x128xf32> to vector<128x128xf32>
    %16 = arith.addf %13, %15 : vector<128x128xf32>
    %cst_12 = arith.constant 0.000000e+00 : f32
    %17 = vector.broadcast %cst_12 : f32 to vector<128x128xf32>
    %18 = arith.maximumf %16, %17 : vector<128x128xf32>
    %19 = arith.truncf %18 : vector<128x128xf32> to vector<128x128xbf16>
    %c2 = arith.constant 2 : index
    %c0_13 = arith.constant 0 : index
    %c0_14 = arith.constant 0 : index
    %20 = vector.load %arg2[%c2, %c0_13, %c0_14] : memref<18x128x128xbf16, #tpu.memory_space<vmem>>, vector<1x128x128xbf16>
    %21 = vector.shape_cast %20 : vector<1x128x128xbf16> to vector<128x128xbf16>
    %cst_15 = arith.constant dense<0.000000e+00> : vector<128x128xf32>
    %22 = tpu.matmul %19, %21, %cst_15 {dimension_numbers = #tpu.dot_dimension_numbers<[1], [0], [0], [1], [0, 0, 1, 1], [], []>} : vector<128x128xbf16>, vector<128x128xbf16>, vector<128x128xf32> -> vector<128x128xf32>
    %c2_16 = arith.constant 2 : index
    %c0_17 = arith.constant 0 : index
    %23 = vector.load %arg3[%c2_16, %c0_17] : memref<18x128xf32, #tpu.memory_space<vmem>>, vector<1x128xf32>
    %24 = vector.broadcast %23 : vector<1x128xf32> to vector<128x128xf32>
    %25 = arith.addf %22, %24 : vector<128x128xf32>
    %26 = arith.addf %25, %0 : vector<128x128xf32>
    %cst_18 = arith.constant dense<0.000000e+00> : vector<128xf32>
    %27 = vector.multi_reduction <add>, %26, %cst_18 [1] : vector<128x128xf32> to vector<128xf32>
    %28 = vector.shape_cast %27 : vector<128xf32> to vector<128x1xf32>
    %cst_19 = arith.constant 1.280000e+02 : f32
    %29 = vector.broadcast %cst_19 : f32 to vector<128x1xf32>
    %30 = arith.divf %28, %29 : vector<128x1xf32>
    %31 = arith.mulf %26, %26 : vector<128x128xf32>
    %cst_20 = arith.constant dense<0.000000e+00> : vector<128xf32>
    %32 = vector.multi_reduction <add>, %31, %cst_20 [1] : vector<128x128xf32> to vector<128xf32>
    %33 = vector.shape_cast %32 : vector<128xf32> to vector<128x1xf32>
    %cst_21 = arith.constant 1.280000e+02 : f32
    %34 = vector.broadcast %cst_21 : f32 to vector<128x1xf32>
    %35 = arith.divf %33, %34 : vector<128x1xf32>
    %36 = arith.mulf %30, %30 : vector<128x1xf32>
    %37 = arith.subf %35, %36 : vector<128x1xf32>
    %cst_22 = arith.constant 0.000000e+00 : f32
    %38 = vector.broadcast %cst_22 : f32 to vector<128x1xf32>
    %39 = arith.maximumf %37, %38 : vector<128x1xf32>
    %40 = vector.broadcast %30 : vector<128x1xf32> to vector<128x128xf32>
    %41 = arith.subf %26, %40 : vector<128x128xf32>
    %cst_23 = arith.constant 9.99999974E-6 : f32
    %42 = vector.broadcast %cst_23 : f32 to vector<128x1xf32>
    %43 = arith.addf %39, %42 : vector<128x1xf32>
    %44 = math.rsqrt %43 : vector<128x1xf32>
    %45 = vector.broadcast %44 : vector<128x1xf32> to vector<128x128xf32>
    %46 = arith.mulf %41, %45 : vector<128x128xf32>
    %c0_24 = arith.constant 0 : index
    %c0_25 = arith.constant 0 : index
    %47 = vector.load %arg4[%c0_24, %c0_25] : memref<5x128xf32, #tpu.memory_space<vmem>>, vector<1x128xf32>
    %48 = vector.broadcast %47 : vector<1x128xf32> to vector<128x128xf32>
    %49 = arith.mulf %46, %48 : vector<128x128xf32>
    %c0_26 = arith.constant 0 : index
    %c0_27 = arith.constant 0 : index
    %50 = vector.load %arg5[%c0_26, %c0_27] : memref<5x128xf32, #tpu.memory_space<vmem>>, vector<1x128xf32>
    %51 = vector.broadcast %50 : vector<1x128xf32> to vector<128x128xf32>
    %52 = arith.addf %49, %51 : vector<128x128xf32>
    %53 = arith.truncf %52 : vector<128x128xf32> to vector<128x128xbf16>
    %c3 = arith.constant 3 : index
    %c0_28 = arith.constant 0 : index
    %c0_29 = arith.constant 0 : index
    %54 = vector.load %arg2[%c3, %c0_28, %c0_29] : memref<18x128x128xbf16, #tpu.memory_space<vmem>>, vector<1x128x128xbf16>
    %55 = vector.shape_cast %54 : vector<1x128x128xbf16> to vector<128x128xbf16>
    %cst_30 = arith.constant dense<0.000000e+00> : vector<128x128xf32>
    %56 = tpu.matmul %53, %55, %cst_30 {dimension_numbers = #tpu.dot_dimension_numbers<[1], [0], [0], [1], [0, 0, 1, 1], [], []>} : vector<128x128xbf16>, vector<128x128xbf16>, vector<128x128xf32> -> vector<128x128xf32>
    %c3_31 = arith.constant 3 : index
    %c0_32 = arith.constant 0 : index
    %57 = vector.load %arg3[%c3_31, %c0_32] : memref<18x128xf32, #tpu.memory_space<vmem>>, vector<1x128xf32>
    %58 = vector.broadcast %57 : vector<1x128xf32> to vector<128x128xf32>
    %59 = arith.addf %56, %58 : vector<128x128xf32>
    %cst_33 = arith.constant 0.000000e+00 : f32
    %60 = vector.broadcast %cst_33 : f32 to vector<128x128xf32>
    %61 = arith.maximumf %59, %60 : vector<128x128xf32>
    %62 = arith.truncf %61 : vector<128x128xf32> to vector<128x128xbf16>
    %c4 = arith.constant 4 : index
    %c0_34 = arith.constant 0 : index
    %c0_35 = arith.constant 0 : index
    %63 = vector.load %arg2[%c4, %c0_34, %c0_35] : memref<18x128x128xbf16, #tpu.memory_space<vmem>>, vector<1x128x128xbf16>
    %64 = vector.shape_cast %63 : vector<1x128x128xbf16> to vector<128x128xbf16>
    %cst_36 = arith.constant dense<0.000000e+00> : vector<128x128xf32>
    %65 = tpu.matmul %62, %64, %cst_36 {dimension_numbers = #tpu.dot_dimension_numbers<[1], [0], [0], [1], [0, 0, 1, 1], [], []>} : vector<128x128xbf16>, vector<128x128xbf16>, vector<128x128xf32> -> vector<128x128xf32>
    %c4_37 = arith.constant 4 : index
    %c0_38 = arith.constant 0 : index
    %66 = vector.load %arg3[%c4_37, %c0_38] : memref<18x128xf32, #tpu.memory_space<vmem>>, vector<1x128xf32>
    %67 = vector.broadcast %66 : vector<1x128xf32> to vector<128x128xf32>
    %68 = arith.addf %65, %67 : vector<128x128xf32>
    %cst_39 = arith.constant 0.000000e+00 : f32
    %69 = vector.broadcast %cst_39 : f32 to vector<128x128xf32>
    %70 = arith.maximumf %68, %69 : vector<128x128xf32>
    %71 = arith.truncf %70 : vector<128x128xf32> to vector<128x128xbf16>
    %c5 = arith.constant 5 : index
    %c0_40 = arith.constant 0 : index
    %c0_41 = arith.constant 0 : index
    %72 = vector.load %arg2[%c5, %c0_40, %c0_41] : memref<18x128x128xbf16, #tpu.memory_space<vmem>>, vector<1x128x128xbf16>
    %73 = vector.shape_cast %72 : vector<1x128x128xbf16> to vector<128x128xbf16>
    %cst_42 = arith.constant dense<0.000000e+00> : vector<128x128xf32>
    %74 = tpu.matmul %71, %73, %cst_42 {dimension_numbers = #tpu.dot_dimension_numbers<[1], [0], [0], [1], [0, 0, 1, 1], [], []>} : vector<128x128xbf16>, vector<128x128xbf16>, vector<128x128xf32> -> vector<128x128xf32>
    %c5_43 = arith.constant 5 : index
    %c0_44 = arith.constant 0 : index
    %75 = vector.load %arg3[%c5_43, %c0_44] : memref<18x128xf32, #tpu.memory_space<vmem>>, vector<1x128xf32>
    %76 = vector.broadcast %75 : vector<1x128xf32> to vector<128x128xf32>
    %77 = arith.addf %74, %76 : vector<128x128xf32>
    %78 = arith.addf %77, %52 : vector<128x128xf32>
    %cst_45 = arith.constant dense<0.000000e+00> : vector<128xf32>
    %79 = vector.multi_reduction <add>, %78, %cst_45 [1] : vector<128x128xf32> to vector<128xf32>
    %80 = vector.shape_cast %79 : vector<128xf32> to vector<128x1xf32>
    %cst_46 = arith.constant 1.280000e+02 : f32
    %81 = vector.broadcast %cst_46 : f32 to vector<128x1xf32>
    %82 = arith.divf %80, %81 : vector<128x1xf32>
    %83 = arith.mulf %78, %78 : vector<128x128xf32>
    %cst_47 = arith.constant dense<0.000000e+00> : vector<128xf32>
    %84 = vector.multi_reduction <add>, %83, %cst_47 [1] : vector<128x128xf32> to vector<128xf32>
    %85 = vector.shape_cast %84 : vector<128xf32> to vector<128x1xf32>
    %cst_48 = arith.constant 1.280000e+02 : f32
    %86 = vector.broadcast %cst_48 : f32 to vector<128x1xf32>
    %87 = arith.divf %85, %86 : vector<128x1xf32>
    %88 = arith.mulf %82, %82 : vector<128x1xf32>
    %89 = arith.subf %87, %88 : vector<128x1xf32>
    %cst_49 = arith.constant 0.000000e+00 : f32
    %90 = vector.broadcast %cst_49 : f32 to vector<128x1xf32>
    %91 = arith.maximumf %89, %90 : vector<128x1xf32>
    %92 = vector.broadcast %82 : vector<128x1xf32> to vector<128x128xf32>
    %93 = arith.subf %78, %92 : vector<128x128xf32>
    %cst_50 = arith.constant 9.99999974E-6 : f32
    %94 = vector.broadcast %cst_50 : f32 to vector<128x1xf32>
    %95 = arith.addf %91, %94 : vector<128x1xf32>
    %96 = math.rsqrt %95 : vector<128x1xf32>
    %97 = vector.broadcast %96 : vector<128x1xf32> to vector<128x128xf32>
    %98 = arith.mulf %93, %97 : vector<128x128xf32>
    %c1_51 = arith.constant 1 : index
    %c0_52 = arith.constant 0 : index
    %99 = vector.load %arg4[%c1_51, %c0_52] : memref<5x128xf32, #tpu.memory_space<vmem>>, vector<1x128xf32>
    %100 = vector.broadcast %99 : vector<1x128xf32> to vector<128x128xf32>
    %101 = arith.mulf %98, %100 : vector<128x128xf32>
    %c1_53 = arith.constant 1 : index
    %c0_54 = arith.constant 0 : index
    %102 = vector.load %arg5[%c1_53, %c0_54] : memref<5x128xf32, #tpu.memory_space<vmem>>, vector<1x128xf32>
    %103 = vector.broadcast %102 : vector<1x128xf32> to vector<128x128xf32>
    %104 = arith.addf %101, %103 : vector<128x128xf32>
    %105 = arith.truncf %104 : vector<128x128xf32> to vector<128x128xbf16>
    %c6 = arith.constant 6 : index
    %c0_55 = arith.constant 0 : index
    %c0_56 = arith.constant 0 : index
    %106 = vector.load %arg2[%c6, %c0_55, %c0_56] : memref<18x128x128xbf16, #tpu.memory_space<vmem>>, vector<1x128x128xbf16>
    %107 = vector.shape_cast %106 : vector<1x128x128xbf16> to vector<128x128xbf16>
    %cst_57 = arith.constant dense<0.000000e+00> : vector<128x128xf32>
    %108 = tpu.matmul %105, %107, %cst_57 {dimension_numbers = #tpu.dot_dimension_numbers<[1], [0], [0], [1], [0, 0, 1, 1], [], []>} : vector<128x128xbf16>, vector<128x128xbf16>, vector<128x128xf32> -> vector<128x128xf32>
    %c6_58 = arith.constant 6 : index
    %c0_59 = arith.constant 0 : index
    %109 = vector.load %arg3[%c6_58, %c0_59] : memref<18x128xf32, #tpu.memory_space<vmem>>, vector<1x128xf32>
    %110 = vector.broadcast %109 : vector<1x128xf32> to vector<128x128xf32>
    %111 = arith.addf %108, %110 : vector<128x128xf32>
    %cst_60 = arith.constant 0.000000e+00 : f32
    %112 = vector.broadcast %cst_60 : f32 to vector<128x128xf32>
    %113 = arith.maximumf %111, %112 : vector<128x128xf32>
    %114 = arith.truncf %113 : vector<128x128xf32> to vector<128x128xbf16>
    %c7 = arith.constant 7 : index
    %c0_61 = arith.constant 0 : index
    %c0_62 = arith.constant 0 : index
    %115 = vector.load %arg2[%c7, %c0_61, %c0_62] : memref<18x128x128xbf16, #tpu.memory_space<vmem>>, vector<1x128x128xbf16>
    %116 = vector.shape_cast %115 : vector<1x128x128xbf16> to vector<128x128xbf16>
    %cst_63 = arith.constant dense<0.000000e+00> : vector<128x128xf32>
    %117 = tpu.matmul %114, %116, %cst_63 {dimension_numbers = #tpu.dot_dimension_numbers<[1], [0], [0], [1], [0, 0, 1, 1], [], []>} : vector<128x128xbf16>, vector<128x128xbf16>, vector<128x128xf32> -> vector<128x128xf32>
    %c7_64 = arith.constant 7 : index
    %c0_65 = arith.constant 0 : index
    %118 = vector.load %arg3[%c7_64, %c0_65] : memref<18x128xf32, #tpu.memory_space<vmem>>, vector<1x128xf32>
    %119 = vector.broadcast %118 : vector<1x128xf32> to vector<128x128xf32>
    %120 = arith.addf %117, %119 : vector<128x128xf32>
    %cst_66 = arith.constant 0.000000e+00 : f32
    %121 = vector.broadcast %cst_66 : f32 to vector<128x128xf32>
    %122 = arith.maximumf %120, %121 : vector<128x128xf32>
    %123 = arith.truncf %122 : vector<128x128xf32> to vector<128x128xbf16>
    %c8 = arith.constant 8 : index
    %c0_67 = arith.constant 0 : index
    %c0_68 = arith.constant 0 : index
    %124 = vector.load %arg2[%c8, %c0_67, %c0_68] : memref<18x128x128xbf16, #tpu.memory_space<vmem>>, vector<1x128x128xbf16>
    %125 = vector.shape_cast %124 : vector<1x128x128xbf16> to vector<128x128xbf16>
    %cst_69 = arith.constant dense<0.000000e+00> : vector<128x128xf32>
    %126 = tpu.matmul %123, %125, %cst_69 {dimension_numbers = #tpu.dot_dimension_numbers<[1], [0], [0], [1], [0, 0, 1, 1], [], []>} : vector<128x128xbf16>, vector<128x128xbf16>, vector<128x128xf32> -> vector<128x128xf32>
    %c8_70 = arith.constant 8 : index
    %c0_71 = arith.constant 0 : index
    %127 = vector.load %arg3[%c8_70, %c0_71] : memref<18x128xf32, #tpu.memory_space<vmem>>, vector<1x128xf32>
    %128 = vector.broadcast %127 : vector<1x128xf32> to vector<128x128xf32>
    %129 = arith.addf %126, %128 : vector<128x128xf32>
    %130 = arith.addf %129, %104 : vector<128x128xf32>
    %cst_72 = arith.constant dense<0.000000e+00> : vector<128xf32>
    %131 = vector.multi_reduction <add>, %130, %cst_72 [1] : vector<128x128xf32> to vector<128xf32>
    %132 = vector.shape_cast %131 : vector<128xf32> to vector<128x1xf32>
    %cst_73 = arith.constant 1.280000e+02 : f32
    %133 = vector.broadcast %cst_73 : f32 to vector<128x1xf32>
    %134 = arith.divf %132, %133 : vector<128x1xf32>
    %135 = arith.mulf %130, %130 : vector<128x128xf32>
    %cst_74 = arith.constant dense<0.000000e+00> : vector<128xf32>
    %136 = vector.multi_reduction <add>, %135, %cst_74 [1] : vector<128x128xf32> to vector<128xf32>
    %137 = vector.shape_cast %136 : vector<128xf32> to vector<128x1xf32>
    %cst_75 = arith.constant 1.280000e+02 : f32
    %138 = vector.broadcast %cst_75 : f32 to vector<128x1xf32>
    %139 = arith.divf %137, %138 : vector<128x1xf32>
    %140 = arith.mulf %134, %134 : vector<128x1xf32>
    %141 = arith.subf %139, %140 : vector<128x1xf32>
    %cst_76 = arith.constant 0.000000e+00 : f32
    %142 = vector.broadcast %cst_76 : f32 to vector<128x1xf32>
    %143 = arith.maximumf %141, %142 : vector<128x1xf32>
    %144 = vector.broadcast %134 : vector<128x1xf32> to vector<128x128xf32>
    %145 = arith.subf %130, %144 : vector<128x128xf32>
    %cst_77 = arith.constant 9.99999974E-6 : f32
    %146 = vector.broadcast %cst_77 : f32 to vector<128x1xf32>
    %147 = arith.addf %143, %146 : vector<128x1xf32>
    %148 = math.rsqrt %147 : vector<128x1xf32>
    %149 = vector.broadcast %148 : vector<128x1xf32> to vector<128x128xf32>
    %150 = arith.mulf %145, %149 : vector<128x128xf32>
    %c2_78 = arith.constant 2 : index
    %c0_79 = arith.constant 0 : index
    %151 = vector.load %arg4[%c2_78, %c0_79] : memref<5x128xf32, #tpu.memory_space<vmem>>, vector<1x128xf32>
    %152 = vector.broadcast %151 : vector<1x128xf32> to vector<128x128xf32>
    %153 = arith.mulf %150, %152 : vector<128x128xf32>
    %c2_80 = arith.constant 2 : index
    %c0_81 = arith.constant 0 : index
    %154 = vector.load %arg5[%c2_80, %c0_81] : memref<5x128xf32, #tpu.memory_space<vmem>>, vector<1x128xf32>
    %155 = vector.broadcast %154 : vector<1x128xf32> to vector<128x128xf32>
    %156 = arith.addf %153, %155 : vector<128x128xf32>
    %157 = arith.truncf %156 : vector<128x128xf32> to vector<128x128xbf16>
    %c9 = arith.constant 9 : index
    %c0_82 = arith.constant 0 : index
    %c0_83 = arith.constant 0 : index
    %158 = vector.load %arg2[%c9, %c0_82, %c0_83] : memref<18x128x128xbf16, #tpu.memory_space<vmem>>, vector<1x128x128xbf16>
    %159 = vector.shape_cast %158 : vector<1x128x128xbf16> to vector<128x128xbf16>
    %cst_84 = arith.constant dense<0.000000e+00> : vector<128x128xf32>
    %160 = tpu.matmul %157, %159, %cst_84 {dimension_numbers = #tpu.dot_dimension_numbers<[1], [0], [0], [1], [0, 0, 1, 1], [], []>} : vector<128x128xbf16>, vector<128x128xbf16>, vector<128x128xf32> -> vector<128x128xf32>
    %c9_85 = arith.constant 9 : index
    %c0_86 = arith.constant 0 : index
    %161 = vector.load %arg3[%c9_85, %c0_86] : memref<18x128xf32, #tpu.memory_space<vmem>>, vector<1x128xf32>
    %162 = vector.broadcast %161 : vector<1x128xf32> to vector<128x128xf32>
    %163 = arith.addf %160, %162 : vector<128x128xf32>
    %cst_87 = arith.constant 0.000000e+00 : f32
    %164 = vector.broadcast %cst_87 : f32 to vector<128x128xf32>
    %165 = arith.maximumf %163, %164 : vector<128x128xf32>
    %166 = arith.truncf %165 : vector<128x128xf32> to vector<128x128xbf16>
    %c10 = arith.constant 10 : index
    %c0_88 = arith.constant 0 : index
    %c0_89 = arith.constant 0 : index
    %167 = vector.load %arg2[%c10, %c0_88, %c0_89] : memref<18x128x128xbf16, #tpu.memory_space<vmem>>, vector<1x128x128xbf16>
    %168 = vector.shape_cast %167 : vector<1x128x128xbf16> to vector<128x128xbf16>
    %cst_90 = arith.constant dense<0.000000e+00> : vector<128x128xf32>
    %169 = tpu.matmul %166, %168, %cst_90 {dimension_numbers = #tpu.dot_dimension_numbers<[1], [0], [0], [1], [0, 0, 1, 1], [], []>} : vector<128x128xbf16>, vector<128x128xbf16>, vector<128x128xf32> -> vector<128x128xf32>
    %c10_91 = arith.constant 10 : index
    %c0_92 = arith.constant 0 : index
    %170 = vector.load %arg3[%c10_91, %c0_92] : memref<18x128xf32, #tpu.memory_space<vmem>>, vector<1x128xf32>
    %171 = vector.broadcast %170 : vector<1x128xf32> to vector<128x128xf32>
    %172 = arith.addf %169, %171 : vector<128x128xf32>
    %cst_93 = arith.constant 0.000000e+00 : f32
    %173 = vector.broadcast %cst_93 : f32 to vector<128x128xf32>
    %174 = arith.maximumf %172, %173 : vector<128x128xf32>
    %175 = arith.truncf %174 : vector<128x128xf32> to vector<128x128xbf16>
    %c11 = arith.constant 11 : index
    %c0_94 = arith.constant 0 : index
    %c0_95 = arith.constant 0 : index
    %176 = vector.load %arg2[%c11, %c0_94, %c0_95] : memref<18x128x128xbf16, #tpu.memory_space<vmem>>, vector<1x128x128xbf16>
    %177 = vector.shape_cast %176 : vector<1x128x128xbf16> to vector<128x128xbf16>
    %cst_96 = arith.constant dense<0.000000e+00> : vector<128x128xf32>
    %178 = tpu.matmul %175, %177, %cst_96 {dimension_numbers = #tpu.dot_dimension_numbers<[1], [0], [0], [1], [0, 0, 1, 1], [], []>} : vector<128x128xbf16>, vector<128x128xbf16>, vector<128x128xf32> -> vector<128x128xf32>
    %c11_97 = arith.constant 11 : index
    %c0_98 = arith.constant 0 : index
    %179 = vector.load %arg3[%c11_97, %c0_98] : memref<18x128xf32, #tpu.memory_space<vmem>>, vector<1x128xf32>
    %180 = vector.broadcast %179 : vector<1x128xf32> to vector<128x128xf32>
    %181 = arith.addf %178, %180 : vector<128x128xf32>
    %182 = arith.addf %181, %156 : vector<128x128xf32>
    %cst_99 = arith.constant dense<0.000000e+00> : vector<128xf32>
    %183 = vector.multi_reduction <add>, %182, %cst_99 [1] : vector<128x128xf32> to vector<128xf32>
    %184 = vector.shape_cast %183 : vector<128xf32> to vector<128x1xf32>
    %cst_100 = arith.constant 1.280000e+02 : f32
    %185 = vector.broadcast %cst_100 : f32 to vector<128x1xf32>
    %186 = arith.divf %184, %185 : vector<128x1xf32>
    %187 = arith.mulf %182, %182 : vector<128x128xf32>
    %cst_101 = arith.constant dense<0.000000e+00> : vector<128xf32>
    %188 = vector.multi_reduction <add>, %187, %cst_101 [1] : vector<128x128xf32> to vector<128xf32>
    %189 = vector.shape_cast %188 : vector<128xf32> to vector<128x1xf32>
    %cst_102 = arith.constant 1.280000e+02 : f32
    %190 = vector.broadcast %cst_102 : f32 to vector<128x1xf32>
    %191 = arith.divf %189, %190 : vector<128x1xf32>
    %192 = arith.mulf %186, %186 : vector<128x1xf32>
    %193 = arith.subf %191, %192 : vector<128x1xf32>
    %cst_103 = arith.constant 0.000000e+00 : f32
    %194 = vector.broadcast %cst_103 : f32 to vector<128x1xf32>
    %195 = arith.maximumf %193, %194 : vector<128x1xf32>
    %196 = vector.broadcast %186 : vector<128x1xf32> to vector<128x128xf32>
    %197 = arith.subf %182, %196 : vector<128x128xf32>
    %cst_104 = arith.constant 9.99999974E-6 : f32
    %198 = vector.broadcast %cst_104 : f32 to vector<128x1xf32>
    %199 = arith.addf %195, %198 : vector<128x1xf32>
    %200 = math.rsqrt %199 : vector<128x1xf32>
    %201 = vector.broadcast %200 : vector<128x1xf32> to vector<128x128xf32>
    %202 = arith.mulf %197, %201 : vector<128x128xf32>
    %c3_105 = arith.constant 3 : index
    %c0_106 = arith.constant 0 : index
    %203 = vector.load %arg4[%c3_105, %c0_106] : memref<5x128xf32, #tpu.memory_space<vmem>>, vector<1x128xf32>
    %204 = vector.broadcast %203 : vector<1x128xf32> to vector<128x128xf32>
    %205 = arith.mulf %202, %204 : vector<128x128xf32>
    %c3_107 = arith.constant 3 : index
    %c0_108 = arith.constant 0 : index
    %206 = vector.load %arg5[%c3_107, %c0_108] : memref<5x128xf32, #tpu.memory_space<vmem>>, vector<1x128xf32>
    %207 = vector.broadcast %206 : vector<1x128xf32> to vector<128x128xf32>
    %208 = arith.addf %205, %207 : vector<128x128xf32>
    %209 = arith.truncf %208 : vector<128x128xf32> to vector<128x128xbf16>
    %c12 = arith.constant 12 : index
    %c0_109 = arith.constant 0 : index
    %c0_110 = arith.constant 0 : index
    %210 = vector.load %arg2[%c12, %c0_109, %c0_110] : memref<18x128x128xbf16, #tpu.memory_space<vmem>>, vector<1x128x128xbf16>
    %211 = vector.shape_cast %210 : vector<1x128x128xbf16> to vector<128x128xbf16>
    %cst_111 = arith.constant dense<0.000000e+00> : vector<128x128xf32>
    %212 = tpu.matmul %209, %211, %cst_111 {dimension_numbers = #tpu.dot_dimension_numbers<[1], [0], [0], [1], [0, 0, 1, 1], [], []>} : vector<128x128xbf16>, vector<128x128xbf16>, vector<128x128xf32> -> vector<128x128xf32>
    %c12_112 = arith.constant 12 : index
    %c0_113 = arith.constant 0 : index
    %213 = vector.load %arg3[%c12_112, %c0_113] : memref<18x128xf32, #tpu.memory_space<vmem>>, vector<1x128xf32>
    %214 = vector.broadcast %213 : vector<1x128xf32> to vector<128x128xf32>
    %215 = arith.addf %212, %214 : vector<128x128xf32>
    %cst_114 = arith.constant 0.000000e+00 : f32
    %216 = vector.broadcast %cst_114 : f32 to vector<128x128xf32>
    %217 = arith.maximumf %215, %216 : vector<128x128xf32>
    %218 = arith.truncf %217 : vector<128x128xf32> to vector<128x128xbf16>
    %c13 = arith.constant 13 : index
    %c0_115 = arith.constant 0 : index
    %c0_116 = arith.constant 0 : index
    %219 = vector.load %arg2[%c13, %c0_115, %c0_116] : memref<18x128x128xbf16, #tpu.memory_space<vmem>>, vector<1x128x128xbf16>
    %220 = vector.shape_cast %219 : vector<1x128x128xbf16> to vector<128x128xbf16>
    %cst_117 = arith.constant dense<0.000000e+00> : vector<128x128xf32>
    %221 = tpu.matmul %218, %220, %cst_117 {dimension_numbers = #tpu.dot_dimension_numbers<[1], [0], [0], [1], [0, 0, 1, 1], [], []>} : vector<128x128xbf16>, vector<128x128xbf16>, vector<128x128xf32> -> vector<128x128xf32>
    %c13_118 = arith.constant 13 : index
    %c0_119 = arith.constant 0 : index
    %222 = vector.load %arg3[%c13_118, %c0_119] : memref<18x128xf32, #tpu.memory_space<vmem>>, vector<1x128xf32>
    %223 = vector.broadcast %222 : vector<1x128xf32> to vector<128x128xf32>
    %224 = arith.addf %221, %223 : vector<128x128xf32>
    %cst_120 = arith.constant 0.000000e+00 : f32
    %225 = vector.broadcast %cst_120 : f32 to vector<128x128xf32>
    %226 = arith.maximumf %224, %225 : vector<128x128xf32>
    %227 = arith.truncf %226 : vector<128x128xf32> to vector<128x128xbf16>
    %c14 = arith.constant 14 : index
    %c0_121 = arith.constant 0 : index
    %c0_122 = arith.constant 0 : index
    %228 = vector.load %arg2[%c14, %c0_121, %c0_122] : memref<18x128x128xbf16, #tpu.memory_space<vmem>>, vector<1x128x128xbf16>
    %229 = vector.shape_cast %228 : vector<1x128x128xbf16> to vector<128x128xbf16>
    %cst_123 = arith.constant dense<0.000000e+00> : vector<128x128xf32>
    %230 = tpu.matmul %227, %229, %cst_123 {dimension_numbers = #tpu.dot_dimension_numbers<[1], [0], [0], [1], [0, 0, 1, 1], [], []>} : vector<128x128xbf16>, vector<128x128xbf16>, vector<128x128xf32> -> vector<128x128xf32>
    %c14_124 = arith.constant 14 : index
    %c0_125 = arith.constant 0 : index
    %231 = vector.load %arg3[%c14_124, %c0_125] : memref<18x128xf32, #tpu.memory_space<vmem>>, vector<1x128xf32>
    %232 = vector.broadcast %231 : vector<1x128xf32> to vector<128x128xf32>
    %233 = arith.addf %230, %232 : vector<128x128xf32>
    %234 = arith.addf %233, %208 : vector<128x128xf32>
    %cst_126 = arith.constant dense<0.000000e+00> : vector<128xf32>
    %235 = vector.multi_reduction <add>, %234, %cst_126 [1] : vector<128x128xf32> to vector<128xf32>
    %236 = vector.shape_cast %235 : vector<128xf32> to vector<128x1xf32>
    %cst_127 = arith.constant 1.280000e+02 : f32
    %237 = vector.broadcast %cst_127 : f32 to vector<128x1xf32>
    %238 = arith.divf %236, %237 : vector<128x1xf32>
    %239 = arith.mulf %234, %234 : vector<128x128xf32>
    %cst_128 = arith.constant dense<0.000000e+00> : vector<128xf32>
    %240 = vector.multi_reduction <add>, %239, %cst_128 [1] : vector<128x128xf32> to vector<128xf32>
    %241 = vector.shape_cast %240 : vector<128xf32> to vector<128x1xf32>
    %cst_129 = arith.constant 1.280000e+02 : f32
    %242 = vector.broadcast %cst_129 : f32 to vector<128x1xf32>
    %243 = arith.divf %241, %242 : vector<128x1xf32>
    %244 = arith.mulf %238, %238 : vector<128x1xf32>
    %245 = arith.subf %243, %244 : vector<128x1xf32>
    %cst_130 = arith.constant 0.000000e+00 : f32
    %246 = vector.broadcast %cst_130 : f32 to vector<128x1xf32>
    %247 = arith.maximumf %245, %246 : vector<128x1xf32>
    %248 = vector.broadcast %238 : vector<128x1xf32> to vector<128x128xf32>
    %249 = arith.subf %234, %248 : vector<128x128xf32>
    %cst_131 = arith.constant 9.99999974E-6 : f32
    %250 = vector.broadcast %cst_131 : f32 to vector<128x1xf32>
    %251 = arith.addf %247, %250 : vector<128x1xf32>
    %252 = math.rsqrt %251 : vector<128x1xf32>
    %253 = vector.broadcast %252 : vector<128x1xf32> to vector<128x128xf32>
    %254 = arith.mulf %249, %253 : vector<128x128xf32>
    %c4_132 = arith.constant 4 : index
    %c0_133 = arith.constant 0 : index
    %255 = vector.load %arg4[%c4_132, %c0_133] : memref<5x128xf32, #tpu.memory_space<vmem>>, vector<1x128xf32>
    %256 = vector.broadcast %255 : vector<1x128xf32> to vector<128x128xf32>
    %257 = arith.mulf %254, %256 : vector<128x128xf32>
    %c4_134 = arith.constant 4 : index
    %c0_135 = arith.constant 0 : index
    %258 = vector.load %arg5[%c4_134, %c0_135] : memref<5x128xf32, #tpu.memory_space<vmem>>, vector<1x128xf32>
    %259 = vector.broadcast %258 : vector<1x128xf32> to vector<128x128xf32>
    %260 = arith.addf %257, %259 : vector<128x128xf32>
    %261 = arith.truncf %260 : vector<128x128xf32> to vector<128x128xbf16>
    %c15 = arith.constant 15 : index
    %c0_136 = arith.constant 0 : index
    %c0_137 = arith.constant 0 : index
    %262 = vector.load %arg2[%c15, %c0_136, %c0_137] : memref<18x128x128xbf16, #tpu.memory_space<vmem>>, vector<1x128x128xbf16>
    %263 = vector.shape_cast %262 : vector<1x128x128xbf16> to vector<128x128xbf16>
    %cst_138 = arith.constant dense<0.000000e+00> : vector<128x128xf32>
    %264 = tpu.matmul %261, %263, %cst_138 {dimension_numbers = #tpu.dot_dimension_numbers<[1], [0], [0], [1], [0, 0, 1, 1], [], []>} : vector<128x128xbf16>, vector<128x128xbf16>, vector<128x128xf32> -> vector<128x128xf32>
    %c15_139 = arith.constant 15 : index
    %c0_140 = arith.constant 0 : index
    %265 = vector.load %arg3[%c15_139, %c0_140] : memref<18x128xf32, #tpu.memory_space<vmem>>, vector<1x128xf32>
    %266 = vector.broadcast %265 : vector<1x128xf32> to vector<128x128xf32>
    %267 = arith.addf %264, %266 : vector<128x128xf32>
    %cst_141 = arith.constant 0.000000e+00 : f32
    %268 = vector.broadcast %cst_141 : f32 to vector<128x128xf32>
    %269 = arith.maximumf %267, %268 : vector<128x128xf32>
    %270 = arith.truncf %269 : vector<128x128xf32> to vector<128x128xbf16>
    %c16 = arith.constant 16 : index
    %c0_142 = arith.constant 0 : index
    %c0_143 = arith.constant 0 : index
    %271 = vector.load %arg2[%c16, %c0_142, %c0_143] : memref<18x128x128xbf16, #tpu.memory_space<vmem>>, vector<1x128x128xbf16>
    %272 = vector.shape_cast %271 : vector<1x128x128xbf16> to vector<128x128xbf16>
    %cst_144 = arith.constant dense<0.000000e+00> : vector<128x128xf32>
    %273 = tpu.matmul %270, %272, %cst_144 {dimension_numbers = #tpu.dot_dimension_numbers<[1], [0], [0], [1], [0, 0, 1, 1], [], []>} : vector<128x128xbf16>, vector<128x128xbf16>, vector<128x128xf32> -> vector<128x128xf32>
    %c16_145 = arith.constant 16 : index
    %c0_146 = arith.constant 0 : index
    %274 = vector.load %arg3[%c16_145, %c0_146] : memref<18x128xf32, #tpu.memory_space<vmem>>, vector<1x128xf32>
    %275 = vector.broadcast %274 : vector<1x128xf32> to vector<128x128xf32>
    %276 = arith.addf %273, %275 : vector<128x128xf32>
    %cst_147 = arith.constant 0.000000e+00 : f32
    %277 = vector.broadcast %cst_147 : f32 to vector<128x128xf32>
    %278 = arith.maximumf %276, %277 : vector<128x128xf32>
    %279 = arith.truncf %278 : vector<128x128xf32> to vector<128x128xbf16>
    %c17 = arith.constant 17 : index
    %c0_148 = arith.constant 0 : index
    %c0_149 = arith.constant 0 : index
    %280 = vector.load %arg2[%c17, %c0_148, %c0_149] : memref<18x128x128xbf16, #tpu.memory_space<vmem>>, vector<1x128x128xbf16>
    %281 = vector.shape_cast %280 : vector<1x128x128xbf16> to vector<128x128xbf16>
    %cst_150 = arith.constant dense<0.000000e+00> : vector<128x128xf32>
    %282 = tpu.matmul %279, %281, %cst_150 {dimension_numbers = #tpu.dot_dimension_numbers<[1], [0], [0], [1], [0, 0, 1, 1], [], []>} : vector<128x128xbf16>, vector<128x128xbf16>, vector<128x128xf32> -> vector<128x128xf32>
    %c17_151 = arith.constant 17 : index
    %c0_152 = arith.constant 0 : index
    %283 = vector.load %arg3[%c17_151, %c0_152] : memref<18x128xf32, #tpu.memory_space<vmem>>, vector<1x128xf32>
    %284 = vector.broadcast %283 : vector<1x128xf32> to vector<128x128xf32>
    %285 = arith.addf %282, %284 : vector<128x128xf32>
    %286 = arith.addf %285, %260 : vector<128x128xf32>
    %c0_153 = arith.constant 0 : index
    %c0_154 = arith.constant 0 : index
    %287 = vector.load %arg6[%c0_153, %c0_154] : memref<128x128xf32, #tpu.memory_space<vmem>>, vector<128x128xf32>
    tpu.vector_store %arg6[%c0_153, %c0_154], %286 {strides = array<i32>} : memref<128x128xf32, #tpu.memory_space<vmem>>, vector<128x128xf32>,
    return
  }
  func.func @transform_0(%arg0: i32) -> (i32, i32) {
    %c0_i32 = arith.constant 0 : i32
    %c0_i32_0 = arith.constant 0 : i32
    return %arg0, %c0_i32 : i32, i32
  }
  func.func @transform_1(%arg0: i32) -> (i32, i32, i32) {
    %c0_i32 = arith.constant 0 : i32
    %c0_i32_0 = arith.constant 0 : i32
    %c0_i32_1 = arith.constant 0 : i32
    %c0_i32_2 = arith.constant 0 : i32
    return %c0_i32, %c0_i32_0, %c0_i32_1 : i32, i32, i32
  }
  func.func @transform_2(%arg0: i32) -> (i32, i32) {
    %c0_i32 = arith.constant 0 : i32
    %c0_i32_0 = arith.constant 0 : i32
    %c0_i32_1 = arith.constant 0 : i32
    return %c0_i32, %c0_i32_0 : i32, i32
  }
  func.func @transform_3(%arg0: i32) -> (i32, i32) {
    %c0_i32 = arith.constant 0 : i32
    %c0_i32_0 = arith.constant 0 : i32
    %c0_i32_1 = arith.constant 0 : i32
    return %c0_i32, %c0_i32_0 : i32, i32
  }
  func.func @transform_4(%arg0: i32) -> (i32, i32) {
    %c0_i32 = arith.constant 0 : i32
    %c0_i32_0 = arith.constant 0 : i32
    %c0_i32_1 = arith.constant 0 : i32
    return %c0_i32, %c0_i32_0 : i32, i32
  }
  func.func @transform_5(%arg0: i32) -> (i32, i32) {
    %c0_i32 = arith.constant 0 : i32
    %c0_i32_0 = arith.constant 0 : i32
    return %arg0, %c0_i32 : i32, i32
  }
}

</mosaic_0001>

<llo_original>
// kernel: tpu_custom_call.1
$region0: #{tpu_custom_call.1}
  #allocation0 [shape = 'u32[]', space=smem, size = 0x4, offset = 0x4, fixed_abs, tag = 'smem constant byte address 0x4 - core index']
  #allocation1 [shape = 'u32[144,128]{1,0:T(1,128)}', space=vmem, size = 0x12000, scoped, tag = 'internal scratch']
  %s0 = inlined_call_operand.hbm [shape: f32[256,128], index: 0, kind: input, shape index: {}]
  %s1 = inlined_call_operand.hbm [shape: bf16[18,128,128], index: 1, kind: input, shape index: {}]
  %s2 = inlined_call_operand.hbm [shape: f32[18,128], index: 2, kind: input, shape index: {}]
  %s3 = inlined_call_operand.vmem [shape: f32[5,128], index: 3, kind: input, shape index: {}]
  %s4 = inlined_call_operand.hbm [shape: f32[5,128], index: 4, kind: input, shape index: {}]
  %s5 = inlined_call_operand.hbm [shape: f32[256,128], index: 5, kind: output, shape index: {}]
  %s6 = sld [smem:[#allocation0]]
  $region69: #{tpu_custom_call.1} parent=0
    _
  %s8 = ssub.s32 1, %s6
  %s9 = scalar_select 0, %s8, %s6
  $region1: #{tpu_custom_call.1} parent=0
    #allocation2 [shape = 'u8[131072]{0}', space=vmem, size = 0x20000, scoped, tag = 'input window, operand 0']
    #allocation3 [shape = 's32[2]{0}', space=sflag, size = 0x8, scoped, tag = 'scoped memory for tpu_custom_call.1']
    #allocation4 [shape = 's32[2]{0}', space=sflag, size = 0x8, scoped, tag = 'scoped memory for tpu_custom_call.1']
    #allocation5 [shape = 'u8[589824]{0}', space=vmem, size = 0x90000, scoped, tag = 'input window, operand 1, single buffered']
    #allocation6 [shape = 's32[1]{0}', space=sflag, size = 0x4, scoped, tag = 'scoped memory for tpu_custom_call.1']
    #allocation7 [shape = 'u8[12288]{0}', space=vmem, size = 0x3000, scoped, tag = 'input window, operand 2, single buffered']
    #allocation8 [shape = 'u8[4096]{0}', space=vmem, size = 0x1000, scoped, tag = 'input window, operand 4, single buffered']
    #allocation9 [shape = 's32[1]{0}', space=sflag, size = 0x4, scoped, tag = 'scoped memory for tpu_custom_call.1']
    #allocation10 [shape = 'u8[131072]{0}', space=vmem, size = 0x20000, scoped, tag = 'output window, operand 0']
    %10 = vsyncpa [#allocation3], 0
    %s11 = scalar_lea.sflag [#allocation3], 1
    %12 = vsyncpa %s11, 0
    %13 = vsyncpa [#allocation6], 0
    %14 = vsyncpa [#allocation9], 0
    %15 = vsyncpa [#allocation4], 0
    %s16 = scalar_lea.sflag [#allocation4], 1
    %17 = vsyncpa %s16, 0
    loop: start=0, step=1, limit=4
    $region2: #{tpu_custom_call.1} parent=1 // loop_pre_header
      _
    $region3: #{tpu_custom_call.1} parent=1 // loop_header
      %s19 = sphi 0, %s23
      %p20 = scmp.ge.s32.totalorder %s19, 4
      %s29 = sphi 0, %s31
      %s32 = sphi 0, %s29
      %s33 = sphi 0, %s32
      %s49 = sphi 0, %s33
      %s53 = sphi 0, %s53
      %s55 = sphi 0, %s53
      %s56 = sphi 0, %s55
      %s70 = sphi 0, %s56
      %s74 = sphi 0, %s74
      %s76 = sphi 0, %s74
      %s77 = sphi 0, %s76
      %s91 = sphi 0, %s77
      %s95 = sphi 0, %s95
      %s97 = sphi 0, %s95
      %s98 = sphi 0, %s97
      %s112 = sphi 0, %s98
      %s116 = sphi 0, %s116
      %s118 = sphi 0, %s116
      %s119 = sphi 0, %s118
      %s133 = sphi 0, %s119
      %s139 = sphi 0, %s141
      %s142 = sphi 0, %s139
      %s143 = sphi 0, %s142
      %s159 = sphi 0, %s143
    $region4: #{tpu_custom_call.1} parent=1 // loop_header_branch
      %22 = sbr.rel (%p20) target = $region8
    $region5: #{tpu_custom_call.1} parent=1 // loop_body
      %s24 = ssub.s32 %s19, 1
      %s25 = ssub.s32 %s19, 2
      %s26 = sadd.s32 %s19, 1
      %s27 = ssub.s32 %s19, %s26
      %p28 = scmp.eq.s32.totalorder %s27, 0
      %s30 = sadd.s32 %s29, 1
      %s31 = scalar_select %p28, %s29, %s30
      %p34 = pneg %p28
      %p35 = scmp.eq.s32.totalorder %s19, 1
      %p36 = por %p34, %p35
      %p37 = scmp.ne.s32.totalorder %s29, %s32
      %p38 = scmp.eq.s32.totalorder %s19, 0
      %p39 = por %p37, %p38
      %p40 = scmp.ne.s32.totalorder %s29, %s32
      %p41 = scmp.eq.s32.totalorder %s24, 1
      %p42 = por %p40, %p41
      %p43 = scmp.ne.s32.totalorder %s32, %s33
      %p44 = scmp.eq.s32.totalorder %s24, 0
      %p45 = por %p43, %p44
      %p46 = scmp.ne.s32.totalorder %s32, %s33
      %p47 = scmp.eq.s32.totalorder %s25, 1
      %p48 = por %p46, %p47
      %p50 = scmp.ne.s32.totalorder %s33, %s49
      %p51 = scmp.eq.s32.totalorder %s25, 0
      %p52 = por %p50, %p51
      %s54 = sadd.s32 %s53, 1
      %p57 = scmp.eq.s32.totalorder %s19, 1
      %p58 = scmp.ne.s32.totalorder %s53, %s55
      %p59 = scmp.eq.s32.totalorder %s19, 0
      %p60 = por %p58, %p59
      %p61 = scmp.ne.s32.totalorder %s53, %s55
      %p62 = scmp.eq.s32.totalorder %s24, 1
      %p63 = por %p61, %p62
      %p64 = scmp.ne.s32.totalorder %s55, %s56
      %p65 = scmp.eq.s32.totalorder %s24, 0
      %p66 = por %p64, %p65
      %p67 = scmp.ne.s32.totalorder %s55, %s56
      %p68 = scmp.eq.s32.totalorder %s25, 1
      %p69 = por %p67, %p68
      %p71 = scmp.ne.s32.totalorder %s56, %s70
      %p72 = scmp.eq.s32.totalorder %s25, 0
      %p73 = por %p71, %p72
      %s75 = sadd.s32 %s74, 1
      %p78 = scmp.eq.s32.totalorder %s19, 1
      %p79 = scmp.ne.s32.totalorder %s74, %s76
      %p80 = scmp.eq.s32.totalorder %s19, 0
      %p81 = por %p79, %p80
      %p82 = scmp.ne.s32.totalorder %s74, %s76
      %p83 = scmp.eq.s32.totalorder %s24, 1
      %p84 = por %p82, %p83
      %p85 = scmp.ne.s32.totalorder %s76, %s77
      %p86 = scmp.eq.s32.totalorder %s24, 0
      %p87 = por %p85, %p86
      %p88 = scmp.ne.s32.totalorder %s76, %s77
      %p89 = scmp.eq.s32.totalorder %s25, 1
      %p90 = por %p88, %p89
      %p92 = scmp.ne.s32.totalorder %s77, %s91
      %p93 = scmp.eq.s32.totalorder %s25, 0
      %p94 = por %p92, %p93
      %s96 = sadd.s32 %s95, 1
      %p99 = scmp.eq.s32.totalorder %s19, 1
      %p100 = scmp.ne.s32.totalorder %s95, %s97
      %p101 = scmp.eq.s32.totalorder %s19, 0
      %p102 = por %p100, %p101
      %p103 = scmp.ne.s32.totalorder %s95, %s97
      %p104 = scmp.eq.s32.totalorder %s24, 1
      %p105 = por %p103, %p104
      %p106 = scmp.ne.s32.totalorder %s97, %s98
      %p107 = scmp.eq.s32.totalorder %s24, 0
      %p108 = por %p106, %p107
      %p109 = scmp.ne.s32.totalorder %s97, %s98
      %p110 = scmp.eq.s32.totalorder %s25, 1
      %p111 = por %p109, %p110
      %p113 = scmp.ne.s32.totalorder %s98, %s112
      %p114 = scmp.eq.s32.totalorder %s25, 0
      %p115 = por %p113, %p114
      %s117 = sadd.s32 %s116, 1
      %p120 = scmp.eq.s32.totalorder %s19, 1
      %p121 = scmp.ne.s32.totalorder %s116, %s118
      %p122 = scmp.eq.s32.totalorder %s19, 0
      %p123 = por %p121, %p122
      %p124 = scmp.ne.s32.totalorder %s116, %s118
      %p125 = scmp.eq.s32.totalorder %s24, 1
      %p126 = por %p124, %p125
      %p127 = scmp.ne.s32.totalorder %s118, %s119
      %p128 = scmp.eq.s32.totalorder %s24, 0
      %p129 = por %p127, %p128
      %p130 = scmp.ne.s32.totalorder %s118, %s119
      %p131 = scmp.eq.s32.totalorder %s25, 1
      %p132 = por %p130, %p131
      %p134 = scmp.ne.s32.totalorder %s119, %s133
      %p135 = scmp.eq.s32.totalorder %s25, 0
      %p136 = por %p134, %p135
      %s137 = ssub.s32 %s19, %s26
      %p138 = scmp.eq.s32.totalorder %s137, 0
      %s140 = sadd.s32 %s139, 1
      %s141 = scalar_select %p138, %s139, %s140
      %p144 = pneg %p138
      %p145 = scmp.eq.s32.totalorder %s19, 1
      %p146 = por %p144, %p145
      %p147 = scmp.ne.s32.totalorder %s139, %s142
      %p148 = scmp.eq.s32.totalorder %s19, 0
      %p149 = por %p147, %p148
      %p150 = scmp.ne.s32.totalorder %s139, %s142
      %p151 = scmp.eq.s32.totalorder %s24, 1
      %p152 = por %p150, %p151
      %p153 = scmp.ne.s32.totalorder %s142, %s143
      %p154 = scmp.eq.s32.totalorder %s24, 0
      %p155 = por %p153, %p154
      %p156 = scmp.ne.s32.totalorder %s142, %s143
      %p157 = scmp.eq.s32.totalorder %s25, 1
      %p158 = por %p156, %p157
      %p160 = scmp.ne.s32.totalorder %s143, %s159
      %p161 = scmp.eq.s32.totalorder %s25, 0
      %p162 = por %p160, %p161
      %p163 = scmp.le.s32.totalorder 1, %s19
      %p164 = scmp.lt.s32.totalorder %s19, 3
      %p165 = pnand %p163, %p164
      %p166 = pneg %p165
      // Predicated region
      $region9: #{tpu_custom_call.1} parent=5 // pred_check
        _
      $region10: #{tpu_custom_call.1} parent=5 // pred_check_branch
        %168 = sbr.rel (%p165) target = $region12
      $region11: #{tpu_custom_call.1} parent=5 // pred_region
        %s169 = ssub.s32 %s19, 1
        // Predicated region
        $region13: #{tpu_custom_call.1} parent=11 // pred_check
          %p170 = pneg %p66
        $region14: #{tpu_custom_call.1} parent=11 // pred_check_branch
          %172 = sbr.rel (%p170) target = $region16
        $region15: #{tpu_custom_call.1} parent=11 // pred_region
          %s174 = ssub.s32 18432, 18432
          %175 = vsyncadd [#allocation6], %s174
          %s176 = sshll.u32 [#allocation5], 4
          %s177 = int_to_ptr.vmem [resolvable:$true] %s176
          %182 = dma.hbm_to_vmem [thread:$0]  %s1, 18432, %s177, [#allocation6], 64, 64, 4
        $region16: #{tpu_custom_call.1} parent=11 // pred_fallthru
          _
        // Predicated region
        $region17: #{tpu_custom_call.1} parent=11 // pred_check
          %p183 = pneg %p87
        $region18: #{tpu_custom_call.1} parent=11 // pred_check_branch
          %185 = sbr.rel (%p183) target = $region20
        $region19: #{tpu_custom_call.1} parent=11 // pred_region
          %s187 = ssub.s32 384, 384
          %188 = vsyncadd [#allocation6], %s187
          %s189 = sshll.u32 [#allocation7], 4
          %s190 = int_to_ptr.vmem [resolvable:$true] %s189
          %195 = dma.hbm_to_vmem [thread:$0]  %s2, 384, %s190, [#allocation6], 128, 128, 8
        $region20: #{tpu_custom_call.1} parent=11 // pred_fallthru
          _
        // Predicated region
        $region21: #{tpu_custom_call.1} parent=11 // pred_check
          %p196 = pneg %p108
        $region22: #{tpu_custom_call.1} parent=11 // pred_check_branch
          %198 = sbr.rel (%p196) target = $region24
        $region23: #{tpu_custom_call.1} parent=11 // pred_region
          _
        $region24: #{tpu_custom_call.1} parent=11 // pred_fallthru
          _
        // Predicated region
        $region25: #{tpu_custom_call.1} parent=11 // pred_check
          %p199 = pneg %p129
        $region26: #{tpu_custom_call.1} parent=11 // pred_check_branch
          %201 = sbr.rel (%p199) target = $region28
        $region27: #{tpu_custom_call.1} parent=11 // pred_region
          %s203 = ssub.s32 128, 128
          %204 = vsyncadd [#allocation9], %s203
          %s206 = sshll.u32 [#allocation8], 4
          %s207 = int_to_ptr.vmem [resolvable:$true] %s206
          %209 = dma.hbm_to_vmem [thread:$0]  %s4, 128, %s207, [#allocation9]
        $region28: #{tpu_custom_call.1} parent=11 // pred_fallthru
          _
      $region12: #{tpu_custom_call.1} parent=5 // pred_fallthru
        _
      %p210 = scmp.lt.s32.totalorder %s19, 2
      // Predicated region
      $region29: #{tpu_custom_call.1} parent=5 // pred_check
        %p211 = pneg %p210
      $region30: #{tpu_custom_call.1} parent=5 // pred_check_branch
        %213 = sbr.rel (%p211) target = $region32
      $region31: #{tpu_custom_call.1} parent=5 // pred_region
        // Predicated region
        $region33: #{tpu_custom_call.1} parent=31 // pred_check
          %p214 = pneg %p39
        $region34: #{tpu_custom_call.1} parent=31 // pred_check_branch
          %216 = sbr.rel (%p214) target = $region36
        $region35: #{tpu_custom_call.1} parent=31 // pred_region
          %s217 = sand.u32 %s29, 1
          %s218 = scalar_lea.sflag [#allocation3], %s217
          %s219 = sand.u32 %s29, 1
          %s220 = smul.addr %s219, 128
          %s221 = scalar_lea.vmem [#allocation2], %s220
          %s222 = smul.u32 16, %s19
          %s224 = ssub.s32 2048, 2048
          %225 = vsyncadd %s218, %s224
          %s226 = smul.addr %s222, 128
          %s227 = scalar_lea.hbm %s0, %s226
          %s228 = sshll.u32 %s221, 4
          %s229 = int_to_ptr.vmem [resolvable:$true] %s228
          %234 = dma.hbm_to_vmem [thread:$0]  %s227, 2048, %s229, %s218, 128, 128, 8
        $region36: #{tpu_custom_call.1} parent=31 // pred_fallthru
          _
      $region32: #{tpu_custom_call.1} parent=5 // pred_fallthru
        _
      %p235 = scmp.le.s32.totalorder 1, %s19
      %p236 = scmp.lt.s32.totalorder %s19, 3
      %p237 = pnand %p235, %p236
      %p238 = pneg %p237
      // Predicated region
      $region37: #{tpu_custom_call.1} parent=5 // pred_check
        _
      $region38: #{tpu_custom_call.1} parent=5 // pred_check_branch
        %240 = sbr.rel (%p237) target = $region40
      $region39: #{tpu_custom_call.1} parent=5 // pred_region
        %s241 = ssub.s32 %s19, 1
        %s242 = sand.u32 %s32, 1
        %s243 = scalar_lea.sflag [#allocation3], %s242
        %s244 = sand.u32 %s32, 1
        %s245 = smul.addr %s244, 128
        %s246 = scalar_lea.vmem [#allocation2], %s245
        // Predicated region
        $region41: #{tpu_custom_call.1} parent=39 // pred_check
          %p247 = pneg %p45
        $region42: #{tpu_custom_call.1} parent=39 // pred_check_branch
          %249 = sbr.rel (%p247) target = $region44
        $region43: #{tpu_custom_call.1} parent=39 // pred_region
          %250 = dma.done %s243, 2048
        $region44: #{tpu_custom_call.1} parent=39 // pred_fallthru
          _
        // Predicated region
        $region45: #{tpu_custom_call.1} parent=39 // pred_check
          %p251 = pneg %p66
        $region46: #{tpu_custom_call.1} parent=39 // pred_check_branch
          %253 = sbr.rel (%p251) target = $region48
        $region47: #{tpu_custom_call.1} parent=39 // pred_region
          %254 = dma.done [#allocation6], 18432
        $region48: #{tpu_custom_call.1} parent=39 // pred_fallthru
          _
        // Predicated region
        $region49: #{tpu_custom_call.1} parent=39 // pred_check
          %p255 = pneg %p87
        $region50: #{tpu_custom_call.1} parent=39 // pred_check_branch
          %257 = sbr.rel (%p255) target = $region52
        $region51: #{tpu_custom_call.1} parent=39 // pred_region
          %258 = dma.done [#allocation6], 384
        $region52: #{tpu_custom_call.1} parent=39 // pred_fallthru
          _
        // Predicated region
        $region53: #{tpu_custom_call.1} parent=39 // pred_check
          %p259 = pneg %p129
        $region54: #{tpu_custom_call.1} parent=39 // pred_check_branch
          %261 = sbr.rel (%p259) target = $region56
        $region55: #{tpu_custom_call.1} parent=39 // pred_region
          %262 = dma.done [#allocation9], 128
        $region56: #{tpu_custom_call.1} parent=39 // pred_fallthru
          _
        %s263 = sand.u32 %s32, 1
        %s264 = scalar_lea.sflag [#allocation3], %s263
        %s265 = sand.u32 %s32, 1
        %s266 = smul.addr %s265, 128
        %s267 = scalar_lea.vmem [#allocation2], %s266
        %p268 = pneg %p45
        %p269 = pneg %p42
        %p270 = pneg %p66
        %p271 = pneg %p63
        %p272 = pneg %p87
        %p273 = pneg %p84
        %p274 = pneg %p108
        %p275 = pneg %p105
        %p276 = pneg %p129
        %p277 = pneg %p126
        %p278 = pneg %p155
        %p279 = pneg %p152
        %s280 = sand.u32 %s142, 1
        %s281 = scalar_lea.sflag [#allocation4], %s280
        %s282 = sand.u32 %s142, 1
        %s283 = smul.addr %s282, 128
        %s284 = scalar_lea.vmem [#allocation10], %s283
        %s285 = smul.u32 16, %s24
        %s286 = smul.u32 16, %s24
        %v288 = vld [vmem:[%s246] sm:$0xff]
        %v289 = vld [vmem:[%s246 + $0x8] sm:$0xff]
        %v290 = vld [vmem:[%s246 + $0x10] sm:$0xff]
        %v291 = vld [vmem:[%s246 + $0x18] sm:$0xff]
        %v292 = vld [vmem:[%s246 + $0x20] sm:$0xff]
        %v293 = vld [vmem:[%s246 + $0x28] sm:$0xff]
        %v294 = vld [vmem:[%s246 + $0x30] sm:$0xff]
        %v295 = vld [vmem:[%s246 + $0x38] sm:$0xff]
        %v296 = vld [vmem:[%s246 + $0x40] sm:$0xff]
        %v297 = vld [vmem:[%s246 + $0x48] sm:$0xff]
        %v298 = vld [vmem:[%s246 + $0x50] sm:$0xff]
        %v299 = vld [vmem:[%s246 + $0x58] sm:$0xff]
        %v300 = vld [vmem:[%s246 + $0x60] sm:$0xff]
        %v301 = vld [vmem:[%s246 + $0x68] sm:$0xff]
        %v302 = vld [vmem:[%s246 + $0x70] sm:$0xff]
        %v303 = vld [vmem:[%s246 + $0x78] sm:$0xff]
        %v304 = vpack.c.bf16 %v289, %v288
        %v305 = vpack.c.bf16 %v291, %v290
        %v306 = vpack.c.bf16 %v293, %v292
        %v307 = vpack.c.bf16 %v295, %v294
        %v308 = vpack.c.bf16 %v297, %v296
        %v309 = vpack.c.bf16 %v299, %v298
        %v310 = vpack.c.bf16 %v301, %v300
        %v311 = vpack.c.bf16 %v303, %v302
        %v312 = vld [vmem:[#allocation5] sm:$0xf]
        %v313 = vld [vmem:[#allocation5 + $0x4] sm:$0xf]
        %v314 = vld [vmem:[#allocation5 + $0x8] sm:$0xf]
        %v315 = vld [vmem:[#allocation5 + $0xc] sm:$0xf]
        %v316 = vld [vmem:[#allocation5 + $0x10] sm:$0xf]
        %v317 = vld [vmem:[#allocation5 + $0x14] sm:$0xf]
        %v318 = vld [vmem:[#allocation5 + $0x18] sm:$0xf]
        %v319 = vld [vmem:[#allocation5 + $0x1c] sm:$0xf]
        %v320 = vld [vmem:[#allocation5 + $0x20] sm:$0xf]
        %v321 = vld [vmem:[#allocation5 + $0x24] sm:$0xf]
        %v322 = vld [vmem:[#allocation5 + $0x28] sm:$0xf]
        %v323 = vld [vmem:[#allocation5 + $0x2c] sm:$0xf]
        %v324 = vld [vmem:[#allocation5 + $0x30] sm:$0xf]
        %v325 = vld [vmem:[#allocation5 + $0x34] sm:$0xf]
        %v326 = vld [vmem:[#allocation5 + $0x38] sm:$0xf]
        %v327 = vld [vmem:[#allocation5 + $0x3c] sm:$0xf]
        %v328 = vld [vmem:[#allocation7] sm:$0x1]
        %v329 = vlaneseq
        %v330 = vshrl.u32 %v329, 7
        %v331 = vsub.s32 0, %v330
        %v332 = vrot.slane %v328, %v331
        %v349 = vunpack.c.l.b16 %v312
        %v350 = vunpack.c.l.b16 %v313
        %v351 = vunpack.c.l.b16 %v314
        %v352 = vunpack.c.l.b16 %v315
        %v353 = vunpack.c.l.b16 %v316
        %v354 = vunpack.c.l.b16 %v317
        %v355 = vunpack.c.l.b16 %v318
        %v356 = vunpack.c.l.b16 %v319
        %v357 = vunpack.c.l.b16 %v320
        %v358 = vunpack.c.l.b16 %v321
        %v359 = vunpack.c.l.b16 %v322
        %v360 = vunpack.c.l.b16 %v323
        %v361 = vunpack.c.l.b16 %v324
        %v362 = vunpack.c.l.b16 %v325
        %v363 = vunpack.c.l.b16 %v326
        %v364 = vunpack.c.l.b16 %v327
        %v365 = vpack.c.b16 %v350, %v349
        %v366 = vpack.c.b16 %v352, %v351
        %v367 = vpack.c.b16 %v354, %v353
        %v368 = vpack.c.b16 %v356, %v355
        %v369 = vpack.c.b16 %v358, %v357
        %v370 = vpack.c.b16 %v360, %v359
        %v371 = vpack.c.b16 %v362, %v361
        %v372 = vpack.c.b16 %v364, %v363
        %381 = vmatprep.subr.bf16.mxu0 0
        %382 = vmatpush1.bf16.msra.mxu0 %v365
        %383 = vmatprep.subr.bf16.mxu0 0
        %384 = vmatpush1.bf16.msra.mxu0 %v366
        %385 = vmatprep.subr.bf16.mxu0 0
        %386 = vmatpush1.bf16.msra.mxu0 %v367
        %387 = vmatprep.subr.bf16.mxu0 0
        %388 = vmatpush1.bf16.msra.mxu0 %v368
        %389 = vmatprep.subr.bf16.mxu0 0
        %390 = vmatpush1.bf16.msra.mxu0 %v369
        %391 = vmatprep.subr.bf16.mxu0 0
        %392 = vmatpush1.bf16.msra.mxu0 %v370
        %393 = vmatprep.subr.bf16.mxu0 0
        %394 = vmatpush1.bf16.msra.mxu0 %v371
        %395 = vmatprep.subr.bf16.mxu0 0
        %396 = vmatpush1.bf16.msra.mxu0 %v372
        %397 = vmatprep.subr.bf16.mxu0 0
        %398 = vmatpush1.bf16.msra.mxu0 0
        %399 = vmatprep.subr.bf16.mxu0 0
        %400 = vmatpush1.bf16.msra.mxu0 0
        %401 = vmatprep.subr.bf16.mxu0 0
        %402 = vmatpush1.bf16.msra.mxu0 0
        %403 = vmatprep.subr.bf16.mxu0 0
        %404 = vmatpush1.bf16.msra.mxu0 0
        %405 = vmatprep.subr.bf16.mxu0 0
        %406 = vmatpush1.bf16.msra.mxu0 0
        %407 = vmatprep.subr.bf16.mxu0 0
        %408 = vmatpush1.bf16.msra.mxu0 0
        %409 = vmatprep.subr.bf16.mxu0 0
        %410 = vmatpush1.bf16.msra.mxu0 0
        %411 = vmatprep.subr.bf16.mxu0 0
        %412 = vmatpush1.bf16.msra.mxu0 0
        %413 = vmatprep.mubr.bf16.mxu0 0
        %414 = vmatmul.mubr.bf16.gmra.mrb[0].mxu0 %v304
        %v415 = vpop.f32.mrb[0].mxu0
        %v416 = vadd.f32 %v332, %v415
        %v417 = vpop.f32.mrb[0].mxu0
        %v418 = vpop.f32.mrb[0].mxu0
        %v419 = vadd.f32 %v332, %v418
        %v420 = vpop.f32.mrb[0].mxu0
        %421 = vmatprep.mubr.bf16.mxu0 0
        %422 = vmatmul.mubr.bf16.gmra.mrb[0].mxu0 %v305
        %v423 = vpop.f32.mrb[0].mxu0
        %v424 = vadd.f32 %v332, %v423
        %v425 = vpop.f32.mrb[0].mxu0
        %v426 = vpop.f32.mrb[0].mxu0
        %v427 = vadd.f32 %v332, %v426
        %v428 = vpop.f32.mrb[0].mxu0
        %429 = vmatprep.mubr.bf16.mxu0 0
        %430 = vmatmul.mubr.bf16.gmra.mrb[0].mxu0 %v306
        %v431 = vpop.f32.mrb[0].mxu0
        %v432 = vadd.f32 %v332, %v431
        %v433 = vpop.f32.mrb[0].mxu0
        %v434 = vpop.f32.mrb[0].mxu0
        %v435 = vadd.f32 %v332, %v434
        %v436 = vpop.f32.mrb[0].mxu0
        %437 = vmatprep.mubr.bf16.mxu0 0
        %438 = vmatmul.mubr.bf16.gmra.mrb[0].mxu0 %v307
        %v439 = vpop.f32.mrb[0].mxu0
        %v440 = vadd.f32 %v332, %v439
        %v441 = vpop.f32.mrb[0].mxu0
        %v442 = vpop.f32.mrb[0].mxu0
        %v443 = vadd.f32 %v332, %v442
        %v444 = vpop.f32.mrb[0].mxu0
        %445 = vmatprep.mubr.bf16.mxu0 0
        %446 = vmatmul.mubr.bf16.gmra.mrb[0].mxu0 %v308
        %v447 = vpop.f32.mrb[0].mxu0
        %v448 = vadd.f32 %v332, %v447
        %v449 = vpop.f32.mrb[0].mxu0
        %v450 = vpop.f32.mrb[0].mxu0
        %v451 = vadd.f32 %v332, %v450
        %v452 = vpop.f32.mrb[0].mxu0
        %453 = vmatprep.mubr.bf16.mxu0 0
        %454 = vmatmul.mubr.bf16.gmra.mrb[0].mxu0 %v309
        %v455 = vpop.f32.mrb[0].mxu0
        %v456 = vadd.f32 %v332, %v455
        %v457 = vpop.f32.mrb[0].mxu0
        %v458 = vpop.f32.mrb[0].mxu0
        %v459 = vadd.f32 %v332, %v458
        %v460 = vpop.f32.mrb[0].mxu0
        %461 = vmatprep.mubr.bf16.mxu0 0
        %462 = vmatmul.mubr.bf16.gmra.mrb[0].mxu0 %v310
        %v463 = vpop.f32.mrb[0].mxu0
        %v464 = vadd.f32 %v332, %v463
        %v465 = vpop.f32.mrb[0].mxu0
        %v466 = vpop.f32.mrb[0].mxu0
        %v467 = vadd.f32 %v332, %v466
        %v468 = vpop.f32.mrb[0].mxu0
        %469 = vmatprep.mubr.bf16.mxu0 0
        %470 = vmatmul.mubr.bf16.gmra.mrb[0].mxu0 %v311
        %v471 = vpop.f32.mrb[0].mxu0
        %v472 = vadd.f32 %v332, %v471
        %v473 = vpop.f32.mrb[0].mxu0
        %v474 = vpop.f32.mrb[0].mxu0
        %v475 = vadd.f32 %v332, %v474
        %v476 = vpop.f32.mrb[0].mxu0
        %477 = vdwg.mxu0
        %v478 = vmax.f32 %v416, 0.0
        %v479 = vmax.f32 %v419, 0.0
        %v480 = vmax.f32 %v424, 0.0
        %v481 = vmax.f32 %v427, 0.0
        %v482 = vmax.f32 %v432, 0.0
        %v483 = vmax.f32 %v435, 0.0
        %v484 = vmax.f32 %v440, 0.0
        %v485 = vmax.f32 %v443, 0.0
        %v486 = vmax.f32 %v448, 0.0
        %v487 = vmax.f32 %v451, 0.0
        %v488 = vmax.f32 %v456, 0.0
        %v489 = vmax.f32 %v459, 0.0
        %v490 = vmax.f32 %v464, 0.0
        %v491 = vmax.f32 %v467, 0.0
        %v492 = vmax.f32 %v472, 0.0
        %v493 = vmax.f32 %v475, 0.0
        %v494 = vpack.c.bf16 %v479, %v478
        %v495 = vpack.c.bf16 %v481, %v480
        %v496 = vpack.c.bf16 %v483, %v482
        %v497 = vpack.c.bf16 %v485, %v484
        %v498 = vpack.c.bf16 %v487, %v486
        %v499 = vpack.c.bf16 %v489, %v488
        %v500 = vpack.c.bf16 %v491, %v490
        %v501 = vpack.c.bf16 %v493, %v492
        %s502 = scalar_lea.vmem [#allocation5], 64
        %v503 = vld [vmem:[%s502] sm:$0xf]
        %v504 = vld [vmem:[%s502 + $0x4] sm:$0xf]
        %v505 = vld [vmem:[%s502 + $0x8] sm:$0xf]
        %v506 = vld [vmem:[%s502 + $0xc] sm:$0xf]
        %v507 = vld [vmem:[%s502 + $0x10] sm:$0xf]
        %v508 = vld [vmem:[%s502 + $0x14] sm:$0xf]
        %v509 = vld [vmem:[%s502 + $0x18] sm:$0xf]
        %v510 = vld [vmem:[%s502 + $0x1c] sm:$0xf]
        %v511 = vld [vmem:[%s502 + $0x20] sm:$0xf]
        %v512 = vld [vmem:[%s502 + $0x24] sm:$0xf]
        %v513 = vld [vmem:[%s502 + $0x28] sm:$0xf]
        %v514 = vld [vmem:[%s502 + $0x2c] sm:$0xf]
        %v515 = vld [vmem:[%s502 + $0x30] sm:$0xf]
        %v516 = vld [vmem:[%s502 + $0x34] sm:$0xf]
        %v517 = vld [vmem:[%s502 + $0x38] sm:$0xf]
        %v518 = vld [vmem:[%s502 + $0x3c] sm:$0xf]
        %v519 = vld [vmem:[#allocation7 + $0x1] sm:$0x1]
        %v520 = vlaneseq
        %v521 = vshrl.u32 %v520, 7
        %v522 = vsub.s32 0, %v521
        %v523 = vrot.slane %v519, %v522
        %v540 = vunpack.c.l.b16 %v503
        %v541 = vunpack.c.l.b16 %v504
        %v542 = vunpack.c.l.b16 %v505
        %v543 = vunpack.c.l.b16 %v506
        %v544 = vunpack.c.l.b16 %v507
        %v545 = vunpack.c.l.b16 %v508
        %v546 = vunpack.c.l.b16 %v509
        %v547 = vunpack.c.l.b16 %v510
        %v548 = vunpack.c.l.b16 %v511
        %v549 = vunpack.c.l.b16 %v512
        %v550 = vunpack.c.l.b16 %v513
        %v551 = vunpack.c.l.b16 %v514
        %v552 = vunpack.c.l.b16 %v515
        %v553 = vunpack.c.l.b16 %v516
        %v554 = vunpack.c.l.b16 %v517
        %v555 = vunpack.c.l.b16 %v518
        %v556 = vpack.c.b16 %v541, %v540
        %v557 = vpack.c.b16 %v543, %v542
        %v558 = vpack.c.b16 %v545, %v544
        %v559 = vpack.c.b16 %v547, %v546
        %v560 = vpack.c.b16 %v549, %v548
        %v561 = vpack.c.b16 %v551, %v550
        %v562 = vpack.c.b16 %v553, %v552
        %v563 = vpack.c.b16 %v555, %v554
        %572 = vmatprep.subr.bf16.mxu0 0
        %573 = vmatpush1.bf16.msra.mxu0 %v556
        %574 = vmatprep.subr.bf16.mxu0 0
        %575 = vmatpush1.bf16.msra.mxu0 %v557
        %576 = vmatprep.subr.bf16.mxu0 0
        %577 = vmatpush1.bf16.msra.mxu0 %v558
        %578 = vmatprep.subr.bf16.mxu0 0
        %579 = vmatpush1.bf16.msra.mxu0 %v559
        %580 = vmatprep.subr.bf16.mxu0 0
        %581 = vmatpush1.bf16.msra.mxu0 %v560
        %582 = vmatprep.subr.bf16.mxu0 0
        %583 = vmatpush1.bf16.msra.mxu0 %v561
        %584 = vmatprep.subr.bf16.mxu0 0
        %585 = vmatpush1.bf16.msra.mxu0 %v562
        %586 = vmatprep.subr.bf16.mxu0 0
        %587 = vmatpush1.bf16.msra.mxu0 %v563
        %588 = vmatprep.subr.bf16.mxu0 0
        %589 = vmatpush1.bf16.msra.mxu0 0
        %590 = vmatprep.subr.bf16.mxu0 0
        %591 = vmatpush1.bf16.msra.mxu0 0
        %592 = vmatprep.subr.bf16.mxu0 0
        %593 = vmatpush1.bf16.msra.mxu0 0
        %594 = vmatprep.subr.bf16.mxu0 0
        %595 = vmatpush1.bf16.msra.mxu0 0
        %596 = vmatprep.subr.bf16.mxu0 0
        %597 = vmatpush1.bf16.msra.mxu0 0
        %598 = vmatprep.subr.bf16.mxu0 0
        %599 = vmatpush1.bf16.msra.mxu0 0
        %600 = vmatprep.subr.bf16.mxu0 0
        %601 = vmatpush1.bf16.msra.mxu0 0
        %602 = vmatprep.subr.bf16.mxu0 0
        %603 = vmatpush1.bf16.msra.mxu0 0
        %604 = vmatprep.mubr.bf16.mxu0 0
        %605 = vmatmul.mubr.bf16.gmra.mrb[0].mxu0 %v494
        %v606 = vpop.f32.mrb[0].mxu0
        %v607 = vadd.f32 %v523, %v606
        %v608 = vpop.f32.mrb[0].mxu0
        %v609 = vpop.f32.mrb[0].mxu0
        %v610 = vadd.f32 %v523, %v609
        %v611 = vpop.f32.mrb[0].mxu0
        %612 = vmatprep.mubr.bf16.mxu0 0
        %613 = vmatmul.mubr.bf16.gmra.mrb[0].mxu0 %v495
        %v614 = vpop.f32.mrb[0].mxu0
        %v615 = vadd.f32 %v523, %v614
        %v616 = vpop.f32.mrb[0].mxu0
        %v617 = vpop.f32.mrb[0].mxu0
        %v618 = vadd.f32 %v523, %v617
        %v619 = vpop.f32.mrb[0].mxu0
        %620 = vmatprep.mubr.bf16.mxu0 0
        %621 = vmatmul.mubr.bf16.gmra.mrb[0].mxu0 %v496
        %v622 = vpop.f32.mrb[0].mxu0
        %v623 = vadd.f32 %v523, %v622
        %v624 = vpop.f32.mrb[0].mxu0
        %v625 = vpop.f32.mrb[0].mxu0
        %v626 = vadd.f32 %v523, %v625
        %v627 = vpop.f32.mrb[0].mxu0
        %628 = vmatprep.mubr.bf16.mxu0 0
        %629 = vmatmul.mubr.bf16.gmra.mrb[0].mxu0 %v497
        %v630 = vpop.f32.mrb[0].mxu0
        %v631 = vadd.f32 %v523, %v630
        %v632 = vpop.f32.mrb[0].mxu0
        %v633 = vpop.f32.mrb[0].mxu0
        %v634 = vadd.f32 %v523, %v633
        %v635 = vpop.f32.mrb[0].mxu0
        %636 = vmatprep.mubr.bf16.mxu0 0
        %637 = vmatmul.mubr.bf16.gmra.mrb[0].mxu0 %v498
        %v638 = vpop.f32.mrb[0].mxu0
        %v639 = vadd.f32 %v523, %v638
        %v640 = vpop.f32.mrb[0].mxu0
        %v641 = vpop.f32.mrb[0].mxu0
        %v642 = vadd.f32 %v523, %v641
        %v643 = vpop.f32.mrb[0].mxu0
        %644 = vmatprep.mubr.bf16.mxu0 0
        %645 = vmatmul.mubr.bf16.gmra.mrb[0].mxu0 %v499
        %v646 = vpop.f32.mrb[0].mxu0
        %v647 = vadd.f32 %v523, %v646
        %v648 = vpop.f32.mrb[0].mxu0
        %v649 = vpop.f32.mrb[0].mxu0
        %v650 = vadd.f32 %v523, %v649
        %v651 = vpop.f32.mrb[0].mxu0
        %652 = vmatprep.mubr.bf16.mxu0 0
        %653 = vmatmul.mubr.bf16.gmra.mrb[0].mxu0 %v500
        %v654 = vpop.f32.mrb[0].mxu0
        %v655 = vadd.f32 %v523, %v654
        %v656 = vpop.f32.mrb[0].mxu0
        %v657 = vpop.f32.mrb[0].mxu0
        %v658 = vadd.f32 %v523, %v657
        %v659 = vpop.f32.mrb[0].mxu0
        %660 = vmatprep.mubr.bf16.mxu0 0
        %661 = vmatmul.mubr.bf16.gmra.mrb[0].mxu0 %v501
        %v662 = vpop.f32.mrb[0].mxu0
        %v663 = vadd.f32 %v523, %v662
        %v664 = vpop.f32.mrb[0].mxu0
        %v665 = vpop.f32.mrb[0].mxu0
        %v666 = vadd.f32 %v523, %v665
        %v667 = vpop.f32.mrb[0].mxu0
        %668 = vdwg.mxu0
        %v669 = vmax.f32 %v607, 0.0
        %v670 = vmax.f32 %v610, 0.0
        %v671 = vmax.f32 %v615, 0.0
        %v672 = vmax.f32 %v618, 0.0
        %v673 = vmax.f32 %v623, 0.0
        %v674 = vmax.f32 %v626, 0.0
        %v675 = vmax.f32 %v631, 0.0
        %v676 = vmax.f32 %v634, 0.0
        %v677 = vmax.f32 %v639, 0.0
        %v678 = vmax.f32 %v642, 0.0
        %v679 = vmax.f32 %v647, 0.0
        %v680 = vmax.f32 %v650, 0.0
        %v681 = vmax.f32 %v655, 0.0
        %v682 = vmax.f32 %v658, 0.0
        %v683 = vmax.f32 %v663, 0.0
        %v684 = vmax.f32 %v666, 0.0
        %v685 = vpack.c.bf16 %v670, %v669
        %v686 = vpack.c.bf16 %v672, %v671
        %v687 = vpack.c.bf16 %v674, %v673
        %v688 = vpack.c.bf16 %v676, %v675
        %v689 = vpack.c.bf16 %v678, %v677
        %v690 = vpack.c.bf16 %v680, %v679
        %v691 = vpack.c.bf16 %v682, %v681
        %v692 = vpack.c.bf16 %v684, %v683
        %s693 = scalar_lea.vmem [#allocation5], 128
        %v694 = vld [vmem:[%s693] sm:$0xf]
        %v695 = vld [vmem:[%s693 + $0x4] sm:$0xf]
        %v696 = vld [vmem:[%s693 + $0x8] sm:$0xf]
        %v697 = vld [vmem:[%s693 + $0xc] sm:$0xf]
        %v698 = vld [vmem:[%s693 + $0x10] sm:$0xf]
        %v699 = vld [vmem:[%s693 + $0x14] sm:$0xf]
        %v700 = vld [vmem:[%s693 + $0x18] sm:$0xf]
        %v701 = vld [vmem:[%s693 + $0x1c] sm:$0xf]
        %v702 = vld [vmem:[%s693 + $0x20] sm:$0xf]
        %v703 = vld [vmem:[%s693 + $0x24] sm:$0xf]
        %v704 = vld [vmem:[%s693 + $0x28] sm:$0xf]
        %v705 = vld [vmem:[%s693 + $0x2c] sm:$0xf]
        %v706 = vld [vmem:[%s693 + $0x30] sm:$0xf]
        %v707 = vld [vmem:[%s693 + $0x34] sm:$0xf]
        %v708 = vld [vmem:[%s693 + $0x38] sm:$0xf]
        %v709 = vld [vmem:[%s693 + $0x3c] sm:$0xf]
        %v710 = vld [vmem:[#allocation7 + $0x2] sm:$0x1]
        %v711 = vlaneseq
        %v712 = vshrl.u32 %v711, 7
        %v713 = vsub.s32 0, %v712
        %v714 = vrot.slane %v710, %v713
        %v731 = vunpack.c.l.b16 %v694
        %v732 = vunpack.c.l.b16 %v695
        %v733 = vunpack.c.l.b16 %v696
        %v734 = vunpack.c.l.b16 %v697
        %v735 = vunpack.c.l.b16 %v698
        %v736 = vunpack.c.l.b16 %v699
        %v737 = vunpack.c.l.b16 %v700
        %v738 = vunpack.c.l.b16 %v701
        %v739 = vunpack.c.l.b16 %v702
        %v740 = vunpack.c.l.b16 %v703
        %v741 = vunpack.c.l.b16 %v704
        %v742 = vunpack.c.l.b16 %v705
        %v743 = vunpack.c.l.b16 %v706
        %v744 = vunpack.c.l.b16 %v707
        %v745 = vunpack.c.l.b16 %v708
        %v746 = vunpack.c.l.b16 %v709
        %v747 = vpack.c.b16 %v732, %v731
        %v748 = vpack.c.b16 %v734, %v733
        %v749 = vpack.c.b16 %v736, %v735
        %v750 = vpack.c.b16 %v738, %v737
        %v751 = vpack.c.b16 %v740, %v739
        %v752 = vpack.c.b16 %v742, %v741
        %v753 = vpack.c.b16 %v744, %v743
        %v754 = vpack.c.b16 %v746, %v745
        %763 = vmatprep.subr.bf16.mxu0 0
        %764 = vmatpush1.bf16.msra.mxu0 %v747
        %765 = vmatprep.subr.bf16.mxu0 0
        %766 = vmatpush1.bf16.msra.mxu0 %v748
        %767 = vmatprep.subr.bf16.mxu0 0
        %768 = vmatpush1.bf16.msra.mxu0 %v749
        %769 = vmatprep.subr.bf16.mxu0 0
        %770 = vmatpush1.bf16.msra.mxu0 %v750
        %771 = vmatprep.subr.bf16.mxu0 0
        %772 = vmatpush1.bf16.msra.mxu0 %v751
        %773 = vmatprep.subr.bf16.mxu0 0
        %774 = vmatpush1.bf16.msra.mxu0 %v752
        %775 = vmatprep.subr.bf16.mxu0 0
        %776 = vmatpush1.bf16.msra.mxu0 %v753
        %777 = vmatprep.subr.bf16.mxu0 0
        %778 = vmatpush1.bf16.msra.mxu0 %v754
        %779 = vmatprep.subr.bf16.mxu0 0
        %780 = vmatpush1.bf16.msra.mxu0 0
        %781 = vmatprep.subr.bf16.mxu0 0
        %782 = vmatpush1.bf16.msra.mxu0 0
        %783 = vmatprep.subr.bf16.mxu0 0
        %784 = vmatpush1.bf16.msra.mxu0 0
        %785 = vmatprep.subr.bf16.mxu0 0
        %786 = vmatpush1.bf16.msra.mxu0 0
        %787 = vmatprep.subr.bf16.mxu0 0
        %788 = vmatpush1.bf16.msra.mxu0 0
        %789 = vmatprep.subr.bf16.mxu0 0
        %790 = vmatpush1.bf16.msra.mxu0 0
        %791 = vmatprep.subr.bf16.mxu0 0
        %792 = vmatpush1.bf16.msra.mxu0 0
        %793 = vmatprep.subr.bf16.mxu0 0
        %794 = vmatpush1.bf16.msra.mxu0 0
        %795 = vmatprep.mubr.bf16.mxu0 0
        %796 = vmatmul.mubr.bf16.gmra.mrb[0].mxu0 %v685
        %v797 = vpop.f32.mrb[0].mxu0
        %v798 = vadd.f32 %v714, %v797
        %v799 = vpop.f32.mrb[0].mxu0
        %v800 = vpop.f32.mrb[0].mxu0
        %v801 = vadd.f32 %v714, %v800
        %v802 = vpop.f32.mrb[0].mxu0
        %803 = vmatprep.mubr.bf16.mxu0 0
        %804 = vmatmul.mubr.bf16.gmra.mrb[0].mxu0 %v686
        %v805 = vpop.f32.mrb[0].mxu0
        %v806 = vadd.f32 %v714, %v805
        %v807 = vpop.f32.mrb[0].mxu0
        %v808 = vpop.f32.mrb[0].mxu0
        %v809 = vadd.f32 %v714, %v808
        %v810 = vpop.f32.mrb[0].mxu0
        %811 = vmatprep.mubr.bf16.mxu0 0
        %812 = vmatmul.mubr.bf16.gmra.mrb[0].mxu0 %v687
        %v813 = vpop.f32.mrb[0].mxu0
        %v814 = vadd.f32 %v714, %v813
        %v815 = vpop.f32.mrb[0].mxu0
        %v816 = vpop.f32.mrb[0].mxu0
        %v817 = vadd.f32 %v714, %v816
        %v818 = vpop.f32.mrb[0].mxu0
        %819 = vmatprep.mubr.bf16.mxu0 0
        %820 = vmatmul.mubr.bf16.gmra.mrb[0].mxu0 %v688
        %v821 = vpop.f32.mrb[0].mxu0
        %v822 = vadd.f32 %v714, %v821
        %v823 = vpop.f32.mrb[0].mxu0
        %v824 = vpop.f32.mrb[0].mxu0
        %v825 = vadd.f32 %v714, %v824
        %v826 = vpop.f32.mrb[0].mxu0
        %827 = vmatprep.mubr.bf16.mxu0 0
        %828 = vmatmul.mubr.bf16.gmra.mrb[0].mxu0 %v689
        %v829 = vpop.f32.mrb[0].mxu0
        %v830 = vadd.f32 %v714, %v829
        %v831 = vpop.f32.mrb[0].mxu0
        %v832 = vpop.f32.mrb[0].mxu0
        %v833 = vadd.f32 %v714, %v832
        %v834 = vpop.f32.mrb[0].mxu0
        %835 = vmatprep.mubr.bf16.mxu0 0
        %836 = vmatmul.mubr.bf16.gmra.mrb[0].mxu0 %v690
        %v837 = vpop.f32.mrb[0].mxu0
        %v838 = vadd.f32 %v714, %v837
        %v839 = vpop.f32.mrb[0].mxu0
        %v840 = vpop.f32.mrb[0].mxu0
        %v841 = vadd.f32 %v714, %v840
        %v842 = vpop.f32.mrb[0].mxu0
        %843 = vmatprep.mubr.bf16.mxu0 0
        %844 = vmatmul.mubr.bf16.gmra.mrb[0].mxu0 %v691
        %v845 = vpop.f32.mrb[0].mxu0
        %v846 = vadd.f32 %v714, %v845
        %v847 = vpop.f32.mrb[0].mxu0
        %v848 = vpop.f32.mrb[0].mxu0
        %v849 = vadd.f32 %v714, %v848
        %v850 = vpop.f32.mrb[0].mxu0
        %851 = vmatprep.mubr.bf16.mxu0 0
        %852 = vmatmul.mubr.bf16.gmra.mrb[0].mxu0 %v692
        %v853 = vpop.f32.mrb[0].mxu0
        %v854 = vadd.f32 %v714, %v853
        %v855 = vpop.f32.mrb[0].mxu0
        %v856 = vpop.f32.mrb[0].mxu0
        %v857 = vadd.f32 %v714, %v856
        %v858 = vpop.f32.mrb[0].mxu0
        %859 = vdwg.mxu0
        %v860 = vadd.f32 %v798, %v288
        %v861 = vadd.f32 %v801, %v289
        %v862 = vadd.f32 %v806, %v290
        %v863 = vadd.f32 %v809, %v291
        %v864 = vadd.f32 %v814, %v292
        %v865 = vadd.f32 %v817, %v293
        %v866 = vadd.f32 %v822, %v294
        %v867 = vadd.f32 %v825, %v295
        %v868 = vadd.f32 %v830, %v296
        %v869 = vadd.f32 %v833, %v297
        %v870 = vadd.f32 %v838, %v298
        %v871 = vadd.f32 %v841, %v299
        %v872 = vadd.f32 %v846, %v300
        %v873 = vadd.f32 %v849, %v301
        %v874 = vadd.f32 %v854, %v302
        %v875 = vadd.f32 %v857, %v303
        %876 = vadd.xlane.f32.xlu0 %v860
        %v877 = vpop.xlane.xlu0 %876
        %878 = vadd.xlane.f32.xlu0 %v861
        %v879 = vpop.xlane.xlu0 %878
        %880 = vadd.xlane.f32.xlu0 %v862
        %v881 = vpop.xlane.xlu0 %880
        %882 = vadd.xlane.f32.xlu0 %v863
        %v883 = vpop.xlane.xlu0 %882
        %884 = vadd.xlane.f32.xlu0 %v864
        %v885 = vpop.xlane.xlu0 %884
        %886 = vadd.xlane.f32.xlu0 %v865
        %v887 = vpop.xlane.xlu0 %886
        %888 = vadd.xlane.f32.xlu0 %v866
        %v889 = vpop.xlane.xlu0 %888
        %890 = vadd.xlane.f32.xlu0 %v867
        %v891 = vpop.xlane.xlu0 %890
        %892 = vadd.xlane.f32.xlu0 %v868
        %v893 = vpop.xlane.xlu0 %892
        %894 = vadd.xlane.f32.xlu0 %v869
        %v895 = vpop.xlane.xlu0 %894
        %896 = vadd.xlane.f32.xlu0 %v870
        %v897 = vpop.xlane.xlu0 %896
        %898 = vadd.xlane.f32.xlu0 %v871
        %v899 = vpop.xlane.xlu0 %898
        %900 = vadd.xlane.f32.xlu0 %v872
        %v901 = vpop.xlane.xlu0 %900
        %902 = vadd.xlane.f32.xlu0 %v873
        %v903 = vpop.xlane.xlu0 %902
        %904 = vadd.xlane.f32.xlu0 %v874
        %v905 = vpop.xlane.xlu0 %904
        %906 = vadd.xlane.f32.xlu0 %v875
        %v907 = vpop.xlane.xlu0 %906
        %v908 = vrcp.pop 128.0
        %v909 = vmul.f32 %v877, %v908
        %v910 = vmul.f32 %v879, %v908
        %v911 = vmul.f32 %v881, %v908
        %v912 = vmul.f32 %v883, %v908
        %v913 = vmul.f32 %v885, %v908
        %v914 = vmul.f32 %v887, %v908
        %v915 = vmul.f32 %v889, %v908
        %v916 = vmul.f32 %v891, %v908
        %v917 = vmul.f32 %v893, %v908
        %v918 = vmul.f32 %v895, %v908
        %v919 = vmul.f32 %v897, %v908
        %v920 = vmul.f32 %v899, %v908
        %v921 = vmul.f32 %v901, %v908
        %v922 = vmul.f32 %v903, %v908
        %v923 = vmul.f32 %v905, %v908
        %v924 = vmul.f32 %v907, %v908
        %v925 = vmul.f32 %v860, %v860
        %v926 = vmul.f32 %v861, %v861
        %v927 = vmul.f32 %v862, %v862
        %v928 = vmul.f32 %v863, %v863
        %v929 = vmul.f32 %v864, %v864
        %v930 = vmul.f32 %v865, %v865
        %v931 = vmul.f32 %v866, %v866
        %v932 = vmul.f32 %v867, %v867
        %v933 = vmul.f32 %v868, %v868
        %v934 = vmul.f32 %v869, %v869
        %v935 = vmul.f32 %v870, %v870
        %v936 = vmul.f32 %v871, %v871
        %v937 = vmul.f32 %v872, %v872
        %v938 = vmul.f32 %v873, %v873
        %v939 = vmul.f32 %v874, %v874
        %v940 = vmul.f32 %v875, %v875
        %941 = vadd.xlane.f32.xlu0 %v925
        %v942 = vpop.xlane.xlu0 %941
        %943 = vadd.xlane.f32.xlu0 %v926
        %v944 = vpop.xlane.xlu0 %943
        %945 = vadd.xlane.f32.xlu0 %v927
        %v946 = vpop.xlane.xlu0 %945
        %947 = vadd.xlane.f32.xlu0 %v928
        %v948 = vpop.xlane.xlu0 %947
        %949 = vadd.xlane.f32.xlu0 %v929
        %v950 = vpop.xlane.xlu0 %949
        %951 = vadd.xlane.f32.xlu0 %v930
        %v952 = vpop.xlane.xlu0 %951
        %953 = vadd.xlane.f32.xlu0 %v931
        %v954 = vpop.xlane.xlu0 %953
        %955 = vadd.xlane.f32.xlu0 %v932
        %v956 = vpop.xlane.xlu0 %955
        %957 = vadd.xlane.f32.xlu0 %v933
        %v958 = vpop.xlane.xlu0 %957
        %959 = vadd.xlane.f32.xlu0 %v934
        %v960 = vpop.xlane.xlu0 %959
        %961 = vadd.xlane.f32.xlu0 %v935
        %v962 = vpop.xlane.xlu0 %961
        %963 = vadd.xlane.f32.xlu0 %v936
        %v964 = vpop.xlane.xlu0 %963
        %965 = vadd.xlane.f32.xlu0 %v937
        %v966 = vpop.xlane.xlu0 %965
        %967 = vadd.xlane.f32.xlu0 %v938
        %v968 = vpop.xlane.xlu0 %967
        %969 = vadd.xlane.f32.xlu0 %v939
        %v970 = vpop.xlane.xlu0 %969
        %971 = vadd.xlane.f32.xlu0 %v940
        %v972 = vpop.xlane.xlu0 %971
        %v973 = vmul.f32 %v942, %v908
        %v974 = vmul.f32 %v944, %v908
        %v975 = vmul.f32 %v946, %v908
        %v976 = vmul.f32 %v948, %v908
        %v977 = vmul.f32 %v950, %v908
        %v978 = vmul.f32 %v952, %v908
        %v979 = vmul.f32 %v954, %v908
        %v980 = vmul.f32 %v956, %v908
        %v981 = vmul.f32 %v958, %v908
        %v982 = vmul.f32 %v960, %v908
        %v983 = vmul.f32 %v962, %v908
        %v984 = vmul.f32 %v964, %v908
        %v985 = vmul.f32 %v966, %v908
        %v986 = vmul.f32 %v968, %v908
        %v987 = vmul.f32 %v970, %v908
        %v988 = vmul.f32 %v972, %v908
        %v989 = vmul.f32 %v909, %v909
        %v990 = vmul.f32 %v910, %v910
        %v991 = vmul.f32 %v911, %v911
        %v992 = vmul.f32 %v912, %v912
        %v993 = vmul.f32 %v913, %v913
        %v994 = vmul.f32 %v914, %v914
        %v995 = vmul.f32 %v915, %v915
        %v996 = vmul.f32 %v916, %v916
        %v997 = vmul.f32 %v917, %v917
        %v998 = vmul.f32 %v918, %v918
        %v999 = vmul.f32 %v919, %v919
        %v1000 = vmul.f32 %v920, %v920
        %v1001 = vmul.f32 %v921, %v921
        %v1002 = vmul.f32 %v922, %v922
        %v1003 = vmul.f32 %v923, %v923
        %v1004 = vmul.f32 %v924, %v924
        %v1005 = vsub.f32 %v973, %v989
        %v1006 = vsub.f32 %v974, %v990
        %v1007 = vsub.f32 %v975, %v991
        %v1008 = vsub.f32 %v976, %v992
        %v1009 = vsub.f32 %v977, %v993
        %v1010 = vsub.f32 %v978, %v994
        %v1011 = vsub.f32 %v979, %v995
        %v1012 = vsub.f32 %v980, %v996
        %v1013 = vsub.f32 %v981, %v997
        %v1014 = vsub.f32 %v982, %v998
        %v1015 = vsub.f32 %v983, %v999
        %v1016 = vsub.f32 %v984, %v1000
        %v1017 = vsub.f32 %v985, %v1001
        %v1018 = vsub.f32 %v986, %v1002
        %v1019 = vsub.f32 %v987, %v1003
        %v1020 = vsub.f32 %v988, %v1004
        %v1021 = vmax.f32 %v1005, 0.0
        %v1022 = vmax.f32 %v1006, 0.0
        %v1023 = vmax.f32 %v1007, 0.0
        %v1024 = vmax.f32 %v1008, 0.0
        %v1025 = vmax.f32 %v1009, 0.0
        %v1026 = vmax.f32 %v1010, 0.0
        %v1027 = vmax.f32 %v1011, 0.0
        %v1028 = vmax.f32 %v1012, 0.0
        %v1029 = vmax.f32 %v1013, 0.0
        %v1030 = vmax.f32 %v1014, 0.0
        %v1031 = vmax.f32 %v1015, 0.0
        %v1032 = vmax.f32 %v1016, 0.0
        %v1033 = vmax.f32 %v1017, 0.0
        %v1034 = vmax.f32 %v1018, 0.0
        %v1035 = vmax.f32 %v1019, 0.0
        %v1036 = vmax.f32 %v1020, 0.0
        %v1037 = vsub.f32 %v860, %v909
        %v1038 = vsub.f32 %v861, %v910
        %v1039 = vsub.f32 %v862, %v911
        %v1040 = vsub.f32 %v863, %v912
        %v1041 = vsub.f32 %v864, %v913
        %v1042 = vsub.f32 %v865, %v914
        %v1043 = vsub.f32 %v866, %v915
        %v1044 = vsub.f32 %v867, %v916
        %v1045 = vsub.f32 %v868, %v917
        %v1046 = vsub.f32 %v869, %v918
        %v1047 = vsub.f32 %v870, %v919
        %v1048 = vsub.f32 %v871, %v920
        %v1049 = vsub.f32 %v872, %v921
        %v1050 = vsub.f32 %v873, %v922
        %v1051 = vsub.f32 %v874, %v923
        %v1052 = vsub.f32 %v875, %v924
        %v1053 = vadd.f32 %v1021, 1e-05
        %v1054 = vadd.f32 %v1022, 1e-05
        %v1055 = vadd.f32 %v1023, 1e-05
        %v1056 = vadd.f32 %v1024, 1e-05
        %v1057 = vadd.f32 %v1025, 1e-05
        %v1058 = vadd.f32 %v1026, 1e-05
        %v1059 = vadd.f32 %v1027, 1e-05
        %v1060 = vadd.f32 %v1028, 1e-05
        %v1061 = vadd.f32 %v1029, 1e-05
        %v1062 = vadd.f32 %v1030, 1e-05
        %v1063 = vadd.f32 %v1031, 1e-05
        %v1064 = vadd.f32 %v1032, 1e-05
        %v1065 = vadd.f32 %v1033, 1e-05
        %v1066 = vadd.f32 %v1034, 1e-05
        %v1067 = vadd.f32 %v1035, 1e-05
        %v1068 = vadd.f32 %v1036, 1e-05
        %v1069 = vrsqrt.pop %v1053
        %v1070 = vrsqrt.pop %v1054
        %v1071 = vrsqrt.pop %v1055
        %v1072 = vrsqrt.pop %v1056
        %v1073 = vrsqrt.pop %v1057
        %v1074 = vrsqrt.pop %v1058
        %v1075 = vrsqrt.pop %v1059
        %v1076 = vrsqrt.pop %v1060
        %v1077 = vrsqrt.pop %v1061
        %v1078 = vrsqrt.pop %v1062
        %v1079 = vrsqrt.pop %v1063
        %v1080 = vrsqrt.pop %v1064
        %v1081 = vrsqrt.pop %v1065
        %v1082 = vrsqrt.pop %v1066
        %v1083 = vrsqrt.pop %v1067
        %v1084 = vrsqrt.pop %v1068
        %v1085 = vmul.f32 %v1037, %v1069
        %v1086 = vmul.f32 %v1038, %v1070
        %v1087 = vmul.f32 %v1039, %v1071
        %v1088 = vmul.f32 %v1040, %v1072
        %v1089 = vmul.f32 %v1041, %v1073
        %v1090 = vmul.f32 %v1042, %v1074
        %v1091 = vmul.f32 %v1043, %v1075
        %v1092 = vmul.f32 %v1044, %v1076
        %v1093 = vmul.f32 %v1045, %v1077
        %v1094 = vmul.f32 %v1046, %v1078
        %v1095 = vmul.f32 %v1047, %v1079
        %v1096 = vmul.f32 %v1048, %v1080
        %v1097 = vmul.f32 %v1049, %v1081
        %v1098 = vmul.f32 %v1050, %v1082
        %v1099 = vmul.f32 %v1051, %v1083
        %v1100 = vmul.f32 %v1052, %v1084
        %v1101 = vld [vmem:[%s3] sm:$0x1]
        %v1102 = vlaneseq
        %v1103 = vshrl.u32 %v1102, 7
        %v1104 = vsub.s32 0, %v1103
        %v1105 = vrot.slane %v1101, %v1104
        %v1106 = vmul.f32 %v1085, %v1105
        %v1107 = vmul.f32 %v1086, %v1105
        %v1108 = vmul.f32 %v1087, %v1105
        %v1109 = vmul.f32 %v1088, %v1105
        %v1110 = vmul.f32 %v1089, %v1105
        %v1111 = vmul.f32 %v1090, %v1105
        %v1112 = vmul.f32 %v1091, %v1105
        %v1113 = vmul.f32 %v1092, %v1105
        %v1114 = vmul.f32 %v1093, %v1105
        %v1115 = vmul.f32 %v1094, %v1105
        %v1116 = vmul.f32 %v1095, %v1105
        %v1117 = vmul.f32 %v1096, %v1105
        %v1118 = vmul.f32 %v1097, %v1105
        %v1119 = vmul.f32 %v1098, %v1105
        %v1120 = vmul.f32 %v1099, %v1105
        %v1121 = vmul.f32 %v1100, %v1105
        %v1122 = vld [vmem:[#allocation8] sm:$0x1]
        %v1123 = vlaneseq
        %v1124 = vshrl.u32 %v1123, 7
        %v1125 = vsub.s32 0, %v1124
        %v1126 = vrot.slane %v1122, %v1125
        %v1127 = vadd.f32 %v1106, %v1126
        %v1128 = vadd.f32 %v1107, %v1126
        %v1129 = vadd.f32 %v1108, %v1126
        %v1130 = vadd.f32 %v1109, %v1126
        %v1131 = vadd.f32 %v1110, %v1126
        %v1132 = vadd.f32 %v1111, %v1126
        %v1133 = vadd.f32 %v1112, %v1126
        %v1134 = vadd.f32 %v1113, %v1126
        %v1135 = vadd.f32 %v1114, %v1126
        %v1136 = vadd.f32 %v1115, %v1126
        %v1137 = vadd.f32 %v1116, %v1126
        %v1138 = vadd.f32 %v1117, %v1126
        %v1139 = vadd.f32 %v1118, %v1126
        %v1140 = vadd.f32 %v1119, %v1126
        %v1141 = vadd.f32 %v1120, %v1126
        %v1142 = vadd.f32 %v1121, %v1126
        %v1143 = vpack.c.bf16 %v1128, %v1127
        %v1144 = vpack.c.bf16 %v1130, %v1129
        %v1145 = vpack.c.bf16 %v1132, %v1131
        %v1146 = vpack.c.bf16 %v1134, %v1133
        %v1147 = vpack.c.bf16 %v1136, %v1135
        %v1148 = vpack.c.bf16 %v1138, %v1137
        %v1149 = vpack.c.bf16 %v1140, %v1139
        %v1150 = vpack.c.bf16 %v1142, %v1141
        %s1151 = scalar_lea.vmem [#allocation5], 192
        %v1152 = vld [vmem:[%s1151] sm:$0xf]
        %v1153 = vld [vmem:[%s1151 + $0x4] sm:$0xf]
        %v1154 = vld [vmem:[%s1151 + $0x8] sm:$0xf]
        %v1155 = vld [vmem:[%s1151 + $0xc] sm:$0xf]
        %v1156 = vld [vmem:[%s1151 + $0x10] sm:$0xf]
        %v1157 = vld [vmem:[%s1151 + $0x14] sm:$0xf]
        %v1158 = vld [vmem:[%s1151 + $0x18] sm:$0xf]
        %v1159 = vld [vmem:[%s1151 + $0x1c] sm:$0xf]
        %v1160 = vld [vmem:[%s1151 + $0x20] sm:$0xf]
        %v1161 = vld [vmem:[%s1151 + $0x24] sm:$0xf]
        %v1162 = vld [vmem:[%s1151 + $0x28] sm:$0xf]
        %v1163 = vld [vmem:[%s1151 + $0x2c] sm:$0xf]
        %v1164 = vld [vmem:[%s1151 + $0x30] sm:$0xf]
        %v1165 = vld [vmem:[%s1151 + $0x34] sm:$0xf]
        %v1166 = vld [vmem:[%s1151 + $0x38] sm:$0xf]
        %v1167 = vld [vmem:[%s1151 + $0x3c] sm:$0xf]
        %v1168 = vld [vmem:[#allocation7 + $0x3] sm:$0x1]
        %v1169 = vlaneseq
        %v1170 = vshrl.u32 %v1169, 7
        %v1171 = vsub.s32 0, %v1170
        %v1172 = vrot.slane %v1168, %v1171
        %v1189 = vunpack.c.l.b16 %v1152
        %v1190 = vunpack.c.l.b16 %v1153
        %v1191 = vunpack.c.l.b16 %v1154
        %v1192 = vunpack.c.l.b16 %v1155
        %v1193 = vunpack.c.l.b16 %v1156
        %v1194 = vunpack.c.l.b16 %v1157
        %v1195 = vunpack.c.l.b16 %v1158
        %v1196 = vunpack.c.l.b16 %v1159
        %v1197 = vunpack.c.l.b16 %v1160
        %v1198 = vunpack.c.l.b16 %v1161
        %v1199 = vunpack.c.l.b16 %v1162
        %v1200 = vunpack.c.l.b16 %v1163
        %v1201 = vunpack.c.l.b16 %v1164
        %v1202 = vunpack.c.l.b16 %v1165
        %v1203 = vunpack.c.l.b16 %v1166
        %v1204 = vunpack.c.l.b16 %v1167
        %v1205 = vpack.c.b16 %v1190, %v1189
        %v1206 = vpack.c.b16 %v1192, %v1191
        %v1207 = vpack.c.b16 %v1194, %v1193
        %v1208 = vpack.c.b16 %v1196, %v1195
        %v1209 = vpack.c.b16 %v1198, %v1197
        %v1210 = vpack.c.b16 %v1200, %v1199
        %v1211 = vpack.c.b16 %v1202, %v1201
        %v1212 = vpack.c.b16 %v1204, %v1203
        %1221 = vmatprep.subr.bf16.mxu0 0
        %1222 = vmatpush1.bf16.msra.mxu0 %v1205
        %1223 = vmatprep.subr.bf16.mxu0 0
        %1224 = vmatpush1.bf16.msra.mxu0 %v1206
        %1225 = vmatprep.subr.bf16.mxu0 0
        %1226 = vmatpush1.bf16.msra.mxu0 %v1207
        %1227 = vmatprep.subr.bf16.mxu0 0
        %1228 = vmatpush1.bf16.msra.mxu0 %v1208
        %1229 = vmatprep.subr.bf16.mxu0 0
        %1230 = vmatpush1.bf16.msra.mxu0 %v1209
        %1231 = vmatprep.subr.bf16.mxu0 0
        %1232 = vmatpush1.bf16.msra.mxu0 %v1210
        %1233 = vmatprep.subr.bf16.mxu0 0
        %1234 = vmatpush1.bf16.msra.mxu0 %v1211
        %1235 = vmatprep.subr.bf16.mxu0 0
        %1236 = vmatpush1.bf16.msra.mxu0 %v1212
        %1237 = vmatprep.subr.bf16.mxu0 0
        %1238 = vmatpush1.bf16.msra.mxu0 0
        %1239 = vmatprep.subr.bf16.mxu0 0
        %1240 = vmatpush1.bf16.msra.mxu0 0
        %1241 = vmatprep.subr.bf16.mxu0 0
        %1242 = vmatpush1.bf16.msra.mxu0 0
        %1243 = vmatprep.subr.bf16.mxu0 0
        %1244 = vmatpush1.bf16.msra.mxu0 0
        %1245 = vmatprep.subr.bf16.mxu0 0
        %1246 = vmatpush1.bf16.msra.mxu0 0
        %1247 = vmatprep.subr.bf16.mxu0 0
        %1248 = vmatpush1.bf16.msra.mxu0 0
        %1249 = vmatprep.subr.bf16.mxu0 0
        %1250 = vmatpush1.bf16.msra.mxu0 0
        %1251 = vmatprep.subr.bf16.mxu0 0
        %1252 = vmatpush1.bf16.msra.mxu0 0
        %1253 = vmatprep.mubr.bf16.mxu0 0
        %1254 = vmatmul.mubr.bf16.gmra.mrb[0].mxu0 %v1143
        %v1255 = vpop.f32.mrb[0].mxu0
        %v1256 = vadd.f32 %v1172, %v1255
        %v1257 = vpop.f32.mrb[0].mxu0
        %v1258 = vpop.f32.mrb[0].mxu0
        %v1259 = vadd.f32 %v1172, %v1258
        %v1260 = vpop.f32.mrb[0].mxu0
        %1261 = vmatprep.mubr.bf16.mxu0 0
        %1262 = vmatmul.mubr.bf16.gmra.mrb[0].mxu0 %v1144
        %v1263 = vpop.f32.mrb[0].mxu0
        %v1264 = vadd.f32 %v1172, %v1263
        %v1265 = vpop.f32.mrb[0].mxu0
        %v1266 = vpop.f32.mrb[0].mxu0
        %v1267 = vadd.f32 %v1172, %v1266
        %v1268 = vpop.f32.mrb[0].mxu0
        %1269 = vmatprep.mubr.bf16.mxu0 0
        %1270 = vmatmul.mubr.bf16.gmra.mrb[0].mxu0 %v1145
        %v1271 = vpop.f32.mrb[0].mxu0
        %v1272 = vadd.f32 %v1172, %v1271
        %v1273 = vpop.f32.mrb[0].mxu0
        %v1274 = vpop.f32.mrb[0].mxu0
        %v1275 = vadd.f32 %v1172, %v1274
        %v1276 = vpop.f32.mrb[0].mxu0
        %1277 = vmatprep.mubr.bf16.mxu0 0
        %1278 = vmatmul.mubr.bf16.gmra.mrb[0].mxu0 %v1146
        %v1279 = vpop.f32.mrb[0].mxu0
        %v1280 = vadd.f32 %v1172, %v1279
        %v1281 = vpop.f32.mrb[0].mxu0
        %v1282 = vpop.f32.mrb[0].mxu0
        %v1283 = vadd.f32 %v1172, %v1282
        %v1284 = vpop.f32.mrb[0].mxu0
        %1285 = vmatprep.mubr.bf16.mxu0 0
        %1286 = vmatmul.mubr.bf16.gmra.mrb[0].mxu0 %v1147
        %v1287 = vpop.f32.mrb[0].mxu0
        %v1288 = vadd.f32 %v1172, %v1287
        %v1289 = vpop.f32.mrb[0].mxu0
        %v1290 = vpop.f32.mrb[0].mxu0
        %v1291 = vadd.f32 %v1172, %v1290
        %v1292 = vpop.f32.mrb[0].mxu0
        %1293 = vmatprep.mubr.bf16.mxu0 0
        %1294 = vmatmul.mubr.bf16.gmra.mrb[0].mxu0 %v1148
        %v1295 = vpop.f32.mrb[0].mxu0
        %v1296 = vadd.f32 %v1172, %v1295
        %v1297 = vpop.f32.mrb[0].mxu0
        %v1298 = vpop.f32.mrb[0].mxu0
        %v1299 = vadd.f32 %v1172, %v1298
        %v1300 = vpop.f32.mrb[0].mxu0
        %1301 = vmatprep.mubr.bf16.mxu0 0
        %1302 = vmatmul.mubr.bf16.gmra.mrb[0].mxu0 %v1149
        %v1303 = vpop.f32.mrb[0].mxu0
        %v1304 = vadd.f32 %v1172, %v1303
        %v1305 = vpop.f32.mrb[0].mxu0
        %v1306 = vpop.f32.mrb[0].mxu0
        %v1307 = vadd.f32 %v1172, %v1306
        %v1308 = vpop.f32.mrb[0].mxu0
        %1309 = vmatprep.mubr.bf16.mxu0 0
        %1310 = vmatmul.mubr.bf16.gmra.mrb[0].mxu0 %v1150
        %v1311 = vpop.f32.mrb[0].mxu0
        %v1312 = vadd.f32 %v1172, %v1311
        %v1313 = vpop.f32.mrb[0].mxu0
        %v1314 = vpop.f32.mrb[0].mxu0
        %v1315 = vadd.f32 %v1172, %v1314
        %v1316 = vpop.f32.mrb[0].mxu0
        %1317 = vdwg.mxu0
        %v1318 = vmax.f32 %v1256, 0.0
        %v1319 = vmax.f32 %v1259, 0.0
        %v1320 = vmax.f32 %v1264, 0.0
        %v1321 = vmax.f32 %v1267, 0.0
        %v1322 = vmax.f32 %v1272, 0.0
        %v1323 = vmax.f32 %v1275, 0.0
        %v1324 = vmax.f32 %v1280, 0.0
        %v1325 = vmax.f32 %v1283, 0.0
        %v1326 = vmax.f32 %v1288, 0.0
        %v1327 = vmax.f32 %v1291, 0.0
        %v1328 = vmax.f32 %v1296, 0.0
        %v1329 = vmax.f32 %v1299, 0.0
        %v1330 = vmax.f32 %v1304, 0.0
        %v1331 = vmax.f32 %v1307, 0.0
        %v1332 = vmax.f32 %v1312, 0.0
        %v1333 = vmax.f32 %v1315, 0.0
        %v1334 = vpack.c.bf16 %v1319, %v1318
        %v1335 = vpack.c.bf16 %v1321, %v1320
        %v1336 = vpack.c.bf16 %v1323, %v1322
        %v1337 = vpack.c.bf16 %v1325, %v1324
        %v1338 = vpack.c.bf16 %v1327, %v1326
        %v1339 = vpack.c.bf16 %v1329, %v1328
        %v1340 = vpack.c.bf16 %v1331, %v1330
        %v1341 = vpack.c.bf16 %v1333, %v1332
        %s1342 = scalar_lea.vmem [#allocation5], 256
        %v1343 = vld [vmem:[%s1342] sm:$0xf]
        %v1344 = vld [vmem:[%s1342 + $0x4] sm:$0xf]
        %v1345 = vld [vmem:[%s1342 + $0x8] sm:$0xf]
        %v1346 = vld [vmem:[%s1342 + $0xc] sm:$0xf]
        %v1347 = vld [vmem:[%s1342 + $0x10] sm:$0xf]
        %v1348 = vld [vmem:[%s1342 + $0x14] sm:$0xf]
        %v1349 = vld [vmem:[%s1342 + $0x18] sm:$0xf]
        %v1350 = vld [vmem:[%s1342 + $0x1c] sm:$0xf]
        %v1351 = vld [vmem:[%s1342 + $0x20] sm:$0xf]
        %v1352 = vld [vmem:[%s1342 + $0x24] sm:$0xf]
        %v1353 = vld [vmem:[%s1342 + $0x28] sm:$0xf]
        %v1354 = vld [vmem:[%s1342 + $0x2c] sm:$0xf]
        %v1355 = vld [vmem:[%s1342 + $0x30] sm:$0xf]
        %v1356 = vld [vmem:[%s1342 + $0x34] sm:$0xf]
        %v1357 = vld [vmem:[%s1342 + $0x38] sm:$0xf]
        %v1358 = vld [vmem:[%s1342 + $0x3c] sm:$0xf]
        %v1359 = vld [vmem:[#allocation7 + $0x4] sm:$0x1]
        %v1360 = vlaneseq
        %v1361 = vshrl.u32 %v1360, 7
        %v1362 = vsub.s32 0, %v1361
        %v1363 = vrot.slane %v1359, %v1362
        %v1380 = vunpack.c.l.b16 %v1343
        %v1381 = vunpack.c.l.b16 %v1344
        %v1382 = vunpack.c.l.b16 %v1345
        %v1383 = vunpack.c.l.b16 %v1346
        %v1384 = vunpack.c.l.b16 %v1347
        %v1385 = vunpack.c.l.b16 %v1348
        %v1386 = vunpack.c.l.b16 %v1349
        %v1387 = vunpack.c.l.b16 %v1350
        %v1388 = vunpack.c.l.b16 %v1351
        %v1389 = vunpack.c.l.b16 %v1352
        %v1390 = vunpack.c.l.b16 %v1353
        %v1391 = vunpack.c.l.b16 %v1354
        %v1392 = vunpack.c.l.b16 %v1355
        %v1393 = vunpack.c.l.b16 %v1356
        %v1394 = vunpack.c.l.b16 %v1357
        %v1395 = vunpack.c.l.b16 %v1358
        %v1396 = vpack.c.b16 %v1381, %v1380
        %v1397 = vpack.c.b16 %v1383, %v1382
        %v1398 = vpack.c.b16 %v1385, %v1384
        %v1399 = vpack.c.b16 %v1387, %v1386
        %v1400 = vpack.c.b16 %v1389, %v1388
        %v1401 = vpack.c.b16 %v1391, %v1390
        %v1402 = vpack.c.b16 %v1393, %v1392
        %v1403 = vpack.c.b16 %v1395, %v1394
        %1412 = vmatprep.subr.bf16.mxu0 0
        %1413 = vmatpush1.bf16.msra.mxu0 %v1396
        %1414 = vmatprep.subr.bf16.mxu0 0
        %1415 = vmatpush1.bf16.msra.mxu0 %v1397
        %1416 = vmatprep.subr.bf16.mxu0 0
        %1417 = vmatpush1.bf16.msra.mxu0 %v1398
        %1418 = vmatprep.subr.bf16.mxu0 0
        %1419 = vmatpush1.bf16.msra.mxu0 %v1399
        %1420 = vmatprep.subr.bf16.mxu0 0
        %1421 = vmatpush1.bf16.msra.mxu0 %v1400
        %1422 = vmatprep.subr.bf16.mxu0 0
        %1423 = vmatpush1.bf16.msra.mxu0 %v1401
        %1424 = vmatprep.subr.bf16.mxu0 0
        %1425 = vmatpush1.bf16.msra.mxu0 %v1402
        %1426 = vmatprep.subr.bf16.mxu0 0
        %1427 = vmatpush1.bf16.msra.mxu0 %v1403
        %1428 = vmatprep.subr.bf16.mxu0 0
        %1429 = vmatpush1.bf16.msra.mxu0 0
        %1430 = vmatprep.subr.bf16.mxu0 0
        %1431 = vmatpush1.bf16.msra.mxu0 0
        %1432 = vmatprep.subr.bf16.mxu0 0
        %1433 = vmatpush1.bf16.msra.mxu0 0
        %1434 = vmatprep.subr.bf16.mxu0 0
        %1435 = vmatpush1.bf16.msra.mxu0 0
        %1436 = vmatprep.subr.bf16.mxu0 0
        %1437 = vmatpush1.bf16.msra.mxu0 0
        %1438 = vmatprep.subr.bf16.mxu0 0
        %1439 = vmatpush1.bf16.msra.mxu0 0
        %1440 = vmatprep.subr.bf16.mxu0 0
        %1441 = vmatpush1.bf16.msra.mxu0 0
        %1442 = vmatprep.subr.bf16.mxu0 0
        %1443 = vmatpush1.bf16.msra.mxu0 0
        %1444 = vmatprep.mubr.bf16.mxu0 0
        %1445 = vmatmul.mubr.bf16.gmra.mrb[0].mxu0 %v1334
        %v1446 = vpop.f32.mrb[0].mxu0
        %v1447 = vadd.f32 %v1363, %v1446
        %v1448 = vpop.f32.mrb[0].mxu0
        %v1449 = vpop.f32.mrb[0].mxu0
        %v1450 = vadd.f32 %v1363, %v1449
        %v1451 = vpop.f32.mrb[0].mxu0
        %1452 = vmatprep.mubr.bf16.mxu0 0
        %1453 = vmatmul.mubr.bf16.gmra.mrb[0].mxu0 %v1335
        %v1454 = vpop.f32.mrb[0].mxu0
        %v1455 = vadd.f32 %v1363, %v1454
        %v1456 = vpop.f32.mrb[0].mxu0
        %v1457 = vpop.f32.mrb[0].mxu0
        %v1458 = vadd.f32 %v1363, %v1457
        %v1459 = vpop.f32.mrb[0].mxu0
        %1460 = vmatprep.mubr.bf16.mxu0 0
        %1461 = vmatmul.mubr.bf16.gmra.mrb[0].mxu0 %v1336
        %v1462 = vpop.f32.mrb[0].mxu0
        %v1463 = vadd.f32 %v1363, %v1462
        %v1464 = vpop.f32.mrb[0].mxu0
        %v1465 = vpop.f32.mrb[0].mxu0
        %v1466 = vadd.f32 %v1363, %v1465
        %v1467 = vpop.f32.mrb[0].mxu0
        %1468 = vmatprep.mubr.bf16.mxu0 0
        %1469 = vmatmul.mubr.bf16.gmra.mrb[0].mxu0 %v1337
        %v1470 = vpop.f32.mrb[0].mxu0
        %v1471 = vadd.f32 %v1363, %v1470
        %v1472 = vpop.f32.mrb[0].mxu0
        %v1473 = vpop.f32.mrb[0].mxu0
        %v1474 = vadd.f32 %v1363, %v1473
        %v1475 = vpop.f32.mrb[0].mxu0
        %1476 = vmatprep.mubr.bf16.mxu0 0
        %1477 = vmatmul.mubr.bf16.gmra.mrb[0].mxu0 %v1338
        %v1478 = vpop.f32.mrb[0].mxu0
        %v1479 = vadd.f32 %v1363, %v1478
        %v1480 = vpop.f32.mrb[0].mxu0
        %v1481 = vpop.f32.mrb[0].mxu0
        %v1482 = vadd.f32 %v1363, %v1481
        %v1483 = vpop.f32.mrb[0].mxu0
        %1484 = vmatprep.mubr.bf16.mxu0 0
        %1485 = vmatmul.mubr.bf16.gmra.mrb[0].mxu0 %v1339
        %v1486 = vpop.f32.mrb[0].mxu0
        %v1487 = vadd.f32 %v1363, %v1486
        %v1488 = vpop.f32.mrb[0].mxu0
        %v1489 = vpop.f32.mrb[0].mxu0
        %v1490 = vadd.f32 %v1363, %v1489
        %v1491 = vpop.f32.mrb[0].mxu0
        %1492 = vmatprep.mubr.bf16.mxu0 0
        %1493 = vmatmul.mubr.bf16.gmra.mrb[0].mxu0 %v1340
        %v1494 = vpop.f32.mrb[0].mxu0
        %v1495 = vadd.f32 %v1363, %v1494
        %v1496 = vpop.f32.mrb[0].mxu0
        %v1497 = vpop.f32.mrb[0].mxu0
        %v1498 = vadd.f32 %v1363, %v1497
        %v1499 = vpop.f32.mrb[0].mxu0
        %1500 = vmatprep.mubr.bf16.mxu0 0
        %1501 = vmatmul.mubr.bf16.gmra.mrb[0].mxu0 %v1341
        %v1502 = vpop.f32.mrb[0].mxu0
        %v1503 = vadd.f32 %v1363, %v1502
        %v1504 = vpop.f32.mrb[0].mxu0
        %v1505 = vpop.f32.mrb[0].mxu0
        %v1506 = vadd.f32 %v1363, %v1505
        %v1507 = vpop.f32.mrb[0].mxu0
        %1508 = vdwg.mxu0
        %v1509 = vmax.f32 %v1447, 0.0
        %v1510 = vmax.f32 %v1450, 0.0
        %v1511 = vmax.f32 %v1455, 0.0
        %v1512 = vmax.f32 %v1458, 0.0
        %v1513 = vmax.f32 %v1463, 0.0
        %v1514 = vmax.f32 %v1466, 0.0
        %v1515 = vmax.f32 %v1471, 0.0
        %v1516 = vmax.f32 %v1474, 0.0
        %v1517 = vmax.f32 %v1479, 0.0
        %v1518 = vmax.f32 %v1482, 0.0
        %v1519 = vmax.f32 %v1487, 0.0
        %v1520 = vmax.f32 %v1490, 0.0
        %v1521 = vmax.f32 %v1495, 0.0
        %v1522 = vmax.f32 %v1498, 0.0
        %v1523 = vmax.f32 %v1503, 0.0
        %v1524 = vmax.f32 %v1506, 0.0
        %v1525 = vpack.c.bf16 %v1510, %v1509
        %v1526 = vpack.c.bf16 %v1512, %v1511
        %v1527 = vpack.c.bf16 %v1514, %v1513
        %v1528 = vpack.c.bf16 %v1516, %v1515
        %v1529 = vpack.c.bf16 %v1518, %v1517
        %v1530 = vpack.c.bf16 %v1520, %v1519
        %v1531 = vpack.c.bf16 %v1522, %v1521
        %v1532 = vpack.c.bf16 %v1524, %v1523
        %s1533 = scalar_lea.vmem [#allocation5], 320
        %v1534 = vld [vmem:[%s1533] sm:$0xf]
        %v1535 = vld [vmem:[%s1533 + $0x4] sm:$0xf]
        %v1536 = vld [vmem:[%s1533 + $0x8] sm:$0xf]
        %v1537 = vld [vmem:[%s1533 + $0xc] sm:$0xf]
        %v1538 = vld [vmem:[%s1533 + $0x10] sm:$0xf]
        %v1539 = vld [vmem:[%s1533 + $0x14] sm:$0xf]
        %v1540 = vld [vmem:[%s1533 + $0x18] sm:$0xf]
        %v1541 = vld [vmem:[%s1533 + $0x1c] sm:$0xf]
        %v1542 = vld [vmem:[%s1533 + $0x20] sm:$0xf]
        %v1543 = vld [vmem:[%s1533 + $0x24] sm:$0xf]
        %v1544 = vld [vmem:[%s1533 + $0x28] sm:$0xf]
        %v1545 = vld [vmem:[%s1533 + $0x2c] sm:$0xf]
        %v1546 = vld [vmem:[%s1533 + $0x30] sm:$0xf]
        %v1547 = vld [vmem:[%s1533 + $0x34] sm:$0xf]
        %v1548 = vld [vmem:[%s1533 + $0x38] sm:$0xf]
        %v1549 = vld [vmem:[%s1533 + $0x3c] sm:$0xf]
        %v1550 = vld [vmem:[#allocation7 + $0x5] sm:$0x1]
        %v1551 = vlaneseq
        %v1552 = vshrl.u32 %v1551, 7
        %v1553 = vsub.s32 0, %v1552
        %v1554 = vrot.slane %v1550, %v1553
        %v1571 = vunpack.c.l.b16 %v1534
        %v1572 = vunpack.c.l.b16 %v1535
        %v1573 = vunpack.c.l.b16 %v1536
        %v1574 = vunpack.c.l.b16 %v1537
        %v1575 = vunpack.c.l.b16 %v1538
        %v1576 = vunpack.c.l.b16 %v1539
        %v1577 = vunpack.c.l.b16 %v1540
        %v1578 = vunpack.c.l.b16 %v1541
        %v1579 = vunpack.c.l.b16 %v1542
        %v1580 = vunpack.c.l.b16 %v1543
        %v1581 = vunpack.c.l.b16 %v1544
        %v1582 = vunpack.c.l.b16 %v1545
        %v1583 = vunpack.c.l.b16 %v1546
        %v1584 = vunpack.c.l.b16 %v1547
        %v1585 = vunpack.c.l.b16 %v1548
        %v1586 = vunpack.c.l.b16 %v1549
        %v1587 = vpack.c.b16 %v1572, %v1571
        %v1588 = vpack.c.b16 %v1574, %v1573
        %v1589 = vpack.c.b16 %v1576, %v1575
        %v1590 = vpack.c.b16 %v1578, %v1577
        %v1591 = vpack.c.b16 %v1580, %v1579
        %v1592 = vpack.c.b16 %v1582, %v1581
        %v1593 = vpack.c.b16 %v1584, %v1583
        %v1594 = vpack.c.b16 %v1586, %v1585
        %1603 = vmatprep.subr.bf16.mxu0 0
        %1604 = vmatpush1.bf16.msra.mxu0 %v1587
        %1605 = vmatprep.subr.bf16.mxu0 0
        %1606 = vmatpush1.bf16.msra.mxu0 %v1588
        %1607 = vmatprep.subr.bf16.mxu0 0
        %1608 = vmatpush1.bf16.msra.mxu0 %v1589
        %1609 = vmatprep.subr.bf16.mxu0 0
        %1610 = vmatpush1.bf16.msra.mxu0 %v1590
        %1611 = vmatprep.subr.bf16.mxu0 0
        %1612 = vmatpush1.bf16.msra.mxu0 %v1591
        %1613 = vmatprep.subr.bf16.mxu0 0
        %1614 = vmatpush1.bf16.msra.mxu0 %v1592
        %1615 = vmatprep.subr.bf16.mxu0 0
        %1616 = vmatpush1.bf16.msra.mxu0 %v1593
        %1617 = vmatprep.subr.bf16.mxu0 0
        %1618 = vmatpush1.bf16.msra.mxu0 %v1594
        %1619 = vmatprep.subr.bf16.mxu0 0
        %1620 = vmatpush1.bf16.msra.mxu0 0
        %1621 = vmatprep.subr.bf16.mxu0 0
        %1622 = vmatpush1.bf16.msra.mxu0 0
        %1623 = vmatprep.subr.bf16.mxu0 0
        %1624 = vmatpush1.bf16.msra.mxu0 0
        %1625 = vmatprep.subr.bf16.mxu0 0
        %1626 = vmatpush1.bf16.msra.mxu0 0
        %1627 = vmatprep.subr.bf16.mxu0 0
        %1628 = vmatpush1.bf16.msra.mxu0 0
        %1629 = vmatprep.subr.bf16.mxu0 0
        %1630 = vmatpush1.bf16.msra.mxu0 0
        %1631 = vmatprep.subr.bf16.mxu0 0
        %1632 = vmatpush1.bf16.msra.mxu0 0
        %1633 = vmatprep.subr.bf16.mxu0 0
        %1634 = vmatpush1.bf16.msra.mxu0 0
        %1635 = vmatprep.mubr.bf16.mxu0 0
        %1636 = vmatmul.mubr.bf16.gmra.mrb[0].mxu0 %v1525
        %v1637 = vpop.f32.mrb[0].mxu0
        %v1638 = vadd.f32 %v1554, %v1637
        %v1639 = vpop.f32.mrb[0].mxu0
        %v1640 = vpop.f32.mrb[0].mxu0
        %v1641 = vadd.f32 %v1554, %v1640
        %v1642 = vpop.f32.mrb[0].mxu0
        %1643 = vmatprep.mubr.bf16.mxu0 0
        %1644 = vmatmul.mubr.bf16.gmra.mrb[0].mxu0 %v1526
        %v1645 = vpop.f32.mrb[0].mxu0
        %v1646 = vadd.f32 %v1554, %v1645
        %v1647 = vpop.f32.mrb[0].mxu0
        %v1648 = vpop.f32.mrb[0].mxu0
        %v1649 = vadd.f32 %v1554, %v1648
        %v1650 = vpop.f32.mrb[0].mxu0
        %1651 = vmatprep.mubr.bf16.mxu0 0
        %1652 = vmatmul.mubr.bf16.gmra.mrb[0].mxu0 %v1527
        %v1653 = vpop.f32.mrb[0].mxu0
        %v1654 = vadd.f32 %v1554, %v1653
        %v1655 = vpop.f32.mrb[0].mxu0
        %v1656 = vpop.f32.mrb[0].mxu0
        %v1657 = vadd.f32 %v1554, %v1656
        %v1658 = vpop.f32.mrb[0].mxu0
        %1659 = vmatprep.mubr.bf16.mxu0 0
        %1660 = vmatmul.mubr.bf16.gmra.mrb[0].mxu0 %v1528
        %v1661 = vpop.f32.mrb[0].mxu0
        %v1662 = vadd.f32 %v1554, %v1661
        %v1663 = vpop.f32.mrb[0].mxu0
        %v1664 = vpop.f32.mrb[0].mxu0
        %v1665 = vadd.f32 %v1554, %v1664
        %v1666 = vpop.f32.mrb[0].mxu0
        %1667 = vmatprep.mubr.bf16.mxu0 0
        %1668 = vmatmul.mubr.bf16.gmra.mrb[0].mxu0 %v1529
        %v1669 = vpop.f32.mrb[0].mxu0
        %v1670 = vadd.f32 %v1554, %v1669
        %v1671 = vpop.f32.mrb[0].mxu0
        %v1672 = vpop.f32.mrb[0].mxu0
        %v1673 = vadd.f32 %v1554, %v1672
        %v1674 = vpop.f32.mrb[0].mxu0
        %1675 = vmatprep.mubr.bf16.mxu0 0
        %1676 = vmatmul.mubr.bf16.gmra.mrb[0].mxu0 %v1530
        %v1677 = vpop.f32.mrb[0].mxu0
        %v1678 = vadd.f32 %v1554, %v1677
        %v1679 = vpop.f32.mrb[0].mxu0
        %v1680 = vpop.f32.mrb[0].mxu0
        %v1681 = vadd.f32 %v1554, %v1680
        %v1682 = vpop.f32.mrb[0].mxu0
        %1683 = vmatprep.mubr.bf16.mxu0 0
        %1684 = vmatmul.mubr.bf16.gmra.mrb[0].mxu0 %v1531
        %v1685 = vpop.f32.mrb[0].mxu0
        %v1686 = vadd.f32 %v1554, %v1685
        %v1687 = vpop.f32.mrb[0].mxu0
        %v1688 = vpop.f32.mrb[0].mxu0
        %v1689 = vadd.f32 %v1554, %v1688
        %v1690 = vpop.f32.mrb[0].mxu0
        %1691 = vmatprep.mubr.bf16.mxu0 0
        %1692 = vmatmul.mubr.bf16.gmra.mrb[0].mxu0 %v1532
        %v1693 = vpop.f32.mrb[0].mxu0
        %v1694 = vadd.f32 %v1554, %v1693
        %v1695 = vpop.f32.mrb[0].mxu0
        %v1696 = vpop.f32.mrb[0].mxu0
        %v1697 = vadd.f32 %v1554, %v1696
        %v1698 = vpop.f32.mrb[0].mxu0
        %1699 = vdwg.mxu0
        %v1700 = vadd.f32 %v1638, %v1127
        %v1701 = vadd.f32 %v1641, %v1128
        %v1702 = vadd.f32 %v1646, %v1129
        %v1703 = vadd.f32 %v1649, %v1130
        %v1704 = vadd.f32 %v1654, %v1131
        %v1705 = vadd.f32 %v1657, %v1132
        %v1706 = vadd.f32 %v1662, %v1133
        %v1707 = vadd.f32 %v1665, %v1134
        %v1708 = vadd.f32 %v1670, %v1135
        %v1709 = vadd.f32 %v1673, %v1136
        %v1710 = vadd.f32 %v1678, %v1137
        %v1711 = vadd.f32 %v1681, %v1138
        %v1712 = vadd.f32 %v1686, %v1139
        %v1713 = vadd.f32 %v1689, %v1140
        %v1714 = vadd.f32 %v1694, %v1141
        %v1715 = vadd.f32 %v1697, %v1142
        %1716 = vadd.xlane.f32.xlu0 %v1700
        %v1717 = vpop.xlane.xlu0 %1716
        %1718 = vadd.xlane.f32.xlu0 %v1701
        %v1719 = vpop.xlane.xlu0 %1718
        %1720 = vadd.xlane.f32.xlu0 %v1702
        %v1721 = vpop.xlane.xlu0 %1720
        %1722 = vadd.xlane.f32.xlu0 %v1703
        %v1723 = vpop.xlane.xlu0 %1722
        %1724 = vadd.xlane.f32.xlu0 %v1704
        %v1725 = vpop.xlane.xlu0 %1724
        %1726 = vadd.xlane.f32.xlu0 %v1705
        %v1727 = vpop.xlane.xlu0 %1726
        %1728 = vadd.xlane.f32.xlu0 %v1706
        %v1729 = vpop.xlane.xlu0 %1728
        %1730 = vadd.xlane.f32.xlu0 %v1707
        %v1731 = vpop.xlane.xlu0 %1730
        %1732 = vadd.xlane.f32.xlu0 %v1708
        %v1733 = vpop.xlane.xlu0 %1732
        %1734 = vadd.xlane.f32.xlu0 %v1709
        %v1735 = vpop.xlane.xlu0 %1734
        %1736 = vadd.xlane.f32.xlu0 %v1710
        %v1737 = vpop.xlane.xlu0 %1736
        %1738 = vadd.xlane.f32.xlu0 %v1711
        %v1739 = vpop.xlane.xlu0 %1738
        %1740 = vadd.xlane.f32.xlu0 %v1712
        %v1741 = vpop.xlane.xlu0 %1740
        %1742 = vadd.xlane.f32.xlu0 %v1713
        %v1743 = vpop.xlane.xlu0 %1742
        %1744 = vadd.xlane.f32.xlu0 %v1714
        %v1745 = vpop.xlane.xlu0 %1744
        %1746 = vadd.xlane.f32.xlu0 %v1715
        %v1747 = vpop.xlane.xlu0 %1746
        %v1748 = vmul.f32 %v1717, %v908
        %v1749 = vmul.f32 %v1719, %v908
        %v1750 = vmul.f32 %v1721, %v908
        %v1751 = vmul.f32 %v1723, %v908
        %v1752 = vmul.f32 %v1725, %v908
        %v1753 = vmul.f32 %v1727, %v908
        %v1754 = vmul.f32 %v1729, %v908
        %v1755 = vmul.f32 %v1731, %v908
        %v1756 = vmul.f32 %v1733, %v908
        %v1757 = vmul.f32 %v1735, %v908
        %v1758 = vmul.f32 %v1737, %v908
        %v1759 = vmul.f32 %v1739, %v908
        %v1760 = vmul.f32 %v1741, %v908
        %v1761 = vmul.f32 %v1743, %v908
        %v1762 = vmul.f32 %v1745, %v908
        %v1763 = vmul.f32 %v1747, %v908
        %v1764 = vmul.f32 %v1700, %v1700
        %v1765 = vmul.f32 %v1701, %v1701
        %v1766 = vmul.f32 %v1702, %v1702
        %v1767 = vmul.f32 %v1703, %v1703
        %v1768 = vmul.f32 %v1704, %v1704
        %v1769 = vmul.f32 %v1705, %v1705
        %v1770 = vmul.f32 %v1706, %v1706
        %v1771 = vmul.f32 %v1707, %v1707
        %v1772 = vmul.f32 %v1708, %v1708
        %v1773 = vmul.f32 %v1709, %v1709
        %v1774 = vmul.f32 %v1710, %v1710
        %v1775 = vmul.f32 %v1711, %v1711
        %v1776 = vmul.f32 %v1712, %v1712
        %v1777 = vmul.f32 %v1713, %v1713
        %v1778 = vmul.f32 %v1714, %v1714
        %v1779 = vmul.f32 %v1715, %v1715
        %1780 = vadd.xlane.f32.xlu0 %v1764
        %v1781 = vpop.xlane.xlu0 %1780
        %1782 = vadd.xlane.f32.xlu0 %v1765
        %v1783 = vpop.xlane.xlu0 %1782
        %1784 = vadd.xlane.f32.xlu0 %v1766
        %v1785 = vpop.xlane.xlu0 %1784
        %1786 = vadd.xlane.f32.xlu0 %v1767
        %v1787 = vpop.xlane.xlu0 %1786
        %1788 = vadd.xlane.f32.xlu0 %v1768
        %v1789 = vpop.xlane.xlu0 %1788
        %1790 = vadd.xlane.f32.xlu0 %v1769
        %v1791 = vpop.xlane.xlu0 %1790
        %1792 = vadd.xlane.f32.xlu0 %v1770
        %v1793 = vpop.xlane.xlu0 %1792
        %1794 = vadd.xlane.f32.xlu0 %v1771
        %v1795 = vpop.xlane.xlu0 %1794
        %1796 = vadd.xlane.f32.xlu0 %v1772
        %v1797 = vpop.xlane.xlu0 %1796
        %1798 = vadd.xlane.f32.xlu0 %v1773
        %v1799 = vpop.xlane.xlu0 %1798
        %1800 = vadd.xlane.f32.xlu0 %v1774
        %v1801 = vpop.xlane.xlu0 %1800
        %1802 = vadd.xlane.f32.xlu0 %v1775
        %v1803 = vpop.xlane.xlu0 %1802
        %1804 = vadd.xlane.f32.xlu0 %v1776
        %v1805 = vpop.xlane.xlu0 %1804
        %1806 = vadd.xlane.f32.xlu0 %v1777
        %v1807 = vpop.xlane.xlu0 %1806
        %1808 = vadd.xlane.f32.xlu0 %v1778
        %v1809 = vpop.xlane.xlu0 %1808
        %1810 = vadd.xlane.f32.xlu0 %v1779
        %v1811 = vpop.xlane.xlu0 %1810
        %v1812 = vmul.f32 %v1781, %v908
        %v1813 = vmul.f32 %v1783, %v908
        %v1814 = vmul.f32 %v1785, %v908
        %v1815 = vmul.f32 %v1787, %v908
        %v1816 = vmul.f32 %v1789, %v908
        %v1817 = vmul.f32 %v1791, %v908
        %v1818 = vmul.f32 %v1793, %v908
        %v1819 = vmul.f32 %v1795, %v908
        %v1820 = vmul.f32 %v1797, %v908
        %v1821 = vmul.f32 %v1799, %v908
        %v1822 = vmul.f32 %v1801, %v908
        %v1823 = vmul.f32 %v1803, %v908
        %v1824 = vmul.f32 %v1805, %v908
        %v1825 = vmul.f32 %v1807, %v908
        %v1826 = vmul.f32 %v1809, %v908
        %v1827 = vmul.f32 %v1811, %v908
        %v1828 = vmul.f32 %v1748, %v1748
        %v1829 = vmul.f32 %v1749, %v1749
        %v1830 = vmul.f32 %v1750, %v1750
        %v1831 = vmul.f32 %v1751, %v1751
        %v1832 = vmul.f32 %v1752, %v1752
        %v1833 = vmul.f32 %v1753, %v1753
        %v1834 = vmul.f32 %v1754, %v1754
        %v1835 = vmul.f32 %v1755, %v1755
        %v1836 = vmul.f32 %v1756, %v1756
        %v1837 = vmul.f32 %v1757, %v1757
        %v1838 = vmul.f32 %v1758, %v1758
        %v1839 = vmul.f32 %v1759, %v1759
        %v1840 = vmul.f32 %v1760, %v1760
        %v1841 = vmul.f32 %v1761, %v1761
        %v1842 = vmul.f32 %v1762, %v1762
        %v1843 = vmul.f32 %v1763, %v1763
        %v1844 = vsub.f32 %v1812, %v1828
        %v1845 = vsub.f32 %v1813, %v1829
        %v1846 = vsub.f32 %v1814, %v1830
        %v1847 = vsub.f32 %v1815, %v1831
        %v1848 = vsub.f32 %v1816, %v1832
        %v1849 = vsub.f32 %v1817, %v1833
        %v1850 = vsub.f32 %v1818, %v1834
        %v1851 = vsub.f32 %v1819, %v1835
        %v1852 = vsub.f32 %v1820, %v1836
        %v1853 = vsub.f32 %v1821, %v1837
        %v1854 = vsub.f32 %v1822, %v1838
        %v1855 = vsub.f32 %v1823, %v1839
        %v1856 = vsub.f32 %v1824, %v1840
        %v1857 = vsub.f32 %v1825, %v1841
        %v1858 = vsub.f32 %v1826, %v1842
        %v1859 = vsub.f32 %v1827, %v1843
        %v1860 = vmax.f32 %v1844, 0.0
        %v1861 = vmax.f32 %v1845, 0.0
        %v1862 = vmax.f32 %v1846, 0.0
        %v1863 = vmax.f32 %v1847, 0.0
        %v1864 = vmax.f32 %v1848, 0.0
        %v1865 = vmax.f32 %v1849, 0.0
        %v1866 = vmax.f32 %v1850, 0.0
        %v1867 = vmax.f32 %v1851, 0.0
        %v1868 = vmax.f32 %v1852, 0.0
        %v1869 = vmax.f32 %v1853, 0.0
        %v1870 = vmax.f32 %v1854, 0.0
        %v1871 = vmax.f32 %v1855, 0.0
        %v1872 = vmax.f32 %v1856, 0.0
        %v1873 = vmax.f32 %v1857, 0.0
        %v1874 = vmax.f32 %v1858, 0.0
        %v1875 = vmax.f32 %v1859, 0.0
        %v1876 = vsub.f32 %v1700, %v1748
        %v1877 = vsub.f32 %v1701, %v1749
        %v1878 = vsub.f32 %v1702, %v1750
        %v1879 = vsub.f32 %v1703, %v1751
        %v1880 = vsub.f32 %v1704, %v1752
        %v1881 = vsub.f32 %v1705, %v1753
        %v1882 = vsub.f32 %v1706, %v1754
        %v1883 = vsub.f32 %v1707, %v1755
        %v1884 = vsub.f32 %v1708, %v1756
        %v1885 = vsub.f32 %v1709, %v1757
        %v1886 = vsub.f32 %v1710, %v1758
        %v1887 = vsub.f32 %v1711, %v1759
        %v1888 = vsub.f32 %v1712, %v1760
        %v1889 = vsub.f32 %v1713, %v1761
        %v1890 = vsub.f32 %v1714, %v1762
        %v1891 = vsub.f32 %v1715, %v1763
        %v1892 = vadd.f32 %v1860, 1e-05
        %v1893 = vadd.f32 %v1861, 1e-05
        %v1894 = vadd.f32 %v1862, 1e-05
        %v1895 = vadd.f32 %v1863, 1e-05
        %v1896 = vadd.f32 %v1864, 1e-05
        %v1897 = vadd.f32 %v1865, 1e-05
        %v1898 = vadd.f32 %v1866, 1e-05
        %v1899 = vadd.f32 %v1867, 1e-05
        %v1900 = vadd.f32 %v1868, 1e-05
        %v1901 = vadd.f32 %v1869, 1e-05
        %v1902 = vadd.f32 %v1870, 1e-05
        %v1903 = vadd.f32 %v1871, 1e-05
        %v1904 = vadd.f32 %v1872, 1e-05
        %v1905 = vadd.f32 %v1873, 1e-05
        %v1906 = vadd.f32 %v1874, 1e-05
        %v1907 = vadd.f32 %v1875, 1e-05
        %v1908 = vrsqrt.pop %v1892
        %v1909 = vrsqrt.pop %v1893
        %v1910 = vrsqrt.pop %v1894
        %v1911 = vrsqrt.pop %v1895
        %v1912 = vrsqrt.pop %v1896
        %v1913 = vrsqrt.pop %v1897
        %v1914 = vrsqrt.pop %v1898
        %v1915 = vrsqrt.pop %v1899
        %v1916 = vrsqrt.pop %v1900
        %v1917 = vrsqrt.pop %v1901
        %v1918 = vrsqrt.pop %v1902
        %v1919 = vrsqrt.pop %v1903
        %v1920 = vrsqrt.pop %v1904
        %v1921 = vrsqrt.pop %v1905
        %v1922 = vrsqrt.pop %v1906
        %v1923 = vrsqrt.pop %v1907
        %v1924 = vmul.f32 %v1876, %v1908
        %v1925 = vmul.f32 %v1877, %v1909
        %v1926 = vmul.f32 %v1878, %v1910
        %v1927 = vmul.f32 %v1879, %v1911
        %v1928 = vmul.f32 %v1880, %v1912
        %v1929 = vmul.f32 %v1881, %v1913
        %v1930 = vmul.f32 %v1882, %v1914
        %v1931 = vmul.f32 %v1883, %v1915
        %v1932 = vmul.f32 %v1884, %v1916
        %v1933 = vmul.f32 %v1885, %v1917
        %v1934 = vmul.f32 %v1886, %v1918
        %v1935 = vmul.f32 %v1887, %v1919
        %v1936 = vmul.f32 %v1888, %v1920
        %v1937 = vmul.f32 %v1889, %v1921
        %v1938 = vmul.f32 %v1890, %v1922
        %v1939 = vmul.f32 %v1891, %v1923
        %v1940 = vld [vmem:[%s3 + $0x1] sm:$0x1]
        %v1941 = vlaneseq
        %v1942 = vshrl.u32 %v1941, 7
        %v1943 = vsub.s32 0, %v1942
        %v1944 = vrot.slane %v1940, %v1943
        %v1945 = vmul.f32 %v1924, %v1944
        %v1946 = vmul.f32 %v1925, %v1944
        %v1947 = vmul.f32 %v1926, %v1944
        %v1948 = vmul.f32 %v1927, %v1944
        %v1949 = vmul.f32 %v1928, %v1944
        %v1950 = vmul.f32 %v1929, %v1944
        %v1951 = vmul.f32 %v1930, %v1944
        %v1952 = vmul.f32 %v1931, %v1944
        %v1953 = vmul.f32 %v1932, %v1944
        %v1954 = vmul.f32 %v1933, %v1944
        %v1955 = vmul.f32 %v1934, %v1944
        %v1956 = vmul.f32 %v1935, %v1944
        %v1957 = vmul.f32 %v1936, %v1944
        %v1958 = vmul.f32 %v1937, %v1944
        %v1959 = vmul.f32 %v1938, %v1944
        %v1960 = vmul.f32 %v1939, %v1944
        %v1961 = vld [vmem:[#allocation8 + $0x1] sm:$0x1]
        %v1962 = vlaneseq
        %v1963 = vshrl.u32 %v1962, 7
        %v1964 = vsub.s32 0, %v1963
        %v1965 = vrot.slane %v1961, %v1964
        %v1966 = vadd.f32 %v1945, %v1965
        %v1967 = vadd.f32 %v1946, %v1965
        %v1968 = vadd.f32 %v1947, %v1965
        %v1969 = vadd.f32 %v1948, %v1965
        %v1970 = vadd.f32 %v1949, %v1965
        %v1971 = vadd.f32 %v1950, %v1965
        %v1972 = vadd.f32 %v1951, %v1965
        %v1973 = vadd.f32 %v1952, %v1965
        %v1974 = vadd.f32 %v1953, %v1965
        %v1975 = vadd.f32 %v1954, %v1965
        %v1976 = vadd.f32 %v1955, %v1965
        %v1977 = vadd.f32 %v1956, %v1965
        %v1978 = vadd.f32 %v1957, %v1965
        %v1979 = vadd.f32 %v1958, %v1965
        %v1980 = vadd.f32 %v1959, %v1965
        %v1981 = vadd.f32 %v1960, %v1965
        %v1982 = vpack.c.bf16 %v1967, %v1966
        %v1983 = vpack.c.bf16 %v1969, %v1968
        %v1984 = vpack.c.bf16 %v1971, %v1970
        %v1985 = vpack.c.bf16 %v1973, %v1972
        %v1986 = vpack.c.bf16 %v1975, %v1974
        %v1987 = vpack.c.bf16 %v1977, %v1976
        %v1988 = vpack.c.bf16 %v1979, %v1978
        %v1989 = vpack.c.bf16 %v1981, %v1980
        %s1990 = scalar_lea.vmem [#allocation5], 384
        %v1991 = vld [vmem:[%s1990] sm:$0xf]
        %v1992 = vld [vmem:[%s1990 + $0x4] sm:$0xf]
        %v1993 = vld [vmem:[%s1990 + $0x8] sm:$0xf]
        %v1994 = vld [vmem:[%s1990 + $0xc] sm:$0xf]
        %v1995 = vld [vmem:[%s1990 + $0x10] sm:$0xf]
        %v1996 = vld [vmem:[%s1990 + $0x14] sm:$0xf]
        %v1997 = vld [vmem:[%s1990 + $0x18] sm:$0xf]
        %v1998 = vld [vmem:[%s1990 + $0x1c] sm:$0xf]
        %v1999 = vld [vmem:[%s1990 + $0x20] sm:$0xf]
        %v2000 = vld [vmem:[%s1990 + $0x24] sm:$0xf]
        %v2001 = vld [vmem:[%s1990 + $0x28] sm:$0xf]
        %v2002 = vld [vmem:[%s1990 + $0x2c] sm:$0xf]
        %v2003 = vld [vmem:[%s1990 + $0x30] sm:$0xf]
        %v2004 = vld [vmem:[%s1990 + $0x34] sm:$0xf]
        %v2005 = vld [vmem:[%s1990 + $0x38] sm:$0xf]
        %v2006 = vld [vmem:[%s1990 + $0x3c] sm:$0xf]
        %v2007 = vld [vmem:[#allocation7 + $0x6] sm:$0x1]
        %v2008 = vlaneseq
        %v2009 = vshrl.u32 %v2008, 7
        %v2010 = vsub.s32 0, %v2009
        %v2011 = vrot.slane %v2007, %v2010
        %v2028 = vunpack.c.l.b16 %v1991
        %v2029 = vunpack.c.l.b16 %v1992
        %v2030 = vunpack.c.l.b16 %v1993
        %v2031 = vunpack.c.l.b16 %v1994
        %v2032 = vunpack.c.l.b16 %v1995
        %v2033 = vunpack.c.l.b16 %v1996
        %v2034 = vunpack.c.l.b16 %v1997
        %v2035 = vunpack.c.l.b16 %v1998
        %v2036 = vunpack.c.l.b16 %v1999
        %v2037 = vunpack.c.l.b16 %v2000
        %v2038 = vunpack.c.l.b16 %v2001
        %v2039 = vunpack.c.l.b16 %v2002
        %v2040 = vunpack.c.l.b16 %v2003
        %v2041 = vunpack.c.l.b16 %v2004
        %v2042 = vunpack.c.l.b16 %v2005
        %v2043 = vunpack.c.l.b16 %v2006
        %v2044 = vpack.c.b16 %v2029, %v2028
        %v2045 = vpack.c.b16 %v2031, %v2030
        %v2046 = vpack.c.b16 %v2033, %v2032
        %v2047 = vpack.c.b16 %v2035, %v2034
        %v2048 = vpack.c.b16 %v2037, %v2036
        %v2049 = vpack.c.b16 %v2039, %v2038
        %v2050 = vpack.c.b16 %v2041, %v2040
        %v2051 = vpack.c.b16 %v2043, %v2042
        %2060 = vmatprep.subr.bf16.mxu0 0
        %2061 = vmatpush1.bf16.msra.mxu0 %v2044
        %2062 = vmatprep.subr.bf16.mxu0 0
        %2063 = vmatpush1.bf16.msra.mxu0 %v2045
        %2064 = vmatprep.subr.bf16.mxu0 0
        %2065 = vmatpush1.bf16.msra.mxu0 %v2046
        %2066 = vmatprep.subr.bf16.mxu0 0
        %2067 = vmatpush1.bf16.msra.mxu0 %v2047
        %2068 = vmatprep.subr.bf16.mxu0 0
        %2069 = vmatpush1.bf16.msra.mxu0 %v2048
        %2070 = vmatprep.subr.bf16.mxu0 0
        %2071 = vmatpush1.bf16.msra.mxu0 %v2049
        %2072 = vmatprep.subr.bf16.mxu0 0
        %2073 = vmatpush1.bf16.msra.mxu0 %v2050
        %2074 = vmatprep.subr.bf16.mxu0 0
        %2075 = vmatpush1.bf16.msra.mxu0 %v2051
        %2076 = vmatprep.subr.bf16.mxu0 0
        %2077 = vmatpush1.bf16.msra.mxu0 0
        %2078 = vmatprep.subr.bf16.mxu0 0
        %2079 = vmatpush1.bf16.msra.mxu0 0
        %2080 = vmatprep.subr.bf16.mxu0 0
        %2081 = vmatpush1.bf16.msra.mxu0 0
        %2082 = vmatprep.subr.bf16.mxu0 0
        %2083 = vmatpush1.bf16.msra.mxu0 0
        %2084 = vmatprep.subr.bf16.mxu0 0
        %2085 = vmatpush1.bf16.msra.mxu0 0
        %2086 = vmatprep.subr.bf16.mxu0 0
        %2087 = vmatpush1.bf16.msra.mxu0 0
        %2088 = vmatprep.subr.bf16.mxu0 0
        %2089 = vmatpush1.bf16.msra.mxu0 0
        %2090 = vmatprep.subr.bf16.mxu0 0
        %2091 = vmatpush1.bf16.msra.mxu0 0
        %2092 = vmatprep.mubr.bf16.mxu0 0
        %2093 = vmatmul.mubr.bf16.gmra.mrb[0].mxu0 %v1982
        %v2094 = vpop.f32.mrb[0].mxu0
        %v2095 = vadd.f32 %v2011, %v2094
        %v2096 = vpop.f32.mrb[0].mxu0
        %v2097 = vpop.f32.mrb[0].mxu0
        %v2098 = vadd.f32 %v2011, %v2097
        %v2099 = vpop.f32.mrb[0].mxu0
        %2100 = vmatprep.mubr.bf16.mxu0 0
        %2101 = vmatmul.mubr.bf16.gmra.mrb[0].mxu0 %v1983
        %v2102 = vpop.f32.mrb[0].mxu0
        %v2103 = vadd.f32 %v2011, %v2102
        %v2104 = vpop.f32.mrb[0].mxu0
        %v2105 = vpop.f32.mrb[0].mxu0
        %v2106 = vadd.f32 %v2011, %v2105
        %v2107 = vpop.f32.mrb[0].mxu0
        %2108 = vmatprep.mubr.bf16.mxu0 0
        %2109 = vmatmul.mubr.bf16.gmra.mrb[0].mxu0 %v1984
        %v2110 = vpop.f32.mrb[0].mxu0
        %v2111 = vadd.f32 %v2011, %v2110
        %v2112 = vpop.f32.mrb[0].mxu0
        %v2113 = vpop.f32.mrb[0].mxu0
        %v2114 = vadd.f32 %v2011, %v2113
        %v2115 = vpop.f32.mrb[0].mxu0
        %2116 = vmatprep.mubr.bf16.mxu0 0
        %2117 = vmatmul.mubr.bf16.gmra.mrb[0].mxu0 %v1985
        %v2118 = vpop.f32.mrb[0].mxu0
        %v2119 = vadd.f32 %v2011, %v2118
        %v2120 = vpop.f32.mrb[0].mxu0
        %v2121 = vpop.f32.mrb[0].mxu0
        %v2122 = vadd.f32 %v2011, %v2121
        %v2123 = vpop.f32.mrb[0].mxu0
        %2124 = vmatprep.mubr.bf16.mxu0 0
        %2125 = vmatmul.mubr.bf16.gmra.mrb[0].mxu0 %v1986
        %v2126 = vpop.f32.mrb[0].mxu0
        %v2127 = vadd.f32 %v2011, %v2126
        %v2128 = vpop.f32.mrb[0].mxu0
        %v2129 = vpop.f32.mrb[0].mxu0
        %v2130 = vadd.f32 %v2011, %v2129
        %v2131 = vpop.f32.mrb[0].mxu0
        %2132 = vmatprep.mubr.bf16.mxu0 0
        %2133 = vmatmul.mubr.bf16.gmra.mrb[0].mxu0 %v1987
        %v2134 = vpop.f32.mrb[0].mxu0
        %v2135 = vadd.f32 %v2011, %v2134
        %v2136 = vpop.f32.mrb[0].mxu0
        %v2137 = vpop.f32.mrb[0].mxu0
        %v2138 = vadd.f32 %v2011, %v2137
        %v2139 = vpop.f32.mrb[0].mxu0
        %2140 = vmatprep.mubr.bf16.mxu0 0
        %2141 = vmatmul.mubr.bf16.gmra.mrb[0].mxu0 %v1988
        %v2142 = vpop.f32.mrb[0].mxu0
        %v2143 = vadd.f32 %v2011, %v2142
        %v2144 = vpop.f32.mrb[0].mxu0
        %v2145 = vpop.f32.mrb[0].mxu0
        %v2146 = vadd.f32 %v2011, %v2145
        %v2147 = vpop.f32.mrb[0].mxu0
        %2148 = vmatprep.mubr.bf16.mxu0 0
        %2149 = vmatmul.mubr.bf16.gmra.mrb[0].mxu0 %v1989
        %v2150 = vpop.f32.mrb[0].mxu0
        %v2151 = vadd.f32 %v2011, %v2150
        %v2152 = vpop.f32.mrb[0].mxu0
        %v2153 = vpop.f32.mrb[0].mxu0
        %v2154 = vadd.f32 %v2011, %v2153
        %v2155 = vpop.f32.mrb[0].mxu0
        %2156 = vdwg.mxu0
        %v2157 = vmax.f32 %v2095, 0.0
        %v2158 = vmax.f32 %v2098, 0.0
        %v2159 = vmax.f32 %v2103, 0.0
        %v2160 = vmax.f32 %v2106, 0.0
        %v2161 = vmax.f32 %v2111, 0.0
        %v2162 = vmax.f32 %v2114, 0.0
        %v2163 = vmax.f32 %v2119, 0.0
        %v2164 = vmax.f32 %v2122, 0.0
        %v2165 = vmax.f32 %v2127, 0.0
        %v2166 = vmax.f32 %v2130, 0.0
        %v2167 = vmax.f32 %v2135, 0.0
        %v2168 = vmax.f32 %v2138, 0.0
        %v2169 = vmax.f32 %v2143, 0.0
        %v2170 = vmax.f32 %v2146, 0.0
        %v2171 = vmax.f32 %v2151, 0.0
        %v2172 = vmax.f32 %v2154, 0.0
        %v2173 = vpack.c.bf16 %v2158, %v2157
        %v2174 = vpack.c.bf16 %v2160, %v2159
        %v2175 = vpack.c.bf16 %v2162, %v2161
        %v2176 = vpack.c.bf16 %v2164, %v2163
        %v2177 = vpack.c.bf16 %v2166, %v2165
        %v2178 = vpack.c.bf16 %v2168, %v2167
        %v2179 = vpack.c.bf16 %v2170, %v2169
        %v2180 = vpack.c.bf16 %v2172, %v2171
        %s2181 = scalar_lea.vmem [#allocation5], 448
        %v2182 = vld [vmem:[%s2181] sm:$0xf]
        %v2183 = vld [vmem:[%s2181 + $0x4] sm:$0xf]
        %v2184 = vld [vmem:[%s2181 + $0x8] sm:$0xf]
        %v2185 = vld [vmem:[%s2181 + $0xc] sm:$0xf]
        %v2186 = vld [vmem:[%s2181 + $0x10] sm:$0xf]
        %v2187 = vld [vmem:[%s2181 + $0x14] sm:$0xf]
        %v2188 = vld [vmem:[%s2181 + $0x18] sm:$0xf]
        %v2189 = vld [vmem:[%s2181 + $0x1c] sm:$0xf]
        %v2190 = vld [vmem:[%s2181 + $0x20] sm:$0xf]
        %v2191 = vld [vmem:[%s2181 + $0x24] sm:$0xf]
        %v2192 = vld [vmem:[%s2181 + $0x28] sm:$0xf]
        %v2193 = vld [vmem:[%s2181 + $0x2c] sm:$0xf]
        %v2194 = vld [vmem:[%s2181 + $0x30] sm:$0xf]
        %v2195 = vld [vmem:[%s2181 + $0x34] sm:$0xf]
        %v2196 = vld [vmem:[%s2181 + $0x38] sm:$0xf]
        %v2197 = vld [vmem:[%s2181 + $0x3c] sm:$0xf]
        %v2198 = vld [vmem:[#allocation7 + $0x7] sm:$0x1]
        %v2199 = vlaneseq
        %v2200 = vshrl.u32 %v2199, 7
        %v2201 = vsub.s32 0, %v2200
        %v2202 = vrot.slane %v2198, %v2201
        %v2219 = vunpack.c.l.b16 %v2182
        %v2220 = vunpack.c.l.b16 %v2183
        %v2221 = vunpack.c.l.b16 %v2184
        %v2222 = vunpack.c.l.b16 %v2185
        %v2223 = vunpack.c.l.b16 %v2186
        %v2224 = vunpack.c.l.b16 %v2187
        %v2225 = vunpack.c.l.b16 %v2188
        %v2226 = vunpack.c.l.b16 %v2189
        %v2227 = vunpack.c.l.b16 %v2190
        %v2228 = vunpack.c.l.b16 %v2191
        %v2229 = vunpack.c.l.b16 %v2192
        %v2230 = vunpack.c.l.b16 %v2193
        %v2231 = vunpack.c.l.b16 %v2194
        %v2232 = vunpack.c.l.b16 %v2195
        %v2233 = vunpack.c.l.b16 %v2196
        %v2234 = vunpack.c.l.b16 %v2197
        %v2235 = vpack.c.b16 %v2220, %v2219
        %v2236 = vpack.c.b16 %v2222, %v2221
        %v2237 = vpack.c.b16 %v2224, %v2223
        %v2238 = vpack.c.b16 %v2226, %v2225
        %v2239 = vpack.c.b16 %v2228, %v2227
        %v2240 = vpack.c.b16 %v2230, %v2229
        %v2241 = vpack.c.b16 %v2232, %v2231
        %v2242 = vpack.c.b16 %v2234, %v2233
        %2251 = vmatprep.subr.bf16.mxu0 0
        %2252 = vmatpush1.bf16.msra.mxu0 %v2235
        %2253 = vmatprep.subr.bf16.mxu0 0
        %2254 = vmatpush1.bf16.msra.mxu0 %v2236
        %2255 = vmatprep.subr.bf16.mxu0 0
        %2256 = vmatpush1.bf16.msra.mxu0 %v2237
        %2257 = vmatprep.subr.bf16.mxu0 0
        %2258 = vmatpush1.bf16.msra.mxu0 %v2238
        %2259 = vmatprep.subr.bf16.mxu0 0
        %2260 = vmatpush1.bf16.msra.mxu0 %v2239
        %2261 = vmatprep.subr.bf16.mxu0 0
        %2262 = vmatpush1.bf16.msra.mxu0 %v2240
        %2263 = vmatprep.subr.bf16.mxu0 0
        %2264 = vmatpush1.bf16.msra.mxu0 %v2241
        %2265 = vmatprep.subr.bf16.mxu0 0
        %2266 = vmatpush1.bf16.msra.mxu0 %v2242
        %2267 = vmatprep.subr.bf16.mxu0 0
        %2268 = vmatpush1.bf16.msra.mxu0 0
        %2269 = vmatprep.subr.bf16.mxu0 0
        %2270 = vmatpush1.bf16.msra.mxu0 0
        %2271 = vmatprep.subr.bf16.mxu0 0
        %2272 = vmatpush1.bf16.msra.mxu0 0
        %2273 = vmatprep.subr.bf16.mxu0 0
        %2274 = vmatpush1.bf16.msra.mxu0 0
        %2275 = vmatprep.subr.bf16.mxu0 0
        %2276 = vmatpush1.bf16.msra.mxu0 0
        %2277 = vmatprep.subr.bf16.mxu0 0
        %2278 = vmatpush1.bf16.msra.mxu0 0
        %2279 = vmatprep.subr.bf16.mxu0 0
        %2280 = vmatpush1.bf16.msra.mxu0 0
        %2281 = vmatprep.subr.bf16.mxu0 0
        %2282 = vmatpush1.bf16.msra.mxu0 0
        %2283 = vmatprep.mubr.bf16.mxu0 0
        %2284 = vmatmul.mubr.bf16.gmra.mrb[0].mxu0 %v2173
        %v2285 = vpop.f32.mrb[0].mxu0
        %v2286 = vadd.f32 %v2202, %v2285
        %v2287 = vpop.f32.mrb[0].mxu0
        %v2288 = vpop.f32.mrb[0].mxu0
        %v2289 = vadd.f32 %v2202, %v2288
        %v2290 = vpop.f32.mrb[0].mxu0
        %2291 = vmatprep.mubr.bf16.mxu0 0
        %2292 = vmatmul.mubr.bf16.gmra.mrb[0].mxu0 %v2174
        %v2293 = vpop.f32.mrb[0].mxu0
        %v2294 = vadd.f32 %v2202, %v2293
        %v2295 = vpop.f32.mrb[0].mxu0
        %v2296 = vpop.f32.mrb[0].mxu0
        %v2297 = vadd.f32 %v2202, %v2296
        %v2298 = vpop.f32.mrb[0].mxu0
        %2299 = vmatprep.mubr.bf16.mxu0 0
        %2300 = vmatmul.mubr.bf16.gmra.mrb[0].mxu0 %v2175
        %v2301 = vpop.f32.mrb[0].mxu0
        %v2302 = vadd.f32 %v2202, %v2301
        %v2303 = vpop.f32.mrb[0].mxu0
        %v2304 = vpop.f32.mrb[0].mxu0
        %v2305 = vadd.f32 %v2202, %v2304
        %v2306 = vpop.f32.mrb[0].mxu0
        %2307 = vmatprep.mubr.bf16.mxu0 0
        %2308 = vmatmul.mubr.bf16.gmra.mrb[0].mxu0 %v2176
        %v2309 = vpop.f32.mrb[0].mxu0
        %v2310 = vadd.f32 %v2202, %v2309
        %v2311 = vpop.f32.mrb[0].mxu0
        %v2312 = vpop.f32.mrb[0].mxu0
        %v2313 = vadd.f32 %v2202, %v2312
        %v2314 = vpop.f32.mrb[0].mxu0
        %2315 = vmatprep.mubr.bf16.mxu0 0
        %2316 = vmatmul.mubr.bf16.gmra.mrb[0].mxu0 %v2177
        %v2317 = vpop.f32.mrb[0].mxu0
        %v2318 = vadd.f32 %v2202, %v2317
        %v2319 = vpop.f32.mrb[0].mxu0
        %v2320 = vpop.f32.mrb[0].mxu0
        %v2321 = vadd.f32 %v2202, %v2320
        %v2322 = vpop.f32.mrb[0].mxu0
        %2323 = vmatprep.mubr.bf16.mxu0 0
        %2324 = vmatmul.mubr.bf16.gmra.mrb[0].mxu0 %v2178
        %v2325 = vpop.f32.mrb[0].mxu0
        %v2326 = vadd.f32 %v2202, %v2325
        %v2327 = vpop.f32.mrb[0].mxu0
        %v2328 = vpop.f32.mrb[0].mxu0
        %v2329 = vadd.f32 %v2202, %v2328
        %v2330 = vpop.f32.mrb[0].mxu0
        %2331 = vmatprep.mubr.bf16.mxu0 0
        %2332 = vmatmul.mubr.bf16.gmra.mrb[0].mxu0 %v2179
        %v2333 = vpop.f32.mrb[0].mxu0
        %v2334 = vadd.f32 %v2202, %v2333
        %v2335 = vpop.f32.mrb[0].mxu0
        %v2336 = vpop.f32.mrb[0].mxu0
        %v2337 = vadd.f32 %v2202, %v2336
        %v2338 = vpop.f32.mrb[0].mxu0
        %2339 = vmatprep.mubr.bf16.mxu0 0
        %2340 = vmatmul.mubr.bf16.gmra.mrb[0].mxu0 %v2180
        %v2341 = vpop.f32.mrb[0].mxu0
        %v2342 = vadd.f32 %v2202, %v2341
        %v2343 = vpop.f32.mrb[0].mxu0
        %v2344 = vpop.f32.mrb[0].mxu0
        %v2345 = vadd.f32 %v2202, %v2344
        %v2346 = vpop.f32.mrb[0].mxu0
        %2347 = vdwg.mxu0
        %v2348 = vmax.f32 %v2286, 0.0
        %v2349 = vmax.f32 %v2289, 0.0
        %v2350 = vmax.f32 %v2294, 0.0
        %v2351 = vmax.f32 %v2297, 0.0
        %v2352 = vmax.f32 %v2302, 0.0
        %v2353 = vmax.f32 %v2305, 0.0
        %v2354 = vmax.f32 %v2310, 0.0
        %v2355 = vmax.f32 %v2313, 0.0
        %v2356 = vmax.f32 %v2318, 0.0
        %v2357 = vmax.f32 %v2321, 0.0
        %v2358 = vmax.f32 %v2326, 0.0
        %v2359 = vmax.f32 %v2329, 0.0
        %v2360 = vmax.f32 %v2334, 0.0
        %v2361 = vmax.f32 %v2337, 0.0
        %v2362 = vmax.f32 %v2342, 0.0
        %v2363 = vmax.f32 %v2345, 0.0
        %v2364 = vpack.c.bf16 %v2349, %v2348
        %v2365 = vpack.c.bf16 %v2351, %v2350
        %v2366 = vpack.c.bf16 %v2353, %v2352
        %v2367 = vpack.c.bf16 %v2355, %v2354
        %v2368 = vpack.c.bf16 %v2357, %v2356
        %v2369 = vpack.c.bf16 %v2359, %v2358
        %v2370 = vpack.c.bf16 %v2361, %v2360
        %v2371 = vpack.c.bf16 %v2363, %v2362
        %s2372 = scalar_lea.vmem [#allocation5], 512
        %v2373 = vld [vmem:[%s2372] sm:$0xf]
        %v2374 = vld [vmem:[%s2372 + $0x4] sm:$0xf]
        %v2375 = vld [vmem:[%s2372 + $0x8] sm:$0xf]
        %v2376 = vld [vmem:[%s2372 + $0xc] sm:$0xf]
        %v2377 = vld [vmem:[%s2372 + $0x10] sm:$0xf]
        %v2378 = vld [vmem:[%s2372 + $0x14] sm:$0xf]
        %v2379 = vld [vmem:[%s2372 + $0x18] sm:$0xf]
        %v2380 = vld [vmem:[%s2372 + $0x1c] sm:$0xf]
        %v2381 = vld [vmem:[%s2372 + $0x20] sm:$0xf]
        %v2382 = vld [vmem:[%s2372 + $0x24] sm:$0xf]
        %v2383 = vld [vmem:[%s2372 + $0x28] sm:$0xf]
        %v2384 = vld [vmem:[%s2372 + $0x2c] sm:$0xf]
        %v2385 = vld [vmem:[%s2372 + $0x30] sm:$0xf]
        %v2386 = vld [vmem:[%s2372 + $0x34] sm:$0xf]
        %v2387 = vld [vmem:[%s2372 + $0x38] sm:$0xf]
        %v2388 = vld [vmem:[%s2372 + $0x3c] sm:$0xf]
        %v2389 = vld [vmem:[#allocation7 + $0x8] sm:$0x1]
        %v2390 = vlaneseq
        %v2391 = vshrl.u32 %v2390, 7
        %v2392 = vsub.s32 0, %v2391
        %v2393 = vrot.slane %v2389, %v2392
        %v2410 = vunpack.c.l.b16 %v2373
        %v2411 = vunpack.c.l.b16 %v2374
        %v2412 = vunpack.c.l.b16 %v2375
        %v2413 = vunpack.c.l.b16 %v2376
        %v2414 = vunpack.c.l.b16 %v2377
        %v2415 = vunpack.c.l.b16 %v2378
        %v2416 = vunpack.c.l.b16 %v2379
        %v2417 = vunpack.c.l.b16 %v2380
        %v2418 = vunpack.c.l.b16 %v2381
        %v2419 = vunpack.c.l.b16 %v2382
        %v2420 = vunpack.c.l.b16 %v2383
        %v2421 = vunpack.c.l.b16 %v2384
        %v2422 = vunpack.c.l.b16 %v2385
        %v2423 = vunpack.c.l.b16 %v2386
        %v2424 = vunpack.c.l.b16 %v2387
        %v2425 = vunpack.c.l.b16 %v2388
        %v2426 = vpack.c.b16 %v2411, %v2410
        %v2427 = vpack.c.b16 %v2413, %v2412
        %v2428 = vpack.c.b16 %v2415, %v2414
        %v2429 = vpack.c.b16 %v2417, %v2416
        %v2430 = vpack.c.b16 %v2419, %v2418
        %v2431 = vpack.c.b16 %v2421, %v2420
        %v2432 = vpack.c.b16 %v2423, %v2422
        %v2433 = vpack.c.b16 %v2425, %v2424
        %2442 = vmatprep.subr.bf16.mxu0 0
        %2443 = vmatpush1.bf16.msra.mxu0 %v2426
        %2444 = vmatprep.subr.bf16.mxu0 0
        %2445 = vmatpush1.bf16.msra.mxu0 %v2427
        %2446 = vmatprep.subr.bf16.mxu0 0
        %2447 = vmatpush1.bf16.msra.mxu0 %v2428
        %2448 = vmatprep.subr.bf16.mxu0 0
        %2449 = vmatpush1.bf16.msra.mxu0 %v2429
        %2450 = vmatprep.subr.bf16.mxu0 0
        %2451 = vmatpush1.bf16.msra.mxu0 %v2430
        %2452 = vmatprep.subr.bf16.mxu0 0
        %2453 = vmatpush1.bf16.msra.mxu0 %v2431
        %2454 = vmatprep.subr.bf16.mxu0 0
        %2455 = vmatpush1.bf16.msra.mxu0 %v2432
        %2456 = vmatprep.subr.bf16.mxu0 0
        %2457 = vmatpush1.bf16.msra.mxu0 %v2433
        %2458 = vmatprep.subr.bf16.mxu0 0
        %2459 = vmatpush1.bf16.msra.mxu0 0
        %2460 = vmatprep.subr.bf16.mxu0 0
        %2461 = vmatpush1.bf16.msra.mxu0 0
        %2462 = vmatprep.subr.bf16.mxu0 0
        %2463 = vmatpush1.bf16.msra.mxu0 0
        %2464 = vmatprep.subr.bf16.mxu0 0
        %2465 = vmatpush1.bf16.msra.mxu0 0
        %2466 = vmatprep.subr.bf16.mxu0 0
        %2467 = vmatpush1.bf16.msra.mxu0 0
        %2468 = vmatprep.subr.bf16.mxu0 0
        %2469 = vmatpush1.bf16.msra.mxu0 0
        %2470 = vmatprep.subr.bf16.mxu0 0
        %2471 = vmatpush1.bf16.msra.mxu0 0
        %2472 = vmatprep.subr.bf16.mxu0 0
        %2473 = vmatpush1.bf16.msra.mxu0 0
        %2474 = vmatprep.mubr.bf16.mxu0 0
        %2475 = vmatmul.mubr.bf16.gmra.mrb[0].mxu0 %v2364
        %v2476 = vpop.f32.mrb[0].mxu0
        %v2477 = vadd.f32 %v2393, %v2476
        %v2478 = vpop.f32.mrb[0].mxu0
        %v2479 = vpop.f32.mrb[0].mxu0
        %v2480 = vadd.f32 %v2393, %v2479
        %v2481 = vpop.f32.mrb[0].mxu0
        %2482 = vmatprep.mubr.bf16.mxu0 0
        %2483 = vmatmul.mubr.bf16.gmra.mrb[0].mxu0 %v2365
        %v2484 = vpop.f32.mrb[0].mxu0
        %v2485 = vadd.f32 %v2393, %v2484
        %v2486 = vpop.f32.mrb[0].mxu0
        %v2487 = vpop.f32.mrb[0].mxu0
        %v2488 = vadd.f32 %v2393, %v2487
        %v2489 = vpop.f32.mrb[0].mxu0
        %2490 = vmatprep.mubr.bf16.mxu0 0
        %2491 = vmatmul.mubr.bf16.gmra.mrb[0].mxu0 %v2366
        %v2492 = vpop.f32.mrb[0].mxu0
        %v2493 = vadd.f32 %v2393, %v2492
        %v2494 = vpop.f32.mrb[0].mxu0
        %v2495 = vpop.f32.mrb[0].mxu0
        %v2496 = vadd.f32 %v2393, %v2495
        %v2497 = vpop.f32.mrb[0].mxu0
        %2498 = vmatprep.mubr.bf16.mxu0 0
        %2499 = vmatmul.mubr.bf16.gmra.mrb[0].mxu0 %v2367
        %v2500 = vpop.f32.mrb[0].mxu0
        %v2501 = vadd.f32 %v2393, %v2500
        %v2502 = vpop.f32.mrb[0].mxu0
        %v2503 = vpop.f32.mrb[0].mxu0
        %v2504 = vadd.f32 %v2393, %v2503
        %v2505 = vpop.f32.mrb[0].mxu0
        %2506 = vmatprep.mubr.bf16.mxu0 0
        %2507 = vmatmul.mubr.bf16.gmra.mrb[0].mxu0 %v2368
        %v2508 = vpop.f32.mrb[0].mxu0
        %v2509 = vadd.f32 %v2393, %v2508
        %v2510 = vpop.f32.mrb[0].mxu0
        %v2511 = vpop.f32.mrb[0].mxu0
        %v2512 = vadd.f32 %v2393, %v2511
        %v2513 = vpop.f32.mrb[0].mxu0
        %2514 = vmatprep.mubr.bf16.mxu0 0
        %2515 = vmatmul.mubr.bf16.gmra.mrb[0].mxu0 %v2369
        %v2516 = vpop.f32.mrb[0].mxu0
        %v2517 = vadd.f32 %v2393, %v2516
        %v2518 = vpop.f32.mrb[0].mxu0
        %v2519 = vpop.f32.mrb[0].mxu0
        %v2520 = vadd.f32 %v2393, %v2519
        %v2521 = vpop.f32.mrb[0].mxu0
        %2522 = vmatprep.mubr.bf16.mxu0 0
        %2523 = vmatmul.mubr.bf16.gmra.mrb[0].mxu0 %v2370
        %v2524 = vpop.f32.mrb[0].mxu0
        %v2525 = vadd.f32 %v2393, %v2524
        %v2526 = vpop.f32.mrb[0].mxu0
        %v2527 = vpop.f32.mrb[0].mxu0
        %v2528 = vadd.f32 %v2393, %v2527
        %v2529 = vpop.f32.mrb[0].mxu0
        %2530 = vmatprep.mubr.bf16.mxu0 0
        %2531 = vmatmul.mubr.bf16.gmra.mrb[0].mxu0 %v2371
        %v2532 = vpop.f32.mrb[0].mxu0
        %v2533 = vadd.f32 %v2393, %v2532
        %v2534 = vpop.f32.mrb[0].mxu0
        %v2535 = vpop.f32.mrb[0].mxu0
        %v2536 = vadd.f32 %v2393, %v2535
        %v2537 = vpop.f32.mrb[0].mxu0
        %2538 = vdwg.mxu0
        %v2539 = vadd.f32 %v2477, %v1966
        %v2540 = vadd.f32 %v2480, %v1967
        %v2541 = vadd.f32 %v2485, %v1968
        %v2542 = vadd.f32 %v2488, %v1969
        %v2543 = vadd.f32 %v2493, %v1970
        %v2544 = vadd.f32 %v2496, %v1971
        %v2545 = vadd.f32 %v2501, %v1972
        %v2546 = vadd.f32 %v2504, %v1973
        %v2547 = vadd.f32 %v2509, %v1974
        %v2548 = vadd.f32 %v2512, %v1975
        %v2549 = vadd.f32 %v2517, %v1976
        %v2550 = vadd.f32 %v2520, %v1977
        %v2551 = vadd.f32 %v2525, %v1978
        %v2552 = vadd.f32 %v2528, %v1979
        %v2553 = vadd.f32 %v2533, %v1980
        %v2554 = vadd.f32 %v2536, %v1981
        %2555 = vadd.xlane.f32.xlu0 %v2539
        %v2556 = vpop.xlane.xlu0 %2555
        %2557 = vadd.xlane.f32.xlu0 %v2540
        %v2558 = vpop.xlane.xlu0 %2557
        %2559 = vadd.xlane.f32.xlu0 %v2541
        %v2560 = vpop.xlane.xlu0 %2559
        %2561 = vadd.xlane.f32.xlu0 %v2542
        %v2562 = vpop.xlane.xlu0 %2561
        %2563 = vadd.xlane.f32.xlu0 %v2543
        %v2564 = vpop.xlane.xlu0 %2563
        %2565 = vadd.xlane.f32.xlu0 %v2544
        %v2566 = vpop.xlane.xlu0 %2565
        %2567 = vadd.xlane.f32.xlu0 %v2545
        %v2568 = vpop.xlane.xlu0 %2567
        %2569 = vadd.xlane.f32.xlu0 %v2546
        %v2570 = vpop.xlane.xlu0 %2569
        %2571 = vadd.xlane.f32.xlu0 %v2547
        %v2572 = vpop.xlane.xlu0 %2571
        %2573 = vadd.xlane.f32.xlu0 %v2548
        %v2574 = vpop.xlane.xlu0 %2573
        %2575 = vadd.xlane.f32.xlu0 %v2549
        %v2576 = vpop.xlane.xlu0 %2575
        %2577 = vadd.xlane.f32.xlu0 %v2550
        %v2578 = vpop.xlane.xlu0 %2577
        %2579 = vadd.xlane.f32.xlu0 %v2551
        %v2580 = vpop.xlane.xlu0 %2579
        %2581 = vadd.xlane.f32.xlu0 %v2552
        %v2582 = vpop.xlane.xlu0 %2581
        %2583 = vadd.xlane.f32.xlu0 %v2553
        %v2584 = vpop.xlane.xlu0 %2583
        %2585 = vadd.xlane.f32.xlu0 %v2554
        %v2586 = vpop.xlane.xlu0 %2585
        %v2587 = vmul.f32 %v2556, %v908
        %v2588 = vmul.f32 %v2558, %v908
        %v2589 = vmul.f32 %v2560, %v908
        %v2590 = vmul.f32 %v2562, %v908
        %v2591 = vmul.f32 %v2564, %v908
        %v2592 = vmul.f32 %v2566, %v908
        %v2593 = vmul.f32 %v2568, %v908
        %v2594 = vmul.f32 %v2570, %v908
        %v2595 = vmul.f32 %v2572, %v908
        %v2596 = vmul.f32 %v2574, %v908
        %v2597 = vmul.f32 %v2576, %v908
        %v2598 = vmul.f32 %v2578, %v908
        %v2599 = vmul.f32 %v2580, %v908
        %v2600 = vmul.f32 %v2582, %v908
        %v2601 = vmul.f32 %v2584, %v908
        %v2602 = vmul.f32 %v2586, %v908
        %v2603 = vmul.f32 %v2539, %v2539
        %v2604 = vmul.f32 %v2540, %v2540
        %v2605 = vmul.f32 %v2541, %v2541
        %v2606 = vmul.f32 %v2542, %v2542
        %v2607 = vmul.f32 %v2543, %v2543
        %v2608 = vmul.f32 %v2544, %v2544
        %v2609 = vmul.f32 %v2545, %v2545
        %v2610 = vmul.f32 %v2546, %v2546
        %v2611 = vmul.f32 %v2547, %v2547
        %v2612 = vmul.f32 %v2548, %v2548
        %v2613 = vmul.f32 %v2549, %v2549
        %v2614 = vmul.f32 %v2550, %v2550
        %v2615 = vmul.f32 %v2551, %v2551
        %v2616 = vmul.f32 %v2552, %v2552
        %v2617 = vmul.f32 %v2553, %v2553
        %v2618 = vmul.f32 %v2554, %v2554
        %2619 = vadd.xlane.f32.xlu0 %v2603
        %v2620 = vpop.xlane.xlu0 %2619
        %2621 = vadd.xlane.f32.xlu0 %v2604
        %v2622 = vpop.xlane.xlu0 %2621
        %2623 = vadd.xlane.f32.xlu0 %v2605
        %v2624 = vpop.xlane.xlu0 %2623
        %2625 = vadd.xlane.f32.xlu0 %v2606
        %v2626 = vpop.xlane.xlu0 %2625
        %2627 = vadd.xlane.f32.xlu0 %v2607
        %v2628 = vpop.xlane.xlu0 %2627
        %2629 = vadd.xlane.f32.xlu0 %v2608
        %v2630 = vpop.xlane.xlu0 %2629
        %2631 = vadd.xlane.f32.xlu0 %v2609
        %v2632 = vpop.xlane.xlu0 %2631
        %2633 = vadd.xlane.f32.xlu0 %v2610
        %v2634 = vpop.xlane.xlu0 %2633
        %2635 = vadd.xlane.f32.xlu0 %v2611
        %v2636 = vpop.xlane.xlu0 %2635
        %2637 = vadd.xlane.f32.xlu0 %v2612
        %v2638 = vpop.xlane.xlu0 %2637
        %2639 = vadd.xlane.f32.xlu0 %v2613
        %v2640 = vpop.xlane.xlu0 %2639
        %2641 = vadd.xlane.f32.xlu0 %v2614
        %v2642 = vpop.xlane.xlu0 %2641
        %2643 = vadd.xlane.f32.xlu0 %v2615
        %v2644 = vpop.xlane.xlu0 %2643
        %2645 = vadd.xlane.f32.xlu0 %v2616
        %v2646 = vpop.xlane.xlu0 %2645
        %2647 = vadd.xlane.f32.xlu0 %v2617
        %v2648 = vpop.xlane.xlu0 %2647
        %2649 = vadd.xlane.f32.xlu0 %v2618
        %v2650 = vpop.xlane.xlu0 %2649
        %v2651 = vmul.f32 %v2620, %v908
        %v2652 = vmul.f32 %v2622, %v908
        %v2653 = vmul.f32 %v2624, %v908
        %v2654 = vmul.f32 %v2626, %v908
        %v2655 = vmul.f32 %v2628, %v908
        %v2656 = vmul.f32 %v2630, %v908
        %v2657 = vmul.f32 %v2632, %v908
        %v2658 = vmul.f32 %v2634, %v908
        %v2659 = vmul.f32 %v2636, %v908
        %v2660 = vmul.f32 %v2638, %v908
        %v2661 = vmul.f32 %v2640, %v908
        %v2662 = vmul.f32 %v2642, %v908
        %v2663 = vmul.f32 %v2644, %v908
        %v2664 = vmul.f32 %v2646, %v908
        %v2665 = vmul.f32 %v2648, %v908
        %v2666 = vmul.f32 %v2650, %v908
        %v2667 = vmul.f32 %v2587, %v2587
        %v2668 = vmul.f32 %v2588, %v2588
        %v2669 = vmul.f32 %v2589, %v2589
        %v2670 = vmul.f32 %v2590, %v2590
        %v2671 = vmul.f32 %v2591, %v2591
        %v2672 = vmul.f32 %v2592, %v2592
        %v2673 = vmul.f32 %v2593, %v2593
        %v2674 = vmul.f32 %v2594, %v2594
        %v2675 = vmul.f32 %v2595, %v2595
        %v2676 = vmul.f32 %v2596, %v2596
        %v2677 = vmul.f32 %v2597, %v2597
        %v2678 = vmul.f32 %v2598, %v2598
        %v2679 = vmul.f32 %v2599, %v2599
        %v2680 = vmul.f32 %v2600, %v2600
        %v2681 = vmul.f32 %v2601, %v2601
        %v2682 = vmul.f32 %v2602, %v2602
        %v2683 = vsub.f32 %v2651, %v2667
        %v2684 = vsub.f32 %v2652, %v2668
        %v2685 = vsub.f32 %v2653, %v2669
        %v2686 = vsub.f32 %v2654, %v2670
        %v2687 = vsub.f32 %v2655, %v2671
        %v2688 = vsub.f32 %v2656, %v2672
        %v2689 = vsub.f32 %v2657, %v2673
        %v2690 = vsub.f32 %v2658, %v2674
        %v2691 = vsub.f32 %v2659, %v2675
        %v2692 = vsub.f32 %v2660, %v2676
        %v2693 = vsub.f32 %v2661, %v2677
        %v2694 = vsub.f32 %v2662, %v2678
        %v2695 = vsub.f32 %v2663, %v2679
        %v2696 = vsub.f32 %v2664, %v2680
        %v2697 = vsub.f32 %v2665, %v2681
        %v2698 = vsub.f32 %v2666, %v2682
        %v2699 = vmax.f32 %v2683, 0.0
        %v2700 = vmax.f32 %v2684, 0.0
        %v2701 = vmax.f32 %v2685, 0.0
        %v2702 = vmax.f32 %v2686, 0.0
        %v2703 = vmax.f32 %v2687, 0.0
        %v2704 = vmax.f32 %v2688, 0.0
        %v2705 = vmax.f32 %v2689, 0.0
        %v2706 = vmax.f32 %v2690, 0.0
        %v2707 = vmax.f32 %v2691, 0.0
        %v2708 = vmax.f32 %v2692, 0.0
        %v2709 = vmax.f32 %v2693, 0.0
        %v2710 = vmax.f32 %v2694, 0.0
        %v2711 = vmax.f32 %v2695, 0.0
        %v2712 = vmax.f32 %v2696, 0.0
        %v2713 = vmax.f32 %v2697, 0.0
        %v2714 = vmax.f32 %v2698, 0.0
        %v2715 = vsub.f32 %v2539, %v2587
        %v2716 = vsub.f32 %v2540, %v2588
        %v2717 = vsub.f32 %v2541, %v2589
        %v2718 = vsub.f32 %v2542, %v2590
        %v2719 = vsub.f32 %v2543, %v2591
        %v2720 = vsub.f32 %v2544, %v2592
        %v2721 = vsub.f32 %v2545, %v2593
        %v2722 = vsub.f32 %v2546, %v2594
        %v2723 = vsub.f32 %v2547, %v2595
        %v2724 = vsub.f32 %v2548, %v2596
        %v2725 = vsub.f32 %v2549, %v2597
        %v2726 = vsub.f32 %v2550, %v2598
        %v2727 = vsub.f32 %v2551, %v2599
        %v2728 = vsub.f32 %v2552, %v2600
        %v2729 = vsub.f32 %v2553, %v2601
        %v2730 = vsub.f32 %v2554, %v2602
        %v2731 = vadd.f32 %v2699, 1e-05
        %v2732 = vadd.f32 %v2700, 1e-05
        %v2733 = vadd.f32 %v2701, 1e-05
        %v2734 = vadd.f32 %v2702, 1e-05
        %v2735 = vadd.f32 %v2703, 1e-05
        %v2736 = vadd.f32 %v2704, 1e-05
        %v2737 = vadd.f32 %v2705, 1e-05
        %v2738 = vadd.f32 %v2706, 1e-05
        %v2739 = vadd.f32 %v2707, 1e-05
        %v2740 = vadd.f32 %v2708, 1e-05
        %v2741 = vadd.f32 %v2709, 1e-05
        %v2742 = vadd.f32 %v2710, 1e-05
        %v2743 = vadd.f32 %v2711, 1e-05
        %v2744 = vadd.f32 %v2712, 1e-05
        %v2745 = vadd.f32 %v2713, 1e-05
        %v2746 = vadd.f32 %v2714, 1e-05
        %v2747 = vrsqrt.pop %v2731
        %v2748 = vrsqrt.pop %v2732
        %v2749 = vrsqrt.pop %v2733
        %v2750 = vrsqrt.pop %v2734
        %v2751 = vrsqrt.pop %v2735
        %v2752 = vrsqrt.pop %v2736
        %v2753 = vrsqrt.pop %v2737
        %v2754 = vrsqrt.pop %v2738
        %v2755 = vrsqrt.pop %v2739
        %v2756 = vrsqrt.pop %v2740
        %v2757 = vrsqrt.pop %v2741
        %v2758 = vrsqrt.pop %v2742
        %v2759 = vrsqrt.pop %v2743
        %v2760 = vrsqrt.pop %v2744
        %v2761 = vrsqrt.pop %v2745
        %v2762 = vrsqrt.pop %v2746
        %v2763 = vmul.f32 %v2715, %v2747
        %v2764 = vmul.f32 %v2716, %v2748
        %v2765 = vmul.f32 %v2717, %v2749
        %v2766 = vmul.f32 %v2718, %v2750
        %v2767 = vmul.f32 %v2719, %v2751
        %v2768 = vmul.f32 %v2720, %v2752
        %v2769 = vmul.f32 %v2721, %v2753
        %v2770 = vmul.f32 %v2722, %v2754
        %v2771 = vmul.f32 %v2723, %v2755
        %v2772 = vmul.f32 %v2724, %v2756
        %v2773 = vmul.f32 %v2725, %v2757
        %v2774 = vmul.f32 %v2726, %v2758
        %v2775 = vmul.f32 %v2727, %v2759
        %v2776 = vmul.f32 %v2728, %v2760
        %v2777 = vmul.f32 %v2729, %v2761
        %v2778 = vmul.f32 %v2730, %v2762
        %v2779 = vld [vmem:[%s3 + $0x2] sm:$0x1]
        %v2780 = vlaneseq
        %v2781 = vshrl.u32 %v2780, 7
        %v2782 = vsub.s32 0, %v2781
        %v2783 = vrot.slane %v2779, %v2782
        %v2784 = vmul.f32 %v2763, %v2783
        %v2785 = vmul.f32 %v2764, %v2783
        %v2786 = vmul.f32 %v2765, %v2783
        %v2787 = vmul.f32 %v2766, %v2783
        %v2788 = vmul.f32 %v2767, %v2783
        %v2789 = vmul.f32 %v2768, %v2783
        %v2790 = vmul.f32 %v2769, %v2783
        %v2791 = vmul.f32 %v2770, %v2783
        %v2792 = vmul.f32 %v2771, %v2783
        %v2793 = vmul.f32 %v2772, %v2783
        %v2794 = vmul.f32 %v2773, %v2783
        %v2795 = vmul.f32 %v2774, %v2783
        %v2796 = vmul.f32 %v2775, %v2783
        %v2797 = vmul.f32 %v2776, %v2783
        %v2798 = vmul.f32 %v2777, %v2783
        %v2799 = vmul.f32 %v2778, %v2783
        %v2800 = vld [vmem:[#allocation8 + $0x2] sm:$0x1]
        %v2801 = vlaneseq
        %v2802 = vshrl.u32 %v2801, 7
        %v2803 = vsub.s32 0, %v2802
        %v2804 = vrot.slane %v2800, %v2803
        %v2805 = vadd.f32 %v2784, %v2804
        %v2806 = vadd.f32 %v2785, %v2804
        %v2807 = vadd.f32 %v2786, %v2804
        %v2808 = vadd.f32 %v2787, %v2804
        %v2809 = vadd.f32 %v2788, %v2804
        %v2810 = vadd.f32 %v2789, %v2804
        %v2811 = vadd.f32 %v2790, %v2804
        %v2812 = vadd.f32 %v2791, %v2804
        %v2813 = vadd.f32 %v2792, %v2804
        %v2814 = vadd.f32 %v2793, %v2804
        %v2815 = vadd.f32 %v2794, %v2804
        %v2816 = vadd.f32 %v2795, %v2804
        %v2817 = vadd.f32 %v2796, %v2804
        %v2818 = vadd.f32 %v2797, %v2804
        %v2819 = vadd.f32 %v2798, %v2804
        %v2820 = vadd.f32 %v2799, %v2804
        %v2821 = vpack.c.bf16 %v2806, %v2805
        %v2822 = vpack.c.bf16 %v2808, %v2807
        %v2823 = vpack.c.bf16 %v2810, %v2809
        %v2824 = vpack.c.bf16 %v2812, %v2811
        %v2825 = vpack.c.bf16 %v2814, %v2813
        %v2826 = vpack.c.bf16 %v2816, %v2815
        %v2827 = vpack.c.bf16 %v2818, %v2817
        %v2828 = vpack.c.bf16 %v2820, %v2819
        %s2829 = scalar_lea.vmem [#allocation5], 576
        %v2830 = vld [vmem:[%s2829] sm:$0xf]
        %v2831 = vld [vmem:[%s2829 + $0x4] sm:$0xf]
        %v2832 = vld [vmem:[%s2829 + $0x8] sm:$0xf]
        %v2833 = vld [vmem:[%s2829 + $0xc] sm:$0xf]
        %v2834 = vld [vmem:[%s2829 + $0x10] sm:$0xf]
        %v2835 = vld [vmem:[%s2829 + $0x14] sm:$0xf]
        %v2836 = vld [vmem:[%s2829 + $0x18] sm:$0xf]
        %v2837 = vld [vmem:[%s2829 + $0x1c] sm:$0xf]
        %v2838 = vld [vmem:[%s2829 + $0x20] sm:$0xf]
        %v2839 = vld [vmem:[%s2829 + $0x24] sm:$0xf]
        %v2840 = vld [vmem:[%s2829 + $0x28] sm:$0xf]
        %v2841 = vld [vmem:[%s2829 + $0x2c] sm:$0xf]
        %v2842 = vld [vmem:[%s2829 + $0x30] sm:$0xf]
        %v2843 = vld [vmem:[%s2829 + $0x34] sm:$0xf]
        %v2844 = vld [vmem:[%s2829 + $0x38] sm:$0xf]
        %v2845 = vld [vmem:[%s2829 + $0x3c] sm:$0xf]
        %v2846 = vld [vmem:[#allocation7 + $0x9] sm:$0x1]
        %v2847 = vlaneseq
        %v2848 = vshrl.u32 %v2847, 7
        %v2849 = vsub.s32 0, %v2848
        %v2850 = vrot.slane %v2846, %v2849
        %v2867 = vunpack.c.l.b16 %v2830
        %v2868 = vunpack.c.l.b16 %v2831
        %v2869 = vunpack.c.l.b16 %v2832
        %v2870 = vunpack.c.l.b16 %v2833
        %v2871 = vunpack.c.l.b16 %v2834
        %v2872 = vunpack.c.l.b16 %v2835
        %v2873 = vunpack.c.l.b16 %v2836
        %v2874 = vunpack.c.l.b16 %v2837
        %v2875 = vunpack.c.l.b16 %v2838
        %v2876 = vunpack.c.l.b16 %v2839
        %v2877 = vunpack.c.l.b16 %v2840
        %v2878 = vunpack.c.l.b16 %v2841
        %v2879 = vunpack.c.l.b16 %v2842
        %v2880 = vunpack.c.l.b16 %v2843
        %v2881 = vunpack.c.l.b16 %v2844
        %v2882 = vunpack.c.l.b16 %v2845
        %v2883 = vpack.c.b16 %v2868, %v2867
        %v2884 = vpack.c.b16 %v2870, %v2869
        %v2885 = vpack.c.b16 %v2872, %v2871
        %v2886 = vpack.c.b16 %v2874, %v2873
        %v2887 = vpack.c.b16 %v2876, %v2875
        %v2888 = vpack.c.b16 %v2878, %v2877
        %v2889 = vpack.c.b16 %v2880, %v2879
        %v2890 = vpack.c.b16 %v2882, %v2881
        %2899 = vmatprep.subr.bf16.mxu0 0
        %2900 = vmatpush1.bf16.msra.mxu0 %v2883
        %2901 = vmatprep.subr.bf16.mxu0 0
        %2902 = vmatpush1.bf16.msra.mxu0 %v2884
        %2903 = vmatprep.subr.bf16.mxu0 0
        %2904 = vmatpush1.bf16.msra.mxu0 %v2885
        %2905 = vmatprep.subr.bf16.mxu0 0
        %2906 = vmatpush1.bf16.msra.mxu0 %v2886
        %2907 = vmatprep.subr.bf16.mxu0 0
        %2908 = vmatpush1.bf16.msra.mxu0 %v2887
        %2909 = vmatprep.subr.bf16.mxu0 0
        %2910 = vmatpush1.bf16.msra.mxu0 %v2888
        %2911 = vmatprep.subr.bf16.mxu0 0
        %2912 = vmatpush1.bf16.msra.mxu0 %v2889
        %2913 = vmatprep.subr.bf16.mxu0 0
        %2914 = vmatpush1.bf16.msra.mxu0 %v2890
        %2915 = vmatprep.subr.bf16.mxu0 0
        %2916 = vmatpush1.bf16.msra.mxu0 0
        %2917 = vmatprep.subr.bf16.mxu0 0
        %2918 = vmatpush1.bf16.msra.mxu0 0
        %2919 = vmatprep.subr.bf16.mxu0 0
        %2920 = vmatpush1.bf16.msra.mxu0 0
        %2921 = vmatprep.subr.bf16.mxu0 0
        %2922 = vmatpush1.bf16.msra.mxu0 0
        %2923 = vmatprep.subr.bf16.mxu0 0
        %2924 = vmatpush1.bf16.msra.mxu0 0
        %2925 = vmatprep.subr.bf16.mxu0 0
        %2926 = vmatpush1.bf16.msra.mxu0 0
        %2927 = vmatprep.subr.bf16.mxu0 0
        %2928 = vmatpush1.bf16.msra.mxu0 0
        %2929 = vmatprep.subr.bf16.mxu0 0
        %2930 = vmatpush1.bf16.msra.mxu0 0
        %2931 = vmatprep.mubr.bf16.mxu0 0
        %2932 = vmatmul.mubr.bf16.gmra.mrb[0].mxu0 %v2821
        %v2933 = vpop.f32.mrb[0].mxu0
        %v2934 = vadd.f32 %v2850, %v2933
        %v2935 = vpop.f32.mrb[0].mxu0
        %v2936 = vpop.f32.mrb[0].mxu0
        %v2937 = vadd.f32 %v2850, %v2936
        %v2938 = vpop.f32.mrb[0].mxu0
        %2939 = vmatprep.mubr.bf16.mxu0 0
        %2940 = vmatmul.mubr.bf16.gmra.mrb[0].mxu0 %v2822
        %v2941 = vpop.f32.mrb[0].mxu0
        %v2942 = vadd.f32 %v2850, %v2941
        %v2943 = vpop.f32.mrb[0].mxu0
        %v2944 = vpop.f32.mrb[0].mxu0
        %v2945 = vadd.f32 %v2850, %v2944
        %v2946 = vpop.f32.mrb[0].mxu0
        %2947 = vmatprep.mubr.bf16.mxu0 0
        %2948 = vmatmul.mubr.bf16.gmra.mrb[0].mxu0 %v2823
        %v2949 = vpop.f32.mrb[0].mxu0
        %v2950 = vadd.f32 %v2850, %v2949
        %v2951 = vpop.f32.mrb[0].mxu0
        %v2952 = vpop.f32.mrb[0].mxu0
        %v2953 = vadd.f32 %v2850, %v2952
        %v2954 = vpop.f32.mrb[0].mxu0
        %2955 = vmatprep.mubr.bf16.mxu0 0
        %2956 = vmatmul.mubr.bf16.gmra.mrb[0].mxu0 %v2824
        %v2957 = vpop.f32.mrb[0].mxu0
        %v2958 = vadd.f32 %v2850, %v2957
        %v2959 = vpop.f32.mrb[0].mxu0
        %v2960 = vpop.f32.mrb[0].mxu0
        %v2961 = vadd.f32 %v2850, %v2960
        %v2962 = vpop.f32.mrb[0].mxu0
        %2963 = vmatprep.mubr.bf16.mxu0 0
        %2964 = vmatmul.mubr.bf16.gmra.mrb[0].mxu0 %v2825
        %v2965 = vpop.f32.mrb[0].mxu0
        %v2966 = vadd.f32 %v2850, %v2965
        %v2967 = vpop.f32.mrb[0].mxu0
        %v2968 = vpop.f32.mrb[0].mxu0
        %v2969 = vadd.f32 %v2850, %v2968
        %v2970 = vpop.f32.mrb[0].mxu0
        %2971 = vmatprep.mubr.bf16.mxu0 0
        %2972 = vmatmul.mubr.bf16.gmra.mrb[0].mxu0 %v2826
        %v2973 = vpop.f32.mrb[0].mxu0
        %v2974 = vadd.f32 %v2850, %v2973
        %v2975 = vpop.f32.mrb[0].mxu0
        %v2976 = vpop.f32.mrb[0].mxu0
        %v2977 = vadd.f32 %v2850, %v2976
        %v2978 = vpop.f32.mrb[0].mxu0
        %2979 = vmatprep.mubr.bf16.mxu0 0
        %2980 = vmatmul.mubr.bf16.gmra.mrb[0].mxu0 %v2827
        %v2981 = vpop.f32.mrb[0].mxu0
        %v2982 = vadd.f32 %v2850, %v2981
        %v2983 = vpop.f32.mrb[0].mxu0
        %v2984 = vpop.f32.mrb[0].mxu0
        %v2985 = vadd.f32 %v2850, %v2984
        %v2986 = vpop.f32.mrb[0].mxu0
        %2987 = vmatprep.mubr.bf16.mxu0 0
        %2988 = vmatmul.mubr.bf16.gmra.mrb[0].mxu0 %v2828
        %v2989 = vpop.f32.mrb[0].mxu0
        %v2990 = vadd.f32 %v2850, %v2989
        %v2991 = vpop.f32.mrb[0].mxu0
        %v2992 = vpop.f32.mrb[0].mxu0
        %v2993 = vadd.f32 %v2850, %v2992
        %v2994 = vpop.f32.mrb[0].mxu0
        %2995 = vdwg.mxu0
        %v2996 = vmax.f32 %v2934, 0.0
        %v2997 = vmax.f32 %v2937, 0.0
        %v2998 = vmax.f32 %v2942, 0.0
        %v2999 = vmax.f32 %v2945, 0.0
        %v3000 = vmax.f32 %v2950, 0.0
        %v3001 = vmax.f32 %v2953, 0.0
        %v3002 = vmax.f32 %v2958, 0.0
        %v3003 = vmax.f32 %v2961, 0.0
        %v3004 = vmax.f32 %v2966, 0.0
        %v3005 = vmax.f32 %v2969, 0.0
        %v3006 = vmax.f32 %v2974, 0.0
        %v3007 = vmax.f32 %v2977, 0.0
        %v3008 = vmax.f32 %v2982, 0.0
        %v3009 = vmax.f32 %v2985, 0.0
        %v3010 = vmax.f32 %v2990, 0.0
        %v3011 = vmax.f32 %v2993, 0.0
        %v3012 = vpack.c.bf16 %v2997, %v2996
        %v3013 = vpack.c.bf16 %v2999, %v2998
        %v3014 = vpack.c.bf16 %v3001, %v3000
        %v3015 = vpack.c.bf16 %v3003, %v3002
        %v3016 = vpack.c.bf16 %v3005, %v3004
        %v3017 = vpack.c.bf16 %v3007, %v3006
        %v3018 = vpack.c.bf16 %v3009, %v3008
        %v3019 = vpack.c.bf16 %v3011, %v3010
        %s3020 = scalar_lea.vmem [#allocation5], 640
        %v3021 = vld [vmem:[%s3020] sm:$0xf]
        %v3022 = vld [vmem:[%s3020 + $0x4] sm:$0xf]
        %v3023 = vld [vmem:[%s3020 + $0x8] sm:$0xf]
        %v3024 = vld [vmem:[%s3020 + $0xc] sm:$0xf]
        %v3025 = vld [vmem:[%s3020 + $0x10] sm:$0xf]
        %v3026 = vld [vmem:[%s3020 + $0x14] sm:$0xf]
        %v3027 = vld [vmem:[%s3020 + $0x18] sm:$0xf]
        %v3028 = vld [vmem:[%s3020 + $0x1c] sm:$0xf]
        %v3029 = vld [vmem:[%s3020 + $0x20] sm:$0xf]
        %v3030 = vld [vmem:[%s3020 + $0x24] sm:$0xf]
        %v3031 = vld [vmem:[%s3020 + $0x28] sm:$0xf]
        %v3032 = vld [vmem:[%s3020 + $0x2c] sm:$0xf]
        %v3033 = vld [vmem:[%s3020 + $0x30] sm:$0xf]
        %v3034 = vld [vmem:[%s3020 + $0x34] sm:$0xf]
        %v3035 = vld [vmem:[%s3020 + $0x38] sm:$0xf]
        %v3036 = vld [vmem:[%s3020 + $0x3c] sm:$0xf]
        %v3037 = vld [vmem:[#allocation7 + $0xa] sm:$0x1]
        %v3038 = vlaneseq
        %v3039 = vshrl.u32 %v3038, 7
        %v3040 = vsub.s32 0, %v3039
        %v3041 = vrot.slane %v3037, %v3040
        %v3058 = vunpack.c.l.b16 %v3021
        %v3059 = vunpack.c.l.b16 %v3022
        %v3060 = vunpack.c.l.b16 %v3023
        %v3061 = vunpack.c.l.b16 %v3024
        %v3062 = vunpack.c.l.b16 %v3025
        %v3063 = vunpack.c.l.b16 %v3026
        %v3064 = vunpack.c.l.b16 %v3027
        %v3065 = vunpack.c.l.b16 %v3028
        %v3066 = vunpack.c.l.b16 %v3029
        %v3067 = vunpack.c.l.b16 %v3030
        %v3068 = vunpack.c.l.b16 %v3031
        %v3069 = vunpack.c.l.b16 %v3032
        %v3070 = vunpack.c.l.b16 %v3033
        %v3071 = vunpack.c.l.b16 %v3034
        %v3072 = vunpack.c.l.b16 %v3035
        %v3073 = vunpack.c.l.b16 %v3036
        %v3074 = vpack.c.b16 %v3059, %v3058
        %v3075 = vpack.c.b16 %v3061, %v3060
        %v3076 = vpack.c.b16 %v3063, %v3062
        %v3077 = vpack.c.b16 %v3065, %v3064
        %v3078 = vpack.c.b16 %v3067, %v3066
        %v3079 = vpack.c.b16 %v3069, %v3068
        %v3080 = vpack.c.b16 %v3071, %v3070
        %v3081 = vpack.c.b16 %v3073, %v3072
        %3090 = vmatprep.subr.bf16.mxu0 0
        %3091 = vmatpush1.bf16.msra.mxu0 %v3074
        %3092 = vmatprep.subr.bf16.mxu0 0
        %3093 = vmatpush1.bf16.msra.mxu0 %v3075
        %3094 = vmatprep.subr.bf16.mxu0 0
        %3095 = vmatpush1.bf16.msra.mxu0 %v3076
        %3096 = vmatprep.subr.bf16.mxu0 0
        %3097 = vmatpush1.bf16.msra.mxu0 %v3077
        %3098 = vmatprep.subr.bf16.mxu0 0
        %3099 = vmatpush1.bf16.msra.mxu0 %v3078
        %3100 = vmatprep.subr.bf16.mxu0 0
        %3101 = vmatpush1.bf16.msra.mxu0 %v3079
        %3102 = vmatprep.subr.bf16.mxu0 0
        %3103 = vmatpush1.bf16.msra.mxu0 %v3080
        %3104 = vmatprep.subr.bf16.mxu0 0
        %3105 = vmatpush1.bf16.msra.mxu0 %v3081
        %3106 = vmatprep.subr.bf16.mxu0 0
        %3107 = vmatpush1.bf16.msra.mxu0 0
        %3108 = vmatprep.subr.bf16.mxu0 0
        %3109 = vmatpush1.bf16.msra.mxu0 0
        %3110 = vmatprep.subr.bf16.mxu0 0
        %3111 = vmatpush1.bf16.msra.mxu0 0
        %3112 = vmatprep.subr.bf16.mxu0 0
        %3113 = vmatpush1.bf16.msra.mxu0 0
        %3114 = vmatprep.subr.bf16.mxu0 0
        %3115 = vmatpush1.bf16.msra.mxu0 0
        %3116 = vmatprep.subr.bf16.mxu0 0
        %3117 = vmatpush1.bf16.msra.mxu0 0
        %3118 = vmatprep.subr.bf16.mxu0 0
        %3119 = vmatpush1.bf16.msra.mxu0 0
        %3120 = vmatprep.subr.bf16.mxu0 0
        %3121 = vmatpush1.bf16.msra.mxu0 0
        %3122 = vmatprep.mubr.bf16.mxu0 0
        %3123 = vmatmul.mubr.bf16.gmra.mrb[0].mxu0 %v3012
        %v3124 = vpop.f32.mrb[0].mxu0
        %v3125 = vadd.f32 %v3041, %v3124
        %v3126 = vpop.f32.mrb[0].mxu0
        %v3127 = vpop.f32.mrb[0].mxu0
        %v3128 = vadd.f32 %v3041, %v3127
        %v3129 = vpop.f32.mrb[0].mxu0
        %3130 = vmatprep.mubr.bf16.mxu0 0
        %3131 = vmatmul.mubr.bf16.gmra.mrb[0].mxu0 %v3013
        %v3132 = vpop.f32.mrb[0].mxu0
        %v3133 = vadd.f32 %v3041, %v3132
        %v3134 = vpop.f32.mrb[0].mxu0
        %v3135 = vpop.f32.mrb[0].mxu0
        %v3136 = vadd.f32 %v3041, %v3135
        %v3137 = vpop.f32.mrb[0].mxu0
        %3138 = vmatprep.mubr.bf16.mxu0 0
        %3139 = vmatmul.mubr.bf16.gmra.mrb[0].mxu0 %v3014
        %v3140 = vpop.f32.mrb[0].mxu0
        %v3141 = vadd.f32 %v3041, %v3140
        %v3142 = vpop.f32.mrb[0].mxu0
        %v3143 = vpop.f32.mrb[0].mxu0
        %v3144 = vadd.f32 %v3041, %v3143
        %v3145 = vpop.f32.mrb[0].mxu0
        %3146 = vmatprep.mubr.bf16.mxu0 0
        %3147 = vmatmul.mubr.bf16.gmra.mrb[0].mxu0 %v3015
        %v3148 = vpop.f32.mrb[0].mxu0
        %v3149 = vadd.f32 %v3041, %v3148
        %v3150 = vpop.f32.mrb[0].mxu0
        %v3151 = vpop.f32.mrb[0].mxu0
        %v3152 = vadd.f32 %v3041, %v3151
        %v3153 = vpop.f32.mrb[0].mxu0
        %3154 = vmatprep.mubr.bf16.mxu0 0
        %3155 = vmatmul.mubr.bf16.gmra.mrb[0].mxu0 %v3016
        %v3156 = vpop.f32.mrb[0].mxu0
        %v3157 = vadd.f32 %v3041, %v3156
        %v3158 = vpop.f32.mrb[0].mxu0
        %v3159 = vpop.f32.mrb[0].mxu0
        %v3160 = vadd.f32 %v3041, %v3159
        %v3161 = vpop.f32.mrb[0].mxu0
        %3162 = vmatprep.mubr.bf16.mxu0 0
        %3163 = vmatmul.mubr.bf16.gmra.mrb[0].mxu0 %v3017
        %v3164 = vpop.f32.mrb[0].mxu0
        %v3165 = vadd.f32 %v3041, %v3164
        %v3166 = vpop.f32.mrb[0].mxu0
        %v3167 = vpop.f32.mrb[0].mxu0
        %v3168 = vadd.f32 %v3041, %v3167
        %v3169 = vpop.f32.mrb[0].mxu0
        %3170 = vmatprep.mubr.bf16.mxu0 0
        %3171 = vmatmul.mubr.bf16.gmra.mrb[0].mxu0 %v3018
        %v3172 = vpop.f32.mrb[0].mxu0
        %v3173 = vadd.f32 %v3041, %v3172
        %v3174 = vpop.f32.mrb[0].mxu0
        %v3175 = vpop.f32.mrb[0].mxu0
        %v3176 = vadd.f32 %v3041, %v3175
        %v3177 = vpop.f32.mrb[0].mxu0
        %3178 = vmatprep.mubr.bf16.mxu0 0
        %3179 = vmatmul.mubr.bf16.gmra.mrb[0].mxu0 %v3019
        %v3180 = vpop.f32.mrb[0].mxu0
        %v3181 = vadd.f32 %v3041, %v3180
        %v3182 = vpop.f32.mrb[0].mxu0
        %v3183 = vpop.f32.mrb[0].mxu0
        %v3184 = vadd.f32 %v3041, %v3183
        %v3185 = vpop.f32.mrb[0].mxu0
        %3186 = vdwg.mxu0
        %v3187 = vmax.f32 %v3125, 0.0
        %v3188 = vmax.f32 %v3128, 0.0
        %v3189 = vmax.f32 %v3133, 0.0
        %v3190 = vmax.f32 %v3136, 0.0
        %v3191 = vmax.f32 %v3141, 0.0
        %v3192 = vmax.f32 %v3144, 0.0
        %v3193 = vmax.f32 %v3149, 0.0
        %v3194 = vmax.f32 %v3152, 0.0
        %v3195 = vmax.f32 %v3157, 0.0
        %v3196 = vmax.f32 %v3160, 0.0
        %v3197 = vmax.f32 %v3165, 0.0
        %v3198 = vmax.f32 %v3168, 0.0
        %v3199 = vmax.f32 %v3173, 0.0
        %v3200 = vmax.f32 %v3176, 0.0
        %v3201 = vmax.f32 %v3181, 0.0
        %v3202 = vmax.f32 %v3184, 0.0
        %v3203 = vpack.c.bf16 %v3188, %v3187
        %v3204 = vpack.c.bf16 %v3190, %v3189
        %v3205 = vpack.c.bf16 %v3192, %v3191
        %v3206 = vpack.c.bf16 %v3194, %v3193
        %v3207 = vpack.c.bf16 %v3196, %v3195
        %v3208 = vpack.c.bf16 %v3198, %v3197
        %v3209 = vpack.c.bf16 %v3200, %v3199
        %v3210 = vpack.c.bf16 %v3202, %v3201
        %s3211 = scalar_lea.vmem [#allocation5], 704
        %v3212 = vld [vmem:[%s3211] sm:$0xf]
        %v3213 = vld [vmem:[%s3211 + $0x4] sm:$0xf]
        %v3214 = vld [vmem:[%s3211 + $0x8] sm:$0xf]
        %v3215 = vld [vmem:[%s3211 + $0xc] sm:$0xf]
        %v3216 = vld [vmem:[%s3211 + $0x10] sm:$0xf]
        %v3217 = vld [vmem:[%s3211 + $0x14] sm:$0xf]
        %v3218 = vld [vmem:[%s3211 + $0x18] sm:$0xf]
        %v3219 = vld [vmem:[%s3211 + $0x1c] sm:$0xf]
        %v3220 = vld [vmem:[%s3211 + $0x20] sm:$0xf]
        %v3221 = vld [vmem:[%s3211 + $0x24] sm:$0xf]
        %v3222 = vld [vmem:[%s3211 + $0x28] sm:$0xf]
        %v3223 = vld [vmem:[%s3211 + $0x2c] sm:$0xf]
        %v3224 = vld [vmem:[%s3211 + $0x30] sm:$0xf]
        %v3225 = vld [vmem:[%s3211 + $0x34] sm:$0xf]
        %v3226 = vld [vmem:[%s3211 + $0x38] sm:$0xf]
        %v3227 = vld [vmem:[%s3211 + $0x3c] sm:$0xf]
        %v3228 = vld [vmem:[#allocation7 + $0xb] sm:$0x1]
        %v3229 = vlaneseq
        %v3230 = vshrl.u32 %v3229, 7
        %v3231 = vsub.s32 0, %v3230
        %v3232 = vrot.slane %v3228, %v3231
        %v3249 = vunpack.c.l.b16 %v3212
        %v3250 = vunpack.c.l.b16 %v3213
        %v3251 = vunpack.c.l.b16 %v3214
        %v3252 = vunpack.c.l.b16 %v3215
        %v3253 = vunpack.c.l.b16 %v3216
        %v3254 = vunpack.c.l.b16 %v3217
        %v3255 = vunpack.c.l.b16 %v3218
        %v3256 = vunpack.c.l.b16 %v3219
        %v3257 = vunpack.c.l.b16 %v3220
        %v3258 = vunpack.c.l.b16 %v3221
        %v3259 = vunpack.c.l.b16 %v3222
        %v3260 = vunpack.c.l.b16 %v3223
        %v3261 = vunpack.c.l.b16 %v3224
        %v3262 = vunpack.c.l.b16 %v3225
        %v3263 = vunpack.c.l.b16 %v3226
        %v3264 = vunpack.c.l.b16 %v3227
        %v3265 = vpack.c.b16 %v3250, %v3249
        %v3266 = vpack.c.b16 %v3252, %v3251
        %v3267 = vpack.c.b16 %v3254, %v3253
        %v3268 = vpack.c.b16 %v3256, %v3255
        %v3269 = vpack.c.b16 %v3258, %v3257
        %v3270 = vpack.c.b16 %v3260, %v3259
        %v3271 = vpack.c.b16 %v3262, %v3261
        %v3272 = vpack.c.b16 %v3264, %v3263
        %3281 = vmatprep.subr.bf16.mxu0 0
        %3282 = vmatpush1.bf16.msra.mxu0 %v3265
        %3283 = vmatprep.subr.bf16.mxu0 0
        %3284 = vmatpush1.bf16.msra.mxu0 %v3266
        %3285 = vmatprep.subr.bf16.mxu0 0
        %3286 = vmatpush1.bf16.msra.mxu0 %v3267
        %3287 = vmatprep.subr.bf16.mxu0 0
        %3288 = vmatpush1.bf16.msra.mxu0 %v3268
        %3289 = vmatprep.subr.bf16.mxu0 0
        %3290 = vmatpush1.bf16.msra.mxu0 %v3269
        %3291 = vmatprep.subr.bf16.mxu0 0
        %3292 = vmatpush1.bf16.msra.mxu0 %v3270
        %3293 = vmatprep.subr.bf16.mxu0 0
        %3294 = vmatpush1.bf16.msra.mxu0 %v3271
        %3295 = vmatprep.subr.bf16.mxu0 0
        %3296 = vmatpush1.bf16.msra.mxu0 %v3272
        %3297 = vmatprep.subr.bf16.mxu0 0
        %3298 = vmatpush1.bf16.msra.mxu0 0
        %3299 = vmatprep.subr.bf16.mxu0 0
        %3300 = vmatpush1.bf16.msra.mxu0 0
        %3301 = vmatprep.subr.bf16.mxu0 0
        %3302 = vmatpush1.bf16.msra.mxu0 0
        %3303 = vmatprep.subr.bf16.mxu0 0
        %3304 = vmatpush1.bf16.msra.mxu0 0
        %3305 = vmatprep.subr.bf16.mxu0 0
        %3306 = vmatpush1.bf16.msra.mxu0 0
        %3307 = vmatprep.subr.bf16.mxu0 0
        %3308 = vmatpush1.bf16.msra.mxu0 0
        %3309 = vmatprep.subr.bf16.mxu0 0
        %3310 = vmatpush1.bf16.msra.mxu0 0
        %3311 = vmatprep.subr.bf16.mxu0 0
        %3312 = vmatpush1.bf16.msra.mxu0 0
        %3313 = vmatprep.mubr.bf16.mxu0 0
        %3314 = vmatmul.mubr.bf16.gmra.mrb[0].mxu0 %v3203
        %v3315 = vpop.f32.mrb[0].mxu0
        %v3316 = vadd.f32 %v3232, %v3315
        %v3317 = vpop.f32.mrb[0].mxu0
        %v3318 = vpop.f32.mrb[0].mxu0
        %v3319 = vadd.f32 %v3232, %v3318
        %v3320 = vpop.f32.mrb[0].mxu0
        %3321 = vmatprep.mubr.bf16.mxu0 0
        %3322 = vmatmul.mubr.bf16.gmra.mrb[0].mxu0 %v3204
        %v3323 = vpop.f32.mrb[0].mxu0
        %v3324 = vadd.f32 %v3232, %v3323
        %v3325 = vpop.f32.mrb[0].mxu0
        %v3326 = vpop.f32.mrb[0].mxu0
        %v3327 = vadd.f32 %v3232, %v3326
        %v3328 = vpop.f32.mrb[0].mxu0
        %3329 = vmatprep.mubr.bf16.mxu0 0
        %3330 = vmatmul.mubr.bf16.gmra.mrb[0].mxu0 %v3205
        %v3331 = vpop.f32.mrb[0].mxu0
        %v3332 = vadd.f32 %v3232, %v3331
        %v3333 = vpop.f32.mrb[0].mxu0
        %v3334 = vpop.f32.mrb[0].mxu0
        %v3335 = vadd.f32 %v3232, %v3334
        %v3336 = vpop.f32.mrb[0].mxu0
        %3337 = vmatprep.mubr.bf16.mxu0 0
        %3338 = vmatmul.mubr.bf16.gmra.mrb[0].mxu0 %v3206
        %v3339 = vpop.f32.mrb[0].mxu0
        %v3340 = vadd.f32 %v3232, %v3339
        %v3341 = vpop.f32.mrb[0].mxu0
        %v3342 = vpop.f32.mrb[0].mxu0
        %v3343 = vadd.f32 %v3232, %v3342
        %v3344 = vpop.f32.mrb[0].mxu0
        %3345 = vmatprep.mubr.bf16.mxu0 0
        %3346 = vmatmul.mubr.bf16.gmra.mrb[0].mxu0 %v3207
        %v3347 = vpop.f32.mrb[0].mxu0
        %v3348 = vadd.f32 %v3232, %v3347
        %v3349 = vpop.f32.mrb[0].mxu0
        %v3350 = vpop.f32.mrb[0].mxu0
        %v3351 = vadd.f32 %v3232, %v3350
        %v3352 = vpop.f32.mrb[0].mxu0
        %3353 = vmatprep.mubr.bf16.mxu0 0
        %3354 = vmatmul.mubr.bf16.gmra.mrb[0].mxu0 %v3208
        %v3355 = vpop.f32.mrb[0].mxu0
        %v3356 = vadd.f32 %v3232, %v3355
        %v3357 = vpop.f32.mrb[0].mxu0
        %v3358 = vpop.f32.mrb[0].mxu0
        %v3359 = vadd.f32 %v3232, %v3358
        %v3360 = vpop.f32.mrb[0].mxu0
        %3361 = vmatprep.mubr.bf16.mxu0 0
        %3362 = vmatmul.mubr.bf16.gmra.mrb[0].mxu0 %v3209
        %v3363 = vpop.f32.mrb[0].mxu0
        %v3364 = vadd.f32 %v3232, %v3363
        %v3365 = vpop.f32.mrb[0].mxu0
        %v3366 = vpop.f32.mrb[0].mxu0
        %v3367 = vadd.f32 %v3232, %v3366
        %v3368 = vpop.f32.mrb[0].mxu0
        %3369 = vmatprep.mubr.bf16.mxu0 0
        %3370 = vmatmul.mubr.bf16.gmra.mrb[0].mxu0 %v3210
        %v3371 = vpop.f32.mrb[0].mxu0
        %v3372 = vadd.f32 %v3232, %v3371
        %v3373 = vpop.f32.mrb[0].mxu0
        %v3374 = vpop.f32.mrb[0].mxu0
        %v3375 = vadd.f32 %v3232, %v3374
        %v3376 = vpop.f32.mrb[0].mxu0
        %3377 = vdwg.mxu0
        %v3378 = vadd.f32 %v3316, %v2805
        %v3379 = vadd.f32 %v3319, %v2806
        %v3380 = vadd.f32 %v3324, %v2807
        %v3381 = vadd.f32 %v3327, %v2808
        %v3382 = vadd.f32 %v3332, %v2809
        %v3383 = vadd.f32 %v3335, %v2810
        %v3384 = vadd.f32 %v3340, %v2811
        %v3385 = vadd.f32 %v3343, %v2812
        %v3386 = vadd.f32 %v3348, %v2813
        %v3387 = vadd.f32 %v3351, %v2814
        %v3388 = vadd.f32 %v3356, %v2815
        %v3389 = vadd.f32 %v3359, %v2816
        %v3390 = vadd.f32 %v3364, %v2817
        %v3391 = vadd.f32 %v3367, %v2818
        %v3392 = vadd.f32 %v3372, %v2819
        %v3393 = vadd.f32 %v3375, %v2820
        %3394 = vadd.xlane.f32.xlu0 %v3378
        %v3395 = vpop.xlane.xlu0 %3394
        %3396 = vadd.xlane.f32.xlu0 %v3379
        %v3397 = vpop.xlane.xlu0 %3396
        %3398 = vadd.xlane.f32.xlu0 %v3380
        %v3399 = vpop.xlane.xlu0 %3398
        %3400 = vadd.xlane.f32.xlu0 %v3381
        %v3401 = vpop.xlane.xlu0 %3400
        %3402 = vadd.xlane.f32.xlu0 %v3382
        %v3403 = vpop.xlane.xlu0 %3402
        %3404 = vadd.xlane.f32.xlu0 %v3383
        %v3405 = vpop.xlane.xlu0 %3404
        %3406 = vadd.xlane.f32.xlu0 %v3384
        %v3407 = vpop.xlane.xlu0 %3406
        %3408 = vadd.xlane.f32.xlu0 %v3385
        %v3409 = vpop.xlane.xlu0 %3408
        %3410 = vadd.xlane.f32.xlu0 %v3386
        %v3411 = vpop.xlane.xlu0 %3410
        %3412 = vadd.xlane.f32.xlu0 %v3387
        %v3413 = vpop.xlane.xlu0 %3412
        %3414 = vadd.xlane.f32.xlu0 %v3388
        %v3415 = vpop.xlane.xlu0 %3414
        %3416 = vadd.xlane.f32.xlu0 %v3389
        %v3417 = vpop.xlane.xlu0 %3416
        %3418 = vadd.xlane.f32.xlu0 %v3390
        %v3419 = vpop.xlane.xlu0 %3418
        %3420 = vadd.xlane.f32.xlu0 %v3391
        %v3421 = vpop.xlane.xlu0 %3420
        %3422 = vadd.xlane.f32.xlu0 %v3392
        %v3423 = vpop.xlane.xlu0 %3422
        %3424 = vadd.xlane.f32.xlu0 %v3393
        %v3425 = vpop.xlane.xlu0 %3424
        %v3426 = vmul.f32 %v3395, %v908
        %v3427 = vmul.f32 %v3397, %v908
        %v3428 = vmul.f32 %v3399, %v908
        %v3429 = vmul.f32 %v3401, %v908
        %v3430 = vmul.f32 %v3403, %v908
        %v3431 = vmul.f32 %v3405, %v908
        %v3432 = vmul.f32 %v3407, %v908
        %v3433 = vmul.f32 %v3409, %v908
        %v3434 = vmul.f32 %v3411, %v908
        %v3435 = vmul.f32 %v3413, %v908
        %v3436 = vmul.f32 %v3415, %v908
        %v3437 = vmul.f32 %v3417, %v908
        %v3438 = vmul.f32 %v3419, %v908
        %v3439 = vmul.f32 %v3421, %v908
        %v3440 = vmul.f32 %v3423, %v908
        %v3441 = vmul.f32 %v3425, %v908
        %v3442 = vmul.f32 %v3378, %v3378
        %v3443 = vmul.f32 %v3379, %v3379
        %v3444 = vmul.f32 %v3380, %v3380
        %v3445 = vmul.f32 %v3381, %v3381
        %v3446 = vmul.f32 %v3382, %v3382
        %v3447 = vmul.f32 %v3383, %v3383
        %v3448 = vmul.f32 %v3384, %v3384
        %v3449 = vmul.f32 %v3385, %v3385
        %v3450 = vmul.f32 %v3386, %v3386
        %v3451 = vmul.f32 %v3387, %v3387
        %v3452 = vmul.f32 %v3388, %v3388
        %v3453 = vmul.f32 %v3389, %v3389
        %v3454 = vmul.f32 %v3390, %v3390
        %v3455 = vmul.f32 %v3391, %v3391
        %v3456 = vmul.f32 %v3392, %v3392
        %v3457 = vmul.f32 %v3393, %v3393
        %3458 = vadd.xlane.f32.xlu0 %v3442
        %v3459 = vpop.xlane.xlu0 %3458
        %3460 = vadd.xlane.f32.xlu0 %v3443
        %v3461 = vpop.xlane.xlu0 %3460
        %3462 = vadd.xlane.f32.xlu0 %v3444
        %v3463 = vpop.xlane.xlu0 %3462
        %3464 = vadd.xlane.f32.xlu0 %v3445
        %v3465 = vpop.xlane.xlu0 %3464
        %3466 = vadd.xlane.f32.xlu0 %v3446
        %v3467 = vpop.xlane.xlu0 %3466
        %3468 = vadd.xlane.f32.xlu0 %v3447
        %v3469 = vpop.xlane.xlu0 %3468
        %3470 = vadd.xlane.f32.xlu0 %v3448
        %v3471 = vpop.xlane.xlu0 %3470
        %3472 = vadd.xlane.f32.xlu0 %v3449
        %v3473 = vpop.xlane.xlu0 %3472
        %3474 = vadd.xlane.f32.xlu0 %v3450
        %v3475 = vpop.xlane.xlu0 %3474
        %3476 = vadd.xlane.f32.xlu0 %v3451
        %v3477 = vpop.xlane.xlu0 %3476
        %3478 = vadd.xlane.f32.xlu0 %v3452
        %v3479 = vpop.xlane.xlu0 %3478
        %3480 = vadd.xlane.f32.xlu0 %v3453
        %v3481 = vpop.xlane.xlu0 %3480
        %3482 = vadd.xlane.f32.xlu0 %v3454
        %v3483 = vpop.xlane.xlu0 %3482
        %3484 = vadd.xlane.f32.xlu0 %v3455
        %v3485 = vpop.xlane.xlu0 %3484
        %3486 = vadd.xlane.f32.xlu0 %v3456
        %v3487 = vpop.xlane.xlu0 %3486
        %3488 = vadd.xlane.f32.xlu0 %v3457
        %v3489 = vpop.xlane.xlu0 %3488
        %v3490 = vmul.f32 %v3459, %v908
        %v3491 = vmul.f32 %v3461, %v908
        %v3492 = vmul.f32 %v3463, %v908
        %v3493 = vmul.f32 %v3465, %v908
        %v3494 = vmul.f32 %v3467, %v908
        %v3495 = vmul.f32 %v3469, %v908
        %v3496 = vmul.f32 %v3471, %v908
        %v3497 = vmul.f32 %v3473, %v908
        %v3498 = vmul.f32 %v3475, %v908
        %v3499 = vmul.f32 %v3477, %v908
        %v3500 = vmul.f32 %v3479, %v908
        %v3501 = vmul.f32 %v3481, %v908
        %v3502 = vmul.f32 %v3483, %v908
        %v3503 = vmul.f32 %v3485, %v908
        %v3504 = vmul.f32 %v3487, %v908
        %v3505 = vmul.f32 %v3489, %v908
        %v3506 = vmul.f32 %v3426, %v3426
        %v3507 = vmul.f32 %v3427, %v3427
        %v3508 = vmul.f32 %v3428, %v3428
        %v3509 = vmul.f32 %v3429, %v3429
        %v3510 = vmul.f32 %v3430, %v3430
        %v3511 = vmul.f32 %v3431, %v3431
        %v3512 = vmul.f32 %v3432, %v3432
        %v3513 = vmul.f32 %v3433, %v3433
        %v3514 = vmul.f32 %v3434, %v3434
        %v3515 = vmul.f32 %v3435, %v3435
        %v3516 = vmul.f32 %v3436, %v3436
        %v3517 = vmul.f32 %v3437, %v3437
        %v3518 = vmul.f32 %v3438, %v3438
        %v3519 = vmul.f32 %v3439, %v3439
        %v3520 = vmul.f32 %v3440, %v3440
        %v3521 = vmul.f32 %v3441, %v3441
        %v3522 = vsub.f32 %v3490, %v3506
        %v3523 = vsub.f32 %v3491, %v3507
        %v3524 = vsub.f32 %v3492, %v3508
        %v3525 = vsub.f32 %v3493, %v3509
        %v3526 = vsub.f32 %v3494, %v3510
        %v3527 = vsub.f32 %v3495, %v3511
        %v3528 = vsub.f32 %v3496, %v3512
        %v3529 = vsub.f32 %v3497, %v3513
        %v3530 = vsub.f32 %v3498, %v3514
        %v3531 = vsub.f32 %v3499, %v3515
        %v3532 = vsub.f32 %v3500, %v3516
        %v3533 = vsub.f32 %v3501, %v3517
        %v3534 = vsub.f32 %v3502, %v3518
        %v3535 = vsub.f32 %v3503, %v3519
        %v3536 = vsub.f32 %v3504, %v3520
        %v3537 = vsub.f32 %v3505, %v3521
        %v3538 = vmax.f32 %v3522, 0.0
        %v3539 = vmax.f32 %v3523, 0.0
        %v3540 = vmax.f32 %v3524, 0.0
        %v3541 = vmax.f32 %v3525, 0.0
        %v3542 = vmax.f32 %v3526, 0.0
        %v3543 = vmax.f32 %v3527, 0.0
        %v3544 = vmax.f32 %v3528, 0.0
        %v3545 = vmax.f32 %v3529, 0.0
        %v3546 = vmax.f32 %v3530, 0.0
        %v3547 = vmax.f32 %v3531, 0.0
        %v3548 = vmax.f32 %v3532, 0.0
        %v3549 = vmax.f32 %v3533, 0.0
        %v3550 = vmax.f32 %v3534, 0.0
        %v3551 = vmax.f32 %v3535, 0.0
        %v3552 = vmax.f32 %v3536, 0.0
        %v3553 = vmax.f32 %v3537, 0.0
        %v3554 = vsub.f32 %v3378, %v3426
        %v3555 = vsub.f32 %v3379, %v3427
        %v3556 = vsub.f32 %v3380, %v3428
        %v3557 = vsub.f32 %v3381, %v3429
        %v3558 = vsub.f32 %v3382, %v3430
        %v3559 = vsub.f32 %v3383, %v3431
        %v3560 = vsub.f32 %v3384, %v3432
        %v3561 = vsub.f32 %v3385, %v3433
        %v3562 = vsub.f32 %v3386, %v3434
        %v3563 = vsub.f32 %v3387, %v3435
        %v3564 = vsub.f32 %v3388, %v3436
        %v3565 = vsub.f32 %v3389, %v3437
        %v3566 = vsub.f32 %v3390, %v3438
        %v3567 = vsub.f32 %v3391, %v3439
        %v3568 = vsub.f32 %v3392, %v3440
        %v3569 = vsub.f32 %v3393, %v3441
        %v3570 = vadd.f32 %v3538, 1e-05
        %v3571 = vadd.f32 %v3539, 1e-05
        %v3572 = vadd.f32 %v3540, 1e-05
        %v3573 = vadd.f32 %v3541, 1e-05
        %v3574 = vadd.f32 %v3542, 1e-05
        %v3575 = vadd.f32 %v3543, 1e-05
        %v3576 = vadd.f32 %v3544, 1e-05
        %v3577 = vadd.f32 %v3545, 1e-05
        %v3578 = vadd.f32 %v3546, 1e-05
        %v3579 = vadd.f32 %v3547, 1e-05
        %v3580 = vadd.f32 %v3548, 1e-05
        %v3581 = vadd.f32 %v3549, 1e-05
        %v3582 = vadd.f32 %v3550, 1e-05
        %v3583 = vadd.f32 %v3551, 1e-05
        %v3584 = vadd.f32 %v3552, 1e-05
        %v3585 = vadd.f32 %v3553, 1e-05
        %v3586 = vrsqrt.pop %v3570
        %v3587 = vrsqrt.pop %v3571
        %v3588 = vrsqrt.pop %v3572
        %v3589 = vrsqrt.pop %v3573
        %v3590 = vrsqrt.pop %v3574
        %v3591 = vrsqrt.pop %v3575
        %v3592 = vrsqrt.pop %v3576
        %v3593 = vrsqrt.pop %v3577
        %v3594 = vrsqrt.pop %v3578
        %v3595 = vrsqrt.pop %v3579
        %v3596 = vrsqrt.pop %v3580
        %v3597 = vrsqrt.pop %v3581
        %v3598 = vrsqrt.pop %v3582
        %v3599 = vrsqrt.pop %v3583
        %v3600 = vrsqrt.pop %v3584
        %v3601 = vrsqrt.pop %v3585
        %v3602 = vmul.f32 %v3554, %v3586
        %v3603 = vmul.f32 %v3555, %v3587
        %v3604 = vmul.f32 %v3556, %v3588
        %v3605 = vmul.f32 %v3557, %v3589
        %v3606 = vmul.f32 %v3558, %v3590
        %v3607 = vmul.f32 %v3559, %v3591
        %v3608 = vmul.f32 %v3560, %v3592
        %v3609 = vmul.f32 %v3561, %v3593
        %v3610 = vmul.f32 %v3562, %v3594
        %v3611 = vmul.f32 %v3563, %v3595
        %v3612 = vmul.f32 %v3564, %v3596
        %v3613 = vmul.f32 %v3565, %v3597
        %v3614 = vmul.f32 %v3566, %v3598
        %v3615 = vmul.f32 %v3567, %v3599
        %v3616 = vmul.f32 %v3568, %v3600
        %v3617 = vmul.f32 %v3569, %v3601
        %v3618 = vld [vmem:[%s3 + $0x3] sm:$0x1]
        %v3619 = vlaneseq
        %v3620 = vshrl.u32 %v3619, 7
        %v3621 = vsub.s32 0, %v3620
        %v3622 = vrot.slane %v3618, %v3621
        %v3623 = vmul.f32 %v3602, %v3622
        %v3624 = vmul.f32 %v3603, %v3622
        %v3625 = vmul.f32 %v3604, %v3622
        %v3626 = vmul.f32 %v3605, %v3622
        %v3627 = vmul.f32 %v3606, %v3622
        %v3628 = vmul.f32 %v3607, %v3622
        %v3629 = vmul.f32 %v3608, %v3622
        %v3630 = vmul.f32 %v3609, %v3622
        %v3631 = vmul.f32 %v3610, %v3622
        %v3632 = vmul.f32 %v3611, %v3622
        %v3633 = vmul.f32 %v3612, %v3622
        %v3634 = vmul.f32 %v3613, %v3622
        %v3635 = vmul.f32 %v3614, %v3622
        %v3636 = vmul.f32 %v3615, %v3622
        %v3637 = vmul.f32 %v3616, %v3622
        %v3638 = vmul.f32 %v3617, %v3622
        %v3639 = vld [vmem:[#allocation8 + $0x3] sm:$0x1]
        %v3640 = vlaneseq
        %v3641 = vshrl.u32 %v3640, 7
        %v3642 = vsub.s32 0, %v3641
        %v3643 = vrot.slane %v3639, %v3642
        %v3644 = vadd.f32 %v3623, %v3643
        %v3645 = vadd.f32 %v3624, %v3643
        %v3646 = vadd.f32 %v3625, %v3643
        %v3647 = vadd.f32 %v3626, %v3643
        %v3648 = vadd.f32 %v3627, %v3643
        %v3649 = vadd.f32 %v3628, %v3643
        %v3650 = vadd.f32 %v3629, %v3643
        %v3651 = vadd.f32 %v3630, %v3643
        %v3652 = vadd.f32 %v3631, %v3643
        %v3653 = vadd.f32 %v3632, %v3643
        %v3654 = vadd.f32 %v3633, %v3643
        %v3655 = vadd.f32 %v3634, %v3643
        %v3656 = vadd.f32 %v3635, %v3643
        %v3657 = vadd.f32 %v3636, %v3643
        %v3658 = vadd.f32 %v3637, %v3643
        %v3659 = vadd.f32 %v3638, %v3643
        %v3660 = vpack.c.bf16 %v3645, %v3644
        %v3661 = vpack.c.bf16 %v3647, %v3646
        %v3662 = vpack.c.bf16 %v3649, %v3648
        %v3663 = vpack.c.bf16 %v3651, %v3650
        %v3664 = vpack.c.bf16 %v3653, %v3652
        %v3665 = vpack.c.bf16 %v3655, %v3654
        %v3666 = vpack.c.bf16 %v3657, %v3656
        %v3667 = vpack.c.bf16 %v3659, %v3658
        %s3668 = scalar_lea.vmem [#allocation5], 768
        %v3669 = vld [vmem:[%s3668] sm:$0xf]
        %v3670 = vld [vmem:[%s3668 + $0x4] sm:$0xf]
        %v3671 = vld [vmem:[%s3668 + $0x8] sm:$0xf]
        %v3672 = vld [vmem:[%s3668 + $0xc] sm:$0xf]
        %v3673 = vld [vmem:[%s3668 + $0x10] sm:$0xf]
        %v3674 = vld [vmem:[%s3668 + $0x14] sm:$0xf]
        %v3675 = vld [vmem:[%s3668 + $0x18] sm:$0xf]
        %v3676 = vld [vmem:[%s3668 + $0x1c] sm:$0xf]
        %v3677 = vld [vmem:[%s3668 + $0x20] sm:$0xf]
        %v3678 = vld [vmem:[%s3668 + $0x24] sm:$0xf]
        %v3679 = vld [vmem:[%s3668 + $0x28] sm:$0xf]
        %v3680 = vld [vmem:[%s3668 + $0x2c] sm:$0xf]
        %v3681 = vld [vmem:[%s3668 + $0x30] sm:$0xf]
        %v3682 = vld [vmem:[%s3668 + $0x34] sm:$0xf]
        %v3683 = vld [vmem:[%s3668 + $0x38] sm:$0xf]
        %v3684 = vld [vmem:[%s3668 + $0x3c] sm:$0xf]
        %v3685 = vld [vmem:[#allocation7 + $0xc] sm:$0x1]
        %v3686 = vlaneseq
        %v3687 = vshrl.u32 %v3686, 7
        %v3688 = vsub.s32 0, %v3687
        %v3689 = vrot.slane %v3685, %v3688
        %v3706 = vunpack.c.l.b16 %v3669
        %v3707 = vunpack.c.l.b16 %v3670
        %v3708 = vunpack.c.l.b16 %v3671
        %v3709 = vunpack.c.l.b16 %v3672
        %v3710 = vunpack.c.l.b16 %v3673
        %v3711 = vunpack.c.l.b16 %v3674
        %v3712 = vunpack.c.l.b16 %v3675
        %v3713 = vunpack.c.l.b16 %v3676
        %v3714 = vunpack.c.l.b16 %v3677
        %v3715 = vunpack.c.l.b16 %v3678
        %v3716 = vunpack.c.l.b16 %v3679
        %v3717 = vunpack.c.l.b16 %v3680
        %v3718 = vunpack.c.l.b16 %v3681
        %v3719 = vunpack.c.l.b16 %v3682
        %v3720 = vunpack.c.l.b16 %v3683
        %v3721 = vunpack.c.l.b16 %v3684
        %v3722 = vpack.c.b16 %v3707, %v3706
        %v3723 = vpack.c.b16 %v3709, %v3708
        %v3724 = vpack.c.b16 %v3711, %v3710
        %v3725 = vpack.c.b16 %v3713, %v3712
        %v3726 = vpack.c.b16 %v3715, %v3714
        %v3727 = vpack.c.b16 %v3717, %v3716
        %v3728 = vpack.c.b16 %v3719, %v3718
        %v3729 = vpack.c.b16 %v3721, %v3720
        %3738 = vmatprep.subr.bf16.mxu0 0
        %3739 = vmatpush1.bf16.msra.mxu0 %v3722
        %3740 = vmatprep.subr.bf16.mxu0 0
        %3741 = vmatpush1.bf16.msra.mxu0 %v3723
        %3742 = vmatprep.subr.bf16.mxu0 0
        %3743 = vmatpush1.bf16.msra.mxu0 %v3724
        %3744 = vmatprep.subr.bf16.mxu0 0
        %3745 = vmatpush1.bf16.msra.mxu0 %v3725
        %3746 = vmatprep.subr.bf16.mxu0 0
        %3747 = vmatpush1.bf16.msra.mxu0 %v3726
        %3748 = vmatprep.subr.bf16.mxu0 0
        %3749 = vmatpush1.bf16.msra.mxu0 %v3727
        %3750 = vmatprep.subr.bf16.mxu0 0
        %3751 = vmatpush1.bf16.msra.mxu0 %v3728
        %3752 = vmatprep.subr.bf16.mxu0 0
        %3753 = vmatpush1.bf16.msra.mxu0 %v3729
        %3754 = vmatprep.subr.bf16.mxu0 0
        %3755 = vmatpush1.bf16.msra.mxu0 0
        %3756 = vmatprep.subr.bf16.mxu0 0
        %3757 = vmatpush1.bf16.msra.mxu0 0
        %3758 = vmatprep.subr.bf16.mxu0 0
        %3759 = vmatpush1.bf16.msra.mxu0 0
        %3760 = vmatprep.subr.bf16.mxu0 0
        %3761 = vmatpush1.bf16.msra.mxu0 0
        %3762 = vmatprep.subr.bf16.mxu0 0
        %3763 = vmatpush1.bf16.msra.mxu0 0
        %3764 = vmatprep.subr.bf16.mxu0 0
        %3765 = vmatpush1.bf16.msra.mxu0 0
        %3766 = vmatprep.subr.bf16.mxu0 0
        %3767 = vmatpush1.bf16.msra.mxu0 0
        %3768 = vmatprep.subr.bf16.mxu0 0
        %3769 = vmatpush1.bf16.msra.mxu0 0
        %3770 = vmatprep.mubr.bf16.mxu0 0
        %3771 = vmatmul.mubr.bf16.gmra.mrb[0].mxu0 %v3660
        %v3772 = vpop.f32.mrb[0].mxu0
        %v3773 = vadd.f32 %v3689, %v3772
        %v3774 = vpop.f32.mrb[0].mxu0
        %v3775 = vpop.f32.mrb[0].mxu0
        %v3776 = vadd.f32 %v3689, %v3775
        %v3777 = vpop.f32.mrb[0].mxu0
        %3778 = vmatprep.mubr.bf16.mxu0 0
        %3779 = vmatmul.mubr.bf16.gmra.mrb[0].mxu0 %v3661
        %v3780 = vpop.f32.mrb[0].mxu0
        %v3781 = vadd.f32 %v3689, %v3780
        %v3782 = vpop.f32.mrb[0].mxu0
        %v3783 = vpop.f32.mrb[0].mxu0
        %v3784 = vadd.f32 %v3689, %v3783
        %v3785 = vpop.f32.mrb[0].mxu0
        %3786 = vmatprep.mubr.bf16.mxu0 0
        %3787 = vmatmul.mubr.bf16.gmra.mrb[0].mxu0 %v3662
        %v3788 = vpop.f32.mrb[0].mxu0
        %v3789 = vadd.f32 %v3689, %v3788
        %v3790 = vpop.f32.mrb[0].mxu0
        %v3791 = vpop.f32.mrb[0].mxu0
        %v3792 = vadd.f32 %v3689, %v3791
        %v3793 = vpop.f32.mrb[0].mxu0
        %3794 = vmatprep.mubr.bf16.mxu0 0
        %3795 = vmatmul.mubr.bf16.gmra.mrb[0].mxu0 %v3663
        %v3796 = vpop.f32.mrb[0].mxu0
        %v3797 = vadd.f32 %v3689, %v3796
        %v3798 = vpop.f32.mrb[0].mxu0
        %v3799 = vpop.f32.mrb[0].mxu0
        %v3800 = vadd.f32 %v3689, %v3799
        %v3801 = vpop.f32.mrb[0].mxu0
        %3802 = vmatprep.mubr.bf16.mxu0 0
        %3803 = vmatmul.mubr.bf16.gmra.mrb[0].mxu0 %v3664
        %v3804 = vpop.f32.mrb[0].mxu0
        %v3805 = vadd.f32 %v3689, %v3804
        %v3806 = vpop.f32.mrb[0].mxu0
        %v3807 = vpop.f32.mrb[0].mxu0
        %v3808 = vadd.f32 %v3689, %v3807
        %v3809 = vpop.f32.mrb[0].mxu0
        %3810 = vmatprep.mubr.bf16.mxu0 0
        %3811 = vmatmul.mubr.bf16.gmra.mrb[0].mxu0 %v3665
        %v3812 = vpop.f32.mrb[0].mxu0
        %v3813 = vadd.f32 %v3689, %v3812
        %v3814 = vpop.f32.mrb[0].mxu0
        %v3815 = vpop.f32.mrb[0].mxu0
        %v3816 = vadd.f32 %v3689, %v3815
        %v3817 = vpop.f32.mrb[0].mxu0
        %3818 = vmatprep.mubr.bf16.mxu0 0
        %3819 = vmatmul.mubr.bf16.gmra.mrb[0].mxu0 %v3666
        %v3820 = vpop.f32.mrb[0].mxu0
        %v3821 = vadd.f32 %v3689, %v3820
        %v3822 = vpop.f32.mrb[0].mxu0
        %v3823 = vpop.f32.mrb[0].mxu0
        %v3824 = vadd.f32 %v3689, %v3823
        %v3825 = vpop.f32.mrb[0].mxu0
        %3826 = vmatprep.mubr.bf16.mxu0 0
        %3827 = vmatmul.mubr.bf16.gmra.mrb[0].mxu0 %v3667
        %v3828 = vpop.f32.mrb[0].mxu0
        %v3829 = vadd.f32 %v3689, %v3828
        %v3830 = vpop.f32.mrb[0].mxu0
        %v3831 = vpop.f32.mrb[0].mxu0
        %v3832 = vadd.f32 %v3689, %v3831
        %v3833 = vpop.f32.mrb[0].mxu0
        %3834 = vdwg.mxu0
        %v3835 = vmax.f32 %v3773, 0.0
        %v3836 = vmax.f32 %v3776, 0.0
        %v3837 = vmax.f32 %v3781, 0.0
        %v3838 = vmax.f32 %v3784, 0.0
        %v3839 = vmax.f32 %v3789, 0.0
        %v3840 = vmax.f32 %v3792, 0.0
        %v3841 = vmax.f32 %v3797, 0.0
        %v3842 = vmax.f32 %v3800, 0.0
        %v3843 = vmax.f32 %v3805, 0.0
        %v3844 = vmax.f32 %v3808, 0.0
        %v3845 = vmax.f32 %v3813, 0.0
        %v3846 = vmax.f32 %v3816, 0.0
        %v3847 = vmax.f32 %v3821, 0.0
        %v3848 = vmax.f32 %v3824, 0.0
        %v3849 = vmax.f32 %v3829, 0.0
        %v3850 = vmax.f32 %v3832, 0.0
        %v3851 = vpack.c.bf16 %v3836, %v3835
        %v3852 = vpack.c.bf16 %v3838, %v3837
        %v3853 = vpack.c.bf16 %v3840, %v3839
        %v3854 = vpack.c.bf16 %v3842, %v3841
        %v3855 = vpack.c.bf16 %v3844, %v3843
        %v3856 = vpack.c.bf16 %v3846, %v3845
        %v3857 = vpack.c.bf16 %v3848, %v3847
        %v3858 = vpack.c.bf16 %v3850, %v3849
        %s3859 = scalar_lea.vmem [#allocation5], 832
        %v3860 = vld [vmem:[%s3859] sm:$0xf]
        %v3861 = vld [vmem:[%s3859 + $0x4] sm:$0xf]
        %v3862 = vld [vmem:[%s3859 + $0x8] sm:$0xf]
        %v3863 = vld [vmem:[%s3859 + $0xc] sm:$0xf]
        %v3864 = vld [vmem:[%s3859 + $0x10] sm:$0xf]
        %v3865 = vld [vmem:[%s3859 + $0x14] sm:$0xf]
        %v3866 = vld [vmem:[%s3859 + $0x18] sm:$0xf]
        %v3867 = vld [vmem:[%s3859 + $0x1c] sm:$0xf]
        %v3868 = vld [vmem:[%s3859 + $0x20] sm:$0xf]
        %v3869 = vld [vmem:[%s3859 + $0x24] sm:$0xf]
        %v3870 = vld [vmem:[%s3859 + $0x28] sm:$0xf]
        %v3871 = vld [vmem:[%s3859 + $0x2c] sm:$0xf]
        %v3872 = vld [vmem:[%s3859 + $0x30] sm:$0xf]
        %v3873 = vld [vmem:[%s3859 + $0x34] sm:$0xf]
        %v3874 = vld [vmem:[%s3859 + $0x38] sm:$0xf]
        %v3875 = vld [vmem:[%s3859 + $0x3c] sm:$0xf]
        %v3876 = vld [vmem:[#allocation7 + $0xd] sm:$0x1]
        %v3877 = vlaneseq
        %v3878 = vshrl.u32 %v3877, 7
        %v3879 = vsub.s32 0, %v3878
        %v3880 = vrot.slane %v3876, %v3879
        %v3897 = vunpack.c.l.b16 %v3860
        %v3898 = vunpack.c.l.b16 %v3861
        %v3899 = vunpack.c.l.b16 %v3862
        %v3900 = vunpack.c.l.b16 %v3863
        %v3901 = vunpack.c.l.b16 %v3864
        %v3902 = vunpack.c.l.b16 %v3865
        %v3903 = vunpack.c.l.b16 %v3866
        %v3904 = vunpack.c.l.b16 %v3867
        %v3905 = vunpack.c.l.b16 %v3868
        %v3906 = vunpack.c.l.b16 %v3869
        %v3907 = vunpack.c.l.b16 %v3870
        %v3908 = vunpack.c.l.b16 %v3871
        %v3909 = vunpack.c.l.b16 %v3872
        %v3910 = vunpack.c.l.b16 %v3873
        %v3911 = vunpack.c.l.b16 %v3874
        %v3912 = vunpack.c.l.b16 %v3875
        %v3913 = vpack.c.b16 %v3898, %v3897
        %v3914 = vpack.c.b16 %v3900, %v3899
        %v3915 = vpack.c.b16 %v3902, %v3901
        %v3916 = vpack.c.b16 %v3904, %v3903
        %v3917 = vpack.c.b16 %v3906, %v3905
        %v3918 = vpack.c.b16 %v3908, %v3907
        %v3919 = vpack.c.b16 %v3910, %v3909
        %v3920 = vpack.c.b16 %v3912, %v3911
        %3929 = vmatprep.subr.bf16.mxu0 0
        %3930 = vmatpush1.bf16.msra.mxu0 %v3913
        %3931 = vmatprep.subr.bf16.mxu0 0
        %3932 = vmatpush1.bf16.msra.mxu0 %v3914
        %3933 = vmatprep.subr.bf16.mxu0 0
        %3934 = vmatpush1.bf16.msra.mxu0 %v3915
        %3935 = vmatprep.subr.bf16.mxu0 0
        %3936 = vmatpush1.bf16.msra.mxu0 %v3916
        %3937 = vmatprep.subr.bf16.mxu0 0
        %3938 = vmatpush1.bf16.msra.mxu0 %v3917
        %3939 = vmatprep.subr.bf16.mxu0 0
        %3940 = vmatpush1.bf16.msra.mxu0 %v3918
        %3941 = vmatprep.subr.bf16.mxu0 0
        %3942 = vmatpush1.bf16.msra.mxu0 %v3919
        %3943 = vmatprep.subr.bf16.mxu0 0
        %3944 = vmatpush1.bf16.msra.mxu0 %v3920
        %3945 = vmatprep.subr.bf16.mxu0 0
        %3946 = vmatpush1.bf16.msra.mxu0 0
        %3947 = vmatprep.subr.bf16.mxu0 0
        %3948 = vmatpush1.bf16.msra.mxu0 0
        %3949 = vmatprep.subr.bf16.mxu0 0
        %3950 = vmatpush1.bf16.msra.mxu0 0
        %3951 = vmatprep.subr.bf16.mxu0 0
        %3952 = vmatpush1.bf16.msra.mxu0 0
        %3953 = vmatprep.subr.bf16.mxu0 0
        %3954 = vmatpush1.bf16.msra.mxu0 0
        %3955 = vmatprep.subr.bf16.mxu0 0
        %3956 = vmatpush1.bf16.msra.mxu0 0
        %3957 = vmatprep.subr.bf16.mxu0 0
        %3958 = vmatpush1.bf16.msra.mxu0 0
        %3959 = vmatprep.subr.bf16.mxu0 0
        %3960 = vmatpush1.bf16.msra.mxu0 0
        %3961 = vmatprep.mubr.bf16.mxu0 0
        %3962 = vmatmul.mubr.bf16.gmra.mrb[0].mxu0 %v3851
        %v3963 = vpop.f32.mrb[0].mxu0
        %v3964 = vadd.f32 %v3880, %v3963
        %v3965 = vpop.f32.mrb[0].mxu0
        %v3966 = vpop.f32.mrb[0].mxu0
        %v3967 = vadd.f32 %v3880, %v3966
        %v3968 = vpop.f32.mrb[0].mxu0
        %3969 = vmatprep.mubr.bf16.mxu0 0
        %3970 = vmatmul.mubr.bf16.gmra.mrb[0].mxu0 %v3852
        %v3971 = vpop.f32.mrb[0].mxu0
        %v3972 = vadd.f32 %v3880, %v3971
        %v3973 = vpop.f32.mrb[0].mxu0
        %v3974 = vpop.f32.mrb[0].mxu0
        %v3975 = vadd.f32 %v3880, %v3974
        %v3976 = vpop.f32.mrb[0].mxu0
        %3977 = vmatprep.mubr.bf16.mxu0 0
        %3978 = vmatmul.mubr.bf16.gmra.mrb[0].mxu0 %v3853
        %v3979 = vpop.f32.mrb[0].mxu0
        %v3980 = vadd.f32 %v3880, %v3979
        %v3981 = vpop.f32.mrb[0].mxu0
        %v3982 = vpop.f32.mrb[0].mxu0
        %v3983 = vadd.f32 %v3880, %v3982
        %v3984 = vpop.f32.mrb[0].mxu0
        %3985 = vmatprep.mubr.bf16.mxu0 0
        %3986 = vmatmul.mubr.bf16.gmra.mrb[0].mxu0 %v3854
        %v3987 = vpop.f32.mrb[0].mxu0
        %v3988 = vadd.f32 %v3880, %v3987
        %v3989 = vpop.f32.mrb[0].mxu0
        %v3990 = vpop.f32.mrb[0].mxu0
        %v3991 = vadd.f32 %v3880, %v3990
        %v3992 = vpop.f32.mrb[0].mxu0
        %3993 = vmatprep.mubr.bf16.mxu0 0
        %3994 = vmatmul.mubr.bf16.gmra.mrb[0].mxu0 %v3855
        %v3995 = vpop.f32.mrb[0].mxu0
        %v3996 = vadd.f32 %v3880, %v3995
        %v3997 = vpop.f32.mrb[0].mxu0
        %v3998 = vpop.f32.mrb[0].mxu0
        %v3999 = vadd.f32 %v3880, %v3998
        %v4000 = vpop.f32.mrb[0].mxu0
        %4001 = vmatprep.mubr.bf16.mxu0 0
        %4002 = vmatmul.mubr.bf16.gmra.mrb[0].mxu0 %v3856
        %v4003 = vpop.f32.mrb[0].mxu0
        %v4004 = vadd.f32 %v3880, %v4003
        %v4005 = vpop.f32.mrb[0].mxu0
        %v4006 = vpop.f32.mrb[0].mxu0
        %v4007 = vadd.f32 %v3880, %v4006
        %v4008 = vpop.f32.mrb[0].mxu0
        %4009 = vmatprep.mubr.bf16.mxu0 0
        %4010 = vmatmul.mubr.bf16.gmra.mrb[0].mxu0 %v3857
        %v4011 = vpop.f32.mrb[0].mxu0
        %v4012 = vadd.f32 %v3880, %v4011
        %v4013 = vpop.f32.mrb[0].mxu0
        %v4014 = vpop.f32.mrb[0].mxu0
        %v4015 = vadd.f32 %v3880, %v4014
        %v4016 = vpop.f32.mrb[0].mxu0
        %4017 = vmatprep.mubr.bf16.mxu0 0
        %4018 = vmatmul.mubr.bf16.gmra.mrb[0].mxu0 %v3858
        %v4019 = vpop.f32.mrb[0].mxu0
        %v4020 = vadd.f32 %v3880, %v4019
        %v4021 = vpop.f32.mrb[0].mxu0
        %v4022 = vpop.f32.mrb[0].mxu0
        %v4023 = vadd.f32 %v3880, %v4022
        %v4024 = vpop.f32.mrb[0].mxu0
        %4025 = vdwg.mxu0
        %v4026 = vmax.f32 %v3964, 0.0
        %v4027 = vmax.f32 %v3967, 0.0
        %v4028 = vmax.f32 %v3972, 0.0
        %v4029 = vmax.f32 %v3975, 0.0
        %v4030 = vmax.f32 %v3980, 0.0
        %v4031 = vmax.f32 %v3983, 0.0
        %v4032 = vmax.f32 %v3988, 0.0
        %v4033 = vmax.f32 %v3991, 0.0
        %v4034 = vmax.f32 %v3996, 0.0
        %v4035 = vmax.f32 %v3999, 0.0
        %v4036 = vmax.f32 %v4004, 0.0
        %v4037 = vmax.f32 %v4007, 0.0
        %v4038 = vmax.f32 %v4012, 0.0
        %v4039 = vmax.f32 %v4015, 0.0
        %v4040 = vmax.f32 %v4020, 0.0
        %v4041 = vmax.f32 %v4023, 0.0
        %v4042 = vpack.c.bf16 %v4027, %v4026
        %v4043 = vpack.c.bf16 %v4029, %v4028
        %v4044 = vpack.c.bf16 %v4031, %v4030
        %v4045 = vpack.c.bf16 %v4033, %v4032
        %v4046 = vpack.c.bf16 %v4035, %v4034
        %v4047 = vpack.c.bf16 %v4037, %v4036
        %v4048 = vpack.c.bf16 %v4039, %v4038
        %v4049 = vpack.c.bf16 %v4041, %v4040
        %s4050 = scalar_lea.vmem [#allocation5], 896
        %v4051 = vld [vmem:[%s4050] sm:$0xf]
        %v4052 = vld [vmem:[%s4050 + $0x4] sm:$0xf]
        %v4053 = vld [vmem:[%s4050 + $0x8] sm:$0xf]
        %v4054 = vld [vmem:[%s4050 + $0xc] sm:$0xf]
        %v4055 = vld [vmem:[%s4050 + $0x10] sm:$0xf]
        %v4056 = vld [vmem:[%s4050 + $0x14] sm:$0xf]
        %v4057 = vld [vmem:[%s4050 + $0x18] sm:$0xf]
        %v4058 = vld [vmem:[%s4050 + $0x1c] sm:$0xf]
        %v4059 = vld [vmem:[%s4050 + $0x20] sm:$0xf]
        %v4060 = vld [vmem:[%s4050 + $0x24] sm:$0xf]
        %v4061 = vld [vmem:[%s4050 + $0x28] sm:$0xf]
        %v4062 = vld [vmem:[%s4050 + $0x2c] sm:$0xf]
        %v4063 = vld [vmem:[%s4050 + $0x30] sm:$0xf]
        %v4064 = vld [vmem:[%s4050 + $0x34] sm:$0xf]
        %v4065 = vld [vmem:[%s4050 + $0x38] sm:$0xf]
        %v4066 = vld [vmem:[%s4050 + $0x3c] sm:$0xf]
        %v4067 = vld [vmem:[#allocation7 + $0xe] sm:$0x1]
        %v4068 = vlaneseq
        %v4069 = vshrl.u32 %v4068, 7
        %v4070 = vsub.s32 0, %v4069
        %v4071 = vrot.slane %v4067, %v4070
        %v4088 = vunpack.c.l.b16 %v4051
        %v4089 = vunpack.c.l.b16 %v4052
        %v4090 = vunpack.c.l.b16 %v4053
        %v4091 = vunpack.c.l.b16 %v4054
        %v4092 = vunpack.c.l.b16 %v4055
        %v4093 = vunpack.c.l.b16 %v4056
        %v4094 = vunpack.c.l.b16 %v4057
        %v4095 = vunpack.c.l.b16 %v4058
        %v4096 = vunpack.c.l.b16 %v4059
        %v4097 = vunpack.c.l.b16 %v4060
        %v4098 = vunpack.c.l.b16 %v4061
        %v4099 = vunpack.c.l.b16 %v4062
        %v4100 = vunpack.c.l.b16 %v4063
        %v4101 = vunpack.c.l.b16 %v4064
        %v4102 = vunpack.c.l.b16 %v4065
        %v4103 = vunpack.c.l.b16 %v4066
        %v4104 = vpack.c.b16 %v4089, %v4088
        %v4105 = vpack.c.b16 %v4091, %v4090
        %v4106 = vpack.c.b16 %v4093, %v4092
        %v4107 = vpack.c.b16 %v4095, %v4094
        %v4108 = vpack.c.b16 %v4097, %v4096
        %v4109 = vpack.c.b16 %v4099, %v4098
        %v4110 = vpack.c.b16 %v4101, %v4100
        %v4111 = vpack.c.b16 %v4103, %v4102
        %4120 = vmatprep.subr.bf16.mxu0 0
        %4121 = vmatpush1.bf16.msra.mxu0 %v4104
        %4122 = vmatprep.subr.bf16.mxu0 0
        %4123 = vmatpush1.bf16.msra.mxu0 %v4105
        %4124 = vmatprep.subr.bf16.mxu0 0
        %4125 = vmatpush1.bf16.msra.mxu0 %v4106
        %4126 = vmatprep.subr.bf16.mxu0 0
        %4127 = vmatpush1.bf16.msra.mxu0 %v4107
        %4128 = vmatprep.subr.bf16.mxu0 0
        %4129 = vmatpush1.bf16.msra.mxu0 %v4108
        %4130 = vmatprep.subr.bf16.mxu0 0
        %4131 = vmatpush1.bf16.msra.mxu0 %v4109
        %4132 = vmatprep.subr.bf16.mxu0 0
        %4133 = vmatpush1.bf16.msra.mxu0 %v4110
        %4134 = vmatprep.subr.bf16.mxu0 0
        %4135 = vmatpush1.bf16.msra.mxu0 %v4111
        %4136 = vmatprep.subr.bf16.mxu0 0
        %4137 = vmatpush1.bf16.msra.mxu0 0
        %4138 = vmatprep.subr.bf16.mxu0 0
        %4139 = vmatpush1.bf16.msra.mxu0 0
        %4140 = vmatprep.subr.bf16.mxu0 0
        %4141 = vmatpush1.bf16.msra.mxu0 0
        %4142 = vmatprep.subr.bf16.mxu0 0
        %4143 = vmatpush1.bf16.msra.mxu0 0
        %4144 = vmatprep.subr.bf16.mxu0 0
        %4145 = vmatpush1.bf16.msra.mxu0 0
        %4146 = vmatprep.subr.bf16.mxu0 0
        %4147 = vmatpush1.bf16.msra.mxu0 0
        %4148 = vmatprep.subr.bf16.mxu0 0
        %4149 = vmatpush1.bf16.msra.mxu0 0
        %4150 = vmatprep.subr.bf16.mxu0 0
        %4151 = vmatpush1.bf16.msra.mxu0 0
        %4152 = vmatprep.mubr.bf16.mxu0 0
        %4153 = vmatmul.mubr.bf16.gmra.mrb[0].mxu0 %v4042
        %v4154 = vpop.f32.mrb[0].mxu0
        %v4155 = vadd.f32 %v4071, %v4154
        %v4156 = vpop.f32.mrb[0].mxu0
        %v4157 = vpop.f32.mrb[0].mxu0
        %v4158 = vadd.f32 %v4071, %v4157
        %v4159 = vpop.f32.mrb[0].mxu0
        %4160 = vmatprep.mubr.bf16.mxu0 0
        %4161 = vmatmul.mubr.bf16.gmra.mrb[0].mxu0 %v4043
        %v4162 = vpop.f32.mrb[0].mxu0
        %v4163 = vadd.f32 %v4071, %v4162
        %v4164 = vpop.f32.mrb[0].mxu0
        %v4165 = vpop.f32.mrb[0].mxu0
        %v4166 = vadd.f32 %v4071, %v4165
        %v4167 = vpop.f32.mrb[0].mxu0
        %4168 = vmatprep.mubr.bf16.mxu0 0
        %4169 = vmatmul.mubr.bf16.gmra.mrb[0].mxu0 %v4044
        %v4170 = vpop.f32.mrb[0].mxu0
        %v4171 = vadd.f32 %v4071, %v4170
        %v4172 = vpop.f32.mrb[0].mxu0
        %v4173 = vpop.f32.mrb[0].mxu0
        %v4174 = vadd.f32 %v4071, %v4173
        %v4175 = vpop.f32.mrb[0].mxu0
        %4176 = vmatprep.mubr.bf16.mxu0 0
        %4177 = vmatmul.mubr.bf16.gmra.mrb[0].mxu0 %v4045
        %v4178 = vpop.f32.mrb[0].mxu0
        %v4179 = vadd.f32 %v4071, %v4178
        %v4180 = vpop.f32.mrb[0].mxu0
        %v4181 = vpop.f32.mrb[0].mxu0
        %v4182 = vadd.f32 %v4071, %v4181
        %v4183 = vpop.f32.mrb[0].mxu0
        %4184 = vmatprep.mubr.bf16.mxu0 0
        %4185 = vmatmul.mubr.bf16.gmra.mrb[0].mxu0 %v4046
        %v4186 = vpop.f32.mrb[0].mxu0
        %v4187 = vadd.f32 %v4071, %v4186
        %v4188 = vpop.f32.mrb[0].mxu0
        %v4189 = vpop.f32.mrb[0].mxu0
        %v4190 = vadd.f32 %v4071, %v4189
        %v4191 = vpop.f32.mrb[0].mxu0
        %4192 = vmatprep.mubr.bf16.mxu0 0
        %4193 = vmatmul.mubr.bf16.gmra.mrb[0].mxu0 %v4047
        %v4194 = vpop.f32.mrb[0].mxu0
        %v4195 = vadd.f32 %v4071, %v4194
        %v4196 = vpop.f32.mrb[0].mxu0
        %v4197 = vpop.f32.mrb[0].mxu0
        %v4198 = vadd.f32 %v4071, %v4197
        %v4199 = vpop.f32.mrb[0].mxu0
        %4200 = vmatprep.mubr.bf16.mxu0 0
        %4201 = vmatmul.mubr.bf16.gmra.mrb[0].mxu0 %v4048
        %v4202 = vpop.f32.mrb[0].mxu0
        %v4203 = vadd.f32 %v4071, %v4202
        %v4204 = vpop.f32.mrb[0].mxu0
        %v4205 = vpop.f32.mrb[0].mxu0
        %v4206 = vadd.f32 %v4071, %v4205
        %v4207 = vpop.f32.mrb[0].mxu0
        %4208 = vmatprep.mubr.bf16.mxu0 0
        %4209 = vmatmul.mubr.bf16.gmra.mrb[0].mxu0 %v4049
        %v4210 = vpop.f32.mrb[0].mxu0
        %v4211 = vadd.f32 %v4071, %v4210
        %v4212 = vpop.f32.mrb[0].mxu0
        %v4213 = vpop.f32.mrb[0].mxu0
        %v4214 = vadd.f32 %v4071, %v4213
        %v4215 = vpop.f32.mrb[0].mxu0
        %4216 = vdwg.mxu0
        %v4217 = vadd.f32 %v4155, %v3644
        %v4218 = vadd.f32 %v4158, %v3645
        %v4219 = vadd.f32 %v4163, %v3646
        %v4220 = vadd.f32 %v4166, %v3647
        %v4221 = vadd.f32 %v4171, %v3648
        %v4222 = vadd.f32 %v4174, %v3649
        %v4223 = vadd.f32 %v4179, %v3650
        %v4224 = vadd.f32 %v4182, %v3651
        %v4225 = vadd.f32 %v4187, %v3652
        %v4226 = vadd.f32 %v4190, %v3653
        %v4227 = vadd.f32 %v4195, %v3654
        %v4228 = vadd.f32 %v4198, %v3655
        %v4229 = vadd.f32 %v4203, %v3656
        %v4230 = vadd.f32 %v4206, %v3657
        %v4231 = vadd.f32 %v4211, %v3658
        %v4232 = vadd.f32 %v4214, %v3659
        %4233 = vadd.xlane.f32.xlu0 %v4217
        %v4234 = vpop.xlane.xlu0 %4233
        %4235 = vadd.xlane.f32.xlu0 %v4218
        %v4236 = vpop.xlane.xlu0 %4235
        %4237 = vadd.xlane.f32.xlu0 %v4219
        %v4238 = vpop.xlane.xlu0 %4237
        %4239 = vadd.xlane.f32.xlu0 %v4220
        %v4240 = vpop.xlane.xlu0 %4239
        %4241 = vadd.xlane.f32.xlu0 %v4221
        %v4242 = vpop.xlane.xlu0 %4241
        %4243 = vadd.xlane.f32.xlu0 %v4222
        %v4244 = vpop.xlane.xlu0 %4243
        %4245 = vadd.xlane.f32.xlu0 %v4223
        %v4246 = vpop.xlane.xlu0 %4245
        %4247 = vadd.xlane.f32.xlu0 %v4224
        %v4248 = vpop.xlane.xlu0 %4247
        %4249 = vadd.xlane.f32.xlu0 %v4225
        %v4250 = vpop.xlane.xlu0 %4249
        %4251 = vadd.xlane.f32.xlu0 %v4226
        %v4252 = vpop.xlane.xlu0 %4251
        %4253 = vadd.xlane.f32.xlu0 %v4227
        %v4254 = vpop.xlane.xlu0 %4253
        %4255 = vadd.xlane.f32.xlu0 %v4228
        %v4256 = vpop.xlane.xlu0 %4255
        %4257 = vadd.xlane.f32.xlu0 %v4229
        %v4258 = vpop.xlane.xlu0 %4257
        %4259 = vadd.xlane.f32.xlu0 %v4230
        %v4260 = vpop.xlane.xlu0 %4259
        %4261 = vadd.xlane.f32.xlu0 %v4231
        %v4262 = vpop.xlane.xlu0 %4261
        %4263 = vadd.xlane.f32.xlu0 %v4232
        %v4264 = vpop.xlane.xlu0 %4263
        %v4265 = vmul.f32 %v4234, %v908
        %v4266 = vmul.f32 %v4236, %v908
        %v4267 = vmul.f32 %v4238, %v908
        %v4268 = vmul.f32 %v4240, %v908
        %v4269 = vmul.f32 %v4242, %v908
        %v4270 = vmul.f32 %v4244, %v908
        %v4271 = vmul.f32 %v4246, %v908
        %v4272 = vmul.f32 %v4248, %v908
        %v4273 = vmul.f32 %v4250, %v908
        %v4274 = vmul.f32 %v4252, %v908
        %v4275 = vmul.f32 %v4254, %v908
        %v4276 = vmul.f32 %v4256, %v908
        %v4277 = vmul.f32 %v4258, %v908
        %v4278 = vmul.f32 %v4260, %v908
        %v4279 = vmul.f32 %v4262, %v908
        %v4280 = vmul.f32 %v4264, %v908
        %v4281 = vmul.f32 %v4217, %v4217
        %v4282 = vmul.f32 %v4218, %v4218
        %v4283 = vmul.f32 %v4219, %v4219
        %v4284 = vmul.f32 %v4220, %v4220
        %v4285 = vmul.f32 %v4221, %v4221
        %v4286 = vmul.f32 %v4222, %v4222
        %v4287 = vmul.f32 %v4223, %v4223
        %v4288 = vmul.f32 %v4224, %v4224
        %v4289 = vmul.f32 %v4225, %v4225
        %v4290 = vmul.f32 %v4226, %v4226
        %v4291 = vmul.f32 %v4227, %v4227
        %v4292 = vmul.f32 %v4228, %v4228
        %v4293 = vmul.f32 %v4229, %v4229
        %v4294 = vmul.f32 %v4230, %v4230
        %v4295 = vmul.f32 %v4231, %v4231
        %v4296 = vmul.f32 %v4232, %v4232
        %4297 = vadd.xlane.f32.xlu0 %v4281
        %v4298 = vpop.xlane.xlu0 %4297
        %4299 = vadd.xlane.f32.xlu0 %v4282
        %v4300 = vpop.xlane.xlu0 %4299
        %4301 = vadd.xlane.f32.xlu0 %v4283
        %v4302 = vpop.xlane.xlu0 %4301
        %4303 = vadd.xlane.f32.xlu0 %v4284
        %v4304 = vpop.xlane.xlu0 %4303
        %4305 = vadd.xlane.f32.xlu0 %v4285
        %v4306 = vpop.xlane.xlu0 %4305
        %4307 = vadd.xlane.f32.xlu0 %v4286
        %v4308 = vpop.xlane.xlu0 %4307
        %4309 = vadd.xlane.f32.xlu0 %v4287
        %v4310 = vpop.xlane.xlu0 %4309
        %4311 = vadd.xlane.f32.xlu0 %v4288
        %v4312 = vpop.xlane.xlu0 %4311
        %4313 = vadd.xlane.f32.xlu0 %v4289
        %v4314 = vpop.xlane.xlu0 %4313
        %4315 = vadd.xlane.f32.xlu0 %v4290
        %v4316 = vpop.xlane.xlu0 %4315
        %4317 = vadd.xlane.f32.xlu0 %v4291
        %v4318 = vpop.xlane.xlu0 %4317
        %4319 = vadd.xlane.f32.xlu0 %v4292
        %v4320 = vpop.xlane.xlu0 %4319
        %4321 = vadd.xlane.f32.xlu0 %v4293
        %v4322 = vpop.xlane.xlu0 %4321
        %4323 = vadd.xlane.f32.xlu0 %v4294
        %v4324 = vpop.xlane.xlu0 %4323
        %4325 = vadd.xlane.f32.xlu0 %v4295
        %v4326 = vpop.xlane.xlu0 %4325
        %4327 = vadd.xlane.f32.xlu0 %v4296
        %v4328 = vpop.xlane.xlu0 %4327
        %v4329 = vmul.f32 %v4298, %v908
        %v4330 = vmul.f32 %v4300, %v908
        %v4331 = vmul.f32 %v4302, %v908
        %v4332 = vmul.f32 %v4304, %v908
        %v4333 = vmul.f32 %v4306, %v908
        %v4334 = vmul.f32 %v4308, %v908
        %v4335 = vmul.f32 %v4310, %v908
        %v4336 = vmul.f32 %v4312, %v908
        %v4337 = vmul.f32 %v4314, %v908
        %v4338 = vmul.f32 %v4316, %v908
        %v4339 = vmul.f32 %v4318, %v908
        %v4340 = vmul.f32 %v4320, %v908
        %v4341 = vmul.f32 %v4322, %v908
        %v4342 = vmul.f32 %v4324, %v908
        %v4343 = vmul.f32 %v4326, %v908
        %v4344 = vmul.f32 %v4328, %v908
        %v4345 = vmul.f32 %v4265, %v4265
        %v4346 = vmul.f32 %v4266, %v4266
        %v4347 = vmul.f32 %v4267, %v4267
        %v4348 = vmul.f32 %v4268, %v4268
        %v4349 = vmul.f32 %v4269, %v4269
        %v4350 = vmul.f32 %v4270, %v4270
        %v4351 = vmul.f32 %v4271, %v4271
        %v4352 = vmul.f32 %v4272, %v4272
        %v4353 = vmul.f32 %v4273, %v4273
        %v4354 = vmul.f32 %v4274, %v4274
        %v4355 = vmul.f32 %v4275, %v4275
        %v4356 = vmul.f32 %v4276, %v4276
        %v4357 = vmul.f32 %v4277, %v4277
        %v4358 = vmul.f32 %v4278, %v4278
        %v4359 = vmul.f32 %v4279, %v4279
        %v4360 = vmul.f32 %v4280, %v4280
        %v4361 = vsub.f32 %v4329, %v4345
        %v4362 = vsub.f32 %v4330, %v4346
        %v4363 = vsub.f32 %v4331, %v4347
        %v4364 = vsub.f32 %v4332, %v4348
        %v4365 = vsub.f32 %v4333, %v4349
        %v4366 = vsub.f32 %v4334, %v4350
        %v4367 = vsub.f32 %v4335, %v4351
        %v4368 = vsub.f32 %v4336, %v4352
        %v4369 = vsub.f32 %v4337, %v4353
        %v4370 = vsub.f32 %v4338, %v4354
        %v4371 = vsub.f32 %v4339, %v4355
        %v4372 = vsub.f32 %v4340, %v4356
        %v4373 = vsub.f32 %v4341, %v4357
        %v4374 = vsub.f32 %v4342, %v4358
        %v4375 = vsub.f32 %v4343, %v4359
        %v4376 = vsub.f32 %v4344, %v4360
        %v4377 = vmax.f32 %v4361, 0.0
        %v4378 = vmax.f32 %v4362, 0.0
        %v4379 = vmax.f32 %v4363, 0.0
        %v4380 = vmax.f32 %v4364, 0.0
        %v4381 = vmax.f32 %v4365, 0.0
        %v4382 = vmax.f32 %v4366, 0.0
        %v4383 = vmax.f32 %v4367, 0.0
        %v4384 = vmax.f32 %v4368, 0.0
        %v4385 = vmax.f32 %v4369, 0.0
        %v4386 = vmax.f32 %v4370, 0.0
        %v4387 = vmax.f32 %v4371, 0.0
        %v4388 = vmax.f32 %v4372, 0.0
        %v4389 = vmax.f32 %v4373, 0.0
        %v4390 = vmax.f32 %v4374, 0.0
        %v4391 = vmax.f32 %v4375, 0.0
        %v4392 = vmax.f32 %v4376, 0.0
        %v4393 = vsub.f32 %v4217, %v4265
        %v4394 = vsub.f32 %v4218, %v4266
        %v4395 = vsub.f32 %v4219, %v4267
        %v4396 = vsub.f32 %v4220, %v4268
        %v4397 = vsub.f32 %v4221, %v4269
        %v4398 = vsub.f32 %v4222, %v4270
        %v4399 = vsub.f32 %v4223, %v4271
        %v4400 = vsub.f32 %v4224, %v4272
        %v4401 = vsub.f32 %v4225, %v4273
        %v4402 = vsub.f32 %v4226, %v4274
        %v4403 = vsub.f32 %v4227, %v4275
        %v4404 = vsub.f32 %v4228, %v4276
        %v4405 = vsub.f32 %v4229, %v4277
        %v4406 = vsub.f32 %v4230, %v4278
        %v4407 = vsub.f32 %v4231, %v4279
        %v4408 = vsub.f32 %v4232, %v4280
        %v4409 = vadd.f32 %v4377, 1e-05
        %v4410 = vadd.f32 %v4378, 1e-05
        %v4411 = vadd.f32 %v4379, 1e-05
        %v4412 = vadd.f32 %v4380, 1e-05
        %v4413 = vadd.f32 %v4381, 1e-05
        %v4414 = vadd.f32 %v4382, 1e-05
        %v4415 = vadd.f32 %v4383, 1e-05
        %v4416 = vadd.f32 %v4384, 1e-05
        %v4417 = vadd.f32 %v4385, 1e-05
        %v4418 = vadd.f32 %v4386, 1e-05
        %v4419 = vadd.f32 %v4387, 1e-05
        %v4420 = vadd.f32 %v4388, 1e-05
        %v4421 = vadd.f32 %v4389, 1e-05
        %v4422 = vadd.f32 %v4390, 1e-05
        %v4423 = vadd.f32 %v4391, 1e-05
        %v4424 = vadd.f32 %v4392, 1e-05
        %v4425 = vrsqrt.pop %v4409
        %v4426 = vrsqrt.pop %v4410
        %v4427 = vrsqrt.pop %v4411
        %v4428 = vrsqrt.pop %v4412
        %v4429 = vrsqrt.pop %v4413
        %v4430 = vrsqrt.pop %v4414
        %v4431 = vrsqrt.pop %v4415
        %v4432 = vrsqrt.pop %v4416
        %v4433 = vrsqrt.pop %v4417
        %v4434 = vrsqrt.pop %v4418
        %v4435 = vrsqrt.pop %v4419
        %v4436 = vrsqrt.pop %v4420
        %v4437 = vrsqrt.pop %v4421
        %v4438 = vrsqrt.pop %v4422
        %v4439 = vrsqrt.pop %v4423
        %v4440 = vrsqrt.pop %v4424
        %v4441 = vmul.f32 %v4393, %v4425
        %v4442 = vmul.f32 %v4394, %v4426
        %v4443 = vmul.f32 %v4395, %v4427
        %v4444 = vmul.f32 %v4396, %v4428
        %v4445 = vmul.f32 %v4397, %v4429
        %v4446 = vmul.f32 %v4398, %v4430
        %v4447 = vmul.f32 %v4399, %v4431
        %v4448 = vmul.f32 %v4400, %v4432
        %v4449 = vmul.f32 %v4401, %v4433
        %v4450 = vmul.f32 %v4402, %v4434
        %v4451 = vmul.f32 %v4403, %v4435
        %v4452 = vmul.f32 %v4404, %v4436
        %v4453 = vmul.f32 %v4405, %v4437
        %v4454 = vmul.f32 %v4406, %v4438
        %v4455 = vmul.f32 %v4407, %v4439
        %v4456 = vmul.f32 %v4408, %v4440
        %v4457 = vld [vmem:[%s3 + $0x4] sm:$0x1]
        %v4458 = vlaneseq
        %v4459 = vshrl.u32 %v4458, 7
        %v4460 = vsub.s32 0, %v4459
        %v4461 = vrot.slane %v4457, %v4460
        %v4462 = vmul.f32 %v4441, %v4461
        %v4463 = vmul.f32 %v4442, %v4461
        %v4464 = vmul.f32 %v4443, %v4461
        %v4465 = vmul.f32 %v4444, %v4461
        %v4466 = vmul.f32 %v4445, %v4461
        %v4467 = vmul.f32 %v4446, %v4461
        %v4468 = vmul.f32 %v4447, %v4461
        %v4469 = vmul.f32 %v4448, %v4461
        %v4470 = vmul.f32 %v4449, %v4461
        %v4471 = vmul.f32 %v4450, %v4461
        %v4472 = vmul.f32 %v4451, %v4461
        %v4473 = vmul.f32 %v4452, %v4461
        %v4474 = vmul.f32 %v4453, %v4461
        %v4475 = vmul.f32 %v4454, %v4461
        %v4476 = vmul.f32 %v4455, %v4461
        %v4477 = vmul.f32 %v4456, %v4461
        %v4478 = vld [vmem:[#allocation8 + $0x4] sm:$0x1]
        %v4479 = vlaneseq
        %v4480 = vshrl.u32 %v4479, 7
        %v4481 = vsub.s32 0, %v4480
        %v4482 = vrot.slane %v4478, %v4481
        %v4483 = vadd.f32 %v4462, %v4482
        %v4484 = vadd.f32 %v4463, %v4482
        %v4485 = vadd.f32 %v4464, %v4482
        %v4486 = vadd.f32 %v4465, %v4482
        %v4487 = vadd.f32 %v4466, %v4482
        %v4488 = vadd.f32 %v4467, %v4482
        %v4489 = vadd.f32 %v4468, %v4482
        %v4490 = vadd.f32 %v4469, %v4482
        %v4491 = vadd.f32 %v4470, %v4482
        %v4492 = vadd.f32 %v4471, %v4482
        %v4493 = vadd.f32 %v4472, %v4482
        %v4494 = vadd.f32 %v4473, %v4482
        %v4495 = vadd.f32 %v4474, %v4482
        %v4496 = vadd.f32 %v4475, %v4482
        %v4497 = vadd.f32 %v4476, %v4482
        %v4498 = vadd.f32 %v4477, %v4482
        %v4499 = vpack.c.bf16 %v4484, %v4483
        %v4500 = vpack.c.bf16 %v4486, %v4485
        %v4501 = vpack.c.bf16 %v4488, %v4487
        %v4502 = vpack.c.bf16 %v4490, %v4489
        %v4503 = vpack.c.bf16 %v4492, %v4491
        %v4504 = vpack.c.bf16 %v4494, %v4493
        %v4505 = vpack.c.bf16 %v4496, %v4495
        %v4506 = vpack.c.bf16 %v4498, %v4497
        %s4507 = scalar_lea.vmem [#allocation5], 960
        %v4508 = vld [vmem:[%s4507] sm:$0xf]
        %v4509 = vld [vmem:[%s4507 + $0x4] sm:$0xf]
        %v4510 = vld [vmem:[%s4507 + $0x8] sm:$0xf]
        %v4511 = vld [vmem:[%s4507 + $0xc] sm:$0xf]
        %v4512 = vld [vmem:[%s4507 + $0x10] sm:$0xf]
        %v4513 = vld [vmem:[%s4507 + $0x14] sm:$0xf]
        %v4514 = vld [vmem:[%s4507 + $0x18] sm:$0xf]
        %v4515 = vld [vmem:[%s4507 + $0x1c] sm:$0xf]
        %v4516 = vld [vmem:[%s4507 + $0x20] sm:$0xf]
        %v4517 = vld [vmem:[%s4507 + $0x24] sm:$0xf]
        %v4518 = vld [vmem:[%s4507 + $0x28] sm:$0xf]
        %v4519 = vld [vmem:[%s4507 + $0x2c] sm:$0xf]
        %v4520 = vld [vmem:[%s4507 + $0x30] sm:$0xf]
        %v4521 = vld [vmem:[%s4507 + $0x34] sm:$0xf]
        %v4522 = vld [vmem:[%s4507 + $0x38] sm:$0xf]
        %v4523 = vld [vmem:[%s4507 + $0x3c] sm:$0xf]
        %v4524 = vld [vmem:[#allocation7 + $0xf] sm:$0x1]
        %v4525 = vlaneseq
        %v4526 = vshrl.u32 %v4525, 7
        %v4527 = vsub.s32 0, %v4526
        %v4528 = vrot.slane %v4524, %v4527
        %v4545 = vunpack.c.l.b16 %v4508
        %v4546 = vunpack.c.l.b16 %v4509
        %v4547 = vunpack.c.l.b16 %v4510
        %v4548 = vunpack.c.l.b16 %v4511
        %v4549 = vunpack.c.l.b16 %v4512
        %v4550 = vunpack.c.l.b16 %v4513
        %v4551 = vunpack.c.l.b16 %v4514
        %v4552 = vunpack.c.l.b16 %v4515
        %v4553 = vunpack.c.l.b16 %v4516
        %v4554 = vunpack.c.l.b16 %v4517
        %v4555 = vunpack.c.l.b16 %v4518
        %v4556 = vunpack.c.l.b16 %v4519
        %v4557 = vunpack.c.l.b16 %v4520
        %v4558 = vunpack.c.l.b16 %v4521
        %v4559 = vunpack.c.l.b16 %v4522
        %v4560 = vunpack.c.l.b16 %v4523
        %v4561 = vpack.c.b16 %v4546, %v4545
        %v4562 = vpack.c.b16 %v4548, %v4547
        %v4563 = vpack.c.b16 %v4550, %v4549
        %v4564 = vpack.c.b16 %v4552, %v4551
        %v4565 = vpack.c.b16 %v4554, %v4553
        %v4566 = vpack.c.b16 %v4556, %v4555
        %v4567 = vpack.c.b16 %v4558, %v4557
        %v4568 = vpack.c.b16 %v4560, %v4559
        %4577 = vmatprep.subr.bf16.mxu0 0
        %4578 = vmatpush1.bf16.msra.mxu0 %v4561
        %4579 = vmatprep.subr.bf16.mxu0 0
        %4580 = vmatpush1.bf16.msra.mxu0 %v4562
        %4581 = vmatprep.subr.bf16.mxu0 0
        %4582 = vmatpush1.bf16.msra.mxu0 %v4563
        %4583 = vmatprep.subr.bf16.mxu0 0
        %4584 = vmatpush1.bf16.msra.mxu0 %v4564
        %4585 = vmatprep.subr.bf16.mxu0 0
        %4586 = vmatpush1.bf16.msra.mxu0 %v4565
        %4587 = vmatprep.subr.bf16.mxu0 0
        %4588 = vmatpush1.bf16.msra.mxu0 %v4566
        %4589 = vmatprep.subr.bf16.mxu0 0
        %4590 = vmatpush1.bf16.msra.mxu0 %v4567
        %4591 = vmatprep.subr.bf16.mxu0 0
        %4592 = vmatpush1.bf16.msra.mxu0 %v4568
        %4593 = vmatprep.subr.bf16.mxu0 0
        %4594 = vmatpush1.bf16.msra.mxu0 0
        %4595 = vmatprep.subr.bf16.mxu0 0
        %4596 = vmatpush1.bf16.msra.mxu0 0
        %4597 = vmatprep.subr.bf16.mxu0 0
        %4598 = vmatpush1.bf16.msra.mxu0 0
        %4599 = vmatprep.subr.bf16.mxu0 0
        %4600 = vmatpush1.bf16.msra.mxu0 0
        %4601 = vmatprep.subr.bf16.mxu0 0
        %4602 = vmatpush1.bf16.msra.mxu0 0
        %4603 = vmatprep.subr.bf16.mxu0 0
        %4604 = vmatpush1.bf16.msra.mxu0 0
        %4605 = vmatprep.subr.bf16.mxu0 0
        %4606 = vmatpush1.bf16.msra.mxu0 0
        %4607 = vmatprep.subr.bf16.mxu0 0
        %4608 = vmatpush1.bf16.msra.mxu0 0
        %4609 = vmatprep.mubr.bf16.mxu0 0
        %4610 = vmatmul.mubr.bf16.gmra.mrb[0].mxu0 %v4499
        %v4611 = vpop.f32.mrb[0].mxu0
        %v4612 = vadd.f32 %v4528, %v4611
        %v4613 = vpop.f32.mrb[0].mxu0
        %v4614 = vpop.f32.mrb[0].mxu0
        %v4615 = vadd.f32 %v4528, %v4614
        %v4616 = vpop.f32.mrb[0].mxu0
        %4617 = vmatprep.mubr.bf16.mxu0 0
        %4618 = vmatmul.mubr.bf16.gmra.mrb[0].mxu0 %v4500
        %v4619 = vpop.f32.mrb[0].mxu0
        %v4620 = vadd.f32 %v4528, %v4619
        %v4621 = vpop.f32.mrb[0].mxu0
        %v4622 = vpop.f32.mrb[0].mxu0
        %v4623 = vadd.f32 %v4528, %v4622
        %v4624 = vpop.f32.mrb[0].mxu0
        %4625 = vmatprep.mubr.bf16.mxu0 0
        %4626 = vmatmul.mubr.bf16.gmra.mrb[0].mxu0 %v4501
        %v4627 = vpop.f32.mrb[0].mxu0
        %v4628 = vadd.f32 %v4528, %v4627
        %v4629 = vpop.f32.mrb[0].mxu0
        %v4630 = vpop.f32.mrb[0].mxu0
        %v4631 = vadd.f32 %v4528, %v4630
        %v4632 = vpop.f32.mrb[0].mxu0
        %4633 = vmatprep.mubr.bf16.mxu0 0
        %4634 = vmatmul.mubr.bf16.gmra.mrb[0].mxu0 %v4502
        %v4635 = vpop.f32.mrb[0].mxu0
        %v4636 = vadd.f32 %v4528, %v4635
        %v4637 = vpop.f32.mrb[0].mxu0
        %v4638 = vpop.f32.mrb[0].mxu0
        %v4639 = vadd.f32 %v4528, %v4638
        %v4640 = vpop.f32.mrb[0].mxu0
        %4641 = vmatprep.mubr.bf16.mxu0 0
        %4642 = vmatmul.mubr.bf16.gmra.mrb[0].mxu0 %v4503
        %v4643 = vpop.f32.mrb[0].mxu0
        %v4644 = vadd.f32 %v4528, %v4643
        %v4645 = vpop.f32.mrb[0].mxu0
        %v4646 = vpop.f32.mrb[0].mxu0
        %v4647 = vadd.f32 %v4528, %v4646
        %v4648 = vpop.f32.mrb[0].mxu0
        %4649 = vmatprep.mubr.bf16.mxu0 0
        %4650 = vmatmul.mubr.bf16.gmra.mrb[0].mxu0 %v4504
        %v4651 = vpop.f32.mrb[0].mxu0
        %v4652 = vadd.f32 %v4528, %v4651
        %v4653 = vpop.f32.mrb[0].mxu0
        %v4654 = vpop.f32.mrb[0].mxu0
        %v4655 = vadd.f32 %v4528, %v4654
        %v4656 = vpop.f32.mrb[0].mxu0
        %4657 = vmatprep.mubr.bf16.mxu0 0
        %4658 = vmatmul.mubr.bf16.gmra.mrb[0].mxu0 %v4505
        %v4659 = vpop.f32.mrb[0].mxu0
        %v4660 = vadd.f32 %v4528, %v4659
        %v4661 = vpop.f32.mrb[0].mxu0
        %v4662 = vpop.f32.mrb[0].mxu0
        %v4663 = vadd.f32 %v4528, %v4662
        %v4664 = vpop.f32.mrb[0].mxu0
        %4665 = vmatprep.mubr.bf16.mxu0 0
        %4666 = vmatmul.mubr.bf16.gmra.mrb[0].mxu0 %v4506
        %v4667 = vpop.f32.mrb[0].mxu0
        %v4668 = vadd.f32 %v4528, %v4667
        %v4669 = vpop.f32.mrb[0].mxu0
        %v4670 = vpop.f32.mrb[0].mxu0
        %v4671 = vadd.f32 %v4528, %v4670
        %v4672 = vpop.f32.mrb[0].mxu0
        %4673 = vdwg.mxu0
        %v4674 = vmax.f32 %v4612, 0.0
        %v4675 = vmax.f32 %v4615, 0.0
        %v4676 = vmax.f32 %v4620, 0.0
        %v4677 = vmax.f32 %v4623, 0.0
        %v4678 = vmax.f32 %v4628, 0.0
        %v4679 = vmax.f32 %v4631, 0.0
        %v4680 = vmax.f32 %v4636, 0.0
        %v4681 = vmax.f32 %v4639, 0.0
        %v4682 = vmax.f32 %v4644, 0.0
        %v4683 = vmax.f32 %v4647, 0.0
        %v4684 = vmax.f32 %v4652, 0.0
        %v4685 = vmax.f32 %v4655, 0.0
        %v4686 = vmax.f32 %v4660, 0.0
        %v4687 = vmax.f32 %v4663, 0.0
        %v4688 = vmax.f32 %v4668, 0.0
        %v4689 = vmax.f32 %v4671, 0.0
        %v4690 = vpack.c.bf16 %v4675, %v4674
        %v4691 = vpack.c.bf16 %v4677, %v4676
        %v4692 = vpack.c.bf16 %v4679, %v4678
        %v4693 = vpack.c.bf16 %v4681, %v4680
        %v4694 = vpack.c.bf16 %v4683, %v4682
        %v4695 = vpack.c.bf16 %v4685, %v4684
        %v4696 = vpack.c.bf16 %v4687, %v4686
        %v4697 = vpack.c.bf16 %v4689, %v4688
        %s4698 = scalar_lea.vmem [#allocation5], 1024
        %v4699 = vld [vmem:[%s4698] sm:$0xf]
        %v4700 = vld [vmem:[%s4698 + $0x4] sm:$0xf]
        %v4701 = vld [vmem:[%s4698 + $0x8] sm:$0xf]
        %v4702 = vld [vmem:[%s4698 + $0xc] sm:$0xf]
        %v4703 = vld [vmem:[%s4698 + $0x10] sm:$0xf]
        %v4704 = vld [vmem:[%s4698 + $0x14] sm:$0xf]
        %v4705 = vld [vmem:[%s4698 + $0x18] sm:$0xf]
        %v4706 = vld [vmem:[%s4698 + $0x1c] sm:$0xf]
        %v4707 = vld [vmem:[%s4698 + $0x20] sm:$0xf]
        %v4708 = vld [vmem:[%s4698 + $0x24] sm:$0xf]
        %v4709 = vld [vmem:[%s4698 + $0x28] sm:$0xf]
        %v4710 = vld [vmem:[%s4698 + $0x2c] sm:$0xf]
        %v4711 = vld [vmem:[%s4698 + $0x30] sm:$0xf]
        %v4712 = vld [vmem:[%s4698 + $0x34] sm:$0xf]
        %v4713 = vld [vmem:[%s4698 + $0x38] sm:$0xf]
        %v4714 = vld [vmem:[%s4698 + $0x3c] sm:$0xf]
        %v4715 = vld [vmem:[#allocation7 + $0x10] sm:$0x1]
        %v4716 = vlaneseq
        %v4717 = vshrl.u32 %v4716, 7
        %v4718 = vsub.s32 0, %v4717
        %v4719 = vrot.slane %v4715, %v4718
        %v4736 = vunpack.c.l.b16 %v4699
        %v4737 = vunpack.c.l.b16 %v4700
        %v4738 = vunpack.c.l.b16 %v4701
        %v4739 = vunpack.c.l.b16 %v4702
        %v4740 = vunpack.c.l.b16 %v4703
        %v4741 = vunpack.c.l.b16 %v4704
        %v4742 = vunpack.c.l.b16 %v4705
        %v4743 = vunpack.c.l.b16 %v4706
        %v4744 = vunpack.c.l.b16 %v4707
        %v4745 = vunpack.c.l.b16 %v4708
        %v4746 = vunpack.c.l.b16 %v4709
        %v4747 = vunpack.c.l.b16 %v4710
        %v4748 = vunpack.c.l.b16 %v4711
        %v4749 = vunpack.c.l.b16 %v4712
        %v4750 = vunpack.c.l.b16 %v4713
        %v4751 = vunpack.c.l.b16 %v4714
        %v4752 = vpack.c.b16 %v4737, %v4736
        %v4753 = vpack.c.b16 %v4739, %v4738
        %v4754 = vpack.c.b16 %v4741, %v4740
        %v4755 = vpack.c.b16 %v4743, %v4742
        %v4756 = vpack.c.b16 %v4745, %v4744
        %v4757 = vpack.c.b16 %v4747, %v4746
        %v4758 = vpack.c.b16 %v4749, %v4748
        %v4759 = vpack.c.b16 %v4751, %v4750
        %4768 = vmatprep.subr.bf16.mxu0 0
        %4769 = vmatpush1.bf16.msra.mxu0 %v4752
        %4770 = vmatprep.subr.bf16.mxu0 0
        %4771 = vmatpush1.bf16.msra.mxu0 %v4753
        %4772 = vmatprep.subr.bf16.mxu0 0
        %4773 = vmatpush1.bf16.msra.mxu0 %v4754
        %4774 = vmatprep.subr.bf16.mxu0 0
        %4775 = vmatpush1.bf16.msra.mxu0 %v4755
        %4776 = vmatprep.subr.bf16.mxu0 0
        %4777 = vmatpush1.bf16.msra.mxu0 %v4756
        %4778 = vmatprep.subr.bf16.mxu0 0
        %4779 = vmatpush1.bf16.msra.mxu0 %v4757
        %4780 = vmatprep.subr.bf16.mxu0 0
        %4781 = vmatpush1.bf16.msra.mxu0 %v4758
        %4782 = vmatprep.subr.bf16.mxu0 0
        %4783 = vmatpush1.bf16.msra.mxu0 %v4759
        %4784 = vmatprep.subr.bf16.mxu0 0
        %4785 = vmatpush1.bf16.msra.mxu0 0
        %4786 = vmatprep.subr.bf16.mxu0 0
        %4787 = vmatpush1.bf16.msra.mxu0 0
        %4788 = vmatprep.subr.bf16.mxu0 0
        %4789 = vmatpush1.bf16.msra.mxu0 0
        %4790 = vmatprep.subr.bf16.mxu0 0
        %4791 = vmatpush1.bf16.msra.mxu0 0
        %4792 = vmatprep.subr.bf16.mxu0 0
        %4793 = vmatpush1.bf16.msra.mxu0 0
        %4794 = vmatprep.subr.bf16.mxu0 0
        %4795 = vmatpush1.bf16.msra.mxu0 0
        %4796 = vmatprep.subr.bf16.mxu0 0
        %4797 = vmatpush1.bf16.msra.mxu0 0
        %4798 = vmatprep.subr.bf16.mxu0 0
        %4799 = vmatpush1.bf16.msra.mxu0 0
        %4800 = vmatprep.mubr.bf16.mxu0 0
        %4801 = vmatmul.mubr.bf16.gmra.mrb[0].mxu0 %v4690
        %v4802 = vpop.f32.mrb[0].mxu0
        %v4803 = vadd.f32 %v4719, %v4802
        %v4804 = vpop.f32.mrb[0].mxu0
        %v4805 = vpop.f32.mrb[0].mxu0
        %v4806 = vadd.f32 %v4719, %v4805
        %v4807 = vpop.f32.mrb[0].mxu0
        %4808 = vmatprep.mubr.bf16.mxu0 0
        %4809 = vmatmul.mubr.bf16.gmra.mrb[0].mxu0 %v4691
        %v4810 = vpop.f32.mrb[0].mxu0
        %v4811 = vadd.f32 %v4719, %v4810
        %v4812 = vpop.f32.mrb[0].mxu0
        %v4813 = vpop.f32.mrb[0].mxu0
        %v4814 = vadd.f32 %v4719, %v4813
        %v4815 = vpop.f32.mrb[0].mxu0
        %4816 = vmatprep.mubr.bf16.mxu0 0
        %4817 = vmatmul.mubr.bf16.gmra.mrb[0].mxu0 %v4692
        %v4818 = vpop.f32.mrb[0].mxu0
        %v4819 = vadd.f32 %v4719, %v4818
        %v4820 = vpop.f32.mrb[0].mxu0
        %v4821 = vpop.f32.mrb[0].mxu0
        %v4822 = vadd.f32 %v4719, %v4821
        %v4823 = vpop.f32.mrb[0].mxu0
        %4824 = vmatprep.mubr.bf16.mxu0 0
        %4825 = vmatmul.mubr.bf16.gmra.mrb[0].mxu0 %v4693
        %v4826 = vpop.f32.mrb[0].mxu0
        %v4827 = vadd.f32 %v4719, %v4826
        %v4828 = vpop.f32.mrb[0].mxu0
        %v4829 = vpop.f32.mrb[0].mxu0
        %v4830 = vadd.f32 %v4719, %v4829
        %v4831 = vpop.f32.mrb[0].mxu0
        %4832 = vmatprep.mubr.bf16.mxu0 0
        %4833 = vmatmul.mubr.bf16.gmra.mrb[0].mxu0 %v4694
        %v4834 = vpop.f32.mrb[0].mxu0
        %v4835 = vadd.f32 %v4719, %v4834
        %v4836 = vpop.f32.mrb[0].mxu0
        %v4837 = vpop.f32.mrb[0].mxu0
        %v4838 = vadd.f32 %v4719, %v4837
        %v4839 = vpop.f32.mrb[0].mxu0
        %4840 = vmatprep.mubr.bf16.mxu0 0
        %4841 = vmatmul.mubr.bf16.gmra.mrb[0].mxu0 %v4695
        %v4842 = vpop.f32.mrb[0].mxu0
        %v4843 = vadd.f32 %v4719, %v4842
        %v4844 = vpop.f32.mrb[0].mxu0
        %v4845 = vpop.f32.mrb[0].mxu0
        %v4846 = vadd.f32 %v4719, %v4845
        %v4847 = vpop.f32.mrb[0].mxu0
        %4848 = vmatprep.mubr.bf16.mxu0 0
        %4849 = vmatmul.mubr.bf16.gmra.mrb[0].mxu0 %v4696
        %v4850 = vpop.f32.mrb[0].mxu0
        %v4851 = vadd.f32 %v4719, %v4850
        %v4852 = vpop.f32.mrb[0].mxu0
        %v4853 = vpop.f32.mrb[0].mxu0
        %v4854 = vadd.f32 %v4719, %v4853
        %v4855 = vpop.f32.mrb[0].mxu0
        %4856 = vmatprep.mubr.bf16.mxu0 0
        %4857 = vmatmul.mubr.bf16.gmra.mrb[0].mxu0 %v4697
        %v4858 = vpop.f32.mrb[0].mxu0
        %v4859 = vadd.f32 %v4719, %v4858
        %v4860 = vpop.f32.mrb[0].mxu0
        %v4861 = vpop.f32.mrb[0].mxu0
        %v4862 = vadd.f32 %v4719, %v4861
        %v4863 = vpop.f32.mrb[0].mxu0
        %4864 = vdwg.mxu0
        %v4865 = vmax.f32 %v4803, 0.0
        %v4866 = vmax.f32 %v4806, 0.0
        %v4867 = vmax.f32 %v4811, 0.0
        %v4868 = vmax.f32 %v4814, 0.0
        %v4869 = vmax.f32 %v4819, 0.0
        %v4870 = vmax.f32 %v4822, 0.0
        %v4871 = vmax.f32 %v4827, 0.0
        %v4872 = vmax.f32 %v4830, 0.0
        %v4873 = vmax.f32 %v4835, 0.0
        %v4874 = vmax.f32 %v4838, 0.0
        %v4875 = vmax.f32 %v4843, 0.0
        %v4876 = vmax.f32 %v4846, 0.0
        %v4877 = vmax.f32 %v4851, 0.0
        %v4878 = vmax.f32 %v4854, 0.0
        %v4879 = vmax.f32 %v4859, 0.0
        %v4880 = vmax.f32 %v4862, 0.0
        %v4881 = vpack.c.bf16 %v4866, %v4865
        %v4882 = vpack.c.bf16 %v4868, %v4867
        %v4883 = vpack.c.bf16 %v4870, %v4869
        %v4884 = vpack.c.bf16 %v4872, %v4871
        %v4885 = vpack.c.bf16 %v4874, %v4873
        %v4886 = vpack.c.bf16 %v4876, %v4875
        %v4887 = vpack.c.bf16 %v4878, %v4877
        %v4888 = vpack.c.bf16 %v4880, %v4879
        %s4889 = scalar_lea.vmem [#allocation5], 1088
        %v4890 = vld [vmem:[%s4889] sm:$0xf]
        %v4891 = vld [vmem:[%s4889 + $0x4] sm:$0xf]
        %v4892 = vld [vmem:[%s4889 + $0x8] sm:$0xf]
        %v4893 = vld [vmem:[%s4889 + $0xc] sm:$0xf]
        %v4894 = vld [vmem:[%s4889 + $0x10] sm:$0xf]
        %v4895 = vld [vmem:[%s4889 + $0x14] sm:$0xf]
        %v4896 = vld [vmem:[%s4889 + $0x18] sm:$0xf]
        %v4897 = vld [vmem:[%s4889 + $0x1c] sm:$0xf]
        %v4898 = vld [vmem:[%s4889 + $0x20] sm:$0xf]
        %v4899 = vld [vmem:[%s4889 + $0x24] sm:$0xf]
        %v4900 = vld [vmem:[%s4889 + $0x28] sm:$0xf]
        %v4901 = vld [vmem:[%s4889 + $0x2c] sm:$0xf]
        %v4902 = vld [vmem:[%s4889 + $0x30] sm:$0xf]
        %v4903 = vld [vmem:[%s4889 + $0x34] sm:$0xf]
        %v4904 = vld [vmem:[%s4889 + $0x38] sm:$0xf]
        %v4905 = vld [vmem:[%s4889 + $0x3c] sm:$0xf]
        %v4906 = vld [vmem:[#allocation7 + $0x11] sm:$0x1]
        %v4907 = vlaneseq
        %v4908 = vshrl.u32 %v4907, 7
        %v4909 = vsub.s32 0, %v4908
        %v4910 = vrot.slane %v4906, %v4909
        %v4927 = vunpack.c.l.b16 %v4890
        %v4928 = vunpack.c.l.b16 %v4891
        %v4929 = vunpack.c.l.b16 %v4892
        %v4930 = vunpack.c.l.b16 %v4893
        %v4931 = vunpack.c.l.b16 %v4894
        %v4932 = vunpack.c.l.b16 %v4895
        %v4933 = vunpack.c.l.b16 %v4896
        %v4934 = vunpack.c.l.b16 %v4897
        %v4935 = vunpack.c.l.b16 %v4898
        %v4936 = vunpack.c.l.b16 %v4899
        %v4937 = vunpack.c.l.b16 %v4900
        %v4938 = vunpack.c.l.b16 %v4901
        %v4939 = vunpack.c.l.b16 %v4902
        %v4940 = vunpack.c.l.b16 %v4903
        %v4941 = vunpack.c.l.b16 %v4904
        %v4942 = vunpack.c.l.b16 %v4905
        %v4943 = vpack.c.b16 %v4928, %v4927
        %v4944 = vpack.c.b16 %v4930, %v4929
        %v4945 = vpack.c.b16 %v4932, %v4931
        %v4946 = vpack.c.b16 %v4934, %v4933
        %v4947 = vpack.c.b16 %v4936, %v4935
        %v4948 = vpack.c.b16 %v4938, %v4937
        %v4949 = vpack.c.b16 %v4940, %v4939
        %v4950 = vpack.c.b16 %v4942, %v4941
        %4959 = vmatprep.subr.bf16.mxu0 0
        %4960 = vmatpush1.bf16.msra.mxu0 %v4943
        %4961 = vmatprep.subr.bf16.mxu0 0
        %4962 = vmatpush1.bf16.msra.mxu0 %v4944
        %4963 = vmatprep.subr.bf16.mxu0 0
        %4964 = vmatpush1.bf16.msra.mxu0 %v4945
        %4965 = vmatprep.subr.bf16.mxu0 0
        %4966 = vmatpush1.bf16.msra.mxu0 %v4946
        %4967 = vmatprep.subr.bf16.mxu0 0
        %4968 = vmatpush1.bf16.msra.mxu0 %v4947
        %4969 = vmatprep.subr.bf16.mxu0 0
        %4970 = vmatpush1.bf16.msra.mxu0 %v4948
        %4971 = vmatprep.subr.bf16.mxu0 0
        %4972 = vmatpush1.bf16.msra.mxu0 %v4949
        %4973 = vmatprep.subr.bf16.mxu0 0
        %4974 = vmatpush1.bf16.msra.mxu0 %v4950
        %4975 = vmatprep.subr.bf16.mxu0 0
        %4976 = vmatpush1.bf16.msra.mxu0 0
        %4977 = vmatprep.subr.bf16.mxu0 0
        %4978 = vmatpush1.bf16.msra.mxu0 0
        %4979 = vmatprep.subr.bf16.mxu0 0
        %4980 = vmatpush1.bf16.msra.mxu0 0
        %4981 = vmatprep.subr.bf16.mxu0 0
        %4982 = vmatpush1.bf16.msra.mxu0 0
        %4983 = vmatprep.subr.bf16.mxu0 0
        %4984 = vmatpush1.bf16.msra.mxu0 0
        %4985 = vmatprep.subr.bf16.mxu0 0
        %4986 = vmatpush1.bf16.msra.mxu0 0
        %4987 = vmatprep.subr.bf16.mxu0 0
        %4988 = vmatpush1.bf16.msra.mxu0 0
        %4989 = vmatprep.subr.bf16.mxu0 0
        %4990 = vmatpush1.bf16.msra.mxu0 0
        %4991 = vmatprep.mubr.bf16.mxu0 0
        %4992 = vmatmul.mubr.bf16.gmra.mrb[0].mxu0 %v4881
        %v4993 = vpop.f32.mrb[0].mxu0
        %v4994 = vadd.f32 %v4910, %v4993
        %v4995 = vpop.f32.mrb[0].mxu0
        %v4996 = vpop.f32.mrb[0].mxu0
        %v4997 = vadd.f32 %v4910, %v4996
        %v4998 = vpop.f32.mrb[0].mxu0
        %4999 = vmatprep.mubr.bf16.mxu0 0
        %5000 = vmatmul.mubr.bf16.gmra.mrb[0].mxu0 %v4882
        %v5001 = vpop.f32.mrb[0].mxu0
        %v5002 = vadd.f32 %v4910, %v5001
        %v5003 = vpop.f32.mrb[0].mxu0
        %v5004 = vpop.f32.mrb[0].mxu0
        %v5005 = vadd.f32 %v4910, %v5004
        %v5006 = vpop.f32.mrb[0].mxu0
        %5007 = vmatprep.mubr.bf16.mxu0 0
        %5008 = vmatmul.mubr.bf16.gmra.mrb[0].mxu0 %v4883
        %v5009 = vpop.f32.mrb[0].mxu0
        %v5010 = vadd.f32 %v4910, %v5009
        %v5011 = vpop.f32.mrb[0].mxu0
        %v5012 = vpop.f32.mrb[0].mxu0
        %v5013 = vadd.f32 %v4910, %v5012
        %v5014 = vpop.f32.mrb[0].mxu0
        %5015 = vmatprep.mubr.bf16.mxu0 0
        %5016 = vmatmul.mubr.bf16.gmra.mrb[0].mxu0 %v4884
        %v5017 = vpop.f32.mrb[0].mxu0
        %v5018 = vadd.f32 %v4910, %v5017
        %v5019 = vpop.f32.mrb[0].mxu0
        %v5020 = vpop.f32.mrb[0].mxu0
        %v5021 = vadd.f32 %v4910, %v5020
        %v5022 = vpop.f32.mrb[0].mxu0
        %5023 = vmatprep.mubr.bf16.mxu0 0
        %5024 = vmatmul.mubr.bf16.gmra.mrb[0].mxu0 %v4885
        %v5025 = vpop.f32.mrb[0].mxu0
        %v5026 = vadd.f32 %v4910, %v5025
        %v5027 = vpop.f32.mrb[0].mxu0
        %v5028 = vpop.f32.mrb[0].mxu0
        %v5029 = vadd.f32 %v4910, %v5028
        %v5030 = vpop.f32.mrb[0].mxu0
        %5031 = vmatprep.mubr.bf16.mxu0 0
        %5032 = vmatmul.mubr.bf16.gmra.mrb[0].mxu0 %v4886
        %v5033 = vpop.f32.mrb[0].mxu0
        %v5034 = vadd.f32 %v4910, %v5033
        %v5035 = vpop.f32.mrb[0].mxu0
        %v5036 = vpop.f32.mrb[0].mxu0
        %v5037 = vadd.f32 %v4910, %v5036
        %v5038 = vpop.f32.mrb[0].mxu0
        %5039 = vmatprep.mubr.bf16.mxu0 0
        %5040 = vmatmul.mubr.bf16.gmra.mrb[0].mxu0 %v4887
        %v5041 = vpop.f32.mrb[0].mxu0
        %v5042 = vadd.f32 %v4910, %v5041
        %v5043 = vpop.f32.mrb[0].mxu0
        %v5044 = vpop.f32.mrb[0].mxu0
        %v5045 = vadd.f32 %v4910, %v5044
        %v5046 = vpop.f32.mrb[0].mxu0
        %5047 = vmatprep.mubr.bf16.mxu0 0
        %5048 = vmatmul.mubr.bf16.gmra.mrb[0].mxu0 %v4888
        %v5049 = vpop.f32.mrb[0].mxu0
        %v5050 = vadd.f32 %v4910, %v5049
        %v5051 = vpop.f32.mrb[0].mxu0
        %v5052 = vpop.f32.mrb[0].mxu0
        %v5053 = vadd.f32 %v4910, %v5052
        %v5054 = vpop.f32.mrb[0].mxu0
        %5055 = vdwg.mxu0
        %v5056 = vadd.f32 %v4994, %v4483
        %v5057 = vadd.f32 %v4997, %v4484
        %v5058 = vadd.f32 %v5002, %v4485
        %v5059 = vadd.f32 %v5005, %v4486
        %v5060 = vadd.f32 %v5010, %v4487
        %v5061 = vadd.f32 %v5013, %v4488
        %v5062 = vadd.f32 %v5018, %v4489
        %v5063 = vadd.f32 %v5021, %v4490
        %v5064 = vadd.f32 %v5026, %v4491
        %v5065 = vadd.f32 %v5029, %v4492
        %v5066 = vadd.f32 %v5034, %v4493
        %v5067 = vadd.f32 %v5037, %v4494
        %v5068 = vadd.f32 %v5042, %v4495
        %v5069 = vadd.f32 %v5045, %v4496
        %v5070 = vadd.f32 %v5050, %v4497
        %v5071 = vadd.f32 %v5053, %v4498
        %5072 = vst [vmem:[%s284] sm:$0xff] %v5056
        %5073 = vst [vmem:[%s284 + $0x8] sm:$0xff] %v5057
        %5074 = vst [vmem:[%s284 + $0x10] sm:$0xff] %v5058
        %5075 = vst [vmem:[%s284 + $0x18] sm:$0xff] %v5059
        %5076 = vst [vmem:[%s284 + $0x20] sm:$0xff] %v5060
        %5077 = vst [vmem:[%s284 + $0x28] sm:$0xff] %v5061
        %5078 = vst [vmem:[%s284 + $0x30] sm:$0xff] %v5062
        %5079 = vst [vmem:[%s284 + $0x38] sm:$0xff] %v5063
        %5080 = vst [vmem:[%s284 + $0x40] sm:$0xff] %v5064
        %5081 = vst [vmem:[%s284 + $0x48] sm:$0xff] %v5065
        %5082 = vst [vmem:[%s284 + $0x50] sm:$0xff] %v5066
        %5083 = vst [vmem:[%s284 + $0x58] sm:$0xff] %v5067
        %5084 = vst [vmem:[%s284 + $0x60] sm:$0xff] %v5068
        %5085 = vst [vmem:[%s284 + $0x68] sm:$0xff] %v5069
        %5086 = vst [vmem:[%s284 + $0x70] sm:$0xff] %v5070
        %5087 = vst [vmem:[%s284 + $0x78] sm:$0xff] %v5071
        %s5088 = sand.u32 %s142, 1
        %s5089 = scalar_lea.sflag [#allocation4], %s5088
        %s5090 = sand.u32 %s142, 1
        %s5091 = smul.addr %s5090, 128
        %s5092 = scalar_lea.vmem [#allocation10], %s5091
        // Predicated region
        $region57: #{tpu_custom_call.1} parent=39 // pred_check
          %p5093 = pneg %p152
        $region58: #{tpu_custom_call.1} parent=39 // pred_check_branch
          %5095 = sbr.rel (%p5093) target = $region60
        $region59: #{tpu_custom_call.1} parent=39 // pred_region
          %s5096 = smul.u32 16, %s24
          %s5098 = ssub.s32 2048, 2048
          %5099 = vsyncadd %s5089, %s5098
          %s5100 = smul.addr %s5096, 128
          %s5101 = scalar_lea.hbm %s5, %s5100
          %s5102 = sshll.u32 %s5092, 4
          %s5103 = int_to_ptr.vmem [resolvable:$true] %s5102
          %5108 = dma.vmem_to_hbm [thread:$0]  %s5103, 2048, %s5101, %s5089, 128, 128, 8
        $region60: #{tpu_custom_call.1} parent=39 // pred_fallthru
          _
      $region40: #{tpu_custom_call.1} parent=5 // pred_fallthru
        _
      %p5109 = scmp.le.s32.totalorder 2, %s19
      // Predicated region
      $region61: #{tpu_custom_call.1} parent=5 // pred_check
        %p5110 = pneg %p5109
      $region62: #{tpu_custom_call.1} parent=5 // pred_check_branch
        %5112 = sbr.rel (%p5110) target = $region64
      $region63: #{tpu_custom_call.1} parent=5 // pred_region
        %s5113 = ssub.s32 %s19, 2
        // Predicated region
        $region65: #{tpu_custom_call.1} parent=63 // pred_check
          %p5114 = pneg %p158
        $region66: #{tpu_custom_call.1} parent=63 // pred_check_branch
          %5116 = sbr.rel (%p5114) target = $region68
        $region67: #{tpu_custom_call.1} parent=63 // pred_region
          %s5117 = sand.u32 %s143, 1
          %s5118 = scalar_lea.sflag [#allocation4], %s5117
          %s5119 = sand.u32 %s143, 1
          %s5120 = smul.addr %s5119, 128
          %s5121 = scalar_lea.vmem [#allocation10], %s5120
          %5122 = dma.done %s5118, 2048
        $region68: #{tpu_custom_call.1} parent=63 // pred_fallthru
          _
      $region64: #{tpu_custom_call.1} parent=5 // pred_fallthru
        _
    $region6: #{tpu_custom_call.1} parent=1 // loop_footer
      %s23 = sadd.s32 1, %s19
    $region7: #{tpu_custom_call.1} parent=1 // loop_footer_branch
      %18 = sbr.rel target = $region3
    $region8: #{tpu_custom_call.1} parent=1 // loop_exit
      _
    %5123 = vsyncpa [#allocation3], 1
    %s5124 = scalar_lea.sflag [#allocation3], 1
    %5125 = vsyncpa %s5124, 1
    %5126 = vsyncpa [#allocation6], 1
    %5127 = vsyncpa [#allocation9], 1
    %5128 = vsyncpa [#allocation4], 1
    %s5129 = scalar_lea.sflag [#allocation4], 1
    %5130 = vsyncpa %s5129, 1

// kernel: tpu_custom_call.1
$region0: #{tpu_custom_call.1}
  #allocation0 [shape = 'u32[]', space=smem, size = 0x4, offset = 0x4, fixed_abs, tag = 'smem constant byte address 0x4 - core index']
  #allocation1 [shape = 'u32[144,128]{1,0:T(1,128)}', space=vmem, size = 0x12000, scoped, tag = 'internal scratch']
  %s0 = inlined_call_operand.hbm [shape: f32[256,128], index: 0, kind: input, shape index: {}]
  %s1 = inlined_call_operand.hbm [shape: bf16[18,128,128], index: 1, kind: input, shape index: {}]
  %s2 = inlined_call_operand.hbm [shape: f32[18,128], index: 2, kind: input, shape index: {}]
  %s3 = inlined_call_operand.vmem [shape: f32[5,128], index: 3, kind: input, shape index: {}]
  %s4 = inlined_call_operand.hbm [shape: f32[5,128], index: 4, kind: input, shape index: {}]
  %s5 = inlined_call_operand.hbm [shape: f32[256,128], index: 5, kind: output, shape index: {}]
  %s6 = sld [smem:[#allocation0]]
  $region69: #{tpu_custom_call.1} parent=0
    _
  %s8 = ssub.s32 1, %s6
  %s9 = scalar_select 0, %s8, %s6
  $region1: #{tpu_custom_call.1} parent=0
    #allocation2 [shape = 'u8[131072]{0}', space=vmem, size = 0x20000, scoped, tag = 'input window, operand 0']
    #allocation3 [shape = 's32[2]{0}', space=sflag, size = 0x8, scoped, tag = 'scoped memory for tpu_custom_call.1']
    #allocation4 [shape = 's32[2]{0}', space=sflag, size = 0x8, scoped, tag = 'scoped memory for tpu_custom_call.1']
    #allocation5 [shape = 'u8[589824]{0}', space=vmem, size = 0x90000, scoped, tag = 'input window, operand 1, single buffered']
    #allocation6 [shape = 's32[1]{0}', space=sflag, size = 0x4, scoped, tag = 'scoped memory for tpu_custom_call.1']
    #allocation7 [shape = 'u8[12288]{0}', space=vmem, size = 0x3000, scoped, tag = 'input window, operand 2, single buffered']
    #allocation8 [shape = 'u8[4096]{0}', space=vmem, size = 0x1000, scoped, tag = 'input window, operand 4, single buffered']
    #allocation9 [shape = 's32[1]{0}', space=sflag, size = 0x4, scoped, tag = 'scoped memory for tpu_custom_call.1']
    #allocation10 [shape = 'u8[131072]{0}', space=vmem, size = 0x20000, scoped, tag = 'output window, operand 0']
    %10 = vsyncpa [#allocation3], 0
    %s11 = scalar_lea.sflag [#allocation3], 1
    %12 = vsyncpa %s11, 0
    %13 = vsyncpa [#allocation6], 0
    %14 = vsyncpa [#allocation9], 0
    %15 = vsyncpa [#allocation4], 0
    %s16 = scalar_lea.sflag [#allocation4], 1
    %17 = vsyncpa %s16, 0
    loop: start=0, step=1, limit=4
    $region2: #{tpu_custom_call.1} parent=1 // loop_pre_header
      _
    $region3: #{tpu_custom_call.1} parent=1 // loop_header
      %s19 = sphi 0, %s23
      %p20 = scmp.ge.s32.totalorder %s19, 4
      %s29 = sphi 0, %s31
      %s32 = sphi 0, %s29
      %s33 = sphi 0, %s32
      %s49 = sphi 0, %s33
      %s53 = sphi 0, %s53
      %s55 = sphi 0, %s53
      %s56 = sphi 0, %s55
      %s70 = sphi 0, %s56
      %s74 = sphi 0, %s74
      %s76 = sphi 0, %s74
      %s77 = sphi 0, %s76
      %s91 = sphi 0, %s77
      %s95 = sphi 0, %s95
      %s97 = sphi 0, %s95
      %s98 = sphi 0, %s97
      %s112 = sphi 0, %s98
      %s116 = sphi 0, %s116
      %s118 = sphi 0, %s116
      %s119 = sphi 0, %s118
      %s133 = sphi 0, %s119
      %s139 = sphi 0, %s141
      %s142 = sphi 0, %s139
      %s143 = sphi 0, %s142
      %s159 = sphi 0, %s143
    $region4: #{tpu_custom_call.1} parent=1 // loop_header_branch
      %22 = sbr.rel (%p20) target = $region8
    $region5: #{tpu_custom_call.1} parent=1 // loop_body
      %s24 = ssub.s32 %s19, 1
      %s25 = ssub.s32 %s19, 2
      %s26 = sadd.s32 %s19, 1
      %s27 = ssub.s32 %s19, %s26
      %p28 = scmp.eq.s32.totalorder %s27, 0
      %s30 = sadd.s32 %s29, 1
      %s31 = scalar_select %p28, %s29, %s30
      %p34 = pneg %p28
      %p35 = scmp.eq.s32.totalorder %s19, 1
      %p36 = por %p34, %p35
      %p37 = scmp.ne.s32.totalorder %s29, %s32
      %p38 = scmp.eq.s32.totalorder %s19, 0
      %p39 = por %p37, %p38
      %p40 = scmp.ne.s32.totalorder %s29, %s32
      %p41 = scmp.eq.s32.totalorder %s24, 1
      %p42 = por %p40, %p41
      %p43 = scmp.ne.s32.totalorder %s32, %s33
      %p44 = scmp.eq.s32.totalorder %s24, 0
      %p45 = por %p43, %p44
      %p46 = scmp.ne.s32.totalorder %s32, %s33
      %p47 = scmp.eq.s32.totalorder %s25, 1
      %p48 = por %p46, %p47
      %p50 = scmp.ne.s32.totalorder %s33, %s49
      %p51 = scmp.eq.s32.totalorder %s25, 0
      %p52 = por %p50, %p51
      %s54 = sadd.s32 %s53, 1
      %p57 = scmp.eq.s32.totalorder %s19, 1
      %p58 = scmp.ne.s32.totalorder %s53, %s55
      %p59 = scmp.eq.s32.totalorder %s19, 0
      %p60 = por %p58, %p59
      %p61 = scmp.ne.s32.totalorder %s53, %s55
      %p62 = scmp.eq.s32.totalorder %s24, 1
      %p63 = por %p61, %p62
      %p64 = scmp.ne.s32.totalorder %s55, %s56
      %p65 = scmp.eq.s32.totalorder %s24, 0
      %p66 = por %p64, %p65
      %p67 = scmp.ne.s32.totalorder %s55, %s56
      %p68 = scmp.eq.s32.totalorder %s25, 1
      %p69 = por %p67, %p68
      %p71 = scmp.ne.s32.totalorder %s56, %s70
      %p72 = scmp.eq.s32.totalorder %s25, 0
      %p73 = por %p71, %p72
      %s75 = sadd.s32 %s74, 1
      %p78 = scmp.eq.s32.totalorder %s19, 1
      %p79 = scmp.ne.s32.totalorder %s74, %s76
      %p80 = scmp.eq.s32.totalorder %s19, 0
      %p81 = por %p79, %p80
      %p82 = scmp.ne.s32.totalorder %s74, %s76
      %p83 = scmp.eq.s32.totalorder %s24, 1
      %p84 = por %p82, %p83
      %p85 = scmp.ne.s32.totalorder %s76, %s77
      %p86 = scmp.eq.s32.totalorder %s24, 0
      %p87 = por %p85, %p86
      %p88 = scmp.ne.s32.totalorder %s76, %s77
      %p89 = scmp.eq.s32.totalorder %s25, 1
      %p90 = por %p88, %p89
      %p92 = scmp.ne.s32.totalorder %s77, %s91
      %p93 = scmp.eq.s32.totalorder %s25, 0
      %p94 = por %p92, %p93
      %s96 = sadd.s32 %s95, 1
      %p99 = scmp.eq.s32.totalorder %s19, 1
      %p100 = scmp.ne.s32.totalorder %s95, %s97
      %p101 = scmp.eq.s32.totalorder %s19, 0
      %p102 = por %p100, %p101
      %p103 = scmp.ne.s32.totalorder %s95, %s97
      %p104 = scmp.eq.s32.totalorder %s24, 1
      %p105 = por %p103, %p104
      %p106 = scmp.ne.s32.totalorder %s97, %s98
      %p107 = scmp.eq.s32.totalorder %s24, 0
      %p108 = por %p106, %p107
      %p109 = scmp.ne.s32.totalorder %s97, %s98
      %p110 = scmp.eq.s32.totalorder %s25, 1
      %p111 = por %p109, %p110
      %p113 = scmp.ne.s32.totalorder %s98, %s112
      %p114 = scmp.eq.s32.totalorder %s25, 0
      %p115 = por %p113, %p114
      %s117 = sadd.s32 %s116, 1
      %p120 = scmp.eq.s32.totalorder %s19, 1
      %p121 = scmp.ne.s32.totalorder %s116, %s118
      %p122 = scmp.eq.s32.totalorder %s19, 0
      %p123 = por %p121, %p122
      %p124 = scmp.ne.s32.totalorder %s116, %s118
      %p125 = scmp.eq.s32.totalorder %s24, 1
      %p126 = por %p124, %p125
      %p127 = scmp.ne.s32.totalorder %s118, %s119
      %p128 = scmp.eq.s32.totalorder %s24, 0
      %p129 = por %p127, %p128
      %p130 = scmp.ne.s32.totalorder %s118, %s119
      %p131 = scmp.eq.s32.totalorder %s25, 1
      %p132 = por %p130, %p131
      %p134 = scmp.ne.s32.totalorder %s119, %s133
      %p135 = scmp.eq.s32.totalorder %s25, 0
      %p136 = por %p134, %p135
      %s137 = ssub.s32 %s19, %s26
      %p138 = scmp.eq.s32.totalorder %s137, 0
      %s140 = sadd.s32 %s139, 1
      %s141 = scalar_select %p138, %s139, %s140
      %p144 = pneg %p138
      %p145 = scmp.eq.s32.totalorder %s19, 1
      %p146 = por %p144, %p145
      %p147 = scmp.ne.s32.totalorder %s139, %s142
      %p148 = scmp.eq.s32.totalorder %s19, 0
      %p149 = por %p147, %p148
      %p150 = scmp.ne.s32.totalorder %s139, %s142
      %p151 = scmp.eq.s32.totalorder %s24, 1
      %p152 = por %p150, %p151
      %p153 = scmp.ne.s32.totalorder %s142, %s143
      %p154 = scmp.eq.s32.totalorder %s24, 0
      %p155 = por %p153, %p154
      %p156 = scmp.ne.s32.totalorder %s142, %s143
      %p157 = scmp.eq.s32.totalorder %s25, 1
      %p158 = por %p156, %p157
      %p160 = scmp.ne.s32.totalorder %s143, %s159
      %p161 = scmp.eq.s32.totalorder %s25, 0
      %p162 = por %p160, %p161
      %p163 = scmp.le.s32.totalorder 1, %s19
      %p164 = scmp.lt.s32.totalorder %s19, 3
      %p165 = pnand %p163, %p164
      %p166 = pneg %p165
      // Predicated region
      $region9: #{tpu_custom_call.1} parent=5 // pred_check
        _
      $region10: #{tpu_custom_call.1} parent=5 // pred_check_branch
        %168 = sbr.rel (%p165) target = $region12
      $region11: #{tpu_custom_call.1} parent=5 // pred_region
        %s169 = ssub.s32 %s19, 1
        // Predicated region
        $region13: #{tpu_custom_call.1} parent=11 // pred_check
          %p170 = pneg %p66
        $region14: #{tpu_custom_call.1} parent=11 // pred_check_branch
          %172 = sbr.rel (%p170) target = $region16
        $region15: #{tpu_custom_call.1} parent=11 // pred_region
          %s174 = ssub.s32 18432, 18432
          %175 = vsyncadd [#allocation6], %s174
          %s176 = sshll.u32 [#allocation5], 4
          %s177 = int_to_ptr.vmem [resolvable:$true] %s176
          %182 = dma.hbm_to_vmem [thread:$0]  %s1, 18432, %s177, [#allocation6], 64, 64, 4
        $region16: #{tpu_custom_call.1} parent=11 // pred_fallthru
          _
        // Predicated region
        $region17: #{tpu_custom_call.1} parent=11 // pred_check
          %p183 = pneg %p87
        $region18: #{tpu_custom_call.1} parent=11 // pred_check_branch
          %185 = sbr.rel (%p183) target = $region20
        $region19: #{tpu_custom_call.1} parent=11 // pred_region
          %s187 = ssub.s32 384, 384
          %188 = vsyncadd [#allocation6], %s187
          %s189 = sshll.u32 [#allocation7], 4
          %s190 = int_to_ptr.vmem [resolvable:$true] %s189
          %195 = dma.hbm_to_vmem [thread:$0]  %s2, 384, %s190, [#allocation6], 128, 128, 8
        $region20: #{tpu_custom_call.1} parent=11 // pred_fallthru
          _
        // Predicated region
        $region21: #{tpu_custom_call.1} parent=11 // pred_check
          %p196 = pneg %p108
        $region22: #{tpu_custom_call.1} parent=11 // pred_check_branch
          %198 = sbr.rel (%p196) target = $region24
        $region23: #{tpu_custom_call.1} parent=11 // pred_region
          _
        $region24: #{tpu_custom_call.1} parent=11 // pred_fallthru
          _
        // Predicated region
        $region25: #{tpu_custom_call.1} parent=11 // pred_check
          %p199 = pneg %p129
        $region26: #{tpu_custom_call.1} parent=11 // pred_check_branch
          %201 = sbr.rel (%p199) target = $region28
        $region27: #{tpu_custom_call.1} parent=11 // pred_region
          %s203 = ssub.s32 128, 128
          %204 = vsyncadd [#allocation9], %s203
          %s206 = sshll.u32 [#allocation8], 4
          %s207 = int_to_ptr.vmem [resolvable:$true] %s206
          %209 = dma.hbm_to_vmem [thread:$0]  %s4, 128, %s207, [#allocation9]
        $region28: #{tpu_custom_call.1} parent=11 // pred_fallthru
          _
      $region12: #{tpu_custom_call.1} parent=5 // pred_fallthru
        _
      %p210 = scmp.lt.s32.totalorder %s19, 2
      // Predicated region
      $region29: #{tpu_custom_call.1} parent=5 // pred_check
        %p211 = pneg %p210
      $region30: #{tpu_custom_call.1} parent=5 // pred_check_branch
        %213 = sbr.rel (%p211) target = $region32
      $region31: #{tpu_custom_call.1} parent=5 // pred_region
        // Predicated region
        $region33: #{tpu_custom_call.1} parent=31 // pred_check
          %p214 = pneg %p39
        $region34: #{tpu_custom_call.1} parent=31 // pred_check_branch
          %216 = sbr.rel (%p214) target = $region36
        $region35: #{tpu_custom_call.1} parent=31 // pred_region
          %s217 = sand.u32 %s29, 1
          %s218 = scalar_lea.sflag [#allocation3], %s217
          %s219 = sand.u32 %s29, 1
          %s220 = smul.addr %s219, 128
          %s221 = scalar_lea.vmem [#allocation2], %s220
          %s222 = smul.u32 16, %s19
          %s224 = ssub.s32 2048, 2048
          %225 = vsyncadd %s218, %s224
          %s226 = smul.addr %s222, 128
          %s227 = scalar_lea.hbm %s0, %s226
          %s228 = sshll.u32 %s221, 4
          %s229 = int_to_ptr.vmem [resolvable:$true] %s228
          %234 = dma.hbm_to_vmem [thread:$0]  %s227, 2048, %s229, %s218, 128, 128, 8
        $region36: #{tpu_custom_call.1} parent=31 // pred_fallthru
          _
      $region32: #{tpu_custom_call.1} parent=5 // pred_fallthru
        _
      %p235 = scmp.le.s32.totalorder 1, %s19
      %p236 = scmp.lt.s32.totalorder %s19, 3
      %p237 = pnand %p235, %p236
      %p238 = pneg %p237
      // Predicated region
      $region37: #{tpu_custom_call.1} parent=5 // pred_check
        _
      $region38: #{tpu_custom_call.1} parent=5 // pred_check_branch
        %240 = sbr.rel (%p237) target = $region40
      $region39: #{tpu_custom_call.1} parent=5 // pred_region
        %s241 = ssub.s32 %s19, 1
        %s242 = sand.u32 %s32, 1
        %s243 = scalar_lea.sflag [#allocation3], %s242
        %s244 = sand.u32 %s32, 1
        %s245 = smul.addr %s244, 128
        %s246 = scalar_lea.vmem [#allocation2], %s245
        // Predicated region
        $region41: #{tpu_custom_call.1} parent=39 // pred_check
          %p247 = pneg %p45
        $region42: #{tpu_custom_call.1} parent=39 // pred_check_branch
          %249 = sbr.rel (%p247) target = $region44
        $region43: #{tpu_custom_call.1} parent=39 // pred_region
          %250 = dma.done %s243, 2048
        $region44: #{tpu_custom_call.1} parent=39 // pred_fallthru
          _
        // Predicated region
        $region45: #{tpu_custom_call.1} parent=39 // pred_check
          %p251 = pneg %p66
        $region46: #{tpu_custom_call.1} parent=39 // pred_check_branch
          %253 = sbr.rel (%p251) target = $region48
        $region47: #{tpu_custom_call.1} parent=39 // pred_region
          %254 = dma.done [#allocation6], 18432
        $region48: #{tpu_custom_call.1} parent=39 // pred_fallthru
          _
        // Predicated region
        $region49: #{tpu_custom_call.1} parent=39 // pred_check
          %p255 = pneg %p87
        $region50: #{tpu_custom_call.1} parent=39 // pred_check_branch
          %257 = sbr.rel (%p255) target = $region52
        $region51: #{tpu_custom_call.1} parent=39 // pred_region
          %258 = dma.done [#allocation6], 384
        $region52: #{tpu_custom_call.1} parent=39 // pred_fallthru
          _
        // Predicated region
        $region53: #{tpu_custom_call.1} parent=39 // pred_check
          %p259 = pneg %p129
        $region54: #{tpu_custom_call.1} parent=39 // pred_check_branch
          %261 = sbr.rel (%p259) target = $region56
        $region55: #{tpu_custom_call.1} parent=39 // pred_region
          %262 = dma.done [#allocation9], 128
        $region56: #{tpu_custom_call.1} parent=39 // pred_fallthru
          _
        %s263 = sand.u32 %s32, 1
        %s264 = scalar_lea.sflag [#allocation3], %s263
        %s265 = sand.u32 %s32, 1
        %s266 = smul.addr %s265, 128
        %s267 = scalar_lea.vmem [#allocation2], %s266
        %p268 = pneg %p45
        %p269 = pneg %p42
        %p270 = pneg %p66
        %p271 = pneg %p63
        %p272 = pneg %p87
        %p273 = pneg %p84
        %p274 = pneg %p108
        %p275 = pneg %p105
        %p276 = pneg %p129
        %p277 = pneg %p126
        %p278 = pneg %p155
        %p279 = pneg %p152
        %s280 = sand.u32 %s142, 1
        %s281 = scalar_lea.sflag [#allocation4], %s280
        %s282 = sand.u32 %s142, 1
        %s283 = smul.addr %s282, 128
        %s284 = scalar_lea.vmem [#allocation10], %s283
        %s285 = smul.u32 16, %s24
        %s286 = smul.u32 16, %s24
        %v288 = vld [vmem:[%s246] sm:$0xff]
        %v289 = vld [vmem:[%s246 + $0x8] sm:$0xff]
        %v290 = vld [vmem:[%s246 + $0x10] sm:$0xff]
        %v291 = vld [vmem:[%s246 + $0x18] sm:$0xff]
        %v292 = vld [vmem:[%s246 + $0x20] sm:$0xff]
        %v293 = vld [vmem:[%s246 + $0x28] sm:$0xff]
        %v294 = vld [vmem:[%s246 + $0x30] sm:$0xff]
        %v295 = vld [vmem:[%s246 + $0x38] sm:$0xff]
        %v296 = vld [vmem:[%s246 + $0x40] sm:$0xff]
        %v297 = vld [vmem:[%s246 + $0x48] sm:$0xff]
        %v298 = vld [vmem:[%s246 + $0x50] sm:$0xff]
        %v299 = vld [vmem:[%s246 + $0x58] sm:$0xff]
        %v300 = vld [vmem:[%s246 + $0x60] sm:$0xff]
        %v301 = vld [vmem:[%s246 + $0x68] sm:$0xff]
        %v302 = vld [vmem:[%s246 + $0x70] sm:$0xff]
        %v303 = vld [vmem:[%s246 + $0x78] sm:$0xff]
        %v304 = vpack.c.bf16 %v289, %v288
        %v305 = vpack.c.bf16 %v291, %v290
        %v306 = vpack.c.bf16 %v293, %v292
        %v307 = vpack.c.bf16 %v295, %v294
        %v308 = vpack.c.bf16 %v297, %v296
        %v309 = vpack.c.bf16 %v299, %v298
        %v310 = vpack.c.bf16 %v301, %v300
        %v311 = vpack.c.bf16 %v303, %v302
        %v312 = vld [vmem:[#allocation5] sm:$0xf]
        %v313 = vld [vmem:[#allocation5 + $0x4] sm:$0xf]
        %v314 = vld [vmem:[#allocation5 + $0x8] sm:$0xf]
        %v315 = vld [vmem:[#allocation5 + $0xc] sm:$0xf]
        %v316 = vld [vmem:[#allocation5 + $0x10] sm:$0xf]
        %v317 = vld [vmem:[#allocation5 + $0x14] sm:$0xf]
        %v318 = vld [vmem:[#allocation5 + $0x18] sm:$0xf]
        %v319 = vld [vmem:[#allocation5 + $0x1c] sm:$0xf]
        %v320 = vld [vmem:[#allocation5 + $0x20] sm:$0xf]
        %v321 = vld [vmem:[#allocation5 + $0x24] sm:$0xf]
        %v322 = vld [vmem:[#allocation5 + $0x28] sm:$0xf]
        %v323 = vld [vmem:[#allocation5 + $0x2c] sm:$0xf]
        %v324 = vld [vmem:[#allocation5 + $0x30] sm:$0xf]
        %v325 = vld [vmem:[#allocation5 + $0x34] sm:$0xf]
        %v326 = vld [vmem:[#allocation5 + $0x38] sm:$0xf]
        %v327 = vld [vmem:[#allocation5 + $0x3c] sm:$0xf]
        %v328 = vld [vmem:[#allocation7] sm:$0x1]
        %v329 = vlaneseq
        %v330 = vshrl.u32 %v329, 7
        %v331 = vsub.s32 0, %v330
        %v332 = vrot.slane %v328, %v331
        %v349 = vunpack.c.l.b16 %v312
        %v350 = vunpack.c.l.b16 %v313
        %v351 = vunpack.c.l.b16 %v314
        %v352 = vunpack.c.l.b16 %v315
        %v353 = vunpack.c.l.b16 %v316
        %v354 = vunpack.c.l.b16 %v317
        %v355 = vunpack.c.l.b16 %v318
        %v356 = vunpack.c.l.b16 %v319
        %v357 = vunpack.c.l.b16 %v320
        %v358 = vunpack.c.l.b16 %v321
        %v359 = vunpack.c.l.b16 %v322
        %v360 = vunpack.c.l.b16 %v323
        %v361 = vunpack.c.l.b16 %v324
        %v362 = vunpack.c.l.b16 %v325
        %v363 = vunpack.c.l.b16 %v326
        %v364 = vunpack.c.l.b16 %v327
        %v365 = vpack.c.b16 %v350, %v349
        %v366 = vpack.c.b16 %v352, %v351
        %v367 = vpack.c.b16 %v354, %v353
        %v368 = vpack.c.b16 %v356, %v355
        %v369 = vpack.c.b16 %v358, %v357
        %v370 = vpack.c.b16 %v360, %v359
        %v371 = vpack.c.b16 %v362, %v361
        %v372 = vpack.c.b16 %v364, %v363
        %381 = vmatprep.subr.bf16.mxu0 0
        %382 = vmatpush1.bf16.msra.mxu0 %v365
        %383 = vmatprep.subr.bf16.mxu0 0
        %384 = vmatpush1.bf16.msra.mxu0 %v366
        %385 = vmatprep.subr.bf16.mxu0 0
        %386 = vmatpush1.bf16.msra.mxu0 %v367
        %387 = vmatprep.subr.bf16.mxu0 0
        %388 = vmatpush1.bf16.msra.mxu0 %v368
        %389 = vmatprep.subr.bf16.mxu0 0
        %390 = vmatpush1.bf16.msra.mxu0 %v369
        %391 = vmatprep.subr.bf16.mxu0 0
        %392 = vmatpush1.bf16.msra.mxu0 %v370
        %393 = vmatprep.subr.bf16.mxu0 0
        %394 = vmatpush1.bf16.msra.mxu0 %v371
        %395 = vmatprep.subr.bf16.mxu0 0
        %396 = vmatpush1.bf16.msra.mxu0 %v372
        %397 = vmatprep.subr.bf16.mxu0 0
        %398 = vmatpush1.bf16.msra.mxu0 0
        %399 = vmatprep.subr.bf16.mxu0 0
        %400 = vmatpush1.bf16.msra.mxu0 0
        %401 = vmatprep.subr.bf16.mxu0 0
        %402 = vmatpush1.bf16.msra.mxu0 0
        %403 = vmatprep.subr.bf16.mxu0 0
        %404 = vmatpush1.bf16.msra.mxu0 0
        %405 = vmatprep.subr.bf16.mxu0 0
        %406 = vmatpush1.bf16.msra.mxu0 0
        %407 = vmatprep.subr.bf16.mxu0 0
        %408 = vmatpush1.bf16.msra.mxu0 0
        %409 = vmatprep.subr.bf16.mxu0 0
        %410 = vmatpush1.bf16.msra.mxu0 0
        %411 = vmatprep.subr.bf16.mxu0 0
        %412 = vmatpush1.bf16.msra.mxu0 0
        %413 = vmatprep.mubr.bf16.mxu0 0
        %414 = vmatmul.mubr.bf16.gmra.mrb[0].mxu0 %v304
        %v415 = vpop.f32.mrb[0].mxu0
        %v416 = vadd.f32 %v332, %v415
        %v417 = vpop.f32.mrb[0].mxu0
        %v418 = vpop.f32.mrb[0].mxu0
        %v419 = vadd.f32 %v332, %v418
        %v420 = vpop.f32.mrb[0].mxu0
        %421 = vmatprep.mubr.bf16.mxu0 0
        %422 = vmatmul.mubr.bf16.gmra.mrb[0].mxu0 %v305
        %v423 = vpop.f32.mrb[0].mxu0
        %v424 = vadd.f32 %v332, %v423
        %v425 = vpop.f32.mrb[0].mxu0
        %v426 = vpop.f32.mrb[0].mxu0
        %v427 = vadd.f32 %v332, %v426
        %v428 = vpop.f32.mrb[0].mxu0
        %429 = vmatprep.mubr.bf16.mxu0 0
        %430 = vmatmul.mubr.bf16.gmra.mrb[0].mxu0 %v306
        %v431 = vpop.f32.mrb[0].mxu0
        %v432 = vadd.f32 %v332, %v431
        %v433 = vpop.f32.mrb[0].mxu0
        %v434 = vpop.f32.mrb[0].mxu0
        %v435 = vadd.f32 %v332, %v434
        %v436 = vpop.f32.mrb[0].mxu0
        %437 = vmatprep.mubr.bf16.mxu0 0
        %438 = vmatmul.mubr.bf16.gmra.mrb[0].mxu0 %v307
        %v439 = vpop.f32.mrb[0].mxu0
        %v440 = vadd.f32 %v332, %v439
        %v441 = vpop.f32.mrb[0].mxu0
        %v442 = vpop.f32.mrb[0].mxu0
        %v443 = vadd.f32 %v332, %v442
        %v444 = vpop.f32.mrb[0].mxu0
        %445 = vmatprep.mubr.bf16.mxu0 0
        %446 = vmatmul.mubr.bf16.gmra.mrb[0].mxu0 %v308
        %v447 = vpop.f32.mrb[0].mxu0
        %v448 = vadd.f32 %v332, %v447
        %v449 = vpop.f32.mrb[0].mxu0
        %v450 = vpop.f32.mrb[0].mxu0
        %v451 = vadd.f32 %v332, %v450
        %v452 = vpop.f32.mrb[0].mxu0
        %453 = vmatprep.mubr.bf16.mxu0 0
        %454 = vmatmul.mubr.bf16.gmra.mrb[0].mxu0 %v309
        %v455 = vpop.f32.mrb[0].mxu0
        %v456 = vadd.f32 %v332, %v455
        %v457 = vpop.f32.mrb[0].mxu0
        %v458 = vpop.f32.mrb[0].mxu0
        %v459 = vadd.f32 %v332, %v458
        %v460 = vpop.f32.mrb[0].mxu0
        %461 = vmatprep.mubr.bf16.mxu0 0
        %462 = vmatmul.mubr.bf16.gmra.mrb[0].mxu0 %v310
        %v463 = vpop.f32.mrb[0].mxu0
        %v464 = vadd.f32 %v332, %v463
        %v465 = vpop.f32.mrb[0].mxu0
        %v466 = vpop.f32.mrb[0].mxu0
        %v467 = vadd.f32 %v332, %v466
        %v468 = vpop.f32.mrb[0].mxu0
        %469 = vmatprep.mubr.bf16.mxu0 0
        %470 = vmatmul.mubr.bf16.gmra.mrb[0].mxu0 %v311
        %v471 = vpop.f32.mrb[0].mxu0
        %v472 = vadd.f32 %v332, %v471
        %v473 = vpop.f32.mrb[0].mxu0
        %v474 = vpop.f32.mrb[0].mxu0
        %v475 = vadd.f32 %v332, %v474
        %v476 = vpop.f32.mrb[0].mxu0
        %477 = vdwg.mxu0
        %v478 = vmax.f32 %v416, 0.0
        %v479 = vmax.f32 %v419, 0.0
        %v480 = vmax.f32 %v424, 0.0
        %v481 = vmax.f32 %v427, 0.0
        %v482 = vmax.f32 %v432, 0.0
        %v483 = vmax.f32 %v435, 0.0
        %v484 = vmax.f32 %v440, 0.0
        %v485 = vmax.f32 %v443, 0.0
        %v486 = vmax.f32 %v448, 0.0
        %v487 = vmax.f32 %v451, 0.0
        %v488 = vmax.f32 %v456, 0.0
        %v489 = vmax.f32 %v459, 0.0
        %v490 = vmax.f32 %v464, 0.0
        %v491 = vmax.f32 %v467, 0.0
        %v492 = vmax.f32 %v472, 0.0
        %v493 = vmax.f32 %v475, 0.0
        %v494 = vpack.c.bf16 %v479, %v478
        %v495 = vpack.c.bf16 %v481, %v480
        %v496 = vpack.c.bf16 %v483, %v482
        %v497 = vpack.c.bf16 %v485, %v484
        %v498 = vpack.c.bf16 %v487, %v486
        %v499 = vpack.c.bf16 %v489, %v488
        %v500 = vpack.c.bf16 %v491, %v490
        %v501 = vpack.c.bf16 %v493, %v492
        %s502 = scalar_lea.vmem [#allocation5], 64
        %v503 = vld [vmem:[%s502] sm:$0xf]
        %v504 = vld [vmem:[%s502 + $0x4] sm:$0xf]
        %v505 = vld [vmem:[%s502 + $0x8] sm:$0xf]
        %v506 = vld [vmem:[%s502 + $0xc] sm:$0xf]
        %v507 = vld [vmem:[%s502 + $0x10] sm:$0xf]
        %v508 = vld [vmem:[%s502 + $0x14] sm:$0xf]
        %v509 = vld [vmem:[%s502 + $0x18] sm:$0xf]
        %v510 = vld [vmem:[%s502 + $0x1c] sm:$0xf]
        %v511 = vld [vmem:[%s502 + $0x20] sm:$0xf]
        %v512 = vld [vmem:[%s502 + $0x24] sm:$0xf]
        %v513 = vld [vmem:[%s502 + $0x28] sm:$0xf]
        %v514 = vld [vmem:[%s502 + $0x2c] sm:$0xf]
        %v515 = vld [vmem:[%s502 + $0x30] sm:$0xf]
        %v516 = vld [vmem:[%s502 + $0x34] sm:$0xf]
        %v517 = vld [vmem:[%s502 + $0x38] sm:$0xf]
        %v518 = vld [vmem:[%s502 + $0x3c] sm:$0xf]
        %v519 = vld [vmem:[#allocation7 + $0x1] sm:$0x1]
        %v520 = vlaneseq
        %v521 = vshrl.u32 %v520, 7
        %v522 = vsub.s32 0, %v521
        %v523 = vrot.slane %v519, %v522
        %v540 = vunpack.c.l.b16 %v503
        %v541 = vunpack.c.l.b16 %v504
        %v542 = vunpack.c.l.b16 %v505
        %v543 = vunpack.c.l.b16 %v506
        %v544 = vunpack.c.l.b16 %v507
        %v545 = vunpack.c.l.b16 %v508
        %v546 = vunpack.c.l.b16 %v509
        %v547 = vunpack.c.l.b16 %v510
        %v548 = vunpack.c.l.b16 %v511
        %v549 = vunpack.c.l.b16 %v512
        %v550 = vunpack.c.l.b16 %v513
        %v551 = vunpack.c.l.b16 %v514
        %v552 = vunpack.c.l.b16 %v515
        %v553 = vunpack.c.l.b16 %v516
        %v554 = vunpack.c.l.b16 %v517
        %v555 = vunpack.c.l.b16 %v518
        %v556 = vpack.c.b16 %v541, %v540
        %v557 = vpack.c.b16 %v543, %v542
        %v558 = vpack.c.b16 %v545, %v544
        %v559 = vpack.c.b16 %v547, %v546
        %v560 = vpack.c.b16 %v549, %v548
        %v561 = vpack.c.b16 %v551, %v550
        %v562 = vpack.c.b16 %v553, %v552
        %v563 = vpack.c.b16 %v555, %v554
        %572 = vmatprep.subr.bf16.mxu0 0
        %573 = vmatpush1.bf16.msra.mxu0 %v556
        %574 = vmatprep.subr.bf16.mxu0 0
        %575 = vmatpush1.bf16.msra.mxu0 %v557
        %576 = vmatprep.subr.bf16.mxu0 0
        %577 = vmatpush1.bf16.msra.mxu0 %v558
        %578 = vmatprep.subr.bf16.mxu0 0
        %579 = vmatpush1.bf16.msra.mxu0 %v559
        %580 = vmatprep.subr.bf16.mxu0 0
        %581 = vmatpush1.bf16.msra.mxu0 %v560
        %582 = vmatprep.subr.bf16.mxu0 0
        %583 = vmatpush1.bf16.msra.mxu0 %v561
        %584 = vmatprep.subr.bf16.mxu0 0
        %585 = vmatpush1.bf16.msra.mxu0 %v562
        %586 = vmatprep.subr.bf16.mxu0 0
        %587 = vmatpush1.bf16.msra.mxu0 %v563
        %588 = vmatprep.subr.bf16.mxu0 0
        %589 = vmatpush1.bf16.msra.mxu0 0
        %590 = vmatprep.subr.bf16.mxu0 0
        %591 = vmatpush1.bf16.msra.mxu0 0
        %592 = vmatprep.subr.bf16.mxu0 0
        %593 = vmatpush1.bf16.msra.mxu0 0
        %594 = vmatprep.subr.bf16.mxu0 0
        %595 = vmatpush1.bf16.msra.mxu0 0
        %596 = vmatprep.subr.bf16.mxu0 0
        %597 = vmatpush1.bf16.msra.mxu0 0
        %598 = vmatprep.subr.bf16.mxu0 0
        %599 = vmatpush1.bf16.msra.mxu0 0
        %600 = vmatprep.subr.bf16.mxu0 0
        %601 = vmatpush1.bf16.msra.mxu0 0
        %602 = vmatprep.subr.bf16.mxu0 0
        %603 = vmatpush1.bf16.msra.mxu0 0
        %604 = vmatprep.mubr.bf16.mxu0 0
        %605 = vmatmul.mubr.bf16.gmra.mrb[0].mxu0 %v494
        %v606 = vpop.f32.mrb[0].mxu0
        %v607 = vadd.f32 %v523, %v606
        %v608 = vpop.f32.mrb[0].mxu0
        %v609 = vpop.f32.mrb[0].mxu0
        %v610 = vadd.f32 %v523, %v609
        %v611 = vpop.f32.mrb[0].mxu0
        %612 = vmatprep.mubr.bf16.mxu0 0
        %613 = vmatmul.mubr.bf16.gmra.mrb[0].mxu0 %v495
        %v614 = vpop.f32.mrb[0].mxu0
        %v615 = vadd.f32 %v523, %v614
        %v616 = vpop.f32.mrb[0].mxu0
        %v617 = vpop.f32.mrb[0].mxu0
        %v618 = vadd.f32 %v523, %v617
        %v619 = vpop.f32.mrb[0].mxu0
        %620 = vmatprep.mubr.bf16.mxu0 0
        %621 = vmatmul.mubr.bf16.gmra.mrb[0].mxu0 %v496
        %v622 = vpop.f32.mrb[0].mxu0
        %v623 = vadd.f32 %v523, %v622
        %v624 = vpop.f32.mrb[0].mxu0
        %v625 = vpop.f32.mrb[0].mxu0
        %v626 = vadd.f32 %v523, %v625
        %v627 = vpop.f32.mrb[0].mxu0
        %628 = vmatprep.mubr.bf16.mxu0 0
        %629 = vmatmul.mubr.bf16.gmra.mrb[0].mxu0 %v497
        %v630 = vpop.f32.mrb[0].mxu0
        %v631 = vadd.f32 %v523, %v630
        %v632 = vpop.f32.mrb[0].mxu0
        %v633 = vpop.f32.mrb[0].mxu0
        %v634 = vadd.f32 %v523, %v633
        %v635 = vpop.f32.mrb[0].mxu0
        %636 = vmatprep.mubr.bf16.mxu0 0
        %637 = vmatmul.mubr.bf16.gmra.mrb[0].mxu0 %v498
        %v638 = vpop.f32.mrb[0].mxu0
        %v639 = vadd.f32 %v523, %v638
        %v640 = vpop.f32.mrb[0].mxu0
        %v641 = vpop.f32.mrb[0].mxu0
        %v642 = vadd.f32 %v523, %v641
        %v643 = vpop.f32.mrb[0].mxu0
        %644 = vmatprep.mubr.bf16.mxu0 0
        %645 = vmatmul.mubr.bf16.gmra.mrb[0].mxu0 %v499
        %v646 = vpop.f32.mrb[0].mxu0
        %v647 = vadd.f32 %v523, %v646
        %v648 = vpop.f32.mrb[0].mxu0
        %v649 = vpop.f32.mrb[0].mxu0
        %v650 = vadd.f32 %v523, %v649
        %v651 = vpop.f32.mrb[0].mxu0
        %652 = vmatprep.mubr.bf16.mxu0 0
        %653 = vmatmul.mubr.bf16.gmra.mrb[0].mxu0 %v500
        %v654 = vpop.f32.mrb[0].mxu0
        %v655 = vadd.f32 %v523, %v654
        %v656 = vpop.f32.mrb[0].mxu0
        %v657 = vpop.f32.mrb[0].mxu0
        %v658 = vadd.f32 %v523, %v657
        %v659 = vpop.f32.mrb[0].mxu0
        %660 = vmatprep.mubr.bf16.mxu0 0
        %661 = vmatmul.mubr.bf16.gmra.mrb[0].mxu0 %v501
        %v662 = vpop.f32.mrb[0].mxu0
        %v663 = vadd.f32 %v523, %v662
        %v664 = vpop.f32.mrb[0].mxu0
        %v665 = vpop.f32.mrb[0].mxu0
        %v666 = vadd.f32 %v523, %v665
        %v667 = vpop.f32.mrb[0].mxu0
        %668 = vdwg.mxu0
        %v669 = vmax.f32 %v607, 0.0
        %v670 = vmax.f32 %v610, 0.0
        %v671 = vmax.f32 %v615, 0.0
        %v672 = vmax.f32 %v618, 0.0
        %v673 = vmax.f32 %v623, 0.0
        %v674 = vmax.f32 %v626, 0.0
        %v675 = vmax.f32 %v631, 0.0
        %v676 = vmax.f32 %v634, 0.0
        %v677 = vmax.f32 %v639, 0.0
        %v678 = vmax.f32 %v642, 0.0
        %v679 = vmax.f32 %v647, 0.0
        %v680 = vmax.f32 %v650, 0.0
        %v681 = vmax.f32 %v655, 0.0
        %v682 = vmax.f32 %v658, 0.0
        %v683 = vmax.f32 %v663, 0.0
        %v684 = vmax.f32 %v666, 0.0
        %v685 = vpack.c.bf16 %v670, %v669
        %v686 = vpack.c.bf16 %v672, %v671
        %v687 = vpack.c.bf16 %v674, %v673
        %v688 = vpack.c.bf16 %v676, %v675
        %v689 = vpack.c.bf16 %v678, %v677
        %v690 = vpack.c.bf16 %v680, %v679
        %v691 = vpack.c.bf16 %v682, %v681
        %v692 = vpack.c.bf16 %v684, %v683
        %s693 = scalar_lea.vmem [#allocation5], 128
        %v694 = vld [vmem:[%s693] sm:$0xf]
        %v695 = vld [vmem:[%s693 + $0x4] sm:$0xf]
        %v696 = vld [vmem:[%s693 + $0x8] sm:$0xf]
        %v697 = vld [vmem:[%s693 + $0xc] sm:$0xf]
        %v698 = vld [vmem:[%s693 + $0x10] sm:$0xf]
        %v699 = vld [vmem:[%s693 + $0x14] sm:$0xf]
        %v700 = vld [vmem:[%s693 + $0x18] sm:$0xf]
        %v701 = vld [vmem:[%s693 + $0x1c] sm:$0xf]
        %v702 = vld [vmem:[%s693 + $0x20] sm:$0xf]
        %v703 = vld [vmem:[%s693 + $0x24] sm:$0xf]
        %v704 = vld [vmem:[%s693 + $0x28] sm:$0xf]
        %v705 = vld [vmem:[%s693 + $0x2c] sm:$0xf]
        %v706 = vld [vmem:[%s693 + $0x30] sm:$0xf]
        %v707 = vld [vmem:[%s693 + $0x34] sm:$0xf]
        %v708 = vld [vmem:[%s693 + $0x38] sm:$0xf]
        %v709 = vld [vmem:[%s693 + $0x3c] sm:$0xf]
        %v710 = vld [vmem:[#allocation7 + $0x2] sm:$0x1]
        %v711 = vlaneseq
        %v712 = vshrl.u32 %v711, 7
        %v713 = vsub.s32 0, %v712
        %v714 = vrot.slane %v710, %v713
        %v731 = vunpack.c.l.b16 %v694
        %v732 = vunpack.c.l.b16 %v695
        %v733 = vunpack.c.l.b16 %v696
        %v734 = vunpack.c.l.b16 %v697
        %v735 = vunpack.c.l.b16 %v698
        %v736 = vunpack.c.l.b16 %v699
        %v737 = vunpack.c.l.b16 %v700
        %v738 = vunpack.c.l.b16 %v701
        %v739 = vunpack.c.l.b16 %v702
        %v740 = vunpack.c.l.b16 %v703
        %v741 = vunpack.c.l.b16 %v704
        %v742 = vunpack.c.l.b16 %v705
        %v743 = vunpack.c.l.b16 %v706
        %v744 = vunpack.c.l.b16 %v707
        %v745 = vunpack.c.l.b16 %v708
        %v746 = vunpack.c.l.b16 %v709
        %v747 = vpack.c.b16 %v732, %v731
        %v748 = vpack.c.b16 %v734, %v733
        %v749 = vpack.c.b16 %v736, %v735
        %v750 = vpack.c.b16 %v738, %v737
        %v751 = vpack.c.b16 %v740, %v739
        %v752 = vpack.c.b16 %v742, %v741
        %v753 = vpack.c.b16 %v744, %v743
        %v754 = vpack.c.b16 %v746, %v745
        %763 = vmatprep.subr.bf16.mxu0 0
        %764 = vmatpush1.bf16.msra.mxu0 %v747
        %765 = vmatprep.subr.bf16.mxu0 0
        %766 = vmatpush1.bf16.msra.mxu0 %v748
        %767 = vmatprep.subr.bf16.mxu0 0
        %768 = vmatpush1.bf16.msra.mxu0 %v749
        %769 = vmatprep.subr.bf16.mxu0 0
        %770 = vmatpush1.bf16.msra.mxu0 %v750
        %771 = vmatprep.subr.bf16.mxu0 0
        %772 = vmatpush1.bf16.msra.mxu0 %v751
        %773 = vmatprep.subr.bf16.mxu0 0
        %774 = vmatpush1.bf16.msra.mxu0 %v752
        %775 = vmatprep.subr.bf16.mxu0 0
        %776 = vmatpush1.bf16.msra.mxu0 %v753
        %777 = vmatprep.subr.bf16.mxu0 0
        %778 = vmatpush1.bf16.msra.mxu0 %v754
        %779 = vmatprep.subr.bf16.mxu0 0
        %780 = vmatpush1.bf16.msra.mxu0 0
        %781 = vmatprep.subr.bf16.mxu0 0
        %782 = vmatpush1.bf16.msra.mxu0 0
        %783 = vmatprep.subr.bf16.mxu0 0
        %784 = vmatpush1.bf16.msra.mxu0 0
        %785 = vmatprep.subr.bf16.mxu0 0
        %786 = vmatpush1.bf16.msra.mxu0 0
        %787 = vmatprep.subr.bf16.mxu0 0
        %788 = vmatpush1.bf16.msra.mxu0 0
        %789 = vmatprep.subr.bf16.mxu0 0
        %790 = vmatpush1.bf16.msra.mxu0 0
        %791 = vmatprep.subr.bf16.mxu0 0
        %792 = vmatpush1.bf16.msra.mxu0 0
        %793 = vmatprep.subr.bf16.mxu0 0
        %794 = vmatpush1.bf16.msra.mxu0 0
        %795 = vmatprep.mubr.bf16.mxu0 0
        %796 = vmatmul.mubr.bf16.gmra.mrb[0].mxu0 %v685
        %v797 = vpop.f32.mrb[0].mxu0
        %v798 = vadd.f32 %v714, %v797
        %v799 = vpop.f32.mrb[0].mxu0
        %v800 = vpop.f32.mrb[0].mxu0
        %v801 = vadd.f32 %v714, %v800
        %v802 = vpop.f32.mrb[0].mxu0
        %803 = vmatprep.mubr.bf16.mxu0 0
        %804 = vmatmul.mubr.bf16.gmra.mrb[0].mxu0 %v686
        %v805 = vpop.f32.mrb[0].mxu0
        %v806 = vadd.f32 %v714, %v805
        %v807 = vpop.f32.mrb[0].mxu0
        %v808 = vpop.f32.mrb[0].mxu0
        %v809 = vadd.f32 %v714, %v808
        %v810 = vpop.f32.mrb[0].mxu0
        %811 = vmatprep.mubr.bf16.mxu0 0
        %812 = vmatmul.mubr.bf16.gmra.mrb[0].mxu0 %v687
        %v813 = vpop.f32.mrb[0].mxu0
        %v814 = vadd.f32 %v714, %v813
        %v815 = vpop.f32.mrb[0].mxu0
        %v816 = vpop.f32.mrb[0].mxu0
        %v817 = vadd.f32 %v714, %v816
        %v818 = vpop.f32.mrb[0].mxu0
        %819 = vmatprep.mubr.bf16.mxu0 0
        %820 = vmatmul.mubr.bf16.gmra.mrb[0].mxu0 %v688
        %v821 = vpop.f32.mrb[0].mxu0
        %v822 = vadd.f32 %v714, %v821
        %v823 = vpop.f32.mrb[0].mxu0
        %v824 = vpop.f32.mrb[0].mxu0
        %v825 = vadd.f32 %v714, %v824
        %v826 = vpop.f32.mrb[0].mxu0
        %827 = vmatprep.mubr.bf16.mxu0 0
        %828 = vmatmul.mubr.bf16.gmra.mrb[0].mxu0 %v689
        %v829 = vpop.f32.mrb[0].mxu0
        %v830 = vadd.f32 %v714, %v829
        %v831 = vpop.f32.mrb[0].mxu0
        %v832 = vpop.f32.mrb[0].mxu0
        %v833 = vadd.f32 %v714, %v832
        %v834 = vpop.f32.mrb[0].mxu0
        %835 = vmatprep.mubr.bf16.mxu0 0
        %836 = vmatmul.mubr.bf16.gmra.mrb[0].mxu0 %v690
        %v837 = vpop.f32.mrb[0].mxu0
        %v838 = vadd.f32 %v714, %v837
        %v839 = vpop.f32.mrb[0].mxu0
        %v840 = vpop.f32.mrb[0].mxu0
        %v841 = vadd.f32 %v714, %v840
        %v842 = vpop.f32.mrb[0].mxu0
        %843 = vmatprep.mubr.bf16.mxu0 0
        %844 = vmatmul.mubr.bf16.gmra.mrb[0].mxu0 %v691
        %v845 = vpop.f32.mrb[0].mxu0
        %v846 = vadd.f32 %v714, %v845
        %v847 = vpop.f32.mrb[0].mxu0
        %v848 = vpop.f32.mrb[0].mxu0
        %v849 = vadd.f32 %v714, %v848
        %v850 = vpop.f32.mrb[0].mxu0
        %851 = vmatprep.mubr.bf16.mxu0 0
        %852 = vmatmul.mubr.bf16.gmra.mrb[0].mxu0 %v692
        %v853 = vpop.f32.mrb[0].mxu0
        %v854 = vadd.f32 %v714, %v853
        %v855 = vpop.f32.mrb[0].mxu0
        %v856 = vpop.f32.mrb[0].mxu0
        %v857 = vadd.f32 %v714, %v856
        %v858 = vpop.f32.mrb[0].mxu0
        %859 = vdwg.mxu0
        %v860 = vadd.f32 %v798, %v288
        %v861 = vadd.f32 %v801, %v289
        %v862 = vadd.f32 %v806, %v290
        %v863 = vadd.f32 %v809, %v291
        %v864 = vadd.f32 %v814, %v292
        %v865 = vadd.f32 %v817, %v293
        %v866 = vadd.f32 %v822, %v294
        %v867 = vadd.f32 %v825, %v295
        %v868 = vadd.f32 %v830, %v296
        %v869 = vadd.f32 %v833, %v297
        %v870 = vadd.f32 %v838, %v298
        %v871 = vadd.f32 %v841, %v299
        %v872 = vadd.f32 %v846, %v300
        %v873 = vadd.f32 %v849, %v301
        %v874 = vadd.f32 %v854, %v302
        %v875 = vadd.f32 %v857, %v303
        %876 = vadd.xlane.f32.xlu0 %v860
        %v877 = vpop.xlane.xlu0 %876
        %878 = vadd.xlane.f32.xlu0 %v861
        %v879 = vpop.xlane.xlu0 %878
        %880 = vadd.xlane.f32.xlu0 %v862
        %v881 = vpop.xlane.xlu0 %880
        %882 = vadd.xlane.f32.xlu0 %v863
        %v883 = vpop.xlane.xlu0 %882
        %884 = vadd.xlane.f32.xlu0 %v864
        %v885 = vpop.xlane.xlu0 %884
        %886 = vadd.xlane.f32.xlu0 %v865
        %v887 = vpop.xlane.xlu0 %886
        %888 = vadd.xlane.f32.xlu0 %v866
        %v889 = vpop.xlane.xlu0 %888
        %890 = vadd.xlane.f32.xlu0 %v867
        %v891 = vpop.xlane.xlu0 %890
        %892 = vadd.xlane.f32.xlu0 %v868
        %v893 = vpop.xlane.xlu0 %892
        %894 = vadd.xlane.f32.xlu0 %v869
        %v895 = vpop.xlane.xlu0 %894
        %896 = vadd.xlane.f32.xlu0 %v870
        %v897 = vpop.xlane.xlu0 %896
        %898 = vadd.xlane.f32.xlu0 %v871
        %v899 = vpop.xlane.xlu0 %898
        %900 = vadd.xlane.f32.xlu0 %v872
        %v901 = vpop.xlane.xlu0 %900
        %902 = vadd.xlane.f32.xlu0 %v873
        %v903 = vpop.xlane.xlu0 %902
        %904 = vadd.xlane.f32.xlu0 %v874
        %v905 = vpop.xlane.xlu0 %904
        %906 = vadd.xlane.f32.xlu0 %v875
        %v907 = vpop.xlane.xlu0 %906
        %v908 = vrcp.pop 128.0
        %v909 = vmul.f32 %v877, %v908
        %v910 = vmul.f32 %v879, %v908
        %v911 = vmul.f32 %v881, %v908
        %v912 = vmul.f32 %v883, %v908
        %v913 = vmul.f32 %v885, %v908
        %v914 = vmul.f32 %v887, %v908
        %v915 = vmul.f32 %v889, %v908
        %v916 = vmul.f32 %v891, %v908
        %v917 = vmul.f32 %v893, %v908
        %v918 = vmul.f32 %v895, %v908
        %v919 = vmul.f32 %v897, %v908
        %v920 = vmul.f32 %v899, %v908
        %v921 = vmul.f32 %v901, %v908
        %v922 = vmul.f32 %v903, %v908
        %v923 = vmul.f32 %v905, %v908
        %v924 = vmul.f32 %v907, %v908
        %v925 = vmul.f32 %v860, %v860
        %v926 = vmul.f32 %v861, %v861
        %v927 = vmul.f32 %v862, %v862
        %v928 = vmul.f32 %v863, %v863
        %v929 = vmul.f32 %v864, %v864
        %v930 = vmul.f32 %v865, %v865
        %v931 = vmul.f32 %v866, %v866
        %v932 = vmul.f32 %v867, %v867
        %v933 = vmul.f32 %v868, %v868
        %v934 = vmul.f32 %v869, %v869
        %v935 = vmul.f32 %v870, %v870
        %v936 = vmul.f32 %v871, %v871
        %v937 = vmul.f32 %v872, %v872
        %v938 = vmul.f32 %v873, %v873
        %v939 = vmul.f32 %v874, %v874
        %v940 = vmul.f32 %v875, %v875
        %941 = vadd.xlane.f32.xlu0 %v925
        %v942 = vpop.xlane.xlu0 %941
        %943 = vadd.xlane.f32.xlu0 %v926
        %v944 = vpop.xlane.xlu0 %943
        %945 = vadd.xlane.f32.xlu0 %v927
        %v946 = vpop.xlane.xlu0 %945
        %947 = vadd.xlane.f32.xlu0 %v928
        %v948 = vpop.xlane.xlu0 %947
        %949 = vadd.xlane.f32.xlu0 %v929
        %v950 = vpop.xlane.xlu0 %949
        %951 = vadd.xlane.f32.xlu0 %v930
        %v952 = vpop.xlane.xlu0 %951
        %953 = vadd.xlane.f32.xlu0 %v931
        %v954 = vpop.xlane.xlu0 %953
        %955 = vadd.xlane.f32.xlu0 %v932
        %v956 = vpop.xlane.xlu0 %955
        %957 = vadd.xlane.f32.xlu0 %v933
        %v958 = vpop.xlane.xlu0 %957
        %959 = vadd.xlane.f32.xlu0 %v934
        %v960 = vpop.xlane.xlu0 %959
        %961 = vadd.xlane.f32.xlu0 %v935
        %v962 = vpop.xlane.xlu0 %961
        %963 = vadd.xlane.f32.xlu0 %v936
        %v964 = vpop.xlane.xlu0 %963
        %965 = vadd.xlane.f32.xlu0 %v937
        %v966 = vpop.xlane.xlu0 %965
        %967 = vadd.xlane.f32.xlu0 %v938
        %v968 = vpop.xlane.xlu0 %967
        %969 = vadd.xlane.f32.xlu0 %v939
        %v970 = vpop.xlane.xlu0 %969
        %971 = vadd.xlane.f32.xlu0 %v940
        %v972 = vpop.xlane.xlu0 %971
        %v973 = vmul.f32 %v942, %v908
        %v974 = vmul.f32 %v944, %v908
        %v975 = vmul.f32 %v946, %v908
        %v976 = vmul.f32 %v948, %v908
        %v977 = vmul.f32 %v950, %v908
        %v978 = vmul.f32 %v952, %v908
        %v979 = vmul.f32 %v954, %v908
        %v980 = vmul.f32 %v956, %v908
        %v981 = vmul.f32 %v958, %v908
        %v982 = vmul.f32 %v960, %v908
        %v983 = vmul.f32 %v962, %v908
        %v984 = vmul.f32 %v964, %v908
        %v985 = vmul.f32 %v966, %v908
        %v986 = vmul.f32 %v968, %v908
        %v987 = vmul.f32 %v970, %v908
        %v988 = vmul.f32 %v972, %v908
        %v989 = vmul.f32 %v909, %v909
        %v990 = vmul.f32 %v910, %v910
        %v991 = vmul.f32 %v911, %v911
        %v992 = vmul.f32 %v912, %v912
        %v993 = vmul.f32 %v913, %v913
        %v994 = vmul.f32 %v914, %v914
        %v995 = vmul.f32 %v915, %v915
        %v996 = vmul.f32 %v916, %v916
        %v997 = vmul.f32 %v917, %v917
        %v998 = vmul.f32 %v918, %v918
        %v999 = vmul.f32 %v919, %v919
        %v1000 = vmul.f32 %v920, %v920
        %v1001 = vmul.f32 %v921, %v921
        %v1002 = vmul.f32 %v922, %v922
        %v1003 = vmul.f32 %v923, %v923
        %v1004 = vmul.f32 %v924, %v924
        %v1005 = vsub.f32 %v973, %v989
        %v1006 = vsub.f32 %v974, %v990
        %v1007 = vsub.f32 %v975, %v991
        %v1008 = vsub.f32 %v976, %v992
        %v1009 = vsub.f32 %v977, %v993
        %v1010 = vsub.f32 %v978, %v994
        %v1011 = vsub.f32 %v979, %v995
        %v1012 = vsub.f32 %v980, %v996
        %v1013 = vsub.f32 %v981, %v997
        %v1014 = vsub.f32 %v982, %v998
        %v1015 = vsub.f32 %v983, %v999
        %v1016 = vsub.f32 %v984, %v1000
        %v1017 = vsub.f32 %v985, %v1001
        %v1018 = vsub.f32 %v986, %v1002
        %v1019 = vsub.f32 %v987, %v1003
        %v1020 = vsub.f32 %v988, %v1004
        %v1021 = vmax.f32 %v1005, 0.0
        %v1022 = vmax.f32 %v1006, 0.0
        %v1023 = vmax.f32 %v1007, 0.0
        %v1024 = vmax.f32 %v1008, 0.0
        %v1025 = vmax.f32 %v1009, 0.0
        %v1026 = vmax.f32 %v1010, 0.0
        %v1027 = vmax.f32 %v1011, 0.0
        %v1028 = vmax.f32 %v1012, 0.0
        %v1029 = vmax.f32 %v1013, 0.0
        %v1030 = vmax.f32 %v1014, 0.0
        %v1031 = vmax.f32 %v1015, 0.0
        %v1032 = vmax.f32 %v1016, 0.0
        %v1033 = vmax.f32 %v1017, 0.0
        %v1034 = vmax.f32 %v1018, 0.0
        %v1035 = vmax.f32 %v1019, 0.0
        %v1036 = vmax.f32 %v1020, 0.0
        %v1037 = vsub.f32 %v860, %v909
        %v1038 = vsub.f32 %v861, %v910
        %v1039 = vsub.f32 %v862, %v911
        %v1040 = vsub.f32 %v863, %v912
        %v1041 = vsub.f32 %v864, %v913
        %v1042 = vsub.f32 %v865, %v914
        %v1043 = vsub.f32 %v866, %v915
        %v1044 = vsub.f32 %v867, %v916
        %v1045 = vsub.f32 %v868, %v917
        %v1046 = vsub.f32 %v869, %v918
        %v1047 = vsub.f32 %v870, %v919
        %v1048 = vsub.f32 %v871, %v920
        %v1049 = vsub.f32 %v872, %v921
        %v1050 = vsub.f32 %v873, %v922
        %v1051 = vsub.f32 %v874, %v923
        %v1052 = vsub.f32 %v875, %v924
        %v1053 = vadd.f32 %v1021, 1e-05
        %v1054 = vadd.f32 %v1022, 1e-05
        %v1055 = vadd.f32 %v1023, 1e-05
        %v1056 = vadd.f32 %v1024, 1e-05
        %v1057 = vadd.f32 %v1025, 1e-05
        %v1058 = vadd.f32 %v1026, 1e-05
        %v1059 = vadd.f32 %v1027, 1e-05
        %v1060 = vadd.f32 %v1028, 1e-05
        %v1061 = vadd.f32 %v1029, 1e-05
        %v1062 = vadd.f32 %v1030, 1e-05
        %v1063 = vadd.f32 %v1031, 1e-05
        %v1064 = vadd.f32 %v1032, 1e-05
        %v1065 = vadd.f32 %v1033, 1e-05
        %v1066 = vadd.f32 %v1034, 1e-05
        %v1067 = vadd.f32 %v1035, 1e-05
        %v1068 = vadd.f32 %v1036, 1e-05
        %v1069 = vrsqrt.pop %v1053
        %v1070 = vrsqrt.pop %v1054
        %v1071 = vrsqrt.pop %v1055
        %v1072 = vrsqrt.pop %v1056
        %v1073 = vrsqrt.pop %v1057
        %v1074 = vrsqrt.pop %v1058
        %v1075 = vrsqrt.pop %v1059
        %v1076 = vrsqrt.pop %v1060
        %v1077 = vrsqrt.pop %v1061
        %v1078 = vrsqrt.pop %v1062
        %v1079 = vrsqrt.pop %v1063
        %v1080 = vrsqrt.pop %v1064
        %v1081 = vrsqrt.pop %v1065
        %v1082 = vrsqrt.pop %v1066
        %v1083 = vrsqrt.pop %v1067
        %v1084 = vrsqrt.pop %v1068
        %v1085 = vmul.f32 %v1037, %v1069
        %v1086 = vmul.f32 %v1038, %v1070
        %v1087 = vmul.f32 %v1039, %v1071
        %v1088 = vmul.f32 %v1040, %v1072
        %v1089 = vmul.f32 %v1041, %v1073
        %v1090 = vmul.f32 %v1042, %v1074
        %v1091 = vmul.f32 %v1043, %v1075
        %v1092 = vmul.f32 %v1044, %v1076
        %v1093 = vmul.f32 %v1045, %v1077
        %v1094 = vmul.f32 %v1046, %v1078
        %v1095 = vmul.f32 %v1047, %v1079
        %v1096 = vmul.f32 %v1048, %v1080
        %v1097 = vmul.f32 %v1049, %v1081
        %v1098 = vmul.f32 %v1050, %v1082
        %v1099 = vmul.f32 %v1051, %v1083
        %v1100 = vmul.f32 %v1052, %v1084
        %v1101 = vld [vmem:[%s3] sm:$0x1]
        %v1102 = vlaneseq
        %v1103 = vshrl.u32 %v1102, 7
        %v1104 = vsub.s32 0, %v1103
        %v1105 = vrot.slane %v1101, %v1104
        %v1106 = vmul.f32 %v1085, %v1105
        %v1107 = vmul.f32 %v1086, %v1105
        %v1108 = vmul.f32 %v1087, %v1105
        %v1109 = vmul.f32 %v1088, %v1105
        %v1110 = vmul.f32 %v1089, %v1105
        %v1111 = vmul.f32 %v1090, %v1105
        %v1112 = vmul.f32 %v1091, %v1105
        %v1113 = vmul.f32 %v1092, %v1105
        %v1114 = vmul.f32 %v1093, %v1105
        %v1115 = vmul.f32 %v1094, %v1105
        %v1116 = vmul.f32 %v1095, %v1105
        %v1117 = vmul.f32 %v1096, %v1105
        %v1118 = vmul.f32 %v1097, %v1105
        %v1119 = vmul.f32 %v1098, %v1105
        %v1120 = vmul.f32 %v1099, %v1105
        %v1121 = vmul.f32 %v1100, %v1105
        %v1122 = vld [vmem:[#allocation8] sm:$0x1]
        %v1123 = vlaneseq
        %v1124 = vshrl.u32 %v1123, 7
        %v1125 = vsub.s32 0, %v1124
        %v1126 = vrot.slane %v1122, %v1125
        %v1127 = vadd.f32 %v1106, %v1126
        %v1128 = vadd.f32 %v1107, %v1126
        %v1129 = vadd.f32 %v1108, %v1126
        %v1130 = vadd.f32 %v1109, %v1126
        %v1131 = vadd.f32 %v1110, %v1126
        %v1132 = vadd.f32 %v1111, %v1126
        %v1133 = vadd.f32 %v1112, %v1126
        %v1134 = vadd.f32 %v1113, %v1126
        %v1135 = vadd.f32 %v1114, %v1126
        %v1136 = vadd.f32 %v1115, %v1126
        %v1137 = vadd.f32 %v1116, %v1126
        %v1138 = vadd.f32 %v1117, %v1126
        %v1139 = vadd.f32 %v1118, %v1126
        %v1140 = vadd.f32 %v1119, %v1126
        %v1141 = vadd.f32 %v1120, %v1126
        %v1142 = vadd.f32 %v1121, %v1126
        %v1143 = vpack.c.bf16 %v1128, %v1127
        %v1144 = vpack.c.bf16 %v1130, %v1129
        %v1145 = vpack.c.bf16 %v1132, %v1131
        %v1146 = vpack.c.bf16 %v1134, %v1133
        %v1147 = vpack.c.bf16 %v1136, %v1135
        %v1148 = vpack.c.bf16 %v1138, %v1137
        %v1149 = vpack.c.bf16 %v1140, %v1139
        %v1150 = vpack.c.bf16 %v1142, %v1141
        %s1151 = scalar_lea.vmem [#allocation5], 192
        %v1152 = vld [vmem:[%s1151] sm:$0xf]
        %v1153 = vld [vmem:[%s1151 + $0x4] sm:$0xf]
        %v1154 = vld [vmem:[%s1151 + $0x8] sm:$0xf]
        %v1155 = vld [vmem:[%s1151 + $0xc] sm:$0xf]
        %v1156 = vld [vmem:[%s1151 + $0x10] sm:$0xf]
        %v1157 = vld [vmem:[%s1151 + $0x14] sm:$0xf]
        %v1158 = vld [vmem:[%s1151 + $0x18] sm:$0xf]
        %v1159 = vld [vmem:[%s1151 + $0x1c] sm:$0xf]
        %v1160 = vld [vmem:[%s1151 + $0x20] sm:$0xf]
        %v1161 = vld [vmem:[%s1151 + $0x24] sm:$0xf]
        %v1162 = vld [vmem:[%s1151 + $0x28] sm:$0xf]
        %v1163 = vld [vmem:[%s1151 + $0x2c] sm:$0xf]
        %v1164 = vld [vmem:[%s1151 + $0x30] sm:$0xf]
        %v1165 = vld [vmem:[%s1151 + $0x34] sm:$0xf]
        %v1166 = vld [vmem:[%s1151 + $0x38] sm:$0xf]
        %v1167 = vld [vmem:[%s1151 + $0x3c] sm:$0xf]
        %v1168 = vld [vmem:[#allocation7 + $0x3] sm:$0x1]
        %v1169 = vlaneseq
        %v1170 = vshrl.u32 %v1169, 7
        %v1171 = vsub.s32 0, %v1170
        %v1172 = vrot.slane %v1168, %v1171
        %v1189 = vunpack.c.l.b16 %v1152
        %v1190 = vunpack.c.l.b16 %v1153
        %v1191 = vunpack.c.l.b16 %v1154
        %v1192 = vunpack.c.l.b16 %v1155
        %v1193 = vunpack.c.l.b16 %v1156
        %v1194 = vunpack.c.l.b16 %v1157
        %v1195 = vunpack.c.l.b16 %v1158
        %v1196 = vunpack.c.l.b16 %v1159
        %v1197 = vunpack.c.l.b16 %v1160
        %v1198 = vunpack.c.l.b16 %v1161
        %v1199 = vunpack.c.l.b16 %v1162
        %v1200 = vunpack.c.l.b16 %v1163
        %v1201 = vunpack.c.l.b16 %v1164
        %v1202 = vunpack.c.l.b16 %v1165
        %v1203 = vunpack.c.l.b16 %v1166
        %v1204 = vunpack.c.l.b16 %v1167
        %v1205 = vpack.c.b16 %v1190, %v1189
        %v1206 = vpack.c.b16 %v1192, %v1191
        %v1207 = vpack.c.b16 %v1194, %v1193
        %v1208 = vpack.c.b16 %v1196, %v1195
        %v1209 = vpack.c.b16 %v1198, %v1197
        %v1210 = vpack.c.b16 %v1200, %v1199
        %v1211 = vpack.c.b16 %v1202, %v1201
        %v1212 = vpack.c.b16 %v1204, %v1203
        %1221 = vmatprep.subr.bf16.mxu0 0
        %1222 = vmatpush1.bf16.msra.mxu0 %v1205
        %1223 = vmatprep.subr.bf16.mxu0 0
        %1224 = vmatpush1.bf16.msra.mxu0 %v1206
        %1225 = vmatprep.subr.bf16.mxu0 0
        %1226 = vmatpush1.bf16.msra.mxu0 %v1207
        %1227 = vmatprep.subr.bf16.mxu0 0
        %1228 = vmatpush1.bf16.msra.mxu0 %v1208
        %1229 = vmatprep.subr.bf16.mxu0 0
        %1230 = vmatpush1.bf16.msra.mxu0 %v1209
        %1231 = vmatprep.subr.bf16.mxu0 0
        %1232 = vmatpush1.bf16.msra.mxu0 %v1210
        %1233 = vmatprep.subr.bf16.mxu0 0
        %1234 = vmatpush1.bf16.msra.mxu0 %v1211
        %1235 = vmatprep.subr.bf16.mxu0 0
        %1236 = vmatpush1.bf16.msra.mxu0 %v1212
        %1237 = vmatprep.subr.bf16.mxu0 0
        %1238 = vmatpush1.bf16.msra.mxu0 0
        %1239 = vmatprep.subr.bf16.mxu0 0
        %1240 = vmatpush1.bf16.msra.mxu0 0
        %1241 = vmatprep.subr.bf16.mxu0 0
        %1242 = vmatpush1.bf16.msra.mxu0 0
        %1243 = vmatprep.subr.bf16.mxu0 0
        %1244 = vmatpush1.bf16.msra.mxu0 0
        %1245 = vmatprep.subr.bf16.mxu0 0
        %1246 = vmatpush1.bf16.msra.mxu0 0
        %1247 = vmatprep.subr.bf16.mxu0 0
        %1248 = vmatpush1.bf16.msra.mxu0 0
        %1249 = vmatprep.subr.bf16.mxu0 0
        %1250 = vmatpush1.bf16.msra.mxu0 0
        %1251 = vmatprep.subr.bf16.mxu0 0
        %1252 = vmatpush1.bf16.msra.mxu0 0
        %1253 = vmatprep.mubr.bf16.mxu0 0
        %1254 = vmatmul.mubr.bf16.gmra.mrb[0].mxu0 %v1143
        %v1255 = vpop.f32.mrb[0].mxu0
        %v1256 = vadd.f32 %v1172, %v1255
        %v1257 = vpop.f32.mrb[0].mxu0
        %v1258 = vpop.f32.mrb[0].mxu0
        %v1259 = vadd.f32 %v1172, %v1258
        %v1260 = vpop.f32.mrb[0].mxu0
        %1261 = vmatprep.mubr.bf16.mxu0 0
        %1262 = vmatmul.mubr.bf16.gmra.mrb[0].mxu0 %v1144
        %v1263 = vpop.f32.mrb[0].mxu0
        %v1264 = vadd.f32 %v1172, %v1263
        %v1265 = vpop.f32.mrb[0].mxu0
        %v1266 = vpop.f32.mrb[0].mxu0
        %v1267 = vadd.f32 %v1172, %v1266
        %v1268 = vpop.f32.mrb[0].mxu0
        %1269 = vmatprep.mubr.bf16.mxu0 0
        %1270 = vmatmul.mubr.bf16.gmra.mrb[0].mxu0 %v1145
        %v1271 = vpop.f32.mrb[0].mxu0
        %v1272 = vadd.f32 %v1172, %v1271
        %v1273 = vpop.f32.mrb[0].mxu0
        %v1274 = vpop.f32.mrb[0].mxu0
        %v1275 = vadd.f32 %v1172, %v1274
        %v1276 = vpop.f32.mrb[0].mxu0
        %1277 = vmatprep.mubr.bf16.mxu0 0
        %1278 = vmatmul.mubr.bf16.gmra.mrb[0].mxu0 %v1146
        %v1279 = vpop.f32.mrb[0].mxu0
        %v1280 = vadd.f32 %v1172, %v1279
        %v1281 = vpop.f32.mrb[0].mxu0
        %v1282 = vpop.f32.mrb[0].mxu0
        %v1283 = vadd.f32 %v1172, %v1282
        %v1284 = vpop.f32.mrb[0].mxu0
        %1285 = vmatprep.mubr.bf16.mxu0 0
        %1286 = vmatmul.mubr.bf16.gmra.mrb[0].mxu0 %v1147
        %v1287 = vpop.f32.mrb[0].mxu0
        %v1288 = vadd.f32 %v1172, %v1287
        %v1289 = vpop.f32.mrb[0].mxu0
        %v1290 = vpop.f32.mrb[0].mxu0
        %v1291 = vadd.f32 %v1172, %v1290
        %v1292 = vpop.f32.mrb[0].mxu0
        %1293 = vmatprep.mubr.bf16.mxu0 0
        %1294 = vmatmul.mubr.bf16.gmra.mrb[0].mxu0 %v1148
        %v1295 = vpop.f32.mrb[0].mxu0
        %v1296 = vadd.f32 %v1172, %v1295
        %v1297 = vpop.f32.mrb[0].mxu0
        %v1298 = vpop.f32.mrb[0].mxu0
        %v1299 = vadd.f32 %v1172, %v1298
        %v1300 = vpop.f32.mrb[0].mxu0
        %1301 = vmatprep.mubr.bf16.mxu0 0
        %1302 = vmatmul.mubr.bf16.gmra.mrb[0].mxu0 %v1149
        %v1303 = vpop.f32.mrb[0].mxu0
        %v1304 = vadd.f32 %v1172, %v1303
        %v1305 = vpop.f32.mrb[0].mxu0
        %v1306 = vpop.f32.mrb[0].mxu0
        %v1307 = vadd.f32 %v1172, %v1306
        %v1308 = vpop.f32.mrb[0].mxu0
        %1309 = vmatprep.mubr.bf16.mxu0 0
        %1310 = vmatmul.mubr.bf16.gmra.mrb[0].mxu0 %v1150
        %v1311 = vpop.f32.mrb[0].mxu0
        %v1312 = vadd.f32 %v1172, %v1311
        %v1313 = vpop.f32.mrb[0].mxu0
        %v1314 = vpop.f32.mrb[0].mxu0
        %v1315 = vadd.f32 %v1172, %v1314
        %v1316 = vpop.f32.mrb[0].mxu0
        %1317 = vdwg.mxu0
        %v1318 = vmax.f32 %v1256, 0.0
        %v1319 = vmax.f32 %v1259, 0.0
        %v1320 = vmax.f32 %v1264, 0.0
        %v1321 = vmax.f32 %v1267, 0.0
        %v1322 = vmax.f32 %v1272, 0.0
        %v1323 = vmax.f32 %v1275, 0.0
        %v1324 = vmax.f32 %v1280, 0.0
        %v1325 = vmax.f32 %v1283, 0.0
        %v1326 = vmax.f32 %v1288, 0.0
        %v1327 = vmax.f32 %v1291, 0.0
        %v1328 = vmax.f32 %v1296, 0.0
        %v1329 = vmax.f32 %v1299, 0.0
        %v1330 = vmax.f32 %v1304, 0.0
        %v1331 = vmax.f32 %v1307, 0.0
        %v1332 = vmax.f32 %v1312, 0.0
        %v1333 = vmax.f32 %v1315, 0.0
        %v1334 = vpack.c.bf16 %v1319, %v1318
        %v1335 = vpack.c.bf16 %v1321, %v1320
        %v1336 = vpack.c.bf16 %v1323, %v1322
        %v1337 = vpack.c.bf16 %v1325, %v1324
        %v1338 = vpack.c.bf16 %v1327, %v1326
        %v1339 = vpack.c.bf16 %v1329, %v1328
        %v1340 = vpack.c.bf16 %v1331, %v1330
        %v1341 = vpack.c.bf16 %v1333, %v1332
        %s1342 = scalar_lea.vmem [#allocation5], 256
        %v1343 = vld [vmem:[%s1342] sm:$0xf]
        %v1344 = vld [vmem:[%s1342 + $0x4] sm:$0xf]
        %v1345 = vld [vmem:[%s1342 + $0x8] sm:$0xf]
        %v1346 = vld [vmem:[%s1342 + $0xc] sm:$0xf]
        %v1347 = vld [vmem:[%s1342 + $0x10] sm:$0xf]
        %v1348 = vld [vmem:[%s1342 + $0x14] sm:$0xf]
        %v1349 = vld [vmem:[%s1342 + $0x18] sm:$0xf]
        %v1350 = vld [vmem:[%s1342 + $0x1c] sm:$0xf]
        %v1351 = vld [vmem:[%s1342 + $0x20] sm:$0xf]
        %v1352 = vld [vmem:[%s1342 + $0x24] sm:$0xf]
        %v1353 = vld [vmem:[%s1342 + $0x28] sm:$0xf]
        %v1354 = vld [vmem:[%s1342 + $0x2c] sm:$0xf]
        %v1355 = vld [vmem:[%s1342 + $0x30] sm:$0xf]
        %v1356 = vld [vmem:[%s1342 + $0x34] sm:$0xf]
        %v1357 = vld [vmem:[%s1342 + $0x38] sm:$0xf]
        %v1358 = vld [vmem:[%s1342 + $0x3c] sm:$0xf]
        %v1359 = vld [vmem:[#allocation7 + $0x4] sm:$0x1]
        %v1360 = vlaneseq
        %v1361 = vshrl.u32 %v1360, 7
        %v1362 = vsub.s32 0, %v1361
        %v1363 = vrot.slane %v1359, %v1362
        %v1380 = vunpack.c.l.b16 %v1343
        %v1381 = vunpack.c.l.b16 %v1344
        %v1382 = vunpack.c.l.b16 %v1345
        %v1383 = vunpack.c.l.b16 %v1346
        %v1384 = vunpack.c.l.b16 %v1347
        %v1385 = vunpack.c.l.b16 %v1348
        %v1386 = vunpack.c.l.b16 %v1349
        %v1387 = vunpack.c.l.b16 %v1350
        %v1388 = vunpack.c.l.b16 %v1351
        %v1389 = vunpack.c.l.b16 %v1352
        %v1390 = vunpack.c.l.b16 %v1353
        %v1391 = vunpack.c.l.b16 %v1354
        %v1392 = vunpack.c.l.b16 %v1355
        %v1393 = vunpack.c.l.b16 %v1356
        %v1394 = vunpack.c.l.b16 %v1357
        %v1395 = vunpack.c.l.b16 %v1358
        %v1396 = vpack.c.b16 %v1381, %v1380
        %v1397 = vpack.c.b16 %v1383, %v1382
        %v1398 = vpack.c.b16 %v1385, %v1384
        %v1399 = vpack.c.b16 %v1387, %v1386
        %v1400 = vpack.c.b16 %v1389, %v1388
        %v1401 = vpack.c.b16 %v1391, %v1390
        %v1402 = vpack.c.b16 %v1393, %v1392
        %v1403 = vpack.c.b16 %v1395, %v1394
        %1412 = vmatprep.subr.bf16.mxu0 0
        %1413 = vmatpush1.bf16.msra.mxu0 %v1396
        %1414 = vmatprep.subr.bf16.mxu0 0
        %1415 = vmatpush1.bf16.msra.mxu0 %v1397
        %1416 = vmatprep.subr.bf16.mxu0 0
        %1417 = vmatpush1.bf16.msra.mxu0 %v1398
        %1418 = vmatprep.subr.bf16.mxu0 0
        %1419 = vmatpush1.bf16.msra.mxu0 %v1399
        %1420 = vmatprep.subr.bf16.mxu0 0
        %1421 = vmatpush1.bf16.msra.mxu0 %v1400
        %1422 = vmatprep.subr.bf16.mxu0 0
        %1423 = vmatpush1.bf16.msra.mxu0 %v1401
        %1424 = vmatprep.subr.bf16.mxu0 0
        %1425 = vmatpush1.bf16.msra.mxu0 %v1402
        %1426 = vmatprep.subr.bf16.mxu0 0
        %1427 = vmatpush1.bf16.msra.mxu0 %v1403
        %1428 = vmatprep.subr.bf16.mxu0 0
        %1429 = vmatpush1.bf16.msra.mxu0 0
        %1430 = vmatprep.subr.bf16.mxu0 0
        %1431 = vmatpush1.bf16.msra.mxu0 0
        %1432 = vmatprep.subr.bf16.mxu0 0
        %1433 = vmatpush1.bf16.msra.mxu0 0
        %1434 = vmatprep.subr.bf16.mxu0 0
        %1435 = vmatpush1.bf16.msra.mxu0 0
        %1436 = vmatprep.subr.bf16.mxu0 0
        %1437 = vmatpush1.bf16.msra.mxu0 0
        %1438 = vmatprep.subr.bf16.mxu0 0
        %1439 = vmatpush1.bf16.msra.mxu0 0
        %1440 = vmatprep.subr.bf16.mxu0 0
        %1441 = vmatpush1.bf16.msra.mxu0 0
        %1442 = vmatprep.subr.bf16.mxu0 0
        %1443 = vmatpush1.bf16.msra.mxu0 0
        %1444 = vmatprep.mubr.bf16.mxu0 0
        %1445 = vmatmul.mubr.bf16.gmra.mrb[0].mxu0 %v1334
        %v1446 = vpop.f32.mrb[0].mxu0
        %v1447 = vadd.f32 %v1363, %v1446
        %v1448 = vpop.f32.mrb[0].mxu0
        %v1449 = vpop.f32.mrb[0].mxu0
        %v1450 = vadd.f32 %v1363, %v1449
        %v1451 = vpop.f32.mrb[0].mxu0
        %1452 = vmatprep.mubr.bf16.mxu0 0
        %1453 = vmatmul.mubr.bf16.gmra.mrb[0].mxu0 %v1335
        %v1454 = vpop.f32.mrb[0].mxu0
        %v1455 = vadd.f32 %v1363, %v1454
        %v1456 = vpop.f32.mrb[0].mxu0
        %v1457 = vpop.f32.mrb[0].mxu0
        %v1458 = vadd.f32 %v1363, %v1457
        %v1459 = vpop.f32.mrb[0].mxu0
        %1460 = vmatprep.mubr.bf16.mxu0 0
        %1461 = vmatmul.mubr.bf16.gmra.mrb[0].mxu0 %v1336
        %v1462 = vpop.f32.mrb[0].mxu0
        %v1463 = vadd.f32 %v1363, %v1462
        %v1464 = vpop.f32.mrb[0].mxu0
        %v1465 = vpop.f32.mrb[0].mxu0
        %v1466 = vadd.f32 %v1363, %v1465
        %v1467 = vpop.f32.mrb[0].mxu0
        %1468 = vmatprep.mubr.bf16.mxu0 0
        %1469 = vmatmul.mubr.bf16.gmra.mrb[0].mxu0 %v1337
        %v1470 = vpop.f32.mrb[0].mxu0
        %v1471 = vadd.f32 %v1363, %v1470
        %v1472 = vpop.f32.mrb[0].mxu0
        %v1473 = vpop.f32.mrb[0].mxu0
        %v1474 = vadd.f32 %v1363, %v1473
        %v1475 = vpop.f32.mrb[0].mxu0
        %1476 = vmatprep.mubr.bf16.mxu0 0
        %1477 = vmatmul.mubr.bf16.gmra.mrb[0].mxu0 %v1338
        %v1478 = vpop.f32.mrb[0].mxu0
        %v1479 = vadd.f32 %v1363, %v1478
        %v1480 = vpop.f32.mrb[0].mxu0
        %v1481 = vpop.f32.mrb[0].mxu0
        %v1482 = vadd.f32 %v1363, %v1481
        %v1483 = vpop.f32.mrb[0].mxu0
        %1484 = vmatprep.mubr.bf16.mxu0 0
        %1485 = vmatmul.mubr.bf16.gmra.mrb[0].mxu0 %v1339
        %v1486 = vpop.f32.mrb[0].mxu0
        %v1487 = vadd.f32 %v1363, %v1486
        %v1488 = vpop.f32.mrb[0].mxu0
        %v1489 = vpop.f32.mrb[0].mxu0
        %v1490 = vadd.f32 %v1363, %v1489
        %v1491 = vpop.f32.mrb[0].mxu0
        %1492 = vmatprep.mubr.bf16.mxu0 0
        %1493 = vmatmul.mubr.bf16.gmra.mrb[0].mxu0 %v1340
        %v1494 = vpop.f32.mrb[0].mxu0
        %v1495 = vadd.f32 %v1363, %v1494
        %v1496 = vpop.f32.mrb[0].mxu0
        %v1497 = vpop.f32.mrb[0].mxu0
        %v1498 = vadd.f32 %v1363, %v1497
        %v1499 = vpop.f32.mrb[0].mxu0
        %1500 = vmatprep.mubr.bf16.mxu0 0
        %1501 = vmatmul.mubr.bf16.gmra.mrb[0].mxu0 %v1341
        %v1502 = vpop.f32.mrb[0].mxu0
        %v1503 = vadd.f32 %v1363, %v1502
        %v1504 = vpop.f32.mrb[0].mxu0
        %v1505 = vpop.f32.mrb[0].mxu0
        %v1506 = vadd.f32 %v1363, %v1505
        %v1507 = vpop.f32.mrb[0].mxu0
        %1508 = vdwg.mxu0
        %v1509 = vmax.f32 %v1447, 0.0
        %v1510 = vmax.f32 %v1450, 0.0
        %v1511 = vmax.f32 %v1455, 0.0
        %v1512 = vmax.f32 %v1458, 0.0
        %v1513 = vmax.f32 %v1463, 0.0
        %v1514 = vmax.f32 %v1466, 0.0
        %v1515 = vmax.f32 %v1471, 0.0
        %v1516 = vmax.f32 %v1474, 0.0
        %v1517 = vmax.f32 %v1479, 0.0
        %v1518 = vmax.f32 %v1482, 0.0
        %v1519 = vmax.f32 %v1487, 0.0
        %v1520 = vmax.f32 %v1490, 0.0
        %v1521 = vmax.f32 %v1495, 0.0
        %v1522 = vmax.f32 %v1498, 0.0
        %v1523 = vmax.f32 %v1503, 0.0
        %v1524 = vmax.f32 %v1506, 0.0
        %v1525 = vpack.c.bf16 %v1510, %v1509
        %v1526 = vpack.c.bf16 %v1512, %v1511
        %v1527 = vpack.c.bf16 %v1514, %v1513
        %v1528 = vpack.c.bf16 %v1516, %v1515
        %v1529 = vpack.c.bf16 %v1518, %v1517
        %v1530 = vpack.c.bf16 %v1520, %v1519
        %v1531 = vpack.c.bf16 %v1522, %v1521
        %v1532 = vpack.c.bf16 %v1524, %v1523
        %s1533 = scalar_lea.vmem [#allocation5], 320
        %v1534 = vld [vmem:[%s1533] sm:$0xf]
        %v1535 = vld [vmem:[%s1533 + $0x4] sm:$0xf]
        %v1536 = vld [vmem:[%s1533 + $0x8] sm:$0xf]
        %v1537 = vld [vmem:[%s1533 + $0xc] sm:$0xf]
        %v1538 = vld [vmem:[%s1533 + $0x10] sm:$0xf]
        %v1539 = vld [vmem:[%s1533 + $0x14] sm:$0xf]
        %v1540 = vld [vmem:[%s1533 + $0x18] sm:$0xf]
        %v1541 = vld [vmem:[%s1533 + $0x1c] sm:$0xf]
        %v1542 = vld [vmem:[%s1533 + $0x20] sm:$0xf]
        %v1543 = vld [vmem:[%s1533 + $0x24] sm:$0xf]
        %v1544 = vld [vmem:[%s1533 + $0x28] sm:$0xf]
        %v1545 = vld [vmem:[%s1533 + $0x2c] sm:$0xf]
        %v1546 = vld [vmem:[%s1533 + $0x30] sm:$0xf]
        %v1547 = vld [vmem:[%s1533 + $0x34] sm:$0xf]
        %v1548 = vld [vmem:[%s1533 + $0x38] sm:$0xf]
        %v1549 = vld [vmem:[%s1533 + $0x3c] sm:$0xf]
        %v1550 = vld [vmem:[#allocation7 + $0x5] sm:$0x1]
        %v1551 = vlaneseq
        %v1552 = vshrl.u32 %v1551, 7
        %v1553 = vsub.s32 0, %v1552
        %v1554 = vrot.slane %v1550, %v1553
        %v1571 = vunpack.c.l.b16 %v1534
        %v1572 = vunpack.c.l.b16 %v1535
        %v1573 = vunpack.c.l.b16 %v1536
        %v1574 = vunpack.c.l.b16 %v1537
        %v1575 = vunpack.c.l.b16 %v1538
        %v1576 = vunpack.c.l.b16 %v1539
        %v1577 = vunpack.c.l.b16 %v1540
        %v1578 = vunpack.c.l.b16 %v1541
        %v1579 = vunpack.c.l.b16 %v1542
        %v1580 = vunpack.c.l.b16 %v1543
        %v1581 = vunpack.c.l.b16 %v1544
        %v1582 = vunpack.c.l.b16 %v1545
        %v1583 = vunpack.c.l.b16 %v1546
        %v1584 = vunpack.c.l.b16 %v1547
        %v1585 = vunpack.c.l.b16 %v1548
        %v1586 = vunpack.c.l.b16 %v1549
        %v1587 = vpack.c.b16 %v1572, %v1571
        %v1588 = vpack.c.b16 %v1574, %v1573
        %v1589 = vpack.c.b16 %v1576, %v1575
        %v1590 = vpack.c.b16 %v1578, %v1577
        %v1591 = vpack.c.b16 %v1580, %v1579
        %v1592 = vpack.c.b16 %v1582, %v1581
        %v1593 = vpack.c.b16 %v1584, %v1583
        %v1594 = vpack.c.b16 %v1586, %v1585
        %1603 = vmatprep.subr.bf16.mxu0 0
        %1604 = vmatpush1.bf16.msra.mxu0 %v1587
        %1605 = vmatprep.subr.bf16.mxu0 0
        %1606 = vmatpush1.bf16.msra.mxu0 %v1588
        %1607 = vmatprep.subr.bf16.mxu0 0
        %1608 = vmatpush1.bf16.msra.mxu0 %v1589
        %1609 = vmatprep.subr.bf16.mxu0 0
        %1610 = vmatpush1.bf16.msra.mxu0 %v1590
        %1611 = vmatprep.subr.bf16.mxu0 0
        %1612 = vmatpush1.bf16.msra.mxu0 %v1591
        %1613 = vmatprep.subr.bf16.mxu0 0
        %1614 = vmatpush1.bf16.msra.mxu0 %v1592
        %1615 = vmatprep.subr.bf16.mxu0 0
        %1616 = vmatpush1.bf16.msra.mxu0 %v1593
        %1617 = vmatprep.subr.bf16.mxu0 0
        %1618 = vmatpush1.bf16.msra.mxu0 %v1594
        %1619 = vmatprep.subr.bf16.mxu0 0
        %1620 = vmatpush1.bf16.msra.mxu0 0
        %1621 = vmatprep.subr.bf16.mxu0 0
        %1622 = vmatpush1.bf16.msra.mxu0 0
        %1623 = vmatprep.subr.bf16.mxu0 0
        %1624 = vmatpush1.bf16.msra.mxu0 0
        %1625 = vmatprep.subr.bf16.mxu0 0
        %1626 = vmatpush1.bf16.msra.mxu0 0
        %1627 = vmatprep.subr.bf16.mxu0 0
        %1628 = vmatpush1.bf16.msra.mxu0 0
        %1629 = vmatprep.subr.bf16.mxu0 0
        %1630 = vmatpush1.bf16.msra.mxu0 0
        %1631 = vmatprep.subr.bf16.mxu0 0
        %1632 = vmatpush1.bf16.msra.mxu0 0
        %1633 = vmatprep.subr.bf16.mxu0 0
        %1634 = vmatpush1.bf16.msra.mxu0 0
        %1635 = vmatprep.mubr.bf16.mxu0 0
        %1636 = vmatmul.mubr.bf16.gmra.mrb[0].mxu0 %v1525
        %v1637 = vpop.f32.mrb[0].mxu0
        %v1638 = vadd.f32 %v1554, %v1637
        %v1639 = vpop.f32.mrb[0].mxu0
        %v1640 = vpop.f32.mrb[0].mxu0
        %v1641 = vadd.f32 %v1554, %v1640
        %v1642 = vpop.f32.mrb[0].mxu0
        %1643 = vmatprep.mubr.bf16.mxu0 0
        %1644 = vmatmul.mubr.bf16.gmra.mrb[0].mxu0 %v1526
        %v1645 = vpop.f32.mrb[0].mxu0
        %v1646 = vadd.f32 %v1554, %v1645
        %v1647 = vpop.f32.mrb[0].mxu0
        %v1648 = vpop.f32.mrb[0].mxu0
        %v1649 = vadd.f32 %v1554, %v1648
        %v1650 = vpop.f32.mrb[0].mxu0
        %1651 = vmatprep.mubr.bf16.mxu0 0
        %1652 = vmatmul.mubr.bf16.gmra.mrb[0].mxu0 %v1527
        %v1653 = vpop.f32.mrb[0].mxu0
        %v1654 = vadd.f32 %v1554, %v1653
        %v1655 = vpop.f32.mrb[0].mxu0
        %v1656 = vpop.f32.mrb[0].mxu0
        %v1657 = vadd.f32 %v1554, %v1656
        %v1658 = vpop.f32.mrb[0].mxu0
        %1659 = vmatprep.mubr.bf16.mxu0 0
        %1660 = vmatmul.mubr.bf16.gmra.mrb[0].mxu0 %v1528
        %v1661 = vpop.f32.mrb[0].mxu0
        %v1662 = vadd.f32 %v1554, %v1661
        %v1663 = vpop.f32.mrb[0].mxu0
        %v1664 = vpop.f32.mrb[0].mxu0
        %v1665 = vadd.f32 %v1554, %v1664
        %v1666 = vpop.f32.mrb[0].mxu0
        %1667 = vmatprep.mubr.bf16.mxu0 0
        %1668 = vmatmul.mubr.bf16.gmra.mrb[0].mxu0 %v1529
        %v1669 = vpop.f32.mrb[0].mxu0
        %v1670 = vadd.f32 %v1554, %v1669
        %v1671 = vpop.f32.mrb[0].mxu0
        %v1672 = vpop.f32.mrb[0].mxu0
        %v1673 = vadd.f32 %v1554, %v1672
        %v1674 = vpop.f32.mrb[0].mxu0
        %1675 = vmatprep.mubr.bf16.mxu0 0
        %1676 = vmatmul.mubr.bf16.gmra.mrb[0].mxu0 %v1530
        %v1677 = vpop.f32.mrb[0].mxu0
        %v1678 = vadd.f32 %v1554, %v1677
        %v1679 = vpop.f32.mrb[0].mxu0
        %v1680 = vpop.f32.mrb[0].mxu0
        %v1681 = vadd.f32 %v1554, %v1680
        %v1682 = vpop.f32.mrb[0].mxu0
        %1683 = vmatprep.mubr.bf16.mxu0 0
        %1684 = vmatmul.mubr.bf16.gmra.mrb[0].mxu0 %v1531
        %v1685 = vpop.f32.mrb[0].mxu0
        %v1686 = vadd.f32 %v1554, %v1685
        %v1687 = vpop.f32.mrb[0].mxu0
        %v1688 = vpop.f32.mrb[0].mxu0
        %v1689 = vadd.f32 %v1554, %v1688
        %v1690 = vpop.f32.mrb[0].mxu0
        %1691 = vmatprep.mubr.bf16.mxu0 0
        %1692 = vmatmul.mubr.bf16.gmra.mrb[0].mxu0 %v1532
        %v1693 = vpop.f32.mrb[0].mxu0
        %v1694 = vadd.f32 %v1554, %v1693
        %v1695 = vpop.f32.mrb[0].mxu0
        %v1696 = vpop.f32.mrb[0].mxu0
        %v1697 = vadd.f32 %v1554, %v1696
        %v1698 = vpop.f32.mrb[0].mxu0
        %1699 = vdwg.mxu0
        %v1700 = vadd.f32 %v1638, %v1127
        %v1701 = vadd.f32 %v1641, %v1128
        %v1702 = vadd.f32 %v1646, %v1129
        %v1703 = vadd.f32 %v1649, %v1130
        %v1704 = vadd.f32 %v1654, %v1131
        %v1705 = vadd.f32 %v1657, %v1132
        %v1706 = vadd.f32 %v1662, %v1133
        %v1707 = vadd.f32 %v1665, %v1134
        %v1708 = vadd.f32 %v1670, %v1135
        %v1709 = vadd.f32 %v1673, %v1136
        %v1710 = vadd.f32 %v1678, %v1137
        %v1711 = vadd.f32 %v1681, %v1138
        %v1712 = vadd.f32 %v1686, %v1139
        %v1713 = vadd.f32 %v1689, %v1140
        %v1714 = vadd.f32 %v1694, %v1141
        %v1715 = vadd.f32 %v1697, %v1142
        %1716 = vadd.xlane.f32.xlu0 %v1700
        %v1717 = vpop.xlane.xlu0 %1716
        %1718 = vadd.xlane.f32.xlu0 %v1701
        %v1719 = vpop.xlane.xlu0 %1718
        %1720 = vadd.xlane.f32.xlu0 %v1702
        %v1721 = vpop.xlane.xlu0 %1720
        %1722 = vadd.xlane.f32.xlu0 %v1703
        %v1723 = vpop.xlane.xlu0 %1722
        %1724 = vadd.xlane.f32.xlu0 %v1704
        %v1725 = vpop.xlane.xlu0 %1724
        %1726 = vadd.xlane.f32.xlu0 %v1705
        %v1727 = vpop.xlane.xlu0 %1726
        %1728 = vadd.xlane.f32.xlu0 %v1706
        %v1729 = vpop.xlane.xlu0 %1728
        %1730 = vadd.xlane.f32.xlu0 %v1707
        %v1731 = vpop.xlane.xlu0 %1730
        %1732 = vadd.xlane.f32.xlu0 %v1708
        %v1733 = vpop.xlane.xlu0 %1732
        %1734 = vadd.xlane.f32.xlu0 %v1709
        %v1735 = vpop.xlane.xlu0 %1734
        %1736 = vadd.xlane.f32.xlu0 %v1710
        %v1737 = vpop.xlane.xlu0 %1736
        %1738 = vadd.xlane.f32.xlu0 %v1711
        %v1739 = vpop.xlane.xlu0 %1738
        %1740 = vadd.xlane.f32.xlu0 %v1712
        %v1741 = vpop.xlane.xlu0 %1740
        %1742 = vadd.xlane.f32.xlu0 %v1713
        %v1743 = vpop.xlane.xlu0 %1742
        %1744 = vadd.xlane.f32.xlu0 %v1714
        %v1745 = vpop.xlane.xlu0 %1744
        %1746 = vadd.xlane.f32.xlu0 %v1715
        %v1747 = vpop.xlane.xlu0 %1746
        %v1748 = vmul.f32 %v1717, %v908
        %v1749 = vmul.f32 %v1719, %v908
        %v1750 = vmul.f32 %v1721, %v908
        %v1751 = vmul.f32 %v1723, %v908
        %v1752 = vmul.f32 %v1725, %v908
        %v1753 = vmul.f32 %v1727, %v908
        %v1754 = vmul.f32 %v1729, %v908
        %v1755 = vmul.f32 %v1731, %v908
        %v1756 = vmul.f32 %v1733, %v908
        %v1757 = vmul.f32 %v1735, %v908
        %v1758 = vmul.f32 %v1737, %v908
        %v1759 = vmul.f32 %v1739, %v908
        %v1760 = vmul.f32 %v1741, %v908
        %v1761 = vmul.f32 %v1743, %v908
        %v1762 = vmul.f32 %v1745, %v908
        %v1763 = vmul.f32 %v1747, %v908
        %v1764 = vmul.f32 %v1700, %v1700
        %v1765 = vmul.f32 %v1701, %v1701
        %v1766 = vmul.f32 %v1702, %v1702
        %v1767 = vmul.f32 %v1703, %v1703
        %v1768 = vmul.f32 %v1704, %v1704
        %v1769 = vmul.f32 %v1705, %v1705
        %v1770 = vmul.f32 %v1706, %v1706
        %v1771 = vmul.f32 %v1707, %v1707
        %v1772 = vmul.f32 %v1708, %v1708
        %v1773 = vmul.f32 %v1709, %v1709
        %v1774 = vmul.f32 %v1710, %v1710
        %v1775 = vmul.f32 %v1711, %v1711
        %v1776 = vmul.f32 %v1712, %v1712
        %v1777 = vmul.f32 %v1713, %v1713
        %v1778 = vmul.f32 %v1714, %v1714
        %v1779 = vmul.f32 %v1715, %v1715
        %1780 = vadd.xlane.f32.xlu0 %v1764
        %v1781 = vpop.xlane.xlu0 %1780
        %1782 = vadd.xlane.f32.xlu0 %v1765
        %v1783 = vpop.xlane.xlu0 %1782
        %1784 = vadd.xlane.f32.xlu0 %v1766
        %v1785 = vpop.xlane.xlu0 %1784
        %1786 = vadd.xlane.f32.xlu0 %v1767
        %v1787 = vpop.xlane.xlu0 %1786
        %1788 = vadd.xlane.f32.xlu0 %v1768
        %v1789 = vpop.xlane.xlu0 %1788
        %1790 = vadd.xlane.f32.xlu0 %v1769
        %v1791 = vpop.xlane.xlu0 %1790
        %1792 = vadd.xlane.f32.xlu0 %v1770
        %v1793 = vpop.xlane.xlu0 %1792
        %1794 = vadd.xlane.f32.xlu0 %v1771
        %v1795 = vpop.xlane.xlu0 %1794
        %1796 = vadd.xlane.f32.xlu0 %v1772
        %v1797 = vpop.xlane.xlu0 %1796
        %1798 = vadd.xlane.f32.xlu0 %v1773
        %v1799 = vpop.xlane.xlu0 %1798
        %1800 = vadd.xlane.f32.xlu0 %v1774
        %v1801 = vpop.xlane.xlu0 %1800
        %1802 = vadd.xlane.f32.xlu0 %v1775
        %v1803 = vpop.xlane.xlu0 %1802
        %1804 = vadd.xlane.f32.xlu0 %v1776
        %v1805 = vpop.xlane.xlu0 %1804
        %1806 = vadd.xlane.f32.xlu0 %v1777
        %v1807 = vpop.xlane.xlu0 %1806
        %1808 = vadd.xlane.f32.xlu0 %v1778
        %v1809 = vpop.xlane.xlu0 %1808
        %1810 = vadd.xlane.f32.xlu0 %v1779
        %v1811 = vpop.xlane.xlu0 %1810
        %v1812 = vmul.f32 %v1781, %v908
        %v1813 = vmul.f32 %v1783, %v908
        %v1814 = vmul.f32 %v1785, %v908
        %v1815 = vmul.f32 %v1787, %v908
        %v1816 = vmul.f32 %v1789, %v908
        %v1817 = vmul.f32 %v1791, %v908
        %v1818 = vmul.f32 %v1793, %v908
        %v1819 = vmul.f32 %v1795, %v908
        %v1820 = vmul.f32 %v1797, %v908
        %v1821 = vmul.f32 %v1799, %v908
        %v1822 = vmul.f32 %v1801, %v908
        %v1823 = vmul.f32 %v1803, %v908
        %v1824 = vmul.f32 %v1805, %v908
        %v1825 = vmul.f32 %v1807, %v908
        %v1826 = vmul.f32 %v1809, %v908
        %v1827 = vmul.f32 %v1811, %v908
        %v1828 = vmul.f32 %v1748, %v1748
        %v1829 = vmul.f32 %v1749, %v1749
        %v1830 = vmul.f32 %v1750, %v1750
        %v1831 = vmul.f32 %v1751, %v1751
        %v1832 = vmul.f32 %v1752, %v1752
        %v1833 = vmul.f32 %v1753, %v1753
        %v1834 = vmul.f32 %v1754, %v1754
        %v1835 = vmul.f32 %v1755, %v1755
        %v1836 = vmul.f32 %v1756, %v1756
        %v1837 = vmul.f32 %v1757, %v1757
        %v1838 = vmul.f32 %v1758, %v1758
        %v1839 = vmul.f32 %v1759, %v1759
        %v1840 = vmul.f32 %v1760, %v1760
        %v1841 = vmul.f32 %v1761, %v1761
        %v1842 = vmul.f32 %v1762, %v1762
        %v1843 = vmul.f32 %v1763, %v1763
        %v1844 = vsub.f32 %v1812, %v1828
        %v1845 = vsub.f32 %v1813, %v1829
        %v1846 = vsub.f32 %v1814, %v1830
        %v1847 = vsub.f32 %v1815, %v1831
        %v1848 = vsub.f32 %v1816, %v1832
        %v1849 = vsub.f32 %v1817, %v1833
        %v1850 = vsub.f32 %v1818, %v1834
        %v1851 = vsub.f32 %v1819, %v1835
        %v1852 = vsub.f32 %v1820, %v1836
        %v1853 = vsub.f32 %v1821, %v1837
        %v1854 = vsub.f32 %v1822, %v1838
        %v1855 = vsub.f32 %v1823, %v1839
        %v1856 = vsub.f32 %v1824, %v1840
        %v1857 = vsub.f32 %v1825, %v1841
        %v1858 = vsub.f32 %v1826, %v1842
        %v1859 = vsub.f32 %v1827, %v1843
        %v1860 = vmax.f32 %v1844, 0.0
        %v1861 = vmax.f32 %v1845, 0.0
        %v1862 = vmax.f32 %v1846, 0.0
        %v1863 = vmax.f32 %v1847, 0.0
        %v1864 = vmax.f32 %v1848, 0.0
        %v1865 = vmax.f32 %v1849, 0.0
        %v1866 = vmax.f32 %v1850, 0.0
        %v1867 = vmax.f32 %v1851, 0.0
        %v1868 = vmax.f32 %v1852, 0.0
        %v1869 = vmax.f32 %v1853, 0.0
        %v1870 = vmax.f32 %v1854, 0.0
        %v1871 = vmax.f32 %v1855, 0.0
        %v1872 = vmax.f32 %v1856, 0.0
        %v1873 = vmax.f32 %v1857, 0.0
        %v1874 = vmax.f32 %v1858, 0.0
        %v1875 = vmax.f32 %v1859, 0.0
        %v1876 = vsub.f32 %v1700, %v1748
        %v1877 = vsub.f32 %v1701, %v1749
        %v1878 = vsub.f32 %v1702, %v1750
        %v1879 = vsub.f32 %v1703, %v1751
        %v1880 = vsub.f32 %v1704, %v1752
        %v1881 = vsub.f32 %v1705, %v1753
        %v1882 = vsub.f32 %v1706, %v1754
        %v1883 = vsub.f32 %v1707, %v1755
        %v1884 = vsub.f32 %v1708, %v1756
        %v1885 = vsub.f32 %v1709, %v1757
        %v1886 = vsub.f32 %v1710, %v1758
        %v1887 = vsub.f32 %v1711, %v1759
        %v1888 = vsub.f32 %v1712, %v1760
        %v1889 = vsub.f32 %v1713, %v1761
        %v1890 = vsub.f32 %v1714, %v1762
        %v1891 = vsub.f32 %v1715, %v1763
        %v1892 = vadd.f32 %v1860, 1e-05
        %v1893 = vadd.f32 %v1861, 1e-05
        %v1894 = vadd.f32 %v1862, 1e-05
        %v1895 = vadd.f32 %v1863, 1e-05
        %v1896 = vadd.f32 %v1864, 1e-05
        %v1897 = vadd.f32 %v1865, 1e-05
        %v1898 = vadd.f32 %v1866, 1e-05
        %v1899 = vadd.f32 %v1867, 1e-05
        %v1900 = vadd.f32 %v1868, 1e-05
        %v1901 = vadd.f32 %v1869, 1e-05
        %v1902 = vadd.f32 %v1870, 1e-05
        %v1903 = vadd.f32 %v1871, 1e-05
        %v1904 = vadd.f32 %v1872, 1e-05
        %v1905 = vadd.f32 %v1873, 1e-05
        %v1906 = vadd.f32 %v1874, 1e-05
        %v1907 = vadd.f32 %v1875, 1e-05
        %v1908 = vrsqrt.pop %v1892
        %v1909 = vrsqrt.pop %v1893
        %v1910 = vrsqrt.pop %v1894
        %v1911 = vrsqrt.pop %v1895
        %v1912 = vrsqrt.pop %v1896
        %v1913 = vrsqrt.pop %v1897
        %v1914 = vrsqrt.pop %v1898
        %v1915 = vrsqrt.pop %v1899
        %v1916 = vrsqrt.pop %v1900
        %v1917 = vrsqrt.pop %v1901
        %v1918 = vrsqrt.pop %v1902
        %v1919 = vrsqrt.pop %v1903
        %v1920 = vrsqrt.pop %v1904
        %v1921 = vrsqrt.pop %v1905
        %v1922 = vrsqrt.pop %v1906
        %v1923 = vrsqrt.pop %v1907
        %v1924 = vmul.f32 %v1876, %v1908
        %v1925 = vmul.f32 %v1877, %v1909
        %v1926 = vmul.f32 %v1878, %v1910
        %v1927 = vmul.f32 %v1879, %v1911
        %v1928 = vmul.f32 %v1880, %v1912
        %v1929 = vmul.f32 %v1881, %v1913
        %v1930 = vmul.f32 %v1882, %v1914
        %v1931 = vmul.f32 %v1883, %v1915
        %v1932 = vmul.f32 %v1884, %v1916
        %v1933 = vmul.f32 %v1885, %v1917
        %v1934 = vmul.f32 %v1886, %v1918
        %v1935 = vmul.f32 %v1887, %v1919
        %v1936 = vmul.f32 %v1888, %v1920
        %v1937 = vmul.f32 %v1889, %v1921
        %v1938 = vmul.f32 %v1890, %v1922
        %v1939 = vmul.f32 %v1891, %v1923
        %v1940 = vld [vmem:[%s3 + $0x1] sm:$0x1]
        %v1941 = vlaneseq
        %v1942 = vshrl.u32 %v1941, 7
        %v1943 = vsub.s32 0, %v1942
        %v1944 = vrot.slane %v1940, %v1943
        %v1945 = vmul.f32 %v1924, %v1944
        %v1946 = vmul.f32 %v1925, %v1944
        %v1947 = vmul.f32 %v1926, %v1944
        %v1948 = vmul.f32 %v1927, %v1944
        %v1949 = vmul.f32 %v1928, %v1944
        %v1950 = vmul.f32 %v1929, %v1944
        %v1951 = vmul.f32 %v1930, %v1944
        %v1952 = vmul.f32 %v1931, %v1944
        %v1953 = vmul.f32 %v1932, %v1944
        %v1954 = vmul.f32 %v1933, %v1944
        %v1955 = vmul.f32 %v1934, %v1944
        %v1956 = vmul.f32 %v1935, %v1944
        %v1957 = vmul.f32 %v1936, %v1944
        %v1958 = vmul.f32 %v1937, %v1944
        %v1959 = vmul.f32 %v1938, %v1944
        %v1960 = vmul.f32 %v1939, %v1944
        %v1961 = vld [vmem:[#allocation8 + $0x1] sm:$0x1]
        %v1962 = vlaneseq
        %v1963 = vshrl.u32 %v1962, 7
        %v1964 = vsub.s32 0, %v1963
        %v1965 = vrot.slane %v1961, %v1964
        %v1966 = vadd.f32 %v1945, %v1965
        %v1967 = vadd.f32 %v1946, %v1965
        %v1968 = vadd.f32 %v1947, %v1965
        %v1969 = vadd.f32 %v1948, %v1965
        %v1970 = vadd.f32 %v1949, %v1965
        %v1971 = vadd.f32 %v1950, %v1965
        %v1972 = vadd.f32 %v1951, %v1965
        %v1973 = vadd.f32 %v1952, %v1965
        %v1974 = vadd.f32 %v1953, %v1965
        %v1975 = vadd.f32 %v1954, %v1965
        %v1976 = vadd.f32 %v1955, %v1965
        %v1977 = vadd.f32 %v1956, %v1965
        %v1978 = vadd.f32 %v1957, %v1965
        %v1979 = vadd.f32 %v1958, %v1965
        %v1980 = vadd.f32 %v1959, %v1965
        %v1981 = vadd.f32 %v1960, %v1965
        %v1982 = vpack.c.bf16 %v1967, %v1966
        %v1983 = vpack.c.bf16 %v1969, %v1968
        %v1984 = vpack.c.bf16 %v1971, %v1970
        %v1985 = vpack.c.bf16 %v1973, %v1972
        %v1986 = vpack.c.bf16 %v1975, %v1974
        %v1987 = vpack.c.bf16 %v1977, %v1976
        %v1988 = vpack.c.bf16 %v1979, %v1978
        %v1989 = vpack.c.bf16 %v1981, %v1980
        %s1990 = scalar_lea.vmem [#allocation5], 384
        %v1991 = vld [vmem:[%s1990] sm:$0xf]
        %v1992 = vld [vmem:[%s1990 + $0x4] sm:$0xf]
        %v1993 = vld [vmem:[%s1990 + $0x8] sm:$0xf]
        %v1994 = vld [vmem:[%s1990 + $0xc] sm:$0xf]
        %v1995 = vld [vmem:[%s1990 + $0x10] sm:$0xf]
        %v1996 = vld [vmem:[%s1990 + $0x14] sm:$0xf]
        %v1997 = vld [vmem:[%s1990 + $0x18] sm:$0xf]
        %v1998 = vld [vmem:[%s1990 + $0x1c] sm:$0xf]
        %v1999 = vld [vmem:[%s1990 + $0x20] sm:$0xf]
        %v2000 = vld [vmem:[%s1990 + $0x24] sm:$0xf]
        %v2001 = vld [vmem:[%s1990 + $0x28] sm:$0xf]
        %v2002 = vld [vmem:[%s1990 + $0x2c] sm:$0xf]
        %v2003 = vld [vmem:[%s1990 + $0x30] sm:$0xf]
        %v2004 = vld [vmem:[%s1990 + $0x34] sm:$0xf]
        %v2005 = vld [vmem:[%s1990 + $0x38] sm:$0xf]
        %v2006 = vld [vmem:[%s1990 + $0x3c] sm:$0xf]
        %v2007 = vld [vmem:[#allocation7 + $0x6] sm:$0x1]
        %v2008 = vlaneseq
        %v2009 = vshrl.u32 %v2008, 7
        %v2010 = vsub.s32 0, %v2009
        %v2011 = vrot.slane %v2007, %v2010
        %v2028 = vunpack.c.l.b16 %v1991
        %v2029 = vunpack.c.l.b16 %v1992
        %v2030 = vunpack.c.l.b16 %v1993
        %v2031 = vunpack.c.l.b16 %v1994
        %v2032 = vunpack.c.l.b16 %v1995
        %v2033 = vunpack.c.l.b16 %v1996
        %v2034 = vunpack.c.l.b16 %v1997
        %v2035 = vunpack.c.l.b16 %v1998
        %v2036 = vunpack.c.l.b16 %v1999
        %v2037 = vunpack.c.l.b16 %v2000
        %v2038 = vunpack.c.l.b16 %v2001
        %v2039 = vunpack.c.l.b16 %v2002
        %v2040 = vunpack.c.l.b16 %v2003
        %v2041 = vunpack.c.l.b16 %v2004
        %v2042 = vunpack.c.l.b16 %v2005
        %v2043 = vunpack.c.l.b16 %v2006
        %v2044 = vpack.c.b16 %v2029, %v2028
        %v2045 = vpack.c.b16 %v2031, %v2030
        %v2046 = vpack.c.b16 %v2033, %v2032
        %v2047 = vpack.c.b16 %v2035, %v2034
        %v2048 = vpack.c.b16 %v2037, %v2036
        %v2049 = vpack.c.b16 %v2039, %v2038
        %v2050 = vpack.c.b16 %v2041, %v2040
        %v2051 = vpack.c.b16 %v2043, %v2042
        %2060 = vmatprep.subr.bf16.mxu0 0
        %2061 = vmatpush1.bf16.msra.mxu0 %v2044
        %2062 = vmatprep.subr.bf16.mxu0 0
        %2063 = vmatpush1.bf16.msra.mxu0 %v2045
        %2064 = vmatprep.subr.bf16.mxu0 0
        %2065 = vmatpush1.bf16.msra.mxu0 %v2046
        %2066 = vmatprep.subr.bf16.mxu0 0
        %2067 = vmatpush1.bf16.msra.mxu0 %v2047
        %2068 = vmatprep.subr.bf16.mxu0 0
        %2069 = vmatpush1.bf16.msra.mxu0 %v2048
        %2070 = vmatprep.subr.bf16.mxu0 0
        %2071 = vmatpush1.bf16.msra.mxu0 %v2049
        %2072 = vmatprep.subr.bf16.mxu0 0
        %2073 = vmatpush1.bf16.msra.mxu0 %v2050
        %2074 = vmatprep.subr.bf16.mxu0 0
        %2075 = vmatpush1.bf16.msra.mxu0 %v2051
        %2076 = vmatprep.subr.bf16.mxu0 0
        %2077 = vmatpush1.bf16.msra.mxu0 0
        %2078 = vmatprep.subr.bf16.mxu0 0
        %2079 = vmatpush1.bf16.msra.mxu0 0
        %2080 = vmatprep.subr.bf16.mxu0 0
        %2081 = vmatpush1.bf16.msra.mxu0 0
        %2082 = vmatprep.subr.bf16.mxu0 0
        %2083 = vmatpush1.bf16.msra.mxu0 0
        %2084 = vmatprep.subr.bf16.mxu0 0
        %2085 = vmatpush1.bf16.msra.mxu0 0
        %2086 = vmatprep.subr.bf16.mxu0 0
        %2087 = vmatpush1.bf16.msra.mxu0 0
        %2088 = vmatprep.subr.bf16.mxu0 0
        %2089 = vmatpush1.bf16.msra.mxu0 0
        %2090 = vmatprep.subr.bf16.mxu0 0
        %2091 = vmatpush1.bf16.msra.mxu0 0
        %2092 = vmatprep.mubr.bf16.mxu0 0
        %2093 = vmatmul.mubr.bf16.gmra.mrb[0].mxu0 %v1982
        %v2094 = vpop.f32.mrb[0].mxu0
        %v2095 = vadd.f32 %v2011, %v2094
        %v2096 = vpop.f32.mrb[0].mxu0
        %v2097 = vpop.f32.mrb[0].mxu0
        %v2098 = vadd.f32 %v2011, %v2097
        %v2099 = vpop.f32.mrb[0].mxu0
        %2100 = vmatprep.mubr.bf16.mxu0 0
        %2101 = vmatmul.mubr.bf16.gmra.mrb[0].mxu0 %v1983
        %v2102 = vpop.f32.mrb[0].mxu0
        %v2103 = vadd.f32 %v2011, %v2102
        %v2104 = vpop.f32.mrb[0].mxu0
        %v2105 = vpop.f32.mrb[0].mxu0
        %v2106 = vadd.f32 %v2011, %v2105
        %v2107 = vpop.f32.mrb[0].mxu0
        %2108 = vmatprep.mubr.bf16.mxu0 0
        %2109 = vmatmul.mubr.bf16.gmra.mrb[0].mxu0 %v1984
        %v2110 = vpop.f32.mrb[0].mxu0
        %v2111 = vadd.f32 %v2011, %v2110
        %v2112 = vpop.f32.mrb[0].mxu0
        %v2113 = vpop.f32.mrb[0].mxu0
        %v2114 = vadd.f32 %v2011, %v2113
        %v2115 = vpop.f32.mrb[0].mxu0
        %2116 = vmatprep.mubr.bf16.mxu0 0
        %2117 = vmatmul.mubr.bf16.gmra.mrb[0].mxu0 %v1985
        %v2118 = vpop.f32.mrb[0].mxu0
        %v2119 = vadd.f32 %v2011, %v2118
        %v2120 = vpop.f32.mrb[0].mxu0
        %v2121 = vpop.f32.mrb[0].mxu0
        %v2122 = vadd.f32 %v2011, %v2121
        %v2123 = vpop.f32.mrb[0].mxu0
        %2124 = vmatprep.mubr.bf16.mxu0 0
        %2125 = vmatmul.mubr.bf16.gmra.mrb[0].mxu0 %v1986
        %v2126 = vpop.f32.mrb[0].mxu0
        %v2127 = vadd.f32 %v2011, %v2126
        %v2128 = vpop.f32.mrb[0].mxu0
        %v2129 = vpop.f32.mrb[0].mxu0
        %v2130 = vadd.f32 %v2011, %v2129
        %v2131 = vpop.f32.mrb[0].mxu0
        %2132 = vmatprep.mubr.bf16.mxu0 0
        %2133 = vmatmul.mubr.bf16.gmra.mrb[0].mxu0 %v1987
        %v2134 = vpop.f32.mrb[0].mxu0
        %v2135 = vadd.f32 %v2011, %v2134
        %v2136 = vpop.f32.mrb[0].mxu0
        %v2137 = vpop.f32.mrb[0].mxu0
        %v2138 = vadd.f32 %v2011, %v2137
        %v2139 = vpop.f32.mrb[0].mxu0
        %2140 = vmatprep.mubr.bf16.mxu0 0
        %2141 = vmatmul.mubr.bf16.gmra.mrb[0].mxu0 %v1988
        %v2142 = vpop.f32.mrb[0].mxu0
        %v2143 = vadd.f32 %v2011, %v2142
        %v2144 = vpop.f32.mrb[0].mxu0
        %v2145 = vpop.f32.mrb[0].mxu0
        %v2146 = vadd.f32 %v2011, %v2145
        %v2147 = vpop.f32.mrb[0].mxu0
        %2148 = vmatprep.mubr.bf16.mxu0 0
        %2149 = vmatmul.mubr.bf16.gmra.mrb[0].mxu0 %v1989
        %v2150 = vpop.f32.mrb[0].mxu0
        %v2151 = vadd.f32 %v2011, %v2150
        %v2152 = vpop.f32.mrb[0].mxu0
        %v2153 = vpop.f32.mrb[0].mxu0
        %v2154 = vadd.f32 %v2011, %v2153
        %v2155 = vpop.f32.mrb[0].mxu0
        %2156 = vdwg.mxu0
        %v2157 = vmax.f32 %v2095, 0.0
        %v2158 = vmax.f32 %v2098, 0.0
        %v2159 = vmax.f32 %v2103, 0.0
        %v2160 = vmax.f32 %v2106, 0.0
        %v2161 = vmax.f32 %v2111, 0.0
        %v2162 = vmax.f32 %v2114, 0.0
        %v2163 = vmax.f32 %v2119, 0.0
        %v2164 = vmax.f32 %v2122, 0.0
        %v2165 = vmax.f32 %v2127, 0.0
        %v2166 = vmax.f32 %v2130, 0.0
        %v2167 = vmax.f32 %v2135, 0.0
        %v2168 = vmax.f32 %v2138, 0.0
        %v2169 = vmax.f32 %v2143, 0.0
        %v2170 = vmax.f32 %v2146, 0.0
        %v2171 = vmax.f32 %v2151, 0.0
        %v2172 = vmax.f32 %v2154, 0.0
        %v2173 = vpack.c.bf16 %v2158, %v2157
        %v2174 = vpack.c.bf16 %v2160, %v2159
        %v2175 = vpack.c.bf16 %v2162, %v2161
        %v2176 = vpack.c.bf16 %v2164, %v2163
        %v2177 = vpack.c.bf16 %v2166, %v2165
        %v2178 = vpack.c.bf16 %v2168, %v2167
        %v2179 = vpack.c.bf16 %v2170, %v2169
        %v2180 = vpack.c.bf16 %v2172, %v2171
        %s2181 = scalar_lea.vmem [#allocation5], 448
        %v2182 = vld [vmem:[%s2181] sm:$0xf]
        %v2183 = vld [vmem:[%s2181 + $0x4] sm:$0xf]
        %v2184 = vld [vmem:[%s2181 + $0x8] sm:$0xf]
        %v2185 = vld [vmem:[%s2181 + $0xc] sm:$0xf]
        %v2186 = vld [vmem:[%s2181 + $0x10] sm:$0xf]
        %v2187 = vld [vmem:[%s2181 + $0x14] sm:$0xf]
        %v2188 = vld [vmem:[%s2181 + $0x18] sm:$0xf]
        %v2189 = vld [vmem:[%s2181 + $0x1c] sm:$0xf]
        %v2190 = vld [vmem:[%s2181 + $0x20] sm:$0xf]
        %v2191 = vld [vmem:[%s2181 + $0x24] sm:$0xf]
        %v2192 = vld [vmem:[%s2181 + $0x28] sm:$0xf]
        %v2193 = vld [vmem:[%s2181 + $0x2c] sm:$0xf]
        %v2194 = vld [vmem:[%s2181 + $0x30] sm:$0xf]
        %v2195 = vld [vmem:[%s2181 + $0x34] sm:$0xf]
        %v2196 = vld [vmem:[%s2181 + $0x38] sm:$0xf]
        %v2197 = vld [vmem:[%s2181 + $0x3c] sm:$0xf]
        %v2198 = vld [vmem:[#allocation7 + $0x7] sm:$0x1]
        %v2199 = vlaneseq
        %v2200 = vshrl.u32 %v2199, 7
        %v2201 = vsub.s32 0, %v2200
        %v2202 = vrot.slane %v2198, %v2201
        %v2219 = vunpack.c.l.b16 %v2182
        %v2220 = vunpack.c.l.b16 %v2183
        %v2221 = vunpack.c.l.b16 %v2184
        %v2222 = vunpack.c.l.b16 %v2185
        %v2223 = vunpack.c.l.b16 %v2186
        %v2224 = vunpack.c.l.b16 %v2187
        %v2225 = vunpack.c.l.b16 %v2188
        %v2226 = vunpack.c.l.b16 %v2189
        %v2227 = vunpack.c.l.b16 %v2190
        %v2228 = vunpack.c.l.b16 %v2191
        %v2229 = vunpack.c.l.b16 %v2192
        %v2230 = vunpack.c.l.b16 %v2193
        %v2231 = vunpack.c.l.b16 %v2194
        %v2232 = vunpack.c.l.b16 %v2195
        %v2233 = vunpack.c.l.b16 %v2196
        %v2234 = vunpack.c.l.b16 %v2197
        %v2235 = vpack.c.b16 %v2220, %v2219
        %v2236 = vpack.c.b16 %v2222, %v2221
        %v2237 = vpack.c.b16 %v2224, %v2223
        %v2238 = vpack.c.b16 %v2226, %v2225
        %v2239 = vpack.c.b16 %v2228, %v2227
        %v2240 = vpack.c.b16 %v2230, %v2229
        %v2241 = vpack.c.b16 %v2232, %v2231
        %v2242 = vpack.c.b16 %v2234, %v2233
        %2251 = vmatprep.subr.bf16.mxu0 0
        %2252 = vmatpush1.bf16.msra.mxu0 %v2235
        %2253 = vmatprep.subr.bf16.mxu0 0
        %2254 = vmatpush1.bf16.msra.mxu0 %v2236
        %2255 = vmatprep.subr.bf16.mxu0 0
        %2256 = vmatpush1.bf16.msra.mxu0 %v2237
        %2257 = vmatprep.subr.bf16.mxu0 0
        %2258 = vmatpush1.bf16.msra.mxu0 %v2238
        %2259 = vmatprep.subr.bf16.mxu0 0
        %2260 = vmatpush1.bf16.msra.mxu0 %v2239
        %2261 = vmatprep.subr.bf16.mxu0 0
        %2262 = vmatpush1.bf16.msra.mxu0 %v2240
        %2263 = vmatprep.subr.bf16.mxu0 0
        %2264 = vmatpush1.bf16.msra.mxu0 %v2241
        %2265 = vmatprep.subr.bf16.mxu0 0
        %2266 = vmatpush1.bf16.msra.mxu0 %v2242
        %2267 = vmatprep.subr.bf16.mxu0 0
        %2268 = vmatpush1.bf16.msra.mxu0 0
        %2269 = vmatprep.subr.bf16.mxu0 0
        %2270 = vmatpush1.bf16.msra.mxu0 0
        %2271 = vmatprep.subr.bf16.mxu0 0
        %2272 = vmatpush1.bf16.msra.mxu0 0
        %2273 = vmatprep.subr.bf16.mxu0 0
        %2274 = vmatpush1.bf16.msra.mxu0 0
        %2275 = vmatprep.subr.bf16.mxu0 0
        %2276 = vmatpush1.bf16.msra.mxu0 0
        %2277 = vmatprep.subr.bf16.mxu0 0
        %2278 = vmatpush1.bf16.msra.mxu0 0
        %2279 = vmatprep.subr.bf16.mxu0 0
        %2280 = vmatpush1.bf16.msra.mxu0 0
        %2281 = vmatprep.subr.bf16.mxu0 0
        %2282 = vmatpush1.bf16.msra.mxu0 0
        %2283 = vmatprep.mubr.bf16.mxu0 0
        %2284 = vmatmul.mubr.bf16.gmra.mrb[0].mxu0 %v2173
        %v2285 = vpop.f32.mrb[0].mxu0
        %v2286 = vadd.f32 %v2202, %v2285
        %v2287 = vpop.f32.mrb[0].mxu0
        %v2288 = vpop.f32.mrb[0].mxu0
        %v2289 = vadd.f32 %v2202, %v2288
        %v2290 = vpop.f32.mrb[0].mxu0
        %2291 = vmatprep.mubr.bf16.mxu0 0
        %2292 = vmatmul.mubr.bf16.gmra.mrb[0].mxu0 %v2174
        %v2293 = vpop.f32.mrb[0].mxu0
        %v2294 = vadd.f32 %v2202, %v2293
        %v2295 = vpop.f32.mrb[0].mxu0
        %v2296 = vpop.f32.mrb[0].mxu0
        %v2297 = vadd.f32 %v2202, %v2296
        %v2298 = vpop.f32.mrb[0].mxu0
        %2299 = vmatprep.mubr.bf16.mxu0 0
        %2300 = vmatmul.mubr.bf16.gmra.mrb[0].mxu0 %v2175
        %v2301 = vpop.f32.mrb[0].mxu0
        %v2302 = vadd.f32 %v2202, %v2301
        %v2303 = vpop.f32.mrb[0].mxu0
        %v2304 = vpop.f32.mrb[0].mxu0
        %v2305 = vadd.f32 %v2202, %v2304
        %v2306 = vpop.f32.mrb[0].mxu0
        %2307 = vmatprep.mubr.bf16.mxu0 0
        %2308 = vmatmul.mubr.bf16.gmra.mrb[0].mxu0 %v2176
        %v2309 = vpop.f32.mrb[0].mxu0
        %v2310 = vadd.f32 %v2202, %v2309
        %v2311 = vpop.f32.mrb[0].mxu0
        %v2312 = vpop.f32.mrb[0].mxu0
        %v2313 = vadd.f32 %v2202, %v2312
        %v2314 = vpop.f32.mrb[0].mxu0
        %2315 = vmatprep.mubr.bf16.mxu0 0
        %2316 = vmatmul.mubr.bf16.gmra.mrb[0].mxu0 %v2177
        %v2317 = vpop.f32.mrb[0].mxu0
        %v2318 = vadd.f32 %v2202, %v2317
        %v2319 = vpop.f32.mrb[0].mxu0
        %v2320 = vpop.f32.mrb[0].mxu0
        %v2321 = vadd.f32 %v2202, %v2320
        %v2322 = vpop.f32.mrb[0].mxu0
        %2323 = vmatprep.mubr.bf16.mxu0 0
        %2324 = vmatmul.mubr.bf16.gmra.mrb[0].mxu0 %v2178
        %v2325 = vpop.f32.mrb[0].mxu0
        %v2326 = vadd.f32 %v2202, %v2325
        %v2327 = vpop.f32.mrb[0].mxu0
        %v2328 = vpop.f32.mrb[0].mxu0
        %v2329 = vadd.f32 %v2202, %v2328
        %v2330 = vpop.f32.mrb[0].mxu0
        %2331 = vmatprep.mubr.bf16.mxu0 0
        %2332 = vmatmul.mubr.bf16.gmra.mrb[0].mxu0 %v2179
        %v2333 = vpop.f32.mrb[0].mxu0
        %v2334 = vadd.f32 %v2202, %v2333
        %v2335 = vpop.f32.mrb[0].mxu0
        %v2336 = vpop.f32.mrb[0].mxu0
        %v2337 = vadd.f32 %v2202, %v2336
        %v2338 = vpop.f32.mrb[0].mxu0
        %2339 = vmatprep.mubr.bf16.mxu0 0
        %2340 = vmatmul.mubr.bf16.gmra.mrb[0].mxu0 %v2180
        %v2341 = vpop.f32.mrb[0].mxu0
        %v2342 = vadd.f32 %v2202, %v2341
        %v2343 = vpop.f32.mrb[0].mxu0
        %v2344 = vpop.f32.mrb[0].mxu0
        %v2345 = vadd.f32 %v2202, %v2344
        %v2346 = vpop.f32.mrb[0].mxu0
        %2347 = vdwg.mxu0
        %v2348 = vmax.f32 %v2286, 0.0
        %v2349 = vmax.f32 %v2289, 0.0
        %v2350 = vmax.f32 %v2294, 0.0
        %v2351 = vmax.f32 %v2297, 0.0
        %v2352 = vmax.f32 %v2302, 0.0
        %v2353 = vmax.f32 %v2305, 0.0
        %v2354 = vmax.f32 %v2310, 0.0
        %v2355 = vmax.f32 %v2313, 0.0
        %v2356 = vmax.f32 %v2318, 0.0
        %v2357 = vmax.f32 %v2321, 0.0
        %v2358 = vmax.f32 %v2326, 0.0
        %v2359 = vmax.f32 %v2329, 0.0
        %v2360 = vmax.f32 %v2334, 0.0
        %v2361 = vmax.f32 %v2337, 0.0
        %v2362 = vmax.f32 %v2342, 0.0
        %v2363 = vmax.f32 %v2345, 0.0
        %v2364 = vpack.c.bf16 %v2349, %v2348
        %v2365 = vpack.c.bf16 %v2351, %v2350
        %v2366 = vpack.c.bf16 %v2353, %v2352
        %v2367 = vpack.c.bf16 %v2355, %v2354
        %v2368 = vpack.c.bf16 %v2357, %v2356
        %v2369 = vpack.c.bf16 %v2359, %v2358
        %v2370 = vpack.c.bf16 %v2361, %v2360
        %v2371 = vpack.c.bf16 %v2363, %v2362
        %s2372 = scalar_lea.vmem [#allocation5], 512
        %v2373 = vld [vmem:[%s2372] sm:$0xf]
        %v2374 = vld [vmem:[%s2372 + $0x4] sm:$0xf]
        %v2375 = vld [vmem:[%s2372 + $0x8] sm:$0xf]
        %v2376 = vld [vmem:[%s2372 + $0xc] sm:$0xf]
        %v2377 = vld [vmem:[%s2372 + $0x10] sm:$0xf]
        %v2378 = vld [vmem:[%s2372 + $0x14] sm:$0xf]
        %v2379 = vld [vmem:[%s2372 + $0x18] sm:$0xf]
        %v2380 = vld [vmem:[%s2372 + $0x1c] sm:$0xf]
        %v2381 = vld [vmem:[%s2372 + $0x20] sm:$0xf]
        %v2382 = vld [vmem:[%s2372 + $0x24] sm:$0xf]
        %v2383 = vld [vmem:[%s2372 + $0x28] sm:$0xf]
        %v2384 = vld [vmem:[%s2372 + $0x2c] sm:$0xf]
        %v2385 = vld [vmem:[%s2372 + $0x30] sm:$0xf]
        %v2386 = vld [vmem:[%s2372 + $0x34] sm:$0xf]
        %v2387 = vld [vmem:[%s2372 + $0x38] sm:$0xf]
        %v2388 = vld [vmem:[%s2372 + $0x3c] sm:$0xf]
        %v2389 = vld [vmem:[#allocation7 + $0x8] sm:$0x1]
        %v2390 = vlaneseq
        %v2391 = vshrl.u32 %v2390, 7
        %v2392 = vsub.s32 0, %v2391
        %v2393 = vrot.slane %v2389, %v2392
        %v2410 = vunpack.c.l.b16 %v2373
        %v2411 = vunpack.c.l.b16 %v2374
        %v2412 = vunpack.c.l.b16 %v2375
        %v2413 = vunpack.c.l.b16 %v2376
        %v2414 = vunpack.c.l.b16 %v2377
        %v2415 = vunpack.c.l.b16 %v2378
        %v2416 = vunpack.c.l.b16 %v2379
        %v2417 = vunpack.c.l.b16 %v2380
        %v2418 = vunpack.c.l.b16 %v2381
        %v2419 = vunpack.c.l.b16 %v2382
        %v2420 = vunpack.c.l.b16 %v2383
        %v2421 = vunpack.c.l.b16 %v2384
        %v2422 = vunpack.c.l.b16 %v2385
        %v2423 = vunpack.c.l.b16 %v2386
        %v2424 = vunpack.c.l.b16 %v2387
        %v2425 = vunpack.c.l.b16 %v2388
        %v2426 = vpack.c.b16 %v2411, %v2410
        %v2427 = vpack.c.b16 %v2413, %v2412
        %v2428 = vpack.c.b16 %v2415, %v2414
        %v2429 = vpack.c.b16 %v2417, %v2416
        %v2430 = vpack.c.b16 %v2419, %v2418
        %v2431 = vpack.c.b16 %v2421, %v2420
        %v2432 = vpack.c.b16 %v2423, %v2422
        %v2433 = vpack.c.b16 %v2425, %v2424
        %2442 = vmatprep.subr.bf16.mxu0 0
        %2443 = vmatpush1.bf16.msra.mxu0 %v2426
        %2444 = vmatprep.subr.bf16.mxu0 0
        %2445 = vmatpush1.bf16.msra.mxu0 %v2427
        %2446 = vmatprep.subr.bf16.mxu0 0
        %2447 = vmatpush1.bf16.msra.mxu0 %v2428
        %2448 = vmatprep.subr.bf16.mxu0 0
        %2449 = vmatpush1.bf16.msra.mxu0 %v2429
        %2450 = vmatprep.subr.bf16.mxu0 0
        %2451 = vmatpush1.bf16.msra.mxu0 %v2430
        %2452 = vmatprep.subr.bf16.mxu0 0
        %2453 = vmatpush1.bf16.msra.mxu0 %v2431
        %2454 = vmatprep.subr.bf16.mxu0 0
        %2455 = vmatpush1.bf16.msra.mxu0 %v2432
        %2456 = vmatprep.subr.bf16.mxu0 0
        %2457 = vmatpush1.bf16.msra.mxu0 %v2433
        %2458 = vmatprep.subr.bf16.mxu0 0
        %2459 = vmatpush1.bf16.msra.mxu0 0
        %2460 = vmatprep.subr.bf16.mxu0 0
        %2461 = vmatpush1.bf16.msra.mxu0 0
        %2462 = vmatprep.subr.bf16.mxu0 0
        %2463 = vmatpush1.bf16.msra.mxu0 0
        %2464 = vmatprep.subr.bf16.mxu0 0
        %2465 = vmatpush1.bf16.msra.mxu0 0
        %2466 = vmatprep.subr.bf16.mxu0 0
        %2467 = vmatpush1.bf16.msra.mxu0 0
        %2468 = vmatprep.subr.bf16.mxu0 0
        %2469 = vmatpush1.bf16.msra.mxu0 0
        %2470 = vmatprep.subr.bf16.mxu0 0
        %2471 = vmatpush1.bf16.msra.mxu0 0
        %2472 = vmatprep.subr.bf16.mxu0 0
        %2473 = vmatpush1.bf16.msra.mxu0 0
        %2474 = vmatprep.mubr.bf16.mxu0 0
        %2475 = vmatmul.mubr.bf16.gmra.mrb[0].mxu0 %v2364
        %v2476 = vpop.f32.mrb[0].mxu0
        %v2477 = vadd.f32 %v2393, %v2476
        %v2478 = vpop.f32.mrb[0].mxu0
        %v2479 = vpop.f32.mrb[0].mxu0
        %v2480 = vadd.f32 %v2393, %v2479
        %v2481 = vpop.f32.mrb[0].mxu0
        %2482 = vmatprep.mubr.bf16.mxu0 0
        %2483 = vmatmul.mubr.bf16.gmra.mrb[0].mxu0 %v2365
        %v2484 = vpop.f32.mrb[0].mxu0
        %v2485 = vadd.f32 %v2393, %v2484
        %v2486 = vpop.f32.mrb[0].mxu0
        %v2487 = vpop.f32.mrb[0].mxu0
        %v2488 = vadd.f32 %v2393, %v2487
        %v2489 = vpop.f32.mrb[0].mxu0
        %2490 = vmatprep.mubr.bf16.mxu0 0
        %2491 = vmatmul.mubr.bf16.gmra.mrb[0].mxu0 %v2366
        %v2492 = vpop.f32.mrb[0].mxu0
        %v2493 = vadd.f32 %v2393, %v2492
        %v2494 = vpop.f32.mrb[0].mxu0
        %v2495 = vpop.f32.mrb[0].mxu0
        %v2496 = vadd.f32 %v2393, %v2495
        %v2497 = vpop.f32.mrb[0].mxu0
        %2498 = vmatprep.mubr.bf16.mxu0 0
        %2499 = vmatmul.mubr.bf16.gmra.mrb[0].mxu0 %v2367
        %v2500 = vpop.f32.mrb[0].mxu0
        %v2501 = vadd.f32 %v2393, %v2500
        %v2502 = vpop.f32.mrb[0].mxu0
        %v2503 = vpop.f32.mrb[0].mxu0
        %v2504 = vadd.f32 %v2393, %v2503
        %v2505 = vpop.f32.mrb[0].mxu0
        %2506 = vmatprep.mubr.bf16.mxu0 0
        %2507 = vmatmul.mubr.bf16.gmra.mrb[0].mxu0 %v2368
        %v2508 = vpop.f32.mrb[0].mxu0
        %v2509 = vadd.f32 %v2393, %v2508
        %v2510 = vpop.f32.mrb[0].mxu0
        %v2511 = vpop.f32.mrb[0].mxu0
        %v2512 = vadd.f32 %v2393, %v2511
        %v2513 = vpop.f32.mrb[0].mxu0
        %2514 = vmatprep.mubr.bf16.mxu0 0
        %2515 = vmatmul.mubr.bf16.gmra.mrb[0].mxu0 %v2369
        %v2516 = vpop.f32.mrb[0].mxu0
        %v2517 = vadd.f32 %v2393, %v2516
        %v2518 = vpop.f32.mrb[0].mxu0
        %v2519 = vpop.f32.mrb[0].mxu0
        %v2520 = vadd.f32 %v2393, %v2519
        %v2521 = vpop.f32.mrb[0].mxu0
        %2522 = vmatprep.mubr.bf16.mxu0 0
        %2523 = vmatmul.mubr.bf16.gmra.mrb[0].mxu0 %v2370
        %v2524 = vpop.f32.mrb[0].mxu0
        %v2525 = vadd.f32 %v2393, %v2524
        %v2526 = vpop.f32.mrb[0].mxu0
        %v2527 = vpop.f32.mrb[0].mxu0
        %v2528 = vadd.f32 %v2393, %v2527
        %v2529 = vpop.f32.mrb[0].mxu0
        %2530 = vmatprep.mubr.bf16.mxu0 0
        %2531 = vmatmul.mubr.bf16.gmra.mrb[0].mxu0 %v2371
        %v2532 = vpop.f32.mrb[0].mxu0
        %v2533 = vadd.f32 %v2393, %v2532
        %v2534 = vpop.f32.mrb[0].mxu0
        %v2535 = vpop.f32.mrb[0].mxu0
        %v2536 = vadd.f32 %v2393, %v2535
        %v2537 = vpop.f32.mrb[0].mxu0
        %2538 = vdwg.mxu0
        %v2539 = vadd.f32 %v2477, %v1966
        %v2540 = vadd.f32 %v2480, %v1967
        %v2541 = vadd.f32 %v2485, %v1968
        %v2542 = vadd.f32 %v2488, %v1969
        %v2543 = vadd.f32 %v2493, %v1970
        %v2544 = vadd.f32 %v2496, %v1971
        %v2545 = vadd.f32 %v2501, %v1972
        %v2546 = vadd.f32 %v2504, %v1973
        %v2547 = vadd.f32 %v2509, %v1974
        %v2548 = vadd.f32 %v2512, %v1975
        %v2549 = vadd.f32 %v2517, %v1976
        %v2550 = vadd.f32 %v2520, %v1977
        %v2551 = vadd.f32 %v2525, %v1978
        %v2552 = vadd.f32 %v2528, %v1979
        %v2553 = vadd.f32 %v2533, %v1980
        %v2554 = vadd.f32 %v2536, %v1981
        %2555 = vadd.xlane.f32.xlu0 %v2539
        %v2556 = vpop.xlane.xlu0 %2555
        %2557 = vadd.xlane.f32.xlu0 %v2540
        %v2558 = vpop.xlane.xlu0 %2557
        %2559 = vadd.xlane.f32.xlu0 %v2541
        %v2560 = vpop.xlane.xlu0 %2559
        %2561 = vadd.xlane.f32.xlu0 %v2542
        %v2562 = vpop.xlane.xlu0 %2561
        %2563 = vadd.xlane.f32.xlu0 %v2543
        %v2564 = vpop.xlane.xlu0 %2563
        %2565 = vadd.xlane.f32.xlu0 %v2544
        %v2566 = vpop.xlane.xlu0 %2565
        %2567 = vadd.xlane.f32.xlu0 %v2545
        %v2568 = vpop.xlane.xlu0 %2567
        %2569 = vadd.xlane.f32.xlu0 %v2546
        %v2570 = vpop.xlane.xlu0 %2569
        %2571 = vadd.xlane.f32.xlu0 %v2547
        %v2572 = vpop.xlane.xlu0 %2571
        %2573 = vadd.xlane.f32.xlu0 %v2548
        %v2574 = vpop.xlane.xlu0 %2573
        %2575 = vadd.xlane.f32.xlu0 %v2549
        %v2576 = vpop.xlane.xlu0 %2575
        %2577 = vadd.xlane.f32.xlu0 %v2550
        %v2578 = vpop.xlane.xlu0 %2577
        %2579 = vadd.xlane.f32.xlu0 %v2551
        %v2580 = vpop.xlane.xlu0 %2579
        %2581 = vadd.xlane.f32.xlu0 %v2552
        %v2582 = vpop.xlane.xlu0 %2581
        %2583 = vadd.xlane.f32.xlu0 %v2553
        %v2584 = vpop.xlane.xlu0 %2583
        %2585 = vadd.xlane.f32.xlu0 %v2554
        %v2586 = vpop.xlane.xlu0 %2585
        %v2587 = vmul.f32 %v2556, %v908
        %v2588 = vmul.f32 %v2558, %v908
        %v2589 = vmul.f32 %v2560, %v908
        %v2590 = vmul.f32 %v2562, %v908
        %v2591 = vmul.f32 %v2564, %v908
        %v2592 = vmul.f32 %v2566, %v908
        %v2593 = vmul.f32 %v2568, %v908
        %v2594 = vmul.f32 %v2570, %v908
        %v2595 = vmul.f32 %v2572, %v908
        %v2596 = vmul.f32 %v2574, %v908
        %v2597 = vmul.f32 %v2576, %v908
        %v2598 = vmul.f32 %v2578, %v908
        %v2599 = vmul.f32 %v2580, %v908
        %v2600 = vmul.f32 %v2582, %v908
        %v2601 = vmul.f32 %v2584, %v908
        %v2602 = vmul.f32 %v2586, %v908
        %v2603 = vmul.f32 %v2539, %v2539
        %v2604 = vmul.f32 %v2540, %v2540
        %v2605 = vmul.f32 %v2541, %v2541
        %v2606 = vmul.f32 %v2542, %v2542
        %v2607 = vmul.f32 %v2543, %v2543
        %v2608 = vmul.f32 %v2544, %v2544
        %v2609 = vmul.f32 %v2545, %v2545
        %v2610 = vmul.f32 %v2546, %v2546
        %v2611 = vmul.f32 %v2547, %v2547
        %v2612 = vmul.f32 %v2548, %v2548
        %v2613 = vmul.f32 %v2549, %v2549
        %v2614 = vmul.f32 %v2550, %v2550
        %v2615 = vmul.f32 %v2551, %v2551
        %v2616 = vmul.f32 %v2552, %v2552
        %v2617 = vmul.f32 %v2553, %v2553
        %v2618 = vmul.f32 %v2554, %v2554
        %2619 = vadd.xlane.f32.xlu0 %v2603
        %v2620 = vpop.xlane.xlu0 %2619
        %2621 = vadd.xlane.f32.xlu0 %v2604
        %v2622 = vpop.xlane.xlu0 %2621
        %2623 = vadd.xlane.f32.xlu0 %v2605
        %v2624 = vpop.xlane.xlu0 %2623
        %2625 = vadd.xlane.f32.xlu0 %v2606
        %v2626 = vpop.xlane.xlu0 %2625
        %2627 = vadd.xlane.f32.xlu0 %v2607
        %v2628 = vpop.xlane.xlu0 %2627
        %2629 = vadd.xlane.f32.xlu0 %v2608
        %v2630 = vpop.xlane.xlu0 %2629
        %2631 = vadd.xlane.f32.xlu0 %v2609
        %v2632 = vpop.xlane.xlu0 %2631
        %2633 = vadd.xlane.f32.xlu0 %v2610
        %v2634 = vpop.xlane.xlu0 %2633
        %2635 = vadd.xlane.f32.xlu0 %v2611
        %v2636 = vpop.xlane.xlu0 %2635
        %2637 = vadd.xlane.f32.xlu0 %v2612
        %v2638 = vpop.xlane.xlu0 %2637
        %2639 = vadd.xlane.f32.xlu0 %v2613
        %v2640 = vpop.xlane.xlu0 %2639
        %2641 = vadd.xlane.f32.xlu0 %v2614
        %v2642 = vpop.xlane.xlu0 %2641
        %2643 = vadd.xlane.f32.xlu0 %v2615
        %v2644 = vpop.xlane.xlu0 %2643
        %2645 = vadd.xlane.f32.xlu0 %v2616
        %v2646 = vpop.xlane.xlu0 %2645
        %2647 = vadd.xlane.f32.xlu0 %v2617
        %v2648 = vpop.xlane.xlu0 %2647
        %2649 = vadd.xlane.f32.xlu0 %v2618
        %v2650 = vpop.xlane.xlu0 %2649
        %v2651 = vmul.f32 %v2620, %v908
        %v2652 = vmul.f32 %v2622, %v908
        %v2653 = vmul.f32 %v2624, %v908
        %v2654 = vmul.f32 %v2626, %v908
        %v2655 = vmul.f32 %v2628, %v908
        %v2656 = vmul.f32 %v2630, %v908
        %v2657 = vmul.f32 %v2632, %v908
        %v2658 = vmul.f32 %v2634, %v908
        %v2659 = vmul.f32 %v2636, %v908
        %v2660 = vmul.f32 %v2638, %v908
        %v2661 = vmul.f32 %v2640, %v908
        %v2662 = vmul.f32 %v2642, %v908
        %v2663 = vmul.f32 %v2644, %v908
        %v2664 = vmul.f32 %v2646, %v908
        %v2665 = vmul.f32 %v2648, %v908
        %v2666 = vmul.f32 %v2650, %v908
        %v2667 = vmul.f32 %v2587, %v2587
        %v2668 = vmul.f32 %v2588, %v2588
        %v2669 = vmul.f32 %v2589, %v2589
        %v2670 = vmul.f32 %v2590, %v2590
        %v2671 = vmul.f32 %v2591, %v2591
        %v2672 = vmul.f32 %v2592, %v2592
        %v2673 = vmul.f32 %v2593, %v2593
        %v2674 = vmul.f32 %v2594, %v2594
        %v2675 = vmul.f32 %v2595, %v2595
        %v2676 = vmul.f32 %v2596, %v2596
        %v2677 = vmul.f32 %v2597, %v2597
        %v2678 = vmul.f32 %v2598, %v2598
        %v2679 = vmul.f32 %v2599, %v2599
        %v2680 = vmul.f32 %v2600, %v2600
        %v2681 = vmul.f32 %v2601, %v2601
        %v2682 = vmul.f32 %v2602, %v2602
        %v2683 = vsub.f32 %v2651, %v2667
        %v2684 = vsub.f32 %v2652, %v2668
        %v2685 = vsub.f32 %v2653, %v2669
        %v2686 = vsub.f32 %v2654, %v2670
        %v2687 = vsub.f32 %v2655, %v2671
        %v2688 = vsub.f32 %v2656, %v2672
        %v2689 = vsub.f32 %v2657, %v2673
        %v2690 = vsub.f32 %v2658, %v2674
        %v2691 = vsub.f32 %v2659, %v2675
        %v2692 = vsub.f32 %v2660, %v2676
        %v2693 = vsub.f32 %v2661, %v2677
        %v2694 = vsub.f32 %v2662, %v2678
        %v2695 = vsub.f32 %v2663, %v2679
        %v2696 = vsub.f32 %v2664, %v2680
        %v2697 = vsub.f32 %v2665, %v2681
        %v2698 = vsub.f32 %v2666, %v2682
        %v2699 = vmax.f32 %v2683, 0.0
        %v2700 = vmax.f32 %v2684, 0.0
        %v2701 = vmax.f32 %v2685, 0.0
        %v2702 = vmax.f32 %v2686, 0.0
        %v2703 = vmax.f32 %v2687, 0.0
        %v2704 = vmax.f32 %v2688, 0.0
        %v2705 = vmax.f32 %v2689, 0.0
        %v2706 = vmax.f32 %v2690, 0.0
        %v2707 = vmax.f32 %v2691, 0.0
        %v2708 = vmax.f32 %v2692, 0.0
        %v2709 = vmax.f32 %v2693, 0.0
        %v2710 = vmax.f32 %v2694, 0.0
        %v2711 = vmax.f32 %v2695, 0.0
        %v2712 = vmax.f32 %v2696, 0.0
        %v2713 = vmax.f32 %v2697, 0.0
        %v2714 = vmax.f32 %v2698, 0.0
        %v2715 = vsub.f32 %v2539, %v2587
        %v2716 = vsub.f32 %v2540, %v2588
        %v2717 = vsub.f32 %v2541, %v2589
        %v2718 = vsub.f32 %v2542, %v2590
        %v2719 = vsub.f32 %v2543, %v2591
        %v2720 = vsub.f32 %v2544, %v2592
        %v2721 = vsub.f32 %v2545, %v2593
        %v2722 = vsub.f32 %v2546, %v2594
        %v2723 = vsub.f32 %v2547, %v2595
        %v2724 = vsub.f32 %v2548, %v2596
        %v2725 = vsub.f32 %v2549, %v2597
        %v2726 = vsub.f32 %v2550, %v2598
        %v2727 = vsub.f32 %v2551, %v2599
        %v2728 = vsub.f32 %v2552, %v2600
        %v2729 = vsub.f32 %v2553, %v2601
        %v2730 = vsub.f32 %v2554, %v2602
        %v2731 = vadd.f32 %v2699, 1e-05
        %v2732 = vadd.f32 %v2700, 1e-05
        %v2733 = vadd.f32 %v2701, 1e-05
        %v2734 = vadd.f32 %v2702, 1e-05
        %v2735 = vadd.f32 %v2703, 1e-05
        %v2736 = vadd.f32 %v2704, 1e-05
        %v2737 = vadd.f32 %v2705, 1e-05
        %v2738 = vadd.f32 %v2706, 1e-05
        %v2739 = vadd.f32 %v2707, 1e-05
        %v2740 = vadd.f32 %v2708, 1e-05
        %v2741 = vadd.f32 %v2709, 1e-05
        %v2742 = vadd.f32 %v2710, 1e-05
        %v2743 = vadd.f32 %v2711, 1e-05
        %v2744 = vadd.f32 %v2712, 1e-05
        %v2745 = vadd.f32 %v2713, 1e-05
        %v2746 = vadd.f32 %v2714, 1e-05
        %v2747 = vrsqrt.pop %v2731
        %v2748 = vrsqrt.pop %v2732
        %v2749 = vrsqrt.pop %v2733
        %v2750 = vrsqrt.pop %v2734
        %v2751 = vrsqrt.pop %v2735
        %v2752 = vrsqrt.pop %v2736
        %v2753 = vrsqrt.pop %v2737
        %v2754 = vrsqrt.pop %v2738
        %v2755 = vrsqrt.pop %v2739
        %v2756 = vrsqrt.pop %v2740
        %v2757 = vrsqrt.pop %v2741
        %v2758 = vrsqrt.pop %v2742
        %v2759 = vrsqrt.pop %v2743
        %v2760 = vrsqrt.pop %v2744
        %v2761 = vrsqrt.pop %v2745
        %v2762 = vrsqrt.pop %v2746
        %v2763 = vmul.f32 %v2715, %v2747
        %v2764 = vmul.f32 %v2716, %v2748
        %v2765 = vmul.f32 %v2717, %v2749
        %v2766 = vmul.f32 %v2718, %v2750
        %v2767 = vmul.f32 %v2719, %v2751
        %v2768 = vmul.f32 %v2720, %v2752
        %v2769 = vmul.f32 %v2721, %v2753
        %v2770 = vmul.f32 %v2722, %v2754
        %v2771 = vmul.f32 %v2723, %v2755
        %v2772 = vmul.f32 %v2724, %v2756
        %v2773 = vmul.f32 %v2725, %v2757
        %v2774 = vmul.f32 %v2726, %v2758
        %v2775 = vmul.f32 %v2727, %v2759
        %v2776 = vmul.f32 %v2728, %v2760
        %v2777 = vmul.f32 %v2729, %v2761
        %v2778 = vmul.f32 %v2730, %v2762
        %v2779 = vld [vmem:[%s3 + $0x2] sm:$0x1]
        %v2780 = vlaneseq
        %v2781 = vshrl.u32 %v2780, 7
        %v2782 = vsub.s32 0, %v2781
        %v2783 = vrot.slane %v2779, %v2782
        %v2784 = vmul.f32 %v2763, %v2783
        %v2785 = vmul.f32 %v2764, %v2783
        %v2786 = vmul.f32 %v2765, %v2783
        %v2787 = vmul.f32 %v2766, %v2783
        %v2788 = vmul.f32 %v2767, %v2783
        %v2789 = vmul.f32 %v2768, %v2783
        %v2790 = vmul.f32 %v2769, %v2783
        %v2791 = vmul.f32 %v2770, %v2783
        %v2792 = vmul.f32 %v2771, %v2783
        %v2793 = vmul.f32 %v2772, %v2783
        %v2794 = vmul.f32 %v2773, %v2783
        %v2795 = vmul.f32 %v2774, %v2783
        %v2796 = vmul.f32 %v2775, %v2783
        %v2797 = vmul.f32 %v2776, %v2783
        %v2798 = vmul.f32 %v2777, %v2783
        %v2799 = vmul.f32 %v2778, %v2783
        %v2800 = vld [vmem:[#allocation8 + $0x2] sm:$0x1]
        %v2801 = vlaneseq
        %v2802 = vshrl.u32 %v2801, 7
        %v2803 = vsub.s32 0, %v2802
        %v2804 = vrot.slane %v2800, %v2803
        %v2805 = vadd.f32 %v2784, %v2804
        %v2806 = vadd.f32 %v2785, %v2804
        %v2807 = vadd.f32 %v2786, %v2804
        %v2808 = vadd.f32 %v2787, %v2804
        %v2809 = vadd.f32 %v2788, %v2804
        %v2810 = vadd.f32 %v2789, %v2804
        %v2811 = vadd.f32 %v2790, %v2804
        %v2812 = vadd.f32 %v2791, %v2804
        %v2813 = vadd.f32 %v2792, %v2804
        %v2814 = vadd.f32 %v2793, %v2804
        %v2815 = vadd.f32 %v2794, %v2804
        %v2816 = vadd.f32 %v2795, %v2804
        %v2817 = vadd.f32 %v2796, %v2804
        %v2818 = vadd.f32 %v2797, %v2804
        %v2819 = vadd.f32 %v2798, %v2804
        %v2820 = vadd.f32 %v2799, %v2804
        %v2821 = vpack.c.bf16 %v2806, %v2805
        %v2822 = vpack.c.bf16 %v2808, %v2807
        %v2823 = vpack.c.bf16 %v2810, %v2809
        %v2824 = vpack.c.bf16 %v2812, %v2811
        %v2825 = vpack.c.bf16 %v2814, %v2813
        %v2826 = vpack.c.bf16 %v2816, %v2815
        %v2827 = vpack.c.bf16 %v2818, %v2817
        %v2828 = vpack.c.bf16 %v2820, %v2819
        %s2829 = scalar_lea.vmem [#allocation5], 576
        %v2830 = vld [vmem:[%s2829] sm:$0xf]
        %v2831 = vld [vmem:[%s2829 + $0x4] sm:$0xf]
        %v2832 = vld [vmem:[%s2829 + $0x8] sm:$0xf]
        %v2833 = vld [vmem:[%s2829 + $0xc] sm:$0xf]
        %v2834 = vld [vmem:[%s2829 + $0x10] sm:$0xf]
        %v2835 = vld [vmem:[%s2829 + $0x14] sm:$0xf]
        %v2836 = vld [vmem:[%s2829 + $0x18] sm:$0xf]
        %v2837 = vld [vmem:[%s2829 + $0x1c] sm:$0xf]
        %v2838 = vld [vmem:[%s2829 + $0x20] sm:$0xf]
        %v2839 = vld [vmem:[%s2829 + $0x24] sm:$0xf]
        %v2840 = vld [vmem:[%s2829 + $0x28] sm:$0xf]
        %v2841 = vld [vmem:[%s2829 + $0x2c] sm:$0xf]
        %v2842 = vld [vmem:[%s2829 + $0x30] sm:$0xf]
        %v2843 = vld [vmem:[%s2829 + $0x34] sm:$0xf]
        %v2844 = vld [vmem:[%s2829 + $0x38] sm:$0xf]
        %v2845 = vld [vmem:[%s2829 + $0x3c] sm:$0xf]
        %v2846 = vld [vmem:[#allocation7 + $0x9] sm:$0x1]
        %v2847 = vlaneseq
        %v2848 = vshrl.u32 %v2847, 7
        %v2849 = vsub.s32 0, %v2848
        %v2850 = vrot.slane %v2846, %v2849
        %v2867 = vunpack.c.l.b16 %v2830
        %v2868 = vunpack.c.l.b16 %v2831
        %v2869 = vunpack.c.l.b16 %v2832
        %v2870 = vunpack.c.l.b16 %v2833
        %v2871 = vunpack.c.l.b16 %v2834
        %v2872 = vunpack.c.l.b16 %v2835
        %v2873 = vunpack.c.l.b16 %v2836
        %v2874 = vunpack.c.l.b16 %v2837
        %v2875 = vunpack.c.l.b16 %v2838
        %v2876 = vunpack.c.l.b16 %v2839
        %v2877 = vunpack.c.l.b16 %v2840
        %v2878 = vunpack.c.l.b16 %v2841
        %v2879 = vunpack.c.l.b16 %v2842
        %v2880 = vunpack.c.l.b16 %v2843
        %v2881 = vunpack.c.l.b16 %v2844
        %v2882 = vunpack.c.l.b16 %v2845
        %v2883 = vpack.c.b16 %v2868, %v2867
        %v2884 = vpack.c.b16 %v2870, %v2869
        %v2885 = vpack.c.b16 %v2872, %v2871
        %v2886 = vpack.c.b16 %v2874, %v2873
        %v2887 = vpack.c.b16 %v2876, %v2875
        %v2888 = vpack.c.b16 %v2878, %v2877
        %v2889 = vpack.c.b16 %v2880, %v2879
        %v2890 = vpack.c.b16 %v2882, %v2881
        %2899 = vmatprep.subr.bf16.mxu0 0
        %2900 = vmatpush1.bf16.msra.mxu0 %v2883
        %2901 = vmatprep.subr.bf16.mxu0 0
        %2902 = vmatpush1.bf16.msra.mxu0 %v2884
        %2903 = vmatprep.subr.bf16.mxu0 0
        %2904 = vmatpush1.bf16.msra.mxu0 %v2885
        %2905 = vmatprep.subr.bf16.mxu0 0
        %2906 = vmatpush1.bf16.msra.mxu0 %v2886
        %2907 = vmatprep.subr.bf16.mxu0 0
        %2908 = vmatpush1.bf16.msra.mxu0 %v2887
        %2909 = vmatprep.subr.bf16.mxu0 0
        %2910 = vmatpush1.bf16.msra.mxu0 %v2888
        %2911 = vmatprep.subr.bf16.mxu0 0
        %2912 = vmatpush1.bf16.msra.mxu0 %v2889
        %2913 = vmatprep.subr.bf16.mxu0 0
        %2914 = vmatpush1.bf16.msra.mxu0 %v2890
        %2915 = vmatprep.subr.bf16.mxu0 0
        %2916 = vmatpush1.bf16.msra.mxu0 0
        %2917 = vmatprep.subr.bf16.mxu0 0
        %2918 = vmatpush1.bf16.msra.mxu0 0
        %2919 = vmatprep.subr.bf16.mxu0 0
        %2920 = vmatpush1.bf16.msra.mxu0 0
        %2921 = vmatprep.subr.bf16.mxu0 0
        %2922 = vmatpush1.bf16.msra.mxu0 0
        %2923 = vmatprep.subr.bf16.mxu0 0
        %2924 = vmatpush1.bf16.msra.mxu0 0
        %2925 = vmatprep.subr.bf16.mxu0 0
        %2926 = vmatpush1.bf16.msra.mxu0 0
        %2927 = vmatprep.subr.bf16.mxu0 0
        %2928 = vmatpush1.bf16.msra.mxu0 0
        %2929 = vmatprep.subr.bf16.mxu0 0
        %2930 = vmatpush1.bf16.msra.mxu0 0
        %2931 = vmatprep.mubr.bf16.mxu0 0
        %2932 = vmatmul.mubr.bf16.gmra.mrb[0].mxu0 %v2821
        %v2933 = vpop.f32.mrb[0].mxu0
        %v2934 = vadd.f32 %v2850, %v2933
        %v2935 = vpop.f32.mrb[0].mxu0
        %v2936 = vpop.f32.mrb[0].mxu0
        %v2937 = vadd.f32 %v2850, %v2936
        %v2938 = vpop.f32.mrb[0].mxu0
        %2939 = vmatprep.mubr.bf16.mxu0 0
        %2940 = vmatmul.mubr.bf16.gmra.mrb[0].mxu0 %v2822
        %v2941 = vpop.f32.mrb[0].mxu0
        %v2942 = vadd.f32 %v2850, %v2941
        %v2943 = vpop.f32.mrb[0].mxu0
        %v2944 = vpop.f32.mrb[0].mxu0
        %v2945 = vadd.f32 %v2850, %v2944
        %v2946 = vpop.f32.mrb[0].mxu0
        %2947 = vmatprep.mubr.bf16.mxu0 0
        %2948 = vmatmul.mubr.bf16.gmra.mrb[0].mxu0 %v2823
        %v2949 = vpop.f32.mrb[0].mxu0
        %v2950 = vadd.f32 %v2850, %v2949
        %v2951 = vpop.f32.mrb[0].mxu0
        %v2952 = vpop.f32.mrb[0].mxu0
        %v2953 = vadd.f32 %v2850, %v2952
        %v2954 = vpop.f32.mrb[0].mxu0
        %2955 = vmatprep.mubr.bf16.mxu0 0
        %2956 = vmatmul.mubr.bf16.gmra.mrb[0].mxu0 %v2824
        %v2957 = vpop.f32.mrb[0].mxu0
        %v2958 = vadd.f32 %v2850, %v2957
        %v2959 = vpop.f32.mrb[0].mxu0
        %v2960 = vpop.f32.mrb[0].mxu0
        %v2961 = vadd.f32 %v2850, %v2960
        %v2962 = vpop.f32.mrb[0].mxu0
        %2963 = vmatprep.mubr.bf16.mxu0 0
        %2964 = vmatmul.mubr.bf16.gmra.mrb[0].mxu0 %v2825
        %v2965 = vpop.f32.mrb[0].mxu0
        %v2966 = vadd.f32 %v2850, %v2965
        %v2967 = vpop.f32.mrb[0].mxu0
        %v2968 = vpop.f32.mrb[0].mxu0
        %v2969 = vadd.f32 %v2850, %v2968
        %v2970 = vpop.f32.mrb[0].mxu0
        %2971 = vmatprep.mubr.bf16.mxu0 0
        %2972 = vmatmul.mubr.bf16.gmra.mrb[0].mxu0 %v2826
        %v2973 = vpop.f32.mrb[0].mxu0
        %v2974 = vadd.f32 %v2850, %v2973
        %v2975 = vpop.f32.mrb[0].mxu0
        %v2976 = vpop.f32.mrb[0].mxu0
        %v2977 = vadd.f32 %v2850, %v2976
        %v2978 = vpop.f32.mrb[0].mxu0
        %2979 = vmatprep.mubr.bf16.mxu0 0
        %2980 = vmatmul.mubr.bf16.gmra.mrb[0].mxu0 %v2827
        %v2981 = vpop.f32.mrb[0].mxu0
        %v2982 = vadd.f32 %v2850, %v2981
        %v2983 = vpop.f32.mrb[0].mxu0
        %v2984 = vpop.f32.mrb[0].mxu0
        %v2985 = vadd.f32 %v2850, %v2984
        %v2986 = vpop.f32.mrb[0].mxu0
        %2987 = vmatprep.mubr.bf16.mxu0 0
        %2988 = vmatmul.mubr.bf16.gmra.mrb[0].mxu0 %v2828
        %v2989 = vpop.f32.mrb[0].mxu0
        %v2990 = vadd.f32 %v2850, %v2989
        %v2991 = vpop.f32.mrb[0].mxu0
        %v2992 = vpop.f32.mrb[0].mxu0
        %v2993 = vadd.f32 %v2850, %v2992
        %v2994 = vpop.f32.mrb[0].mxu0
        %2995 = vdwg.mxu0
        %v2996 = vmax.f32 %v2934, 0.0
        %v2997 = vmax.f32 %v2937, 0.0
        %v2998 = vmax.f32 %v2942, 0.0
        %v2999 = vmax.f32 %v2945, 0.0
        %v3000 = vmax.f32 %v2950, 0.0
        %v3001 = vmax.f32 %v2953, 0.0
        %v3002 = vmax.f32 %v2958, 0.0
        %v3003 = vmax.f32 %v2961, 0.0
        %v3004 = vmax.f32 %v2966, 0.0
        %v3005 = vmax.f32 %v2969, 0.0
        %v3006 = vmax.f32 %v2974, 0.0
        %v3007 = vmax.f32 %v2977, 0.0
        %v3008 = vmax.f32 %v2982, 0.0
        %v3009 = vmax.f32 %v2985, 0.0
        %v3010 = vmax.f32 %v2990, 0.0
        %v3011 = vmax.f32 %v2993, 0.0
        %v3012 = vpack.c.bf16 %v2997, %v2996
        %v3013 = vpack.c.bf16 %v2999, %v2998
        %v3014 = vpack.c.bf16 %v3001, %v3000
        %v3015 = vpack.c.bf16 %v3003, %v3002
        %v3016 = vpack.c.bf16 %v3005, %v3004
        %v3017 = vpack.c.bf16 %v3007, %v3006
        %v3018 = vpack.c.bf16 %v3009, %v3008
        %v3019 = vpack.c.bf16 %v3011, %v3010
        %s3020 = scalar_lea.vmem [#allocation5], 640
        %v3021 = vld [vmem:[%s3020] sm:$0xf]
        %v3022 = vld [vmem:[%s3020 + $0x4] sm:$0xf]
        %v3023 = vld [vmem:[%s3020 + $0x8] sm:$0xf]
        %v3024 = vld [vmem:[%s3020 + $0xc] sm:$0xf]
        %v3025 = vld [vmem:[%s3020 + $0x10] sm:$0xf]
        %v3026 = vld [vmem:[%s3020 + $0x14] sm:$0xf]
        %v3027 = vld [vmem:[%s3020 + $0x18] sm:$0xf]
        %v3028 = vld [vmem:[%s3020 + $0x1c] sm:$0xf]
        %v3029 = vld [vmem:[%s3020 + $0x20] sm:$0xf]
        %v3030 = vld [vmem:[%s3020 + $0x24] sm:$0xf]
        %v3031 = vld [vmem:[%s3020 + $0x28] sm:$0xf]
        %v3032 = vld [vmem:[%s3020 + $0x2c] sm:$0xf]
        %v3033 = vld [vmem:[%s3020 + $0x30] sm:$0xf]
        %v3034 = vld [vmem:[%s3020 + $0x34] sm:$0xf]
        %v3035 = vld [vmem:[%s3020 + $0x38] sm:$0xf]
        %v3036 = vld [vmem:[%s3020 + $0x3c] sm:$0xf]
        %v3037 = vld [vmem:[#allocation7 + $0xa] sm:$0x1]
        %v3038 = vlaneseq
        %v3039 = vshrl.u32 %v3038, 7
        %v3040 = vsub.s32 0, %v3039
        %v3041 = vrot.slane %v3037, %v3040
        %v3058 = vunpack.c.l.b16 %v3021
        %v3059 = vunpack.c.l.b16 %v3022
        %v3060 = vunpack.c.l.b16 %v3023
        %v3061 = vunpack.c.l.b16 %v3024
        %v3062 = vunpack.c.l.b16 %v3025
        %v3063 = vunpack.c.l.b16 %v3026
        %v3064 = vunpack.c.l.b16 %v3027
        %v3065 = vunpack.c.l.b16 %v3028
        %v3066 = vunpack.c.l.b16 %v3029
        %v3067 = vunpack.c.l.b16 %v3030
        %v3068 = vunpack.c.l.b16 %v3031
        %v3069 = vunpack.c.l.b16 %v3032
        %v3070 = vunpack.c.l.b16 %v3033
        %v3071 = vunpack.c.l.b16 %v3034
        %v3072 = vunpack.c.l.b16 %v3035
        %v3073 = vunpack.c.l.b16 %v3036
        %v3074 = vpack.c.b16 %v3059, %v3058
        %v3075 = vpack.c.b16 %v3061, %v3060
        %v3076 = vpack.c.b16 %v3063, %v3062
        %v3077 = vpack.c.b16 %v3065, %v3064
        %v3078 = vpack.c.b16 %v3067, %v3066
        %v3079 = vpack.c.b16 %v3069, %v3068
        %v3080 = vpack.c.b16 %v3071, %v3070
        %v3081 = vpack.c.b16 %v3073, %v3072
        %3090 = vmatprep.subr.bf16.mxu0 0
        %3091 = vmatpush1.bf16.msra.mxu0 %v3074
        %3092 = vmatprep.subr.bf16.mxu0 0
        %3093 = vmatpush1.bf16.msra.mxu0 %v3075
        %3094 = vmatprep.subr.bf16.mxu0 0
        %3095 = vmatpush1.bf16.msra.mxu0 %v3076
        %3096 = vmatprep.subr.bf16.mxu0 0
        %3097 = vmatpush1.bf16.msra.mxu0 %v3077
        %3098 = vmatprep.subr.bf16.mxu0 0
        %3099 = vmatpush1.bf16.msra.mxu0 %v3078
        %3100 = vmatprep.subr.bf16.mxu0 0
        %3101 = vmatpush1.bf16.msra.mxu0 %v3079
        %3102 = vmatprep.subr.bf16.mxu0 0
        %3103 = vmatpush1.bf16.msra.mxu0 %v3080
        %3104 = vmatprep.subr.bf16.mxu0 0
        %3105 = vmatpush1.bf16.msra.mxu0 %v3081
        %3106 = vmatprep.subr.bf16.mxu0 0
        %3107 = vmatpush1.bf16.msra.mxu0 0
        %3108 = vmatprep.subr.bf16.mxu0 0
        %3109 = vmatpush1.bf16.msra.mxu0 0
        %3110 = vmatprep.subr.bf16.mxu0 0
        %3111 = vmatpush1.bf16.msra.mxu0 0
        %3112 = vmatprep.subr.bf16.mxu0 0
        %3113 = vmatpush1.bf16.msra.mxu0 0
        %3114 = vmatprep.subr.bf16.mxu0 0
        %3115 = vmatpush1.bf16.msra.mxu0 0
        %3116 = vmatprep.subr.bf16.mxu0 0
        %3117 = vmatpush1.bf16.msra.mxu0 0
        %3118 = vmatprep.subr.bf16.mxu0 0
        %3119 = vmatpush1.bf16.msra.mxu0 0
        %3120 = vmatprep.subr.bf16.mxu0 0
        %3121 = vmatpush1.bf16.msra.mxu0 0
        %3122 = vmatprep.mubr.bf16.mxu0 0
        %3123 = vmatmul.mubr.bf16.gmra.mrb[0].mxu0 %v3012
        %v3124 = vpop.f32.mrb[0].mxu0
        %v3125 = vadd.f32 %v3041, %v3124
        %v3126 = vpop.f32.mrb[0].mxu0
        %v3127 = vpop.f32.mrb[0].mxu0
        %v3128 = vadd.f32 %v3041, %v3127
        %v3129 = vpop.f32.mrb[0].mxu0
        %3130 = vmatprep.mubr.bf16.mxu0 0
        %3131 = vmatmul.mubr.bf16.gmra.mrb[0].mxu0 %v3013
        %v3132 = vpop.f32.mrb[0].mxu0
        %v3133 = vadd.f32 %v3041, %v3132
        %v3134 = vpop.f32.mrb[0].mxu0
        %v3135 = vpop.f32.mrb[0].mxu0
        %v3136 = vadd.f32 %v3041, %v3135
        %v3137 = vpop.f32.mrb[0].mxu0
        %3138 = vmatprep.mubr.bf16.mxu0 0
        %3139 = vmatmul.mubr.bf16.gmra.mrb[0].mxu0 %v3014
        %v3140 = vpop.f32.mrb[0].mxu0
        %v3141 = vadd.f32 %v3041, %v3140
        %v3142 = vpop.f32.mrb[0].mxu0
        %v3143 = vpop.f32.mrb[0].mxu0
        %v3144 = vadd.f32 %v3041, %v3143
        %v3145 = vpop.f32.mrb[0].mxu0
        %3146 = vmatprep.mubr.bf16.mxu0 0
        %3147 = vmatmul.mubr.bf16.gmra.mrb[0].mxu0 %v3015
        %v3148 = vpop.f32.mrb[0].mxu0
        %v3149 = vadd.f32 %v3041, %v3148
        %v3150 = vpop.f32.mrb[0].mxu0
        %v3151 = vpop.f32.mrb[0].mxu0
        %v3152 = vadd.f32 %v3041, %v3151
        %v3153 = vpop.f32.mrb[0].mxu0
        %3154 = vmatprep.mubr.bf16.mxu0 0
        %3155 = vmatmul.mubr.bf16.gmra.mrb[0].mxu0 %v3016
        %v3156 = vpop.f32.mrb[0].mxu0
        %v3157 = vadd.f32 %v3041, %v3156
        %v3158 = vpop.f32.mrb[0].mxu0
        %v3159 = vpop.f32.mrb[0].mxu0
        %v3160 = vadd.f32 %v3041, %v3159
        %v3161 = vpop.f32.mrb[0].mxu0
        %3162 = vmatprep.mubr.bf16.mxu0 0
        %3163 = vmatmul.mubr.bf16.gmra.mrb[0].mxu0 %v3017
        %v3164 = vpop.f32.mrb[0].mxu0
        %v3165 = vadd.f32 %v3041, %v3164
        %v3166 = vpop.f32.mrb[0].mxu0
        %v3167 = vpop.f32.mrb[0].mxu0
        %v3168 = vadd.f32 %v3041, %v3167
        %v3169 = vpop.f32.mrb[0].mxu0
        %3170 = vmatprep.mubr.bf16.mxu0 0
        %3171 = vmatmul.mubr.bf16.gmra.mrb[0].mxu0 %v3018
        %v3172 = vpop.f32.mrb[0].mxu0
        %v3173 = vadd.f32 %v3041, %v3172
        %v3174 = vpop.f32.mrb[0].mxu0
        %v3175 = vpop.f32.mrb[0].mxu0
        %v3176 = vadd.f32 %v3041, %v3175
        %v3177 = vpop.f32.mrb[0].mxu0
        %3178 = vmatprep.mubr.bf16.mxu0 0
        %3179 = vmatmul.mubr.bf16.gmra.mrb[0].mxu0 %v3019
        %v3180 = vpop.f32.mrb[0].mxu0
        %v3181 = vadd.f32 %v3041, %v3180
        %v3182 = vpop.f32.mrb[0].mxu0
        %v3183 = vpop.f32.mrb[0].mxu0
        %v3184 = vadd.f32 %v3041, %v3183
        %v3185 = vpop.f32.mrb[0].mxu0
        %3186 = vdwg.mxu0
        %v3187 = vmax.f32 %v3125, 0.0
        %v3188 = vmax.f32 %v3128, 0.0
        %v3189 = vmax.f32 %v3133, 0.0
        %v3190 = vmax.f32 %v3136, 0.0
        %v3191 = vmax.f32 %v3141, 0.0
        %v3192 = vmax.f32 %v3144, 0.0
        %v3193 = vmax.f32 %v3149, 0.0
        %v3194 = vmax.f32 %v3152, 0.0
        %v3195 = vmax.f32 %v3157, 0.0
        %v3196 = vmax.f32 %v3160, 0.0
        %v3197 = vmax.f32 %v3165, 0.0
        %v3198 = vmax.f32 %v3168, 0.0
        %v3199 = vmax.f32 %v3173, 0.0
        %v3200 = vmax.f32 %v3176, 0.0
        %v3201 = vmax.f32 %v3181, 0.0
        %v3202 = vmax.f32 %v3184, 0.0
        %v3203 = vpack.c.bf16 %v3188, %v3187
        %v3204 = vpack.c.bf16 %v3190, %v3189
        %v3205 = vpack.c.bf16 %v3192, %v3191
        %v3206 = vpack.c.bf16 %v3194, %v3193
        %v3207 = vpack.c.bf16 %v3196, %v3195
        %v3208 = vpack.c.bf16 %v3198, %v3197
        %v3209 = vpack.c.bf16 %v3200, %v3199
        %v3210 = vpack.c.bf16 %v3202, %v3201
        %s3211 = scalar_lea.vmem [#allocation5], 704
        %v3212 = vld [vmem:[%s3211] sm:$0xf]
        %v3213 = vld [vmem:[%s3211 + $0x4] sm:$0xf]
        %v3214 = vld [vmem:[%s3211 + $0x8] sm:$0xf]
        %v3215 = vld [vmem:[%s3211 + $0xc] sm:$0xf]
        %v3216 = vld [vmem:[%s3211 + $0x10] sm:$0xf]
        %v3217 = vld [vmem:[%s3211 + $0x14] sm:$0xf]
        %v3218 = vld [vmem:[%s3211 + $0x18] sm:$0xf]
        %v3219 = vld [vmem:[%s3211 + $0x1c] sm:$0xf]
        %v3220 = vld [vmem:[%s3211 + $0x20] sm:$0xf]
        %v3221 = vld [vmem:[%s3211 + $0x24] sm:$0xf]
        %v3222 = vld [vmem:[%s3211 + $0x28] sm:$0xf]
        %v3223 = vld [vmem:[%s3211 + $0x2c] sm:$0xf]
        %v3224 = vld [vmem:[%s3211 + $0x30] sm:$0xf]
        %v3225 = vld [vmem:[%s3211 + $0x34] sm:$0xf]
        %v3226 = vld [vmem:[%s3211 + $0x38] sm:$0xf]
        %v3227 = vld [vmem:[%s3211 + $0x3c] sm:$0xf]
        %v3228 = vld [vmem:[#allocation7 + $0xb] sm:$0x1]
        %v3229 = vlaneseq
        %v3230 = vshrl.u32 %v3229, 7
        %v3231 = vsub.s32 0, %v3230
        %v3232 = vrot.slane %v3228, %v3231
        %v3249 = vunpack.c.l.b16 %v3212
        %v3250 = vunpack.c.l.b16 %v3213
        %v3251 = vunpack.c.l.b16 %v3214
        %v3252 = vunpack.c.l.b16 %v3215
        %v3253 = vunpack.c.l.b16 %v3216
        %v3254 = vunpack.c.l.b16 %v3217
        %v3255 = vunpack.c.l.b16 %v3218
        %v3256 = vunpack.c.l.b16 %v3219
        %v3257 = vunpack.c.l.b16 %v3220
        %v3258 = vunpack.c.l.b16 %v3221
        %v3259 = vunpack.c.l.b16 %v3222
        %v3260 = vunpack.c.l.b16 %v3223
        %v3261 = vunpack.c.l.b16 %v3224
        %v3262 = vunpack.c.l.b16 %v3225
        %v3263 = vunpack.c.l.b16 %v3226
        %v3264 = vunpack.c.l.b16 %v3227
        %v3265 = vpack.c.b16 %v3250, %v3249
        %v3266 = vpack.c.b16 %v3252, %v3251
        %v3267 = vpack.c.b16 %v3254, %v3253
        %v3268 = vpack.c.b16 %v3256, %v3255
        %v3269 = vpack.c.b16 %v3258, %v3257
        %v3270 = vpack.c.b16 %v3260, %v3259
        %v3271 = vpack.c.b16 %v3262, %v3261
        %v3272 = vpack.c.b16 %v3264, %v3263
        %3281 = vmatprep.subr.bf16.mxu0 0
        %3282 = vmatpush1.bf16.msra.mxu0 %v3265
        %3283 = vmatprep.subr.bf16.mxu0 0
        %3284 = vmatpush1.bf16.msra.mxu0 %v3266
        %3285 = vmatprep.subr.bf16.mxu0 0
        %3286 = vmatpush1.bf16.msra.mxu0 %v3267
        %3287 = vmatprep.subr.bf16.mxu0 0
        %3288 = vmatpush1.bf16.msra.mxu0 %v3268
        %3289 = vmatprep.subr.bf16.mxu0 0
        %3290 = vmatpush1.bf16.msra.mxu0 %v3269
        %3291 = vmatprep.subr.bf16.mxu0 0
        %3292 = vmatpush1.bf16.msra.mxu0 %v3270
        %3293 = vmatprep.subr.bf16.mxu0 0
        %3294 = vmatpush1.bf16.msra.mxu0 %v3271
        %3295 = vmatprep.subr.bf16.mxu0 0
        %3296 = vmatpush1.bf16.msra.mxu0 %v3272
        %3297 = vmatprep.subr.bf16.mxu0 0
        %3298 = vmatpush1.bf16.msra.mxu0 0
        %3299 = vmatprep.subr.bf16.mxu0 0
        %3300 = vmatpush1.bf16.msra.mxu0 0
        %3301 = vmatprep.subr.bf16.mxu0 0
        %3302 = vmatpush1.bf16.msra.mxu0 0
        %3303 = vmatprep.subr.bf16.mxu0 0
        %3304 = vmatpush1.bf16.msra.mxu0 0
        %3305 = vmatprep.subr.bf16.mxu0 0
        %3306 = vmatpush1.bf16.msra.mxu0 0
        %3307 = vmatprep.subr.bf16.mxu0 0
        %3308 = vmatpush1.bf16.msra.mxu0 0
        %3309 = vmatprep.subr.bf16.mxu0 0
        %3310 = vmatpush1.bf16.msra.mxu0 0
        %3311 = vmatprep.subr.bf16.mxu0 0
        %3312 = vmatpush1.bf16.msra.mxu0 0
        %3313 = vmatprep.mubr.bf16.mxu0 0
        %3314 = vmatmul.mubr.bf16.gmra.mrb[0].mxu0 %v3203
        %v3315 = vpop.f32.mrb[0].mxu0
        %v3316 = vadd.f32 %v3232, %v3315
        %v3317 = vpop.f32.mrb[0].mxu0
        %v3318 = vpop.f32.mrb[0].mxu0
        %v3319 = vadd.f32 %v3232, %v3318
        %v3320 = vpop.f32.mrb[0].mxu0
        %3321 = vmatprep.mubr.bf16.mxu0 0
        %3322 = vmatmul.mubr.bf16.gmra.mrb[0].mxu0 %v3204
        %v3323 = vpop.f32.mrb[0].mxu0
        %v3324 = vadd.f32 %v3232, %v3323
        %v3325 = vpop.f32.mrb[0].mxu0
        %v3326 = vpop.f32.mrb[0].mxu0
        %v3327 = vadd.f32 %v3232, %v3326
        %v3328 = vpop.f32.mrb[0].mxu0
        %3329 = vmatprep.mubr.bf16.mxu0 0
        %3330 = vmatmul.mubr.bf16.gmra.mrb[0].mxu0 %v3205
        %v3331 = vpop.f32.mrb[0].mxu0
        %v3332 = vadd.f32 %v3232, %v3331
        %v3333 = vpop.f32.mrb[0].mxu0
        %v3334 = vpop.f32.mrb[0].mxu0
        %v3335 = vadd.f32 %v3232, %v3334
        %v3336 = vpop.f32.mrb[0].mxu0
        %3337 = vmatprep.mubr.bf16.mxu0 0
        %3338 = vmatmul.mubr.bf16.gmra.mrb[0].mxu0 %v3206
        %v3339 = vpop.f32.mrb[0].mxu0
        %v3340 = vadd.f32 %v3232, %v3339
        %v3341 = vpop.f32.mrb[0].mxu0
        %v3342 = vpop.f32.mrb[0].mxu0
        %v3343 = vadd.f32 %v3232, %v3342
        %v3344 = vpop.f32.mrb[0].mxu0
        %3345 = vmatprep.mubr.bf16.mxu0 0
        %3346 = vmatmul.mubr.bf16.gmra.mrb[0].mxu0 %v3207
        %v3347 = vpop.f32.mrb[0].mxu0
        %v3348 = vadd.f32 %v3232, %v3347
        %v3349 = vpop.f32.mrb[0].mxu0
        %v3350 = vpop.f32.mrb[0].mxu0
        %v3351 = vadd.f32 %v3232, %v3350
        %v3352 = vpop.f32.mrb[0].mxu0
        %3353 = vmatprep.mubr.bf16.mxu0 0
        %3354 = vmatmul.mubr.bf16.gmra.mrb[0].mxu0 %v3208
        %v3355 = vpop.f32.mrb[0].mxu0
        %v3356 = vadd.f32 %v3232, %v3355
        %v3357 = vpop.f32.mrb[0].mxu0
        %v3358 = vpop.f32.mrb[0].mxu0
        %v3359 = vadd.f32 %v3232, %v3358
        %v3360 = vpop.f32.mrb[0].mxu0
        %3361 = vmatprep.mubr.bf16.mxu0 0
        %3362 = vmatmul.mubr.bf16.gmra.mrb[0].mxu0 %v3209
        %v3363 = vpop.f32.mrb[0].mxu0
        %v3364 = vadd.f32 %v3232, %v3363
        %v3365 = vpop.f32.mrb[0].mxu0
        %v3366 = vpop.f32.mrb[0].mxu0
        %v3367 = vadd.f32 %v3232, %v3366
        %v3368 = vpop.f32.mrb[0].mxu0
        %3369 = vmatprep.mubr.bf16.mxu0 0
        %3370 = vmatmul.mubr.bf16.gmra.mrb[0].mxu0 %v3210
        %v3371 = vpop.f32.mrb[0].mxu0
        %v3372 = vadd.f32 %v3232, %v3371
        %v3373 = vpop.f32.mrb[0].mxu0
        %v3374 = vpop.f32.mrb[0].mxu0
        %v3375 = vadd.f32 %v3232, %v3374
        %v3376 = vpop.f32.mrb[0].mxu0
        %3377 = vdwg.mxu0
        %v3378 = vadd.f32 %v3316, %v2805
        %v3379 = vadd.f32 %v3319, %v2806
        %v3380 = vadd.f32 %v3324, %v2807
        %v3381 = vadd.f32 %v3327, %v2808
        %v3382 = vadd.f32 %v3332, %v2809
        %v3383 = vadd.f32 %v3335, %v2810
        %v3384 = vadd.f32 %v3340, %v2811
        %v3385 = vadd.f32 %v3343, %v2812
        %v3386 = vadd.f32 %v3348, %v2813
        %v3387 = vadd.f32 %v3351, %v2814
        %v3388 = vadd.f32 %v3356, %v2815
        %v3389 = vadd.f32 %v3359, %v2816
        %v3390 = vadd.f32 %v3364, %v2817
        %v3391 = vadd.f32 %v3367, %v2818
        %v3392 = vadd.f32 %v3372, %v2819
        %v3393 = vadd.f32 %v3375, %v2820
        %3394 = vadd.xlane.f32.xlu0 %v3378
        %v3395 = vpop.xlane.xlu0 %3394
        %3396 = vadd.xlane.f32.xlu0 %v3379
        %v3397 = vpop.xlane.xlu0 %3396
        %3398 = vadd.xlane.f32.xlu0 %v3380
        %v3399 = vpop.xlane.xlu0 %3398
        %3400 = vadd.xlane.f32.xlu0 %v3381
        %v3401 = vpop.xlane.xlu0 %3400
        %3402 = vadd.xlane.f32.xlu0 %v3382
        %v3403 = vpop.xlane.xlu0 %3402
        %3404 = vadd.xlane.f32.xlu0 %v3383
        %v3405 = vpop.xlane.xlu0 %3404
        %3406 = vadd.xlane.f32.xlu0 %v3384
        %v3407 = vpop.xlane.xlu0 %3406
        %3408 = vadd.xlane.f32.xlu0 %v3385
        %v3409 = vpop.xlane.xlu0 %3408
        %3410 = vadd.xlane.f32.xlu0 %v3386
        %v3411 = vpop.xlane.xlu0 %3410
        %3412 = vadd.xlane.f32.xlu0 %v3387
        %v3413 = vpop.xlane.xlu0 %3412
        %3414 = vadd.xlane.f32.xlu0 %v3388
        %v3415 = vpop.xlane.xlu0 %3414
        %3416 = vadd.xlane.f32.xlu0 %v3389
        %v3417 = vpop.xlane.xlu0 %3416
        %3418 = vadd.xlane.f32.xlu0 %v3390
        %v3419 = vpop.xlane.xlu0 %3418
        %3420 = vadd.xlane.f32.xlu0 %v3391
        %v3421 = vpop.xlane.xlu0 %3420
        %3422 = vadd.xlane.f32.xlu0 %v3392
        %v3423 = vpop.xlane.xlu0 %3422
        %3424 = vadd.xlane.f32.xlu0 %v3393
        %v3425 = vpop.xlane.xlu0 %3424
        %v3426 = vmul.f32 %v3395, %v908
        %v3427 = vmul.f32 %v3397, %v908
        %v3428 = vmul.f32 %v3399, %v908
        %v3429 = vmul.f32 %v3401, %v908
        %v3430 = vmul.f32 %v3403, %v908
        %v3431 = vmul.f32 %v3405, %v908
        %v3432 = vmul.f32 %v3407, %v908
        %v3433 = vmul.f32 %v3409, %v908
        %v3434 = vmul.f32 %v3411, %v908
        %v3435 = vmul.f32 %v3413, %v908
        %v3436 = vmul.f32 %v3415, %v908
        %v3437 = vmul.f32 %v3417, %v908
        %v3438 = vmul.f32 %v3419, %v908
        %v3439 = vmul.f32 %v3421, %v908
        %v3440 = vmul.f32 %v3423, %v908
        %v3441 = vmul.f32 %v3425, %v908
        %v3442 = vmul.f32 %v3378, %v3378
        %v3443 = vmul.f32 %v3379, %v3379
        %v3444 = vmul.f32 %v3380, %v3380
        %v3445 = vmul.f32 %v3381, %v3381
        %v3446 = vmul.f32 %v3382, %v3382
        %v3447 = vmul.f32 %v3383, %v3383
        %v3448 = vmul.f32 %v3384, %v3384
        %v3449 = vmul.f32 %v3385, %v3385
        %v3450 = vmul.f32 %v3386, %v3386
        %v3451 = vmul.f32 %v3387, %v3387
        %v3452 = vmul.f32 %v3388, %v3388
        %v3453 = vmul.f32 %v3389, %v3389
        %v3454 = vmul.f32 %v3390, %v3390
        %v3455 = vmul.f32 %v3391, %v3391
        %v3456 = vmul.f32 %v3392, %v3392
        %v3457 = vmul.f32 %v3393, %v3393
        %3458 = vadd.xlane.f32.xlu0 %v3442
        %v3459 = vpop.xlane.xlu0 %3458
        %3460 = vadd.xlane.f32.xlu0 %v3443
        %v3461 = vpop.xlane.xlu0 %3460
        %3462 = vadd.xlane.f32.xlu0 %v3444
        %v3463 = vpop.xlane.xlu0 %3462
        %3464 = vadd.xlane.f32.xlu0 %v3445
        %v3465 = vpop.xlane.xlu0 %3464
        %3466 = vadd.xlane.f32.xlu0 %v3446
        %v3467 = vpop.xlane.xlu0 %3466
        %3468 = vadd.xlane.f32.xlu0 %v3447
        %v3469 = vpop.xlane.xlu0 %3468
        %3470 = vadd.xlane.f32.xlu0 %v3448
        %v3471 = vpop.xlane.xlu0 %3470
        %3472 = vadd.xlane.f32.xlu0 %v3449
        %v3473 = vpop.xlane.xlu0 %3472
        %3474 = vadd.xlane.f32.xlu0 %v3450
        %v3475 = vpop.xlane.xlu0 %3474
        %3476 = vadd.xlane.f32.xlu0 %v3451
        %v3477 = vpop.xlane.xlu0 %3476
        %3478 = vadd.xlane.f32.xlu0 %v3452
        %v3479 = vpop.xlane.xlu0 %3478
        %3480 = vadd.xlane.f32.xlu0 %v3453
        %v3481 = vpop.xlane.xlu0 %3480
        %3482 = vadd.xlane.f32.xlu0 %v3454
        %v3483 = vpop.xlane.xlu0 %3482
        %3484 = vadd.xlane.f32.xlu0 %v3455
        %v3485 = vpop.xlane.xlu0 %3484
        %3486 = vadd.xlane.f32.xlu0 %v3456
        %v3487 = vpop.xlane.xlu0 %3486
        %3488 = vadd.xlane.f32.xlu0 %v3457
        %v3489 = vpop.xlane.xlu0 %3488
        %v3490 = vmul.f32 %v3459, %v908
        %v3491 = vmul.f32 %v3461, %v908
        %v3492 = vmul.f32 %v3463, %v908
        %v3493 = vmul.f32 %v3465, %v908
        %v3494 = vmul.f32 %v3467, %v908
        %v3495 = vmul.f32 %v3469, %v908
        %v3496 = vmul.f32 %v3471, %v908
        %v3497 = vmul.f32 %v3473, %v908
        %v3498 = vmul.f32 %v3475, %v908
        %v3499 = vmul.f32 %v3477, %v908
        %v3500 = vmul.f32 %v3479, %v908
        %v3501 = vmul.f32 %v3481, %v908
        %v3502 = vmul.f32 %v3483, %v908
        %v3503 = vmul.f32 %v3485, %v908
        %v3504 = vmul.f32 %v3487, %v908
        %v3505 = vmul.f32 %v3489, %v908
        %v3506 = vmul.f32 %v3426, %v3426
        %v3507 = vmul.f32 %v3427, %v3427
        %v3508 = vmul.f32 %v3428, %v3428
        %v3509 = vmul.f32 %v3429, %v3429
        %v3510 = vmul.f32 %v3430, %v3430
        %v3511 = vmul.f32 %v3431, %v3431
        %v3512 = vmul.f32 %v3432, %v3432
        %v3513 = vmul.f32 %v3433, %v3433
        %v3514 = vmul.f32 %v3434, %v3434
        %v3515 = vmul.f32 %v3435, %v3435
        %v3516 = vmul.f32 %v3436, %v3436
        %v3517 = vmul.f32 %v3437, %v3437
        %v3518 = vmul.f32 %v3438, %v3438
        %v3519 = vmul.f32 %v3439, %v3439
        %v3520 = vmul.f32 %v3440, %v3440
        %v3521 = vmul.f32 %v3441, %v3441
        %v3522 = vsub.f32 %v3490, %v3506
        %v3523 = vsub.f32 %v3491, %v3507
        %v3524 = vsub.f32 %v3492, %v3508
        %v3525 = vsub.f32 %v3493, %v3509
        %v3526 = vsub.f32 %v3494, %v3510
        %v3527 = vsub.f32 %v3495, %v3511
        %v3528 = vsub.f32 %v3496, %v3512
        %v3529 = vsub.f32 %v3497, %v3513
        %v3530 = vsub.f32 %v3498, %v3514
        %v3531 = vsub.f32 %v3499, %v3515
        %v3532 = vsub.f32 %v3500, %v3516
        %v3533 = vsub.f32 %v3501, %v3517
        %v3534 = vsub.f32 %v3502, %v3518
        %v3535 = vsub.f32 %v3503, %v3519
        %v3536 = vsub.f32 %v3504, %v3520
        %v3537 = vsub.f32 %v3505, %v3521
        %v3538 = vmax.f32 %v3522, 0.0
        %v3539 = vmax.f32 %v3523, 0.0
        %v3540 = vmax.f32 %v3524, 0.0
        %v3541 = vmax.f32 %v3525, 0.0
        %v3542 = vmax.f32 %v3526, 0.0
        %v3543 = vmax.f32 %v3527, 0.0
        %v3544 = vmax.f32 %v3528, 0.0
        %v3545 = vmax.f32 %v3529, 0.0
        %v3546 = vmax.f32 %v3530, 0.0
        %v3547 = vmax.f32 %v3531, 0.0
        %v3548 = vmax.f32 %v3532, 0.0
        %v3549 = vmax.f32 %v3533, 0.0
        %v3550 = vmax.f32 %v3534, 0.0
        %v3551 = vmax.f32 %v3535, 0.0
        %v3552 = vmax.f32 %v3536, 0.0
        %v3553 = vmax.f32 %v3537, 0.0
        %v3554 = vsub.f32 %v3378, %v3426
        %v3555 = vsub.f32 %v3379, %v3427
        %v3556 = vsub.f32 %v3380, %v3428
        %v3557 = vsub.f32 %v3381, %v3429
        %v3558 = vsub.f32 %v3382, %v3430
        %v3559 = vsub.f32 %v3383, %v3431
        %v3560 = vsub.f32 %v3384, %v3432
        %v3561 = vsub.f32 %v3385, %v3433
        %v3562 = vsub.f32 %v3386, %v3434
        %v3563 = vsub.f32 %v3387, %v3435
        %v3564 = vsub.f32 %v3388, %v3436
        %v3565 = vsub.f32 %v3389, %v3437
        %v3566 = vsub.f32 %v3390, %v3438
        %v3567 = vsub.f32 %v3391, %v3439
        %v3568 = vsub.f32 %v3392, %v3440
        %v3569 = vsub.f32 %v3393, %v3441
        %v3570 = vadd.f32 %v3538, 1e-05
        %v3571 = vadd.f32 %v3539, 1e-05
        %v3572 = vadd.f32 %v3540, 1e-05
        %v3573 = vadd.f32 %v3541, 1e-05
        %v3574 = vadd.f32 %v3542, 1e-05
        %v3575 = vadd.f32 %v3543, 1e-05
        %v3576 = vadd.f32 %v3544, 1e-05
        %v3577 = vadd.f32 %v3545, 1e-05
        %v3578 = vadd.f32 %v3546, 1e-05
        %v3579 = vadd.f32 %v3547, 1e-05
        %v3580 = vadd.f32 %v3548, 1e-05
        %v3581 = vadd.f32 %v3549, 1e-05
        %v3582 = vadd.f32 %v3550, 1e-05
        %v3583 = vadd.f32 %v3551, 1e-05
        %v3584 = vadd.f32 %v3552, 1e-05
        %v3585 = vadd.f32 %v3553, 1e-05
        %v3586 = vrsqrt.pop %v3570
        %v3587 = vrsqrt.pop %v3571
        %v3588 = vrsqrt.pop %v3572
        %v3589 = vrsqrt.pop %v3573
        %v3590 = vrsqrt.pop %v3574
        %v3591 = vrsqrt.pop %v3575
        %v3592 = vrsqrt.pop %v3576
        %v3593 = vrsqrt.pop %v3577
        %v3594 = vrsqrt.pop %v3578
        %v3595 = vrsqrt.pop %v3579
        %v3596 = vrsqrt.pop %v3580
        %v3597 = vrsqrt.pop %v3581
        %v3598 = vrsqrt.pop %v3582
        %v3599 = vrsqrt.pop %v3583
        %v3600 = vrsqrt.pop %v3584
        %v3601 = vrsqrt.pop %v3585
        %v3602 = vmul.f32 %v3554, %v3586
        %v3603 = vmul.f32 %v3555, %v3587
        %v3604 = vmul.f32 %v3556, %v3588
        %v3605 = vmul.f32 %v3557, %v3589
        %v3606 = vmul.f32 %v3558, %v3590
        %v3607 = vmul.f32 %v3559, %v3591
        %v3608 = vmul.f32 %v3560, %v3592
        %v3609 = vmul.f32 %v3561, %v3593
        %v3610 = vmul.f32 %v3562, %v3594
        %v3611 = vmul.f32 %v3563, %v3595
        %v3612 = vmul.f32 %v3564, %v3596
        %v3613 = vmul.f32 %v3565, %v3597
        %v3614 = vmul.f32 %v3566, %v3598
        %v3615 = vmul.f32 %v3567, %v3599
        %v3616 = vmul.f32 %v3568, %v3600
        %v3617 = vmul.f32 %v3569, %v3601
        %v3618 = vld [vmem:[%s3 + $0x3] sm:$0x1]
        %v3619 = vlaneseq
        %v3620 = vshrl.u32 %v3619, 7
        %v3621 = vsub.s32 0, %v3620
        %v3622 = vrot.slane %v3618, %v3621
        %v3623 = vmul.f32 %v3602, %v3622
        %v3624 = vmul.f32 %v3603, %v3622
        %v3625 = vmul.f32 %v3604, %v3622
        %v3626 = vmul.f32 %v3605, %v3622
        %v3627 = vmul.f32 %v3606, %v3622
        %v3628 = vmul.f32 %v3607, %v3622
        %v3629 = vmul.f32 %v3608, %v3622
        %v3630 = vmul.f32 %v3609, %v3622
        %v3631 = vmul.f32 %v3610, %v3622
        %v3632 = vmul.f32 %v3611, %v3622
        %v3633 = vmul.f32 %v3612, %v3622
        %v3634 = vmul.f32 %v3613, %v3622
        %v3635 = vmul.f32 %v3614, %v3622
        %v3636 = vmul.f32 %v3615, %v3622
        %v3637 = vmul.f32 %v3616, %v3622
        %v3638 = vmul.f32 %v3617, %v3622
        %v3639 = vld [vmem:[#allocation8 + $0x3] sm:$0x1]
        %v3640 = vlaneseq
        %v3641 = vshrl.u32 %v3640, 7
        %v3642 = vsub.s32 0, %v3641
        %v3643 = vrot.slane %v3639, %v3642
        %v3644 = vadd.f32 %v3623, %v3643
        %v3645 = vadd.f32 %v3624, %v3643
        %v3646 = vadd.f32 %v3625, %v3643
        %v3647 = vadd.f32 %v3626, %v3643
        %v3648 = vadd.f32 %v3627, %v3643
        %v3649 = vadd.f32 %v3628, %v3643
        %v3650 = vadd.f32 %v3629, %v3643
        %v3651 = vadd.f32 %v3630, %v3643
        %v3652 = vadd.f32 %v3631, %v3643
        %v3653 = vadd.f32 %v3632, %v3643
        %v3654 = vadd.f32 %v3633, %v3643
        %v3655 = vadd.f32 %v3634, %v3643
        %v3656 = vadd.f32 %v3635, %v3643
        %v3657 = vadd.f32 %v3636, %v3643
        %v3658 = vadd.f32 %v3637, %v3643
        %v3659 = vadd.f32 %v3638, %v3643
        %v3660 = vpack.c.bf16 %v3645, %v3644
        %v3661 = vpack.c.bf16 %v3647, %v3646
        %v3662 = vpack.c.bf16 %v3649, %v3648
        %v3663 = vpack.c.bf16 %v3651, %v3650
        %v3664 = vpack.c.bf16 %v3653, %v3652
        %v3665 = vpack.c.bf16 %v3655, %v3654
        %v3666 = vpack.c.bf16 %v3657, %v3656
        %v3667 = vpack.c.bf16 %v3659, %v3658
        %s3668 = scalar_lea.vmem [#allocation5], 768
        %v3669 = vld [vmem:[%s3668] sm:$0xf]
        %v3670 = vld [vmem:[%s3668 + $0x4] sm:$0xf]
        %v3671 = vld [vmem:[%s3668 + $0x8] sm:$0xf]
        %v3672 = vld [vmem:[%s3668 + $0xc] sm:$0xf]
        %v3673 = vld [vmem:[%s3668 + $0x10] sm:$0xf]
        %v3674 = vld [vmem:[%s3668 + $0x14] sm:$0xf]
        %v3675 = vld [vmem:[%s3668 + $0x18] sm:$0xf]
        %v3676 = vld [vmem:[%s3668 + $0x1c] sm:$0xf]
        %v3677 = vld [vmem:[%s3668 + $0x20] sm:$0xf]
        %v3678 = vld [vmem:[%s3668 + $0x24] sm:$0xf]
        %v3679 = vld [vmem:[%s3668 + $0x28] sm:$0xf]
        %v3680 = vld [vmem:[%s3668 + $0x2c] sm:$0xf]
        %v3681 = vld [vmem:[%s3668 + $0x30] sm:$0xf]
        %v3682 = vld [vmem:[%s3668 + $0x34] sm:$0xf]
        %v3683 = vld [vmem:[%s3668 + $0x38] sm:$0xf]
        %v3684 = vld [vmem:[%s3668 + $0x3c] sm:$0xf]
        %v3685 = vld [vmem:[#allocation7 + $0xc] sm:$0x1]
        %v3686 = vlaneseq
        %v3687 = vshrl.u32 %v3686, 7
        %v3688 = vsub.s32 0, %v3687
        %v3689 = vrot.slane %v3685, %v3688
        %v3706 = vunpack.c.l.b16 %v3669
        %v3707 = vunpack.c.l.b16 %v3670
        %v3708 = vunpack.c.l.b16 %v3671
        %v3709 = vunpack.c.l.b16 %v3672
        %v3710 = vunpack.c.l.b16 %v3673
        %v3711 = vunpack.c.l.b16 %v3674
        %v3712 = vunpack.c.l.b16 %v3675
        %v3713 = vunpack.c.l.b16 %v3676
        %v3714 = vunpack.c.l.b16 %v3677
        %v3715 = vunpack.c.l.b16 %v3678
        %v3716 = vunpack.c.l.b16 %v3679
        %v3717 = vunpack.c.l.b16 %v3680
        %v3718 = vunpack.c.l.b16 %v3681
        %v3719 = vunpack.c.l.b16 %v3682
        %v3720 = vunpack.c.l.b16 %v3683
        %v3721 = vunpack.c.l.b16 %v3684
        %v3722 = vpack.c.b16 %v3707, %v3706
        %v3723 = vpack.c.b16 %v3709, %v3708
        %v3724 = vpack.c.b16 %v3711, %v3710
        %v3725 = vpack.c.b16 %v3713, %v3712
        %v3726 = vpack.c.b16 %v3715, %v3714
        %v3727 = vpack.c.b16 %v3717, %v3716
        %v3728 = vpack.c.b16 %v3719, %v3718
        %v3729 = vpack.c.b16 %v3721, %v3720
        %3738 = vmatprep.subr.bf16.mxu0 0
        %3739 = vmatpush1.bf16.msra.mxu0 %v3722
        %3740 = vmatprep.subr.bf16.mxu0 0
        %3741 = vmatpush1.bf16.msra.mxu0 %v3723
        %3742 = vmatprep.subr.bf16.mxu0 0
        %3743 = vmatpush1.bf16.msra.mxu0 %v3724
        %3744 = vmatprep.subr.bf16.mxu0 0
        %3745 = vmatpush1.bf16.msra.mxu0 %v3725
        %3746 = vmatprep.subr.bf16.mxu0 0
        %3747 = vmatpush1.bf16.msra.mxu0 %v3726
        %3748 = vmatprep.subr.bf16.mxu0 0
        %3749 = vmatpush1.bf16.msra.mxu0 %v3727
        %3750 = vmatprep.subr.bf16.mxu0 0
        %3751 = vmatpush1.bf16.msra.mxu0 %v3728
        %3752 = vmatprep.subr.bf16.mxu0 0
        %3753 = vmatpush1.bf16.msra.mxu0 %v3729
        %3754 = vmatprep.subr.bf16.mxu0 0
        %3755 = vmatpush1.bf16.msra.mxu0 0
        %3756 = vmatprep.subr.bf16.mxu0 0
        %3757 = vmatpush1.bf16.msra.mxu0 0
        %3758 = vmatprep.subr.bf16.mxu0 0
        %3759 = vmatpush1.bf16.msra.mxu0 0
        %3760 = vmatprep.subr.bf16.mxu0 0
        %3761 = vmatpush1.bf16.msra.mxu0 0
        %3762 = vmatprep.subr.bf16.mxu0 0
        %3763 = vmatpush1.bf16.msra.mxu0 0
        %3764 = vmatprep.subr.bf16.mxu0 0
        %3765 = vmatpush1.bf16.msra.mxu0 0
        %3766 = vmatprep.subr.bf16.mxu0 0
        %3767 = vmatpush1.bf16.msra.mxu0 0
        %3768 = vmatprep.subr.bf16.mxu0 0
        %3769 = vmatpush1.bf16.msra.mxu0 0
        %3770 = vmatprep.mubr.bf16.mxu0 0
        %3771 = vmatmul.mubr.bf16.gmra.mrb[0].mxu0 %v3660
        %v3772 = vpop.f32.mrb[0].mxu0
        %v3773 = vadd.f32 %v3689, %v3772
        %v3774 = vpop.f32.mrb[0].mxu0
        %v3775 = vpop.f32.mrb[0].mxu0
        %v3776 = vadd.f32 %v3689, %v3775
        %v3777 = vpop.f32.mrb[0].mxu0
        %3778 = vmatprep.mubr.bf16.mxu0 0
        %3779 = vmatmul.mubr.bf16.gmra.mrb[0].mxu0 %v3661
        %v3780 = vpop.f32.mrb[0].mxu0
        %v3781 = vadd.f32 %v3689, %v3780
        %v3782 = vpop.f32.mrb[0].mxu0
        %v3783 = vpop.f32.mrb[0].mxu0
        %v3784 = vadd.f32 %v3689, %v3783
        %v3785 = vpop.f32.mrb[0].mxu0
        %3786 = vmatprep.mubr.bf16.mxu0 0
        %3787 = vmatmul.mubr.bf16.gmra.mrb[0].mxu0 %v3662
        %v3788 = vpop.f32.mrb[0].mxu0
        %v3789 = vadd.f32 %v3689, %v3788
        %v3790 = vpop.f32.mrb[0].mxu0
        %v3791 = vpop.f32.mrb[0].mxu0
        %v3792 = vadd.f32 %v3689, %v3791
        %v3793 = vpop.f32.mrb[0].mxu0
        %3794 = vmatprep.mubr.bf16.mxu0 0
        %3795 = vmatmul.mubr.bf16.gmra.mrb[0].mxu0 %v3663
        %v3796 = vpop.f32.mrb[0].mxu0
        %v3797 = vadd.f32 %v3689, %v3796
        %v3798 = vpop.f32.mrb[0].mxu0
        %v3799 = vpop.f32.mrb[0].mxu0
        %v3800 = vadd.f32 %v3689, %v3799
        %v3801 = vpop.f32.mrb[0].mxu0
        %3802 = vmatprep.mubr.bf16.mxu0 0
        %3803 = vmatmul.mubr.bf16.gmra.mrb[0].mxu0 %v3664
        %v3804 = vpop.f32.mrb[0].mxu0
        %v3805 = vadd.f32 %v3689, %v3804
        %v3806 = vpop.f32.mrb[0].mxu0
        %v3807 = vpop.f32.mrb[0].mxu0
        %v3808 = vadd.f32 %v3689, %v3807
        %v3809 = vpop.f32.mrb[0].mxu0
        %3810 = vmatprep.mubr.bf16.mxu0 0
        %3811 = vmatmul.mubr.bf16.gmra.mrb[0].mxu0 %v3665
        %v3812 = vpop.f32.mrb[0].mxu0
        %v3813 = vadd.f32 %v3689, %v3812
        %v3814 = vpop.f32.mrb[0].mxu0
        %v3815 = vpop.f32.mrb[0].mxu0
        %v3816 = vadd.f32 %v3689, %v3815
        %v3817 = vpop.f32.mrb[0].mxu0
        %3818 = vmatprep.mubr.bf16.mxu0 0
        %3819 = vmatmul.mubr.bf16.gmra.mrb[0].mxu0 %v3666
        %v3820 = vpop.f32.mrb[0].mxu0
        %v3821 = vadd.f32 %v3689, %v3820
        %v3822 = vpop.f32.mrb[0].mxu0
        %v3823 = vpop.f32.mrb[0].mxu0
        %v3824 = vadd.f32 %v3689, %v3823
        %v3825 = vpop.f32.mrb[0].mxu0
        %3826 = vmatprep.mubr.bf16.mxu0 0
        %3827 = vmatmul.mubr.bf16.gmra.mrb[0].mxu0 %v3667
        %v3828 = vpop.f32.mrb[0].mxu0
        %v3829 = vadd.f32 %v3689, %v3828
        %v3830 = vpop.f32.mrb[0].mxu0
        %v3831 = vpop.f32.mrb[0].mxu0
        %v3832 = vadd.f32 %v3689, %v3831
        %v3833 = vpop.f32.mrb[0].mxu0
        %3834 = vdwg.mxu0
        %v3835 = vmax.f32 %v3773, 0.0
        %v3836 = vmax.f32 %v3776, 0.0
        %v3837 = vmax.f32 %v3781, 0.0
        %v3838 = vmax.f32 %v3784, 0.0
        %v3839 = vmax.f32 %v3789, 0.0
        %v3840 = vmax.f32 %v3792, 0.0
        %v3841 = vmax.f32 %v3797, 0.0
        %v3842 = vmax.f32 %v3800, 0.0
        %v3843 = vmax.f32 %v3805, 0.0
        %v3844 = vmax.f32 %v3808, 0.0
        %v3845 = vmax.f32 %v3813, 0.0
        %v3846 = vmax.f32 %v3816, 0.0
        %v3847 = vmax.f32 %v3821, 0.0
        %v3848 = vmax.f32 %v3824, 0.0
        %v3849 = vmax.f32 %v3829, 0.0
        %v3850 = vmax.f32 %v3832, 0.0
        %v3851 = vpack.c.bf16 %v3836, %v3835
        %v3852 = vpack.c.bf16 %v3838, %v3837
        %v3853 = vpack.c.bf16 %v3840, %v3839
        %v3854 = vpack.c.bf16 %v3842, %v3841
        %v3855 = vpack.c.bf16 %v3844, %v3843
        %v3856 = vpack.c.bf16 %v3846, %v3845
        %v3857 = vpack.c.bf16 %v3848, %v3847
        %v3858 = vpack.c.bf16 %v3850, %v3849
        %s3859 = scalar_lea.vmem [#allocation5], 832
        %v3860 = vld [vmem:[%s3859] sm:$0xf]
        %v3861 = vld [vmem:[%s3859 + $0x4] sm:$0xf]
        %v3862 = vld [vmem:[%s3859 + $0x8] sm:$0xf]
        %v3863 = vld [vmem:[%s3859 + $0xc] sm:$0xf]
        %v3864 = vld [vmem:[%s3859 + $0x10] sm:$0xf]
        %v3865 = vld [vmem:[%s3859 + $0x14] sm:$0xf]
        %v3866 = vld [vmem:[%s3859 + $0x18] sm:$0xf]
        %v3867 = vld [vmem:[%s3859 + $0x1c] sm:$0xf]
        %v3868 = vld [vmem:[%s3859 + $0x20] sm:$0xf]
        %v3869 = vld [vmem:[%s3859 + $0x24] sm:$0xf]
        %v3870 = vld [vmem:[%s3859 + $0x28] sm:$0xf]
        %v3871 = vld [vmem:[%s3859 + $0x2c] sm:$0xf]
        %v3872 = vld [vmem:[%s3859 + $0x30] sm:$0xf]
        %v3873 = vld [vmem:[%s3859 + $0x34] sm:$0xf]
        %v3874 = vld [vmem:[%s3859 + $0x38] sm:$0xf]
        %v3875 = vld [vmem:[%s3859 + $0x3c] sm:$0xf]
        %v3876 = vld [vmem:[#allocation7 + $0xd] sm:$0x1]
        %v3877 = vlaneseq
        %v3878 = vshrl.u32 %v3877, 7
        %v3879 = vsub.s32 0, %v3878
        %v3880 = vrot.slane %v3876, %v3879
        %v3897 = vunpack.c.l.b16 %v3860
        %v3898 = vunpack.c.l.b16 %v3861
        %v3899 = vunpack.c.l.b16 %v3862
        %v3900 = vunpack.c.l.b16 %v3863
        %v3901 = vunpack.c.l.b16 %v3864
        %v3902 = vunpack.c.l.b16 %v3865
        %v3903 = vunpack.c.l.b16 %v3866
        %v3904 = vunpack.c.l.b16 %v3867
        %v3905 = vunpack.c.l.b16 %v3868
        %v3906 = vunpack.c.l.b16 %v3869
        %v3907 = vunpack.c.l.b16 %v3870
        %v3908 = vunpack.c.l.b16 %v3871
        %v3909 = vunpack.c.l.b16 %v3872
        %v3910 = vunpack.c.l.b16 %v3873
        %v3911 = vunpack.c.l.b16 %v3874
        %v3912 = vunpack.c.l.b16 %v3875
        %v3913 = vpack.c.b16 %v3898, %v3897
        %v3914 = vpack.c.b16 %v3900, %v3899
        %v3915 = vpack.c.b16 %v3902, %v3901
        %v3916 = vpack.c.b16 %v3904, %v3903
        %v3917 = vpack.c.b16 %v3906, %v3905
        %v3918 = vpack.c.b16 %v3908, %v3907
        %v3919 = vpack.c.b16 %v3910, %v3909
        %v3920 = vpack.c.b16 %v3912, %v3911
        %3929 = vmatprep.subr.bf16.mxu0 0
        %3930 = vmatpush1.bf16.msra.mxu0 %v3913
        %3931 = vmatprep.subr.bf16.mxu0 0
        %3932 = vmatpush1.bf16.msra.mxu0 %v3914
        %3933 = vmatprep.subr.bf16.mxu0 0
        %3934 = vmatpush1.bf16.msra.mxu0 %v3915
        %3935 = vmatprep.subr.bf16.mxu0 0
        %3936 = vmatpush1.bf16.msra.mxu0 %v3916
        %3937 = vmatprep.subr.bf16.mxu0 0
        %3938 = vmatpush1.bf16.msra.mxu0 %v3917
        %3939 = vmatprep.subr.bf16.mxu0 0
        %3940 = vmatpush1.bf16.msra.mxu0 %v3918
        %3941 = vmatprep.subr.bf16.mxu0 0
        %3942 = vmatpush1.bf16.msra.mxu0 %v3919
        %3943 = vmatprep.subr.bf16.mxu0 0
        %3944 = vmatpush1.bf16.msra.mxu0 %v3920
        %3945 = vmatprep.subr.bf16.mxu0 0
        %3946 = vmatpush1.bf16.msra.mxu0 0
        %3947 = vmatprep.subr.bf16.mxu0 0
        %3948 = vmatpush1.bf16.msra.mxu0 0
        %3949 = vmatprep.subr.bf16.mxu0 0
        %3950 = vmatpush1.bf16.msra.mxu0 0
        %3951 = vmatprep.subr.bf16.mxu0 0
        %3952 = vmatpush1.bf16.msra.mxu0 0
        %3953 = vmatprep.subr.bf16.mxu0 0
        %3954 = vmatpush1.bf16.msra.mxu0 0
        %3955 = vmatprep.subr.bf16.mxu0 0
        %3956 = vmatpush1.bf16.msra.mxu0 0
        %3957 = vmatprep.subr.bf16.mxu0 0
        %3958 = vmatpush1.bf16.msra.mxu0 0
        %3959 = vmatprep.subr.bf16.mxu0 0
        %3960 = vmatpush1.bf16.msra.mxu0 0
        %3961 = vmatprep.mubr.bf16.mxu0 0
        %3962 = vmatmul.mubr.bf16.gmra.mrb[0].mxu0 %v3851
        %v3963 = vpop.f32.mrb[0].mxu0
        %v3964 = vadd.f32 %v3880, %v3963
        %v3965 = vpop.f32.mrb[0].mxu0
        %v3966 = vpop.f32.mrb[0].mxu0
        %v3967 = vadd.f32 %v3880, %v3966
        %v3968 = vpop.f32.mrb[0].mxu0
        %3969 = vmatprep.mubr.bf16.mxu0 0
        %3970 = vmatmul.mubr.bf16.gmra.mrb[0].mxu0 %v3852
        %v3971 = vpop.f32.mrb[0].mxu0
        %v3972 = vadd.f32 %v3880, %v3971
        %v3973 = vpop.f32.mrb[0].mxu0
        %v3974 = vpop.f32.mrb[0].mxu0
        %v3975 = vadd.f32 %v3880, %v3974
        %v3976 = vpop.f32.mrb[0].mxu0
        %3977 = vmatprep.mubr.bf16.mxu0 0
        %3978 = vmatmul.mubr.bf16.gmra.mrb[0].mxu0 %v3853
        %v3979 = vpop.f32.mrb[0].mxu0
        %v3980 = vadd.f32 %v3880, %v3979
        %v3981 = vpop.f32.mrb[0].mxu0
        %v3982 = vpop.f32.mrb[0].mxu0
        %v3983 = vadd.f32 %v3880, %v3982
        %v3984 = vpop.f32.mrb[0].mxu0
        %3985 = vmatprep.mubr.bf16.mxu0 0
        %3986 = vmatmul.mubr.bf16.gmra.mrb[0].mxu0 %v3854
        %v3987 = vpop.f32.mrb[0].mxu0
        %v3988 = vadd.f32 %v3880, %v3987
        %v3989 = vpop.f32.mrb[0].mxu0
        %v3990 = vpop.f32.mrb[0].mxu0
        %v3991 = vadd.f32 %v3880, %v3990
        %v3992 = vpop.f32.mrb[0].mxu0
        %3993 = vmatprep.mubr.bf16.mxu0 0
        %3994 = vmatmul.mubr.bf16.gmra.mrb[0].mxu0 %v3855
        %v3995 = vpop.f32.mrb[0].mxu0
        %v3996 = vadd.f32 %v3880, %v3995
        %v3997 = vpop.f32.mrb[0].mxu0
        %v3998 = vpop.f32.mrb[0].mxu0
        %v3999 = vadd.f32 %v3880, %v3998
        %v4000 = vpop.f32.mrb[0].mxu0
        %4001 = vmatprep.mubr.bf16.mxu0 0
        %4002 = vmatmul.mubr.bf16.gmra.mrb[0].mxu0 %v3856
        %v4003 = vpop.f32.mrb[0].mxu0
        %v4004 = vadd.f32 %v3880, %v4003
        %v4005 = vpop.f32.mrb[0].mxu0
        %v4006 = vpop.f32.mrb[0].mxu0
        %v4007 = vadd.f32 %v3880, %v4006
        %v4008 = vpop.f32.mrb[0].mxu0
        %4009 = vmatprep.mubr.bf16.mxu0 0
        %4010 = vmatmul.mubr.bf16.gmra.mrb[0].mxu0 %v3857
        %v4011 = vpop.f32.mrb[0].mxu0
        %v4012 = vadd.f32 %v3880, %v4011
        %v4013 = vpop.f32.mrb[0].mxu0
        %v4014 = vpop.f32.mrb[0].mxu0
        %v4015 = vadd.f32 %v3880, %v4014
        %v4016 = vpop.f32.mrb[0].mxu0
        %4017 = vmatprep.mubr.bf16.mxu0 0
        %4018 = vmatmul.mubr.bf16.gmra.mrb[0].mxu0 %v3858
        %v4019 = vpop.f32.mrb[0].mxu0
        %v4020 = vadd.f32 %v3880, %v4019
        %v4021 = vpop.f32.mrb[0].mxu0
        %v4022 = vpop.f32.mrb[0].mxu0
        %v4023 = vadd.f32 %v3880, %v4022
        %v4024 = vpop.f32.mrb[0].mxu0
        %4025 = vdwg.mxu0
        %v4026 = vmax.f32 %v3964, 0.0
        %v4027 = vmax.f32 %v3967, 0.0
        %v4028 = vmax.f32 %v3972, 0.0
        %v4029 = vmax.f32 %v3975, 0.0
        %v4030 = vmax.f32 %v3980, 0.0
        %v4031 = vmax.f32 %v3983, 0.0
        %v4032 = vmax.f32 %v3988, 0.0
        %v4033 = vmax.f32 %v3991, 0.0
        %v4034 = vmax.f32 %v3996, 0.0
        %v4035 = vmax.f32 %v3999, 0.0
        %v4036 = vmax.f32 %v4004, 0.0
        %v4037 = vmax.f32 %v4007, 0.0
        %v4038 = vmax.f32 %v4012, 0.0
        %v4039 = vmax.f32 %v4015, 0.0
        %v4040 = vmax.f32 %v4020, 0.0
        %v4041 = vmax.f32 %v4023, 0.0
        %v4042 = vpack.c.bf16 %v4027, %v4026
        %v4043 = vpack.c.bf16 %v4029, %v4028
        %v4044 = vpack.c.bf16 %v4031, %v4030
        %v4045 = vpack.c.bf16 %v4033, %v4032
        %v4046 = vpack.c.bf16 %v4035, %v4034
        %v4047 = vpack.c.bf16 %v4037, %v4036
        %v4048 = vpack.c.bf16 %v4039, %v4038
        %v4049 = vpack.c.bf16 %v4041, %v4040
        %s4050 = scalar_lea.vmem [#allocation5], 896
        %v4051 = vld [vmem:[%s4050] sm:$0xf]
        %v4052 = vld [vmem:[%s4050 + $0x4] sm:$0xf]
        %v4053 = vld [vmem:[%s4050 + $0x8] sm:$0xf]
        %v4054 = vld [vmem:[%s4050 + $0xc] sm:$0xf]
        %v4055 = vld [vmem:[%s4050 + $0x10] sm:$0xf]
        %v4056 = vld [vmem:[%s4050 + $0x14] sm:$0xf]
        %v4057 = vld [vmem:[%s4050 + $0x18] sm:$0xf]
        %v4058 = vld [vmem:[%s4050 + $0x1c] sm:$0xf]
        %v4059 = vld [vmem:[%s4050 + $0x20] sm:$0xf]
        %v4060 = vld [vmem:[%s4050 + $0x24] sm:$0xf]
        %v4061 = vld [vmem:[%s4050 + $0x28] sm:$0xf]
        %v4062 = vld [vmem:[%s4050 + $0x2c] sm:$0xf]
        %v4063 = vld [vmem:[%s4050 + $0x30] sm:$0xf]
        %v4064 = vld [vmem:[%s4050 + $0x34] sm:$0xf]
        %v4065 = vld [vmem:[%s4050 + $0x38] sm:$0xf]
        %v4066 = vld [vmem:[%s4050 + $0x3c] sm:$0xf]
        %v4067 = vld [vmem:[#allocation7 + $0xe] sm:$0x1]
        %v4068 = vlaneseq
        %v4069 = vshrl.u32 %v4068, 7
        %v4070 = vsub.s32 0, %v4069
        %v4071 = vrot.slane %v4067, %v4070
        %v4088 = vunpack.c.l.b16 %v4051
        %v4089 = vunpack.c.l.b16 %v4052
        %v4090 = vunpack.c.l.b16 %v4053
        %v4091 = vunpack.c.l.b16 %v4054
        %v4092 = vunpack.c.l.b16 %v4055
        %v4093 = vunpack.c.l.b16 %v4056
        %v4094 = vunpack.c.l.b16 %v4057
        %v4095 = vunpack.c.l.b16 %v4058
        %v4096 = vunpack.c.l.b16 %v4059
        %v4097 = vunpack.c.l.b16 %v4060
        %v4098 = vunpack.c.l.b16 %v4061
        %v4099 = vunpack.c.l.b16 %v4062
        %v4100 = vunpack.c.l.b16 %v4063
        %v4101 = vunpack.c.l.b16 %v4064
        %v4102 = vunpack.c.l.b16 %v4065
        %v4103 = vunpack.c.l.b16 %v4066
        %v4104 = vpack.c.b16 %v4089, %v4088
        %v4105 = vpack.c.b16 %v4091, %v4090
        %v4106 = vpack.c.b16 %v4093, %v4092
        %v4107 = vpack.c.b16 %v4095, %v4094
        %v4108 = vpack.c.b16 %v4097, %v4096
        %v4109 = vpack.c.b16 %v4099, %v4098
        %v4110 = vpack.c.b16 %v4101, %v4100
        %v4111 = vpack.c.b16 %v4103, %v4102
        %4120 = vmatprep.subr.bf16.mxu0 0
        %4121 = vmatpush1.bf16.msra.mxu0 %v4104
        %4122 = vmatprep.subr.bf16.mxu0 0
        %4123 = vmatpush1.bf16.msra.mxu0 %v4105
        %4124 = vmatprep.subr.bf16.mxu0 0
        %4125 = vmatpush1.bf16.msra.mxu0 %v4106
        %4126 = vmatprep.subr.bf16.mxu0 0
        %4127 = vmatpush1.bf16.msra.mxu0 %v4107
        %4128 = vmatprep.subr.bf16.mxu0 0
        %4129 = vmatpush1.bf16.msra.mxu0 %v4108
        %4130 = vmatprep.subr.bf16.mxu0 0
        %4131 = vmatpush1.bf16.msra.mxu0 %v4109
        %4132 = vmatprep.subr.bf16.mxu0 0
        %4133 = vmatpush1.bf16.msra.mxu0 %v4110
        %4134 = vmatprep.subr.bf16.mxu0 0
        %4135 = vmatpush1.bf16.msra.mxu0 %v4111
        %4136 = vmatprep.subr.bf16.mxu0 0
        %4137 = vmatpush1.bf16.msra.mxu0 0
        %4138 = vmatprep.subr.bf16.mxu0 0
        %4139 = vmatpush1.bf16.msra.mxu0 0
        %4140 = vmatprep.subr.bf16.mxu0 0
        %4141 = vmatpush1.bf16.msra.mxu0 0
        %4142 = vmatprep.subr.bf16.mxu0 0
        %4143 = vmatpush1.bf16.msra.mxu0 0
        %4144 = vmatprep.subr.bf16.mxu0 0
        %4145 = vmatpush1.bf16.msra.mxu0 0
        %4146 = vmatprep.subr.bf16.mxu0 0
        %4147 = vmatpush1.bf16.msra.mxu0 0
        %4148 = vmatprep.subr.bf16.mxu0 0
        %4149 = vmatpush1.bf16.msra.mxu0 0
        %4150 = vmatprep.subr.bf16.mxu0 0
        %4151 = vmatpush1.bf16.msra.mxu0 0
        %4152 = vmatprep.mubr.bf16.mxu0 0
        %4153 = vmatmul.mubr.bf16.gmra.mrb[0].mxu0 %v4042
        %v4154 = vpop.f32.mrb[0].mxu0
        %v4155 = vadd.f32 %v4071, %v4154
        %v4156 = vpop.f32.mrb[0].mxu0
        %v4157 = vpop.f32.mrb[0].mxu0
        %v4158 = vadd.f32 %v4071, %v4157
        %v4159 = vpop.f32.mrb[0].mxu0
        %4160 = vmatprep.mubr.bf16.mxu0 0
        %4161 = vmatmul.mubr.bf16.gmra.mrb[0].mxu0 %v4043
        %v4162 = vpop.f32.mrb[0].mxu0
        %v4163 = vadd.f32 %v4071, %v4162
        %v4164 = vpop.f32.mrb[0].mxu0
        %v4165 = vpop.f32.mrb[0].mxu0
        %v4166 = vadd.f32 %v4071, %v4165
        %v4167 = vpop.f32.mrb[0].mxu0
        %4168 = vmatprep.mubr.bf16.mxu0 0
        %4169 = vmatmul.mubr.bf16.gmra.mrb[0].mxu0 %v4044
        %v4170 = vpop.f32.mrb[0].mxu0
        %v4171 = vadd.f32 %v4071, %v4170
        %v4172 = vpop.f32.mrb[0].mxu0
        %v4173 = vpop.f32.mrb[0].mxu0
        %v4174 = vadd.f32 %v4071, %v4173
        %v4175 = vpop.f32.mrb[0].mxu0
        %4176 = vmatprep.mubr.bf16.mxu0 0
        %4177 = vmatmul.mubr.bf16.gmra.mrb[0].mxu0 %v4045
        %v4178 = vpop.f32.mrb[0].mxu0
        %v4179 = vadd.f32 %v4071, %v4178
        %v4180 = vpop.f32.mrb[0].mxu0
        %v4181 = vpop.f32.mrb[0].mxu0
        %v4182 = vadd.f32 %v4071, %v4181
        %v4183 = vpop.f32.mrb[0].mxu0
        %4184 = vmatprep.mubr.bf16.mxu0 0
        %4185 = vmatmul.mubr.bf16.gmra.mrb[0].mxu0 %v4046
        %v4186 = vpop.f32.mrb[0].mxu0
        %v4187 = vadd.f32 %v4071, %v4186
        %v4188 = vpop.f32.mrb[0].mxu0
        %v4189 = vpop.f32.mrb[0].mxu0
        %v4190 = vadd.f32 %v4071, %v4189
        %v4191 = vpop.f32.mrb[0].mxu0
        %4192 = vmatprep.mubr.bf16.mxu0 0
        %4193 = vmatmul.mubr.bf16.gmra.mrb[0].mxu0 %v4047
        %v4194 = vpop.f32.mrb[0].mxu0
        %v4195 = vadd.f32 %v4071, %v4194
        %v4196 = vpop.f32.mrb[0].mxu0
        %v4197 = vpop.f32.mrb[0].mxu0
        %v4198 = vadd.f32 %v4071, %v4197
        %v4199 = vpop.f32.mrb[0].mxu0
        %4200 = vmatprep.mubr.bf16.mxu0 0
        %4201 = vmatmul.mubr.bf16.gmra.mrb[0].mxu0 %v4048
        %v4202 = vpop.f32.mrb[0].mxu0
        %v4203 = vadd.f32 %v4071, %v4202
        %v4204 = vpop.f32.mrb[0].mxu0
        %v4205 = vpop.f32.mrb[0].mxu0
        %v4206 = vadd.f32 %v4071, %v4205
        %v4207 = vpop.f32.mrb[0].mxu0
        %4208 = vmatprep.mubr.bf16.mxu0 0
        %4209 = vmatmul.mubr.bf16.gmra.mrb[0].mxu0 %v4049
        %v4210 = vpop.f32.mrb[0].mxu0
        %v4211 = vadd.f32 %v4071, %v4210
        %v4212 = vpop.f32.mrb[0].mxu0
        %v4213 = vpop.f32.mrb[0].mxu0
        %v4214 = vadd.f32 %v4071, %v4213
        %v4215 = vpop.f32.mrb[0].mxu0
        %4216 = vdwg.mxu0
        %v4217 = vadd.f32 %v4155, %v3644
        %v4218 = vadd.f32 %v4158, %v3645
        %v4219 = vadd.f32 %v4163, %v3646
        %v4220 = vadd.f32 %v4166, %v3647
        %v4221 = vadd.f32 %v4171, %v3648
        %v4222 = vadd.f32 %v4174, %v3649
        %v4223 = vadd.f32 %v4179, %v3650
        %v4224 = vadd.f32 %v4182, %v3651
        %v4225 = vadd.f32 %v4187, %v3652
        %v4226 = vadd.f32 %v4190, %v3653
        %v4227 = vadd.f32 %v4195, %v3654
        %v4228 = vadd.f32 %v4198, %v3655
        %v4229 = vadd.f32 %v4203, %v3656
        %v4230 = vadd.f32 %v4206, %v3657
        %v4231 = vadd.f32 %v4211, %v3658
        %v4232 = vadd.f32 %v4214, %v3659
        %4233 = vadd.xlane.f32.xlu0 %v4217
        %v4234 = vpop.xlane.xlu0 %4233
        %4235 = vadd.xlane.f32.xlu0 %v4218
        %v4236 = vpop.xlane.xlu0 %4235
        %4237 = vadd.xlane.f32.xlu0 %v4219
        %v4238 = vpop.xlane.xlu0 %4237
        %4239 = vadd.xlane.f32.xlu0 %v4220
        %v4240 = vpop.xlane.xlu0 %4239
        %4241 = vadd.xlane.f32.xlu0 %v4221
        %v4242 = vpop.xlane.xlu0 %4241
        %4243 = vadd.xlane.f32.xlu0 %v4222
        %v4244 = vpop.xlane.xlu0 %4243
        %4245 = vadd.xlane.f32.xlu0 %v4223
        %v4246 = vpop.xlane.xlu0 %4245
        %4247 = vadd.xlane.f32.xlu0 %v4224
        %v4248 = vpop.xlane.xlu0 %4247
        %4249 = vadd.xlane.f32.xlu0 %v4225
        %v4250 = vpop.xlane.xlu0 %4249
        %4251 = vadd.xlane.f32.xlu0 %v4226
        %v4252 = vpop.xlane.xlu0 %4251
        %4253 = vadd.xlane.f32.xlu0 %v4227
        %v4254 = vpop.xlane.xlu0 %4253
        %4255 = vadd.xlane.f32.xlu0 %v4228
        %v4256 = vpop.xlane.xlu0 %4255
        %4257 = vadd.xlane.f32.xlu0 %v4229
        %v4258 = vpop.xlane.xlu0 %4257
        %4259 = vadd.xlane.f32.xlu0 %v4230
        %v4260 = vpop.xlane.xlu0 %4259
        %4261 = vadd.xlane.f32.xlu0 %v4231
        %v4262 = vpop.xlane.xlu0 %4261
        %4263 = vadd.xlane.f32.xlu0 %v4232
        %v4264 = vpop.xlane.xlu0 %4263
        %v4265 = vmul.f32 %v4234, %v908
        %v4266 = vmul.f32 %v4236, %v908
        %v4267 = vmul.f32 %v4238, %v908
        %v4268 = vmul.f32 %v4240, %v908
        %v4269 = vmul.f32 %v4242, %v908
        %v4270 = vmul.f32 %v4244, %v908
        %v4271 = vmul.f32 %v4246, %v908
        %v4272 = vmul.f32 %v4248, %v908
        %v4273 = vmul.f32 %v4250, %v908
        %v4274 = vmul.f32 %v4252, %v908
        %v4275 = vmul.f32 %v4254, %v908
        %v4276 = vmul.f32 %v4256, %v908
        %v4277 = vmul.f32 %v4258, %v908
        %v4278 = vmul.f32 %v4260, %v908
        %v4279 = vmul.f32 %v4262, %v908
        %v4280 = vmul.f32 %v4264, %v908
        %v4281 = vmul.f32 %v4217, %v4217
        %v4282 = vmul.f32 %v4218, %v4218
        %v4283 = vmul.f32 %v4219, %v4219
        %v4284 = vmul.f32 %v4220, %v4220
        %v4285 = vmul.f32 %v4221, %v4221
        %v4286 = vmul.f32 %v4222, %v4222
        %v4287 = vmul.f32 %v4223, %v4223
        %v4288 = vmul.f32 %v4224, %v4224
        %v4289 = vmul.f32 %v4225, %v4225
        %v4290 = vmul.f32 %v4226, %v4226
        %v4291 = vmul.f32 %v4227, %v4227
        %v4292 = vmul.f32 %v4228, %v4228
        %v4293 = vmul.f32 %v4229, %v4229
        %v4294 = vmul.f32 %v4230, %v4230
        %v4295 = vmul.f32 %v4231, %v4231
        %v4296 = vmul.f32 %v4232, %v4232
        %4297 = vadd.xlane.f32.xlu0 %v4281
        %v4298 = vpop.xlane.xlu0 %4297
        %4299 = vadd.xlane.f32.xlu0 %v4282
        %v4300 = vpop.xlane.xlu0 %4299
        %4301 = vadd.xlane.f32.xlu0 %v4283
        %v4302 = vpop.xlane.xlu0 %4301
        %4303 = vadd.xlane.f32.xlu0 %v4284
        %v4304 = vpop.xlane.xlu0 %4303
        %4305 = vadd.xlane.f32.xlu0 %v4285
        %v4306 = vpop.xlane.xlu0 %4305
        %4307 = vadd.xlane.f32.xlu0 %v4286
        %v4308 = vpop.xlane.xlu0 %4307
        %4309 = vadd.xlane.f32.xlu0 %v4287
        %v4310 = vpop.xlane.xlu0 %4309
        %4311 = vadd.xlane.f32.xlu0 %v4288
        %v4312 = vpop.xlane.xlu0 %4311
        %4313 = vadd.xlane.f32.xlu0 %v4289
        %v4314 = vpop.xlane.xlu0 %4313
        %4315 = vadd.xlane.f32.xlu0 %v4290
        %v4316 = vpop.xlane.xlu0 %4315
        %4317 = vadd.xlane.f32.xlu0 %v4291
        %v4318 = vpop.xlane.xlu0 %4317
        %4319 = vadd.xlane.f32.xlu0 %v4292
        %v4320 = vpop.xlane.xlu0 %4319
        %4321 = vadd.xlane.f32.xlu0 %v4293
        %v4322 = vpop.xlane.xlu0 %4321
        %4323 = vadd.xlane.f32.xlu0 %v4294
        %v4324 = vpop.xlane.xlu0 %4323
        %4325 = vadd.xlane.f32.xlu0 %v4295
        %v4326 = vpop.xlane.xlu0 %4325
        %4327 = vadd.xlane.f32.xlu0 %v4296
        %v4328 = vpop.xlane.xlu0 %4327
        %v4329 = vmul.f32 %v4298, %v908
        %v4330 = vmul.f32 %v4300, %v908
        %v4331 = vmul.f32 %v4302, %v908
        %v4332 = vmul.f32 %v4304, %v908
        %v4333 = vmul.f32 %v4306, %v908
        %v4334 = vmul.f32 %v4308, %v908
        %v4335 = vmul.f32 %v4310, %v908
        %v4336 = vmul.f32 %v4312, %v908
        %v4337 = vmul.f32 %v4314, %v908
        %v4338 = vmul.f32 %v4316, %v908
        %v4339 = vmul.f32 %v4318, %v908
        %v4340 = vmul.f32 %v4320, %v908
        %v4341 = vmul.f32 %v4322, %v908
        %v4342 = vmul.f32 %v4324, %v908
        %v4343 = vmul.f32 %v4326, %v908
        %v4344 = vmul.f32 %v4328, %v908
        %v4345 = vmul.f32 %v4265, %v4265
        %v4346 = vmul.f32 %v4266, %v4266
        %v4347 = vmul.f32 %v4267, %v4267
        %v4348 = vmul.f32 %v4268, %v4268
        %v4349 = vmul.f32 %v4269, %v4269
        %v4350 = vmul.f32 %v4270, %v4270
        %v4351 = vmul.f32 %v4271, %v4271
        %v4352 = vmul.f32 %v4272, %v4272
        %v4353 = vmul.f32 %v4273, %v4273
        %v4354 = vmul.f32 %v4274, %v4274
        %v4355 = vmul.f32 %v4275, %v4275
        %v4356 = vmul.f32 %v4276, %v4276
        %v4357 = vmul.f32 %v4277, %v4277
        %v4358 = vmul.f32 %v4278, %v4278
        %v4359 = vmul.f32 %v4279, %v4279
        %v4360 = vmul.f32 %v4280, %v4280
        %v4361 = vsub.f32 %v4329, %v4345
        %v4362 = vsub.f32 %v4330, %v4346
        %v4363 = vsub.f32 %v4331, %v4347
        %v4364 = vsub.f32 %v4332, %v4348
        %v4365 = vsub.f32 %v4333, %v4349
        %v4366 = vsub.f32 %v4334, %v4350
        %v4367 = vsub.f32 %v4335, %v4351
        %v4368 = vsub.f32 %v4336, %v4352
        %v4369 = vsub.f32 %v4337, %v4353
        %v4370 = vsub.f32 %v4338, %v4354
        %v4371 = vsub.f32 %v4339, %v4355
        %v4372 = vsub.f32 %v4340, %v4356
        %v4373 = vsub.f32 %v4341, %v4357
        %v4374 = vsub.f32 %v4342, %v4358
        %v4375 = vsub.f32 %v4343, %v4359
        %v4376 = vsub.f32 %v4344, %v4360
        %v4377 = vmax.f32 %v4361, 0.0
        %v4378 = vmax.f32 %v4362, 0.0
        %v4379 = vmax.f32 %v4363, 0.0
        %v4380 = vmax.f32 %v4364, 0.0
        %v4381 = vmax.f32 %v4365, 0.0
        %v4382 = vmax.f32 %v4366, 0.0
        %v4383 = vmax.f32 %v4367, 0.0
        %v4384 = vmax.f32 %v4368, 0.0
        %v4385 = vmax.f32 %v4369, 0.0
        %v4386 = vmax.f32 %v4370, 0.0
        %v4387 = vmax.f32 %v4371, 0.0
        %v4388 = vmax.f32 %v4372, 0.0
        %v4389 = vmax.f32 %v4373, 0.0
        %v4390 = vmax.f32 %v4374, 0.0
        %v4391 = vmax.f32 %v4375, 0.0
        %v4392 = vmax.f32 %v4376, 0.0
        %v4393 = vsub.f32 %v4217, %v4265
        %v4394 = vsub.f32 %v4218, %v4266
        %v4395 = vsub.f32 %v4219, %v4267
        %v4396 = vsub.f32 %v4220, %v4268
        %v4397 = vsub.f32 %v4221, %v4269
        %v4398 = vsub.f32 %v4222, %v4270
        %v4399 = vsub.f32 %v4223, %v4271
        %v4400 = vsub.f32 %v4224, %v4272
        %v4401 = vsub.f32 %v4225, %v4273
        %v4402 = vsub.f32 %v4226, %v4274
        %v4403 = vsub.f32 %v4227, %v4275
        %v4404 = vsub.f32 %v4228, %v4276
        %v4405 = vsub.f32 %v4229, %v4277
        %v4406 = vsub.f32 %v4230, %v4278
        %v4407 = vsub.f32 %v4231, %v4279
        %v4408 = vsub.f32 %v4232, %v4280
        %v4409 = vadd.f32 %v4377, 1e-05
        %v4410 = vadd.f32 %v4378, 1e-05
        %v4411 = vadd.f32 %v4379, 1e-05
        %v4412 = vadd.f32 %v4380, 1e-05
        %v4413 = vadd.f32 %v4381, 1e-05
        %v4414 = vadd.f32 %v4382, 1e-05
        %v4415 = vadd.f32 %v4383, 1e-05
        %v4416 = vadd.f32 %v4384, 1e-05
        %v4417 = vadd.f32 %v4385, 1e-05
        %v4418 = vadd.f32 %v4386, 1e-05
        %v4419 = vadd.f32 %v4387, 1e-05
        %v4420 = vadd.f32 %v4388, 1e-05
        %v4421 = vadd.f32 %v4389, 1e-05
        %v4422 = vadd.f32 %v4390, 1e-05
        %v4423 = vadd.f32 %v4391, 1e-05
        %v4424 = vadd.f32 %v4392, 1e-05
        %v4425 = vrsqrt.pop %v4409
        %v4426 = vrsqrt.pop %v4410
        %v4427 = vrsqrt.pop %v4411
        %v4428 = vrsqrt.pop %v4412
        %v4429 = vrsqrt.pop %v4413
        %v4430 = vrsqrt.pop %v4414
        %v4431 = vrsqrt.pop %v4415
        %v4432 = vrsqrt.pop %v4416
        %v4433 = vrsqrt.pop %v4417
        %v4434 = vrsqrt.pop %v4418
        %v4435 = vrsqrt.pop %v4419
        %v4436 = vrsqrt.pop %v4420
        %v4437 = vrsqrt.pop %v4421
        %v4438 = vrsqrt.pop %v4422
        %v4439 = vrsqrt.pop %v4423
        %v4440 = vrsqrt.pop %v4424
        %v4441 = vmul.f32 %v4393, %v4425
        %v4442 = vmul.f32 %v4394, %v4426
        %v4443 = vmul.f32 %v4395, %v4427
        %v4444 = vmul.f32 %v4396, %v4428
        %v4445 = vmul.f32 %v4397, %v4429
        %v4446 = vmul.f32 %v4398, %v4430
        %v4447 = vmul.f32 %v4399, %v4431
        %v4448 = vmul.f32 %v4400, %v4432
        %v4449 = vmul.f32 %v4401, %v4433
        %v4450 = vmul.f32 %v4402, %v4434
        %v4451 = vmul.f32 %v4403, %v4435
        %v4452 = vmul.f32 %v4404, %v4436
        %v4453 = vmul.f32 %v4405, %v4437
        %v4454 = vmul.f32 %v4406, %v4438
        %v4455 = vmul.f32 %v4407, %v4439
        %v4456 = vmul.f32 %v4408, %v4440
        %v4457 = vld [vmem:[%s3 + $0x4] sm:$0x1]
        %v4458 = vlaneseq
        %v4459 = vshrl.u32 %v4458, 7
        %v4460 = vsub.s32 0, %v4459
        %v4461 = vrot.slane %v4457, %v4460
        %v4462 = vmul.f32 %v4441, %v4461
        %v4463 = vmul.f32 %v4442, %v4461
        %v4464 = vmul.f32 %v4443, %v4461
        %v4465 = vmul.f32 %v4444, %v4461
        %v4466 = vmul.f32 %v4445, %v4461
        %v4467 = vmul.f32 %v4446, %v4461
        %v4468 = vmul.f32 %v4447, %v4461
        %v4469 = vmul.f32 %v4448, %v4461
        %v4470 = vmul.f32 %v4449, %v4461
        %v4471 = vmul.f32 %v4450, %v4461
        %v4472 = vmul.f32 %v4451, %v4461
        %v4473 = vmul.f32 %v4452, %v4461
        %v4474 = vmul.f32 %v4453, %v4461
        %v4475 = vmul.f32 %v4454, %v4461
        %v4476 = vmul.f32 %v4455, %v4461
        %v4477 = vmul.f32 %v4456, %v4461
        %v4478 = vld [vmem:[#allocation8 + $0x4] sm:$0x1]
        %v4479 = vlaneseq
        %v4480 = vshrl.u32 %v4479, 7
        %v4481 = vsub.s32 0, %v4480
        %v4482 = vrot.slane %v4478, %v4481
        %v4483 = vadd.f32 %v4462, %v4482
        %v4484 = vadd.f32 %v4463, %v4482
        %v4485 = vadd.f32 %v4464, %v4482
        %v4486 = vadd.f32 %v4465, %v4482
        %v4487 = vadd.f32 %v4466, %v4482
        %v4488 = vadd.f32 %v4467, %v4482
        %v4489 = vadd.f32 %v4468, %v4482
        %v4490 = vadd.f32 %v4469, %v4482
        %v4491 = vadd.f32 %v4470, %v4482
        %v4492 = vadd.f32 %v4471, %v4482
        %v4493 = vadd.f32 %v4472, %v4482
        %v4494 = vadd.f32 %v4473, %v4482
        %v4495 = vadd.f32 %v4474, %v4482
        %v4496 = vadd.f32 %v4475, %v4482
        %v4497 = vadd.f32 %v4476, %v4482
        %v4498 = vadd.f32 %v4477, %v4482
        %v4499 = vpack.c.bf16 %v4484, %v4483
        %v4500 = vpack.c.bf16 %v4486, %v4485
        %v4501 = vpack.c.bf16 %v4488, %v4487
        %v4502 = vpack.c.bf16 %v4490, %v4489
        %v4503 = vpack.c.bf16 %v4492, %v4491
        %v4504 = vpack.c.bf16 %v4494, %v4493
        %v4505 = vpack.c.bf16 %v4496, %v4495
        %v4506 = vpack.c.bf16 %v4498, %v4497
        %s4507 = scalar_lea.vmem [#allocation5], 960
        %v4508 = vld [vmem:[%s4507] sm:$0xf]
        %v4509 = vld [vmem:[%s4507 + $0x4] sm:$0xf]
        %v4510 = vld [vmem:[%s4507 + $0x8] sm:$0xf]
        %v4511 = vld [vmem:[%s4507 + $0xc] sm:$0xf]
        %v4512 = vld [vmem:[%s4507 + $0x10] sm:$0xf]
        %v4513 = vld [vmem:[%s4507 + $0x14] sm:$0xf]
        %v4514 = vld [vmem:[%s4507 + $0x18] sm:$0xf]
        %v4515 = vld [vmem:[%s4507 + $0x1c] sm:$0xf]
        %v4516 = vld [vmem:[%s4507 + $0x20] sm:$0xf]
        %v4517 = vld [vmem:[%s4507 + $0x24] sm:$0xf]
        %v4518 = vld [vmem:[%s4507 + $0x28] sm:$0xf]
        %v4519 = vld [vmem:[%s4507 + $0x2c] sm:$0xf]
        %v4520 = vld [vmem:[%s4507 + $0x30] sm:$0xf]
        %v4521 = vld [vmem:[%s4507 + $0x34] sm:$0xf]
        %v4522 = vld [vmem:[%s4507 + $0x38] sm:$0xf]
        %v4523 = vld [vmem:[%s4507 + $0x3c] sm:$0xf]
        %v4524 = vld [vmem:[#allocation7 + $0xf] sm:$0x1]
        %v4525 = vlaneseq
        %v4526 = vshrl.u32 %v4525, 7
        %v4527 = vsub.s32 0, %v4526
        %v4528 = vrot.slane %v4524, %v4527
        %v4545 = vunpack.c.l.b16 %v4508
        %v4546 = vunpack.c.l.b16 %v4509
        %v4547 = vunpack.c.l.b16 %v4510
        %v4548 = vunpack.c.l.b16 %v4511
        %v4549 = vunpack.c.l.b16 %v4512
        %v4550 = vunpack.c.l.b16 %v4513
        %v4551 = vunpack.c.l.b16 %v4514
        %v4552 = vunpack.c.l.b16 %v4515
        %v4553 = vunpack.c.l.b16 %v4516
        %v4554 = vunpack.c.l.b16 %v4517
        %v4555 = vunpack.c.l.b16 %v4518
        %v4556 = vunpack.c.l.b16 %v4519
        %v4557 = vunpack.c.l.b16 %v4520
        %v4558 = vunpack.c.l.b16 %v4521
        %v4559 = vunpack.c.l.b16 %v4522
        %v4560 = vunpack.c.l.b16 %v4523
        %v4561 = vpack.c.b16 %v4546, %v4545
        %v4562 = vpack.c.b16 %v4548, %v4547
        %v4563 = vpack.c.b16 %v4550, %v4549
        %v4564 = vpack.c.b16 %v4552, %v4551
        %v4565 = vpack.c.b16 %v4554, %v4553
        %v4566 = vpack.c.b16 %v4556, %v4555
        %v4567 = vpack.c.b16 %v4558, %v4557
        %v4568 = vpack.c.b16 %v4560, %v4559
        %4577 = vmatprep.subr.bf16.mxu0 0
        %4578 = vmatpush1.bf16.msra.mxu0 %v4561
        %4579 = vmatprep.subr.bf16.mxu0 0
        %4580 = vmatpush1.bf16.msra.mxu0 %v4562
        %4581 = vmatprep.subr.bf16.mxu0 0
        %4582 = vmatpush1.bf16.msra.mxu0 %v4563
        %4583 = vmatprep.subr.bf16.mxu0 0
        %4584 = vmatpush1.bf16.msra.mxu0 %v4564
        %4585 = vmatprep.subr.bf16.mxu0 0
        %4586 = vmatpush1.bf16.msra.mxu0 %v4565
        %4587 = vmatprep.subr.bf16.mxu0 0
        %4588 = vmatpush1.bf16.msra.mxu0 %v4566
        %4589 = vmatprep.subr.bf16.mxu0 0
        %4590 = vmatpush1.bf16.msra.mxu0 %v4567
        %4591 = vmatprep.subr.bf16.mxu0 0
        %4592 = vmatpush1.bf16.msra.mxu0 %v4568
        %4593 = vmatprep.subr.bf16.mxu0 0
        %4594 = vmatpush1.bf16.msra.mxu0 0
        %4595 = vmatprep.subr.bf16.mxu0 0
        %4596 = vmatpush1.bf16.msra.mxu0 0
        %4597 = vmatprep.subr.bf16.mxu0 0
        %4598 = vmatpush1.bf16.msra.mxu0 0
        %4599 = vmatprep.subr.bf16.mxu0 0
        %4600 = vmatpush1.bf16.msra.mxu0 0
        %4601 = vmatprep.subr.bf16.mxu0 0
        %4602 = vmatpush1.bf16.msra.mxu0 0
        %4603 = vmatprep.subr.bf16.mxu0 0
        %4604 = vmatpush1.bf16.msra.mxu0 0
        %4605 = vmatprep.subr.bf16.mxu0 0
        %4606 = vmatpush1.bf16.msra.mxu0 0
        %4607 = vmatprep.subr.bf16.mxu0 0
        %4608 = vmatpush1.bf16.msra.mxu0 0
        %4609 = vmatprep.mubr.bf16.mxu0 0
        %4610 = vmatmul.mubr.bf16.gmra.mrb[0].mxu0 %v4499
        %v4611 = vpop.f32.mrb[0].mxu0
        %v4612 = vadd.f32 %v4528, %v4611
        %v4613 = vpop.f32.mrb[0].mxu0
        %v4614 = vpop.f32.mrb[0].mxu0
        %v4615 = vadd.f32 %v4528, %v4614
        %v4616 = vpop.f32.mrb[0].mxu0
        %4617 = vmatprep.mubr.bf16.mxu0 0
        %4618 = vmatmul.mubr.bf16.gmra.mrb[0].mxu0 %v4500
        %v4619 = vpop.f32.mrb[0].mxu0
        %v4620 = vadd.f32 %v4528, %v4619
        %v4621 = vpop.f32.mrb[0].mxu0
        %v4622 = vpop.f32.mrb[0].mxu0
        %v4623 = vadd.f32 %v4528, %v4622
        %v4624 = vpop.f32.mrb[0].mxu0
        %4625 = vmatprep.mubr.bf16.mxu0 0
        %4626 = vmatmul.mubr.bf16.gmra.mrb[0].mxu0 %v4501
        %v4627 = vpop.f32.mrb[0].mxu0
        %v4628 = vadd.f32 %v4528, %v4627
        %v4629 = vpop.f32.mrb[0].mxu0
        %v4630 = vpop.f32.mrb[0].mxu0
        %v4631 = vadd.f32 %v4528, %v4630
        %v4632 = vpop.f32.mrb[0].mxu0
        %4633 = vmatprep.mubr.bf16.mxu0 0
        %4634 = vmatmul.mubr.bf16.gmra.mrb[0].mxu0 %v4502
        %v4635 = vpop.f32.mrb[0].mxu0
        %v4636 = vadd.f32 %v4528, %v4635
        %v4637 = vpop.f32.mrb[0].mxu0
        %v4638 = vpop.f32.mrb[0].mxu0
        %v4639 = vadd.f32 %v4528, %v4638
        %v4640 = vpop.f32.mrb[0].mxu0
        %4641 = vmatprep.mubr.bf16.mxu0 0
        %4642 = vmatmul.mubr.bf16.gmra.mrb[0].mxu0 %v4503
        %v4643 = vpop.f32.mrb[0].mxu0
        %v4644 = vadd.f32 %v4528, %v4643
        %v4645 = vpop.f32.mrb[0].mxu0
        %v4646 = vpop.f32.mrb[0].mxu0
        %v4647 = vadd.f32 %v4528, %v4646
        %v4648 = vpop.f32.mrb[0].mxu0
        %4649 = vmatprep.mubr.bf16.mxu0 0
        %4650 = vmatmul.mubr.bf16.gmra.mrb[0].mxu0 %v4504
        %v4651 = vpop.f32.mrb[0].mxu0
        %v4652 = vadd.f32 %v4528, %v4651
        %v4653 = vpop.f32.mrb[0].mxu0
        %v4654 = vpop.f32.mrb[0].mxu0
        %v4655 = vadd.f32 %v4528, %v4654
        %v4656 = vpop.f32.mrb[0].mxu0
        %4657 = vmatprep.mubr.bf16.mxu0 0
        %4658 = vmatmul.mubr.bf16.gmra.mrb[0].mxu0 %v4505
        %v4659 = vpop.f32.mrb[0].mxu0
        %v4660 = vadd.f32 %v4528, %v4659
        %v4661 = vpop.f32.mrb[0].mxu0
        %v4662 = vpop.f32.mrb[0].mxu0
        %v4663 = vadd.f32 %v4528, %v4662
        %v4664 = vpop.f32.mrb[0].mxu0
        %4665 = vmatprep.mubr.bf16.mxu0 0
        %4666 = vmatmul.mubr.bf16.gmra.mrb[0].mxu0 %v4506
        %v4667 = vpop.f32.mrb[0].mxu0
        %v4668 = vadd.f32 %v4528, %v4667
        %v4669 = vpop.f32.mrb[0].mxu0
        %v4670 = vpop.f32.mrb[0].mxu0
        %v4671 = vadd.f32 %v4528, %v4670
        %v4672 = vpop.f32.mrb[0].mxu0
        %4673 = vdwg.mxu0
        %v4674 = vmax.f32 %v4612, 0.0
        %v4675 = vmax.f32 %v4615, 0.0
        %v4676 = vmax.f32 %v4620, 0.0
        %v4677 = vmax.f32 %v4623, 0.0
        %v4678 = vmax.f32 %v4628, 0.0
        %v4679 = vmax.f32 %v4631, 0.0
        %v4680 = vmax.f32 %v4636, 0.0
        %v4681 = vmax.f32 %v4639, 0.0
        %v4682 = vmax.f32 %v4644, 0.0
        %v4683 = vmax.f32 %v4647, 0.0
        %v4684 = vmax.f32 %v4652, 0.0
        %v4685 = vmax.f32 %v4655, 0.0
        %v4686 = vmax.f32 %v4660, 0.0
        %v4687 = vmax.f32 %v4663, 0.0
        %v4688 = vmax.f32 %v4668, 0.0
        %v4689 = vmax.f32 %v4671, 0.0
        %v4690 = vpack.c.bf16 %v4675, %v4674
        %v4691 = vpack.c.bf16 %v4677, %v4676
        %v4692 = vpack.c.bf16 %v4679, %v4678
        %v4693 = vpack.c.bf16 %v4681, %v4680
        %v4694 = vpack.c.bf16 %v4683, %v4682
        %v4695 = vpack.c.bf16 %v4685, %v4684
        %v4696 = vpack.c.bf16 %v4687, %v4686
        %v4697 = vpack.c.bf16 %v4689, %v4688
        %s4698 = scalar_lea.vmem [#allocation5], 1024
        %v4699 = vld [vmem:[%s4698] sm:$0xf]
        %v4700 = vld [vmem:[%s4698 + $0x4] sm:$0xf]
        %v4701 = vld [vmem:[%s4698 + $0x8] sm:$0xf]
        %v4702 = vld [vmem:[%s4698 + $0xc] sm:$0xf]
        %v4703 = vld [vmem:[%s4698 + $0x10] sm:$0xf]
        %v4704 = vld [vmem:[%s4698 + $0x14] sm:$0xf]
        %v4705 = vld [vmem:[%s4698 + $0x18] sm:$0xf]
        %v4706 = vld [vmem:[%s4698 + $0x1c] sm:$0xf]
        %v4707 = vld [vmem:[%s4698 + $0x20] sm:$0xf]
        %v4708 = vld [vmem:[%s4698 + $0x24] sm:$0xf]
        %v4709 = vld [vmem:[%s4698 + $0x28] sm:$0xf]
        %v4710 = vld [vmem:[%s4698 + $0x2c] sm:$0xf]
        %v4711 = vld [vmem:[%s4698 + $0x30] sm:$0xf]
        %v4712 = vld [vmem:[%s4698 + $0x34] sm:$0xf]
        %v4713 = vld [vmem:[%s4698 + $0x38] sm:$0xf]
        %v4714 = vld [vmem:[%s4698 + $0x3c] sm:$0xf]
        %v4715 = vld [vmem:[#allocation7 + $0x10] sm:$0x1]
        %v4716 = vlaneseq
        %v4717 = vshrl.u32 %v4716, 7
        %v4718 = vsub.s32 0, %v4717
        %v4719 = vrot.slane %v4715, %v4718
        %v4736 = vunpack.c.l.b16 %v4699
        %v4737 = vunpack.c.l.b16 %v4700
        %v4738 = vunpack.c.l.b16 %v4701
        %v4739 = vunpack.c.l.b16 %v4702
        %v4740 = vunpack.c.l.b16 %v4703
        %v4741 = vunpack.c.l.b16 %v4704
        %v4742 = vunpack.c.l.b16 %v4705
        %v4743 = vunpack.c.l.b16 %v4706
        %v4744 = vunpack.c.l.b16 %v4707
        %v4745 = vunpack.c.l.b16 %v4708
        %v4746 = vunpack.c.l.b16 %v4709
        %v4747 = vunpack.c.l.b16 %v4710
        %v4748 = vunpack.c.l.b16 %v4711
        %v4749 = vunpack.c.l.b16 %v4712
        %v4750 = vunpack.c.l.b16 %v4713
        %v4751 = vunpack.c.l.b16 %v4714
        %v4752 = vpack.c.b16 %v4737, %v4736
        %v4753 = vpack.c.b16 %v4739, %v4738
        %v4754 = vpack.c.b16 %v4741, %v4740
        %v4755 = vpack.c.b16 %v4743, %v4742
        %v4756 = vpack.c.b16 %v4745, %v4744
        %v4757 = vpack.c.b16 %v4747, %v4746
        %v4758 = vpack.c.b16 %v4749, %v4748
        %v4759 = vpack.c.b16 %v4751, %v4750
        %4768 = vmatprep.subr.bf16.mxu0 0
        %4769 = vmatpush1.bf16.msra.mxu0 %v4752
        %4770 = vmatprep.subr.bf16.mxu0 0
        %4771 = vmatpush1.bf16.msra.mxu0 %v4753
        %4772 = vmatprep.subr.bf16.mxu0 0
        %4773 = vmatpush1.bf16.msra.mxu0 %v4754
        %4774 = vmatprep.subr.bf16.mxu0 0
        %4775 = vmatpush1.bf16.msra.mxu0 %v4755
        %4776 = vmatprep.subr.bf16.mxu0 0
        %4777 = vmatpush1.bf16.msra.mxu0 %v4756
        %4778 = vmatprep.subr.bf16.mxu0 0
        %4779 = vmatpush1.bf16.msra.mxu0 %v4757
        %4780 = vmatprep.subr.bf16.mxu0 0
        %4781 = vmatpush1.bf16.msra.mxu0 %v4758
        %4782 = vmatprep.subr.bf16.mxu0 0
        %4783 = vmatpush1.bf16.msra.mxu0 %v4759
        %4784 = vmatprep.subr.bf16.mxu0 0
        %4785 = vmatpush1.bf16.msra.mxu0 0
        %4786 = vmatprep.subr.bf16.mxu0 0
        %4787 = vmatpush1.bf16.msra.mxu0 0
        %4788 = vmatprep.subr.bf16.mxu0 0
        %4789 = vmatpush1.bf16.msra.mxu0 0
        %4790 = vmatprep.subr.bf16.mxu0 0
        %4791 = vmatpush1.bf16.msra.mxu0 0
        %4792 = vmatprep.subr.bf16.mxu0 0
        %4793 = vmatpush1.bf16.msra.mxu0 0
        %4794 = vmatprep.subr.bf16.mxu0 0
        %4795 = vmatpush1.bf16.msra.mxu0 0
        %4796 = vmatprep.subr.bf16.mxu0 0
        %4797 = vmatpush1.bf16.msra.mxu0 0
        %4798 = vmatprep.subr.bf16.mxu0 0
        %4799 = vmatpush1.bf16.msra.mxu0 0
        %4800 = vmatprep.mubr.bf16.mxu0 0
        %4801 = vmatmul.mubr.bf16.gmra.mrb[0].mxu0 %v4690
        %v4802 = vpop.f32.mrb[0].mxu0
        %v4803 = vadd.f32 %v4719, %v4802
        %v4804 = vpop.f32.mrb[0].mxu0
        %v4805 = vpop.f32.mrb[0].mxu0
        %v4806 = vadd.f32 %v4719, %v4805
        %v4807 = vpop.f32.mrb[0].mxu0
        %4808 = vmatprep.mubr.bf16.mxu0 0
        %4809 = vmatmul.mubr.bf16.gmra.mrb[0].mxu0 %v4691
        %v4810 = vpop.f32.mrb[0].mxu0
        %v4811 = vadd.f32 %v4719, %v4810
        %v4812 = vpop.f32.mrb[0].mxu0
        %v4813 = vpop.f32.mrb[0].mxu0
        %v4814 = vadd.f32 %v4719, %v4813
        %v4815 = vpop.f32.mrb[0].mxu0
        %4816 = vmatprep.mubr.bf16.mxu0 0
        %4817 = vmatmul.mubr.bf16.gmra.mrb[0].mxu0 %v4692
        %v4818 = vpop.f32.mrb[0].mxu0
        %v4819 = vadd.f32 %v4719, %v4818
        %v4820 = vpop.f32.mrb[0].mxu0
        %v4821 = vpop.f32.mrb[0].mxu0
        %v4822 = vadd.f32 %v4719, %v4821
        %v4823 = vpop.f32.mrb[0].mxu0
        %4824 = vmatprep.mubr.bf16.mxu0 0
        %4825 = vmatmul.mubr.bf16.gmra.mrb[0].mxu0 %v4693
        %v4826 = vpop.f32.mrb[0].mxu0
        %v4827 = vadd.f32 %v4719, %v4826
        %v4828 = vpop.f32.mrb[0].mxu0
        %v4829 = vpop.f32.mrb[0].mxu0
        %v4830 = vadd.f32 %v4719, %v4829
        %v4831 = vpop.f32.mrb[0].mxu0
        %4832 = vmatprep.mubr.bf16.mxu0 0
        %4833 = vmatmul.mubr.bf16.gmra.mrb[0].mxu0 %v4694
        %v4834 = vpop.f32.mrb[0].mxu0
        %v4835 = vadd.f32 %v4719, %v4834
        %v4836 = vpop.f32.mrb[0].mxu0
        %v4837 = vpop.f32.mrb[0].mxu0
        %v4838 = vadd.f32 %v4719, %v4837
        %v4839 = vpop.f32.mrb[0].mxu0
        %4840 = vmatprep.mubr.bf16.mxu0 0
        %4841 = vmatmul.mubr.bf16.gmra.mrb[0].mxu0 %v4695
        %v4842 = vpop.f32.mrb[0].mxu0
        %v4843 = vadd.f32 %v4719, %v4842
        %v4844 = vpop.f32.mrb[0].mxu0
        %v4845 = vpop.f32.mrb[0].mxu0
        %v4846 = vadd.f32 %v4719, %v4845
        %v4847 = vpop.f32.mrb[0].mxu0
        %4848 = vmatprep.mubr.bf16.mxu0 0
        %4849 = vmatmul.mubr.bf16.gmra.mrb[0].mxu0 %v4696
        %v4850 = vpop.f32.mrb[0].mxu0
        %v4851 = vadd.f32 %v4719, %v4850
        %v4852 = vpop.f32.mrb[0].mxu0
        %v4853 = vpop.f32.mrb[0].mxu0
        %v4854 = vadd.f32 %v4719, %v4853
        %v4855 = vpop.f32.mrb[0].mxu0
        %4856 = vmatprep.mubr.bf16.mxu0 0
        %4857 = vmatmul.mubr.bf16.gmra.mrb[0].mxu0 %v4697
        %v4858 = vpop.f32.mrb[0].mxu0
        %v4859 = vadd.f32 %v4719, %v4858
        %v4860 = vpop.f32.mrb[0].mxu0
        %v4861 = vpop.f32.mrb[0].mxu0
        %v4862 = vadd.f32 %v4719, %v4861
        %v4863 = vpop.f32.mrb[0].mxu0
        %4864 = vdwg.mxu0
        %v4865 = vmax.f32 %v4803, 0.0
        %v4866 = vmax.f32 %v4806, 0.0
        %v4867 = vmax.f32 %v4811, 0.0
        %v4868 = vmax.f32 %v4814, 0.0
        %v4869 = vmax.f32 %v4819, 0.0
        %v4870 = vmax.f32 %v4822, 0.0
        %v4871 = vmax.f32 %v4827, 0.0
        %v4872 = vmax.f32 %v4830, 0.0
        %v4873 = vmax.f32 %v4835, 0.0
        %v4874 = vmax.f32 %v4838, 0.0
        %v4875 = vmax.f32 %v4843, 0.0
        %v4876 = vmax.f32 %v4846, 0.0
        %v4877 = vmax.f32 %v4851, 0.0
        %v4878 = vmax.f32 %v4854, 0.0
        %v4879 = vmax.f32 %v4859, 0.0
        %v4880 = vmax.f32 %v4862, 0.0
        %v4881 = vpack.c.bf16 %v4866, %v4865
        %v4882 = vpack.c.bf16 %v4868, %v4867
        %v4883 = vpack.c.bf16 %v4870, %v4869
        %v4884 = vpack.c.bf16 %v4872, %v4871
        %v4885 = vpack.c.bf16 %v4874, %v4873
        %v4886 = vpack.c.bf16 %v4876, %v4875
        %v4887 = vpack.c.bf16 %v4878, %v4877
        %v4888 = vpack.c.bf16 %v4880, %v4879
        %s4889 = scalar_lea.vmem [#allocation5], 1088
        %v4890 = vld [vmem:[%s4889] sm:$0xf]
        %v4891 = vld [vmem:[%s4889 + $0x4] sm:$0xf]
        %v4892 = vld [vmem:[%s4889 + $0x8] sm:$0xf]
        %v4893 = vld [vmem:[%s4889 + $0xc] sm:$0xf]
        %v4894 = vld [vmem:[%s4889 + $0x10] sm:$0xf]
        %v4895 = vld [vmem:[%s4889 + $0x14] sm:$0xf]
        %v4896 = vld [vmem:[%s4889 + $0x18] sm:$0xf]
        %v4897 = vld [vmem:[%s4889 + $0x1c] sm:$0xf]
        %v4898 = vld [vmem:[%s4889 + $0x20] sm:$0xf]
        %v4899 = vld [vmem:[%s4889 + $0x24] sm:$0xf]
        %v4900 = vld [vmem:[%s4889 + $0x28] sm:$0xf]
        %v4901 = vld [vmem:[%s4889 + $0x2c] sm:$0xf]
        %v4902 = vld [vmem:[%s4889 + $0x30] sm:$0xf]
        %v4903 = vld [vmem:[%s4889 + $0x34] sm:$0xf]
        %v4904 = vld [vmem:[%s4889 + $0x38] sm:$0xf]
        %v4905 = vld [vmem:[%s4889 + $0x3c] sm:$0xf]
        %v4906 = vld [vmem:[#allocation7 + $0x11] sm:$0x1]
        %v4907 = vlaneseq
        %v4908 = vshrl.u32 %v4907, 7
        %v4909 = vsub.s32 0, %v4908
        %v4910 = vrot.slane %v4906, %v4909
        %v4927 = vunpack.c.l.b16 %v4890
        %v4928 = vunpack.c.l.b16 %v4891
        %v4929 = vunpack.c.l.b16 %v4892
        %v4930 = vunpack.c.l.b16 %v4893
        %v4931 = vunpack.c.l.b16 %v4894
        %v4932 = vunpack.c.l.b16 %v4895
        %v4933 = vunpack.c.l.b16 %v4896
        %v4934 = vunpack.c.l.b16 %v4897
        %v4935 = vunpack.c.l.b16 %v4898
        %v4936 = vunpack.c.l.b16 %v4899
        %v4937 = vunpack.c.l.b16 %v4900
        %v4938 = vunpack.c.l.b16 %v4901
        %v4939 = vunpack.c.l.b16 %v4902
        %v4940 = vunpack.c.l.b16 %v4903
        %v4941 = vunpack.c.l.b16 %v4904
        %v4942 = vunpack.c.l.b16 %v4905
        %v4943 = vpack.c.b16 %v4928, %v4927
        %v4944 = vpack.c.b16 %v4930, %v4929
        %v4945 = vpack.c.b16 %v4932, %v4931
        %v4946 = vpack.c.b16 %v4934, %v4933
        %v4947 = vpack.c.b16 %v4936, %v4935
        %v4948 = vpack.c.b16 %v4938, %v4937
        %v4949 = vpack.c.b16 %v4940, %v4939
        %v4950 = vpack.c.b16 %v4942, %v4941
        %4959 = vmatprep.subr.bf16.mxu0 0
        %4960 = vmatpush1.bf16.msra.mxu0 %v4943
        %4961 = vmatprep.subr.bf16.mxu0 0
        %4962 = vmatpush1.bf16.msra.mxu0 %v4944
        %4963 = vmatprep.subr.bf16.mxu0 0
        %4964 = vmatpush1.bf16.msra.mxu0 %v4945
        %4965 = vmatprep.subr.bf16.mxu0 0
        %4966 = vmatpush1.bf16.msra.mxu0 %v4946
        %4967 = vmatprep.subr.bf16.mxu0 0
        %4968 = vmatpush1.bf16.msra.mxu0 %v4947
        %4969 = vmatprep.subr.bf16.mxu0 0
        %4970 = vmatpush1.bf16.msra.mxu0 %v4948
        %4971 = vmatprep.subr.bf16.mxu0 0
        %4972 = vmatpush1.bf16.msra.mxu0 %v4949
        %4973 = vmatprep.subr.bf16.mxu0 0
        %4974 = vmatpush1.bf16.msra.mxu0 %v4950
        %4975 = vmatprep.subr.bf16.mxu0 0
        %4976 = vmatpush1.bf16.msra.mxu0 0
        %4977 = vmatprep.subr.bf16.mxu0 0
        %4978 = vmatpush1.bf16.msra.mxu0 0
        %4979 = vmatprep.subr.bf16.mxu0 0
        %4980 = vmatpush1.bf16.msra.mxu0 0
        %4981 = vmatprep.subr.bf16.mxu0 0
        %4982 = vmatpush1.bf16.msra.mxu0 0
        %4983 = vmatprep.subr.bf16.mxu0 0
        %4984 = vmatpush1.bf16.msra.mxu0 0
        %4985 = vmatprep.subr.bf16.mxu0 0
        %4986 = vmatpush1.bf16.msra.mxu0 0
        %4987 = vmatprep.subr.bf16.mxu0 0
        %4988 = vmatpush1.bf16.msra.mxu0 0
        %4989 = vmatprep.subr.bf16.mxu0 0
        %4990 = vmatpush1.bf16.msra.mxu0 0
        %4991 = vmatprep.mubr.bf16.mxu0 0
        %4992 = vmatmul.mubr.bf16.gmra.mrb[0].mxu0 %v4881
        %v4993 = vpop.f32.mrb[0].mxu0
        %v4994 = vadd.f32 %v4910, %v4993
        %v4995 = vpop.f32.mrb[0].mxu0
        %v4996 = vpop.f32.mrb[0].mxu0
        %v4997 = vadd.f32 %v4910, %v4996
        %v4998 = vpop.f32.mrb[0].mxu0
        %4999 = vmatprep.mubr.bf16.mxu0 0
        %5000 = vmatmul.mubr.bf16.gmra.mrb[0].mxu0 %v4882
        %v5001 = vpop.f32.mrb[0].mxu0
        %v5002 = vadd.f32 %v4910, %v5001
        %v5003 = vpop.f32.mrb[0].mxu0
        %v5004 = vpop.f32.mrb[0].mxu0
        %v5005 = vadd.f32 %v4910, %v5004
        %v5006 = vpop.f32.mrb[0].mxu0
        %5007 = vmatprep.mubr.bf16.mxu0 0
        %5008 = vmatmul.mubr.bf16.gmra.mrb[0].mxu0 %v4883
        %v5009 = vpop.f32.mrb[0].mxu0
        %v5010 = vadd.f32 %v4910, %v5009
        %v5011 = vpop.f32.mrb[0].mxu0
        %v5012 = vpop.f32.mrb[0].mxu0
        %v5013 = vadd.f32 %v4910, %v5012
        %v5014 = vpop.f32.mrb[0].mxu0
        %5015 = vmatprep.mubr.bf16.mxu0 0
        %5016 = vmatmul.mubr.bf16.gmra.mrb[0].mxu0 %v4884
        %v5017 = vpop.f32.mrb[0].mxu0
        %v5018 = vadd.f32 %v4910, %v5017
        %v5019 = vpop.f32.mrb[0].mxu0
        %v5020 = vpop.f32.mrb[0].mxu0
        %v5021 = vadd.f32 %v4910, %v5020
        %v5022 = vpop.f32.mrb[0].mxu0
        %5023 = vmatprep.mubr.bf16.mxu0 0
        %5024 = vmatmul.mubr.bf16.gmra.mrb[0].mxu0 %v4885
        %v5025 = vpop.f32.mrb[0].mxu0
        %v5026 = vadd.f32 %v4910, %v5025
        %v5027 = vpop.f32.mrb[0].mxu0
        %v5028 = vpop.f32.mrb[0].mxu0
        %v5029 = vadd.f32 %v4910, %v5028
        %v5030 = vpop.f32.mrb[0].mxu0
        %5031 = vmatprep.mubr.bf16.mxu0 0
        %5032 = vmatmul.mubr.bf16.gmra.mrb[0].mxu0 %v4886
        %v5033 = vpop.f32.mrb[0].mxu0
        %v5034 = vadd.f32 %v4910, %v5033
        %v5035 = vpop.f32.mrb[0].mxu0
        %v5036 = vpop.f32.mrb[0].mxu0
        %v5037 = vadd.f32 %v4910, %v5036
        %v5038 = vpop.f32.mrb[0].mxu0
        %5039 = vmatprep.mubr.bf16.mxu0 0
        %5040 = vmatmul.mubr.bf16.gmra.mrb[0].mxu0 %v4887
        %v5041 = vpop.f32.mrb[0].mxu0
        %v5042 = vadd.f32 %v4910, %v5041
        %v5043 = vpop.f32.mrb[0].mxu0
        %v5044 = vpop.f32.mrb[0].mxu0
        %v5045 = vadd.f32 %v4910, %v5044
        %v5046 = vpop.f32.mrb[0].mxu0
        %5047 = vmatprep.mubr.bf16.mxu0 0
        %5048 = vmatmul.mubr.bf16.gmra.mrb[0].mxu0 %v4888
        %v5049 = vpop.f32.mrb[0].mxu0
        %v5050 = vadd.f32 %v4910, %v5049
        %v5051 = vpop.f32.mrb[0].mxu0
        %v5052 = vpop.f32.mrb[0].mxu0
        %v5053 = vadd.f32 %v4910, %v5052
        %v5054 = vpop.f32.mrb[0].mxu0
        %5055 = vdwg.mxu0
        %v5056 = vadd.f32 %v4994, %v4483
        %v5057 = vadd.f32 %v4997, %v4484
        %v5058 = vadd.f32 %v5002, %v4485
        %v5059 = vadd.f32 %v5005, %v4486
        %v5060 = vadd.f32 %v5010, %v4487
        %v5061 = vadd.f32 %v5013, %v4488
        %v5062 = vadd.f32 %v5018, %v4489
        %v5063 = vadd.f32 %v5021, %v4490
        %v5064 = vadd.f32 %v5026, %v4491
        %v5065 = vadd.f32 %v5029, %v4492
        %v5066 = vadd.f32 %v5034, %v4493
        %v5067 = vadd.f32 %v5037, %v4494
        %v5068 = vadd.f32 %v5042, %v4495
        %v5069 = vadd.f32 %v5045, %v4496
        %v5070 = vadd.f32 %v5050, %v4497
        %v5071 = vadd.f32 %v5053, %v4498
        %5072 = vst [vmem:[%s284] sm:$0xff] %v5056
        %5073 = vst [vmem:[%s284 + $0x8] sm:$0xff] %v5057
        %5074 = vst [vmem:[%s284 + $0x10] sm:$0xff] %v5058
        %5075 = vst [vmem:[%s284 + $0x18] sm:$0xff] %v5059
        %5076 = vst [vmem:[%s284 + $0x20] sm:$0xff] %v5060
        %5077 = vst [vmem:[%s284 + $0x28] sm:$0xff] %v5061
        %5078 = vst [vmem:[%s284 + $0x30] sm:$0xff] %v5062
        %5079 = vst [vmem:[%s284 + $0x38] sm:$0xff] %v5063
        %5080 = vst [vmem:[%s284 + $0x40] sm:$0xff] %v5064
        %5081 = vst [vmem:[%s284 + $0x48] sm:$0xff] %v5065
        %5082 = vst [vmem:[%s284 + $0x50] sm:$0xff] %v5066
        %5083 = vst [vmem:[%s284 + $0x58] sm:$0xff] %v5067
        %5084 = vst [vmem:[%s284 + $0x60] sm:$0xff] %v5068
        %5085 = vst [vmem:[%s284 + $0x68] sm:$0xff] %v5069
        %5086 = vst [vmem:[%s284 + $0x70] sm:$0xff] %v5070
        %5087 = vst [vmem:[%s284 + $0x78] sm:$0xff] %v5071
        %s5088 = sand.u32 %s142, 1
        %s5089 = scalar_lea.sflag [#allocation4], %s5088
        %s5090 = sand.u32 %s142, 1
        %s5091 = smul.addr %s5090, 128
        %s5092 = scalar_lea.vmem [#allocation10], %s5091
        // Predicated region
        $region57: #{tpu_custom_call.1} parent=39 // pred_check
          %p5093 = pneg %p152
        $region58: #{tpu_custom_call.1} parent=39 // pred_check_branch
          %5095 = sbr.rel (%p5093) target = $region60
        $region59: #{tpu_custom_call.1} parent=39 // pred_region
          %s5096 = smul.u32 16, %s24
          %s5098 = ssub.s32 2048, 2048
          %5099 = vsyncadd %s5089, %s5098
          %s5100 = smul.addr %s5096, 128
          %s5101 = scalar_lea.hbm %s5, %s5100
          %s5102 = sshll.u32 %s5092, 4
          %s5103 = int_to_ptr.vmem [resolvable:$true] %s5102
          %5108 = dma.vmem_to_hbm [thread:$0]  %s5103, 2048, %s5101, %s5089, 128, 128, 8
        $region60: #{tpu_custom_call.1} parent=39 // pred_fallthru
          _
      $region40: #{tpu_custom_call.1} parent=5 // pred_fallthru
        _
      %p5109 = scmp.le.s32.totalorder 2, %s19
      // Predicated region
      $region61: #{tpu_custom_call.1} parent=5 // pred_check
        %p5110 = pneg %p5109
      $region62: #{tpu_custom_call.1} parent=5 // pred_check_branch
        %5112 = sbr.rel (%p5110) target = $region64
      $region63: #{tpu_custom_call.1} parent=5 // pred_region
        %s5113 = ssub.s32 %s19, 2
        // Predicated region
        $region65: #{tpu_custom_call.1} parent=63 // pred_check
          %p5114 = pneg %p158
        $region66: #{tpu_custom_call.1} parent=63 // pred_check_branch
          %5116 = sbr.rel (%p5114) target = $region68
        $region67: #{tpu_custom_call.1} parent=63 // pred_region
          %s5117 = sand.u32 %s143, 1
          %s5118 = scalar_lea.sflag [#allocation4], %s5117
          %s5119 = sand.u32 %s143, 1
          %s5120 = smul.addr %s5119, 128
          %s5121 = scalar_lea.vmem [#allocation10], %s5120
          %5122 = dma.done %s5118, 2048
        $region68: #{tpu_custom_call.1} parent=63 // pred_fallthru
          _
      $region64: #{tpu_custom_call.1} parent=5 // pred_fallthru
        _
    $region6: #{tpu_custom_call.1} parent=1 // loop_footer
      %s23 = sadd.s32 1, %s19
    $region7: #{tpu_custom_call.1} parent=1 // loop_footer_branch
      %18 = sbr.rel target = $region3
    $region8: #{tpu_custom_call.1} parent=1 // loop_exit
      _
    %5123 = vsyncpa [#allocation3], 1
    %s5124 = scalar_lea.sflag [#allocation3], 1
    %5125 = vsyncpa %s5124, 1
    %5126 = vsyncpa [#allocation6], 1
    %5127 = vsyncpa [#allocation9], 1
    %5128 = vsyncpa [#allocation4], 1
    %s5129 = scalar_lea.sflag [#allocation4], 1
    %5130 = vsyncpa %s5129, 1

</llo_original>
